<compile_context>
chip_gen: v7x
topology: tpu7x:2x2x1
jax: 0.10.0
libtpu: 0.0.40
codegen_flags: <defaults>
</compile_context>

<pallas_src>
import jax
import jax.numpy as jnp
from jax.experimental import pallas as pl
from jax.experimental.pallas import tpu as pltpu

IMG_DIM = 28 * 28        # 784
EMB_DIM = 10             # digit_embedding_size
LATENT_DIM = 20
HIDDEN = 512
STAT_PAD = 128           # packed mu|log_var lane width
LV_OFF = 64              # log_var occupies lanes [64, 84) of the packed stats
NUM_CLASSES = 10
CLASS_PAD = 128          # one-hot lane width (classes padded 10 -> 128)
BLOCK_B = 256            # batch rows per grid step


def _cvae_kernel(
    x_ref,      # (Bt, 784)  bf16  flattened image (stream)
    cond_ref,   # (Bt, 1)    int32 class label (stream)
    eps_ref,    # (Bt, 128)  f32   N(0,1) noise, zero-padded past lane 20 (stream)
    w1x_ref,    # (784, 512) bf16  fc1 image-part weight (resident)
    ctab_ref,   # (128,1024) bf16  per-class bias table [fc1 bias | fc3 bias] (resident)
    wst_ref,    # (512, 128) bf16  fused fc21|fc22 weight (resident)
    bst_ref,    # (1, 128)   f32   fused fc21|fc22 bias (resident)
    w3z_ref,    # (128, 512) bf16  fc3 latent-part weight, zero rows past 20 (resident)
    w4_ref,     # (512, 784) bf16  fc4 weight (resident)
    b4_ref,     # (1, 784)   f32   fc4 bias (resident)
    recon_ref,  # out: (Bt, 784) f32
    stats_ref,  # out: (Bt, 128) f32  (mu in [0,20), log_var in [64,84))
):
    f32 = jnp.float32
    bf16 = jnp.bfloat16
    bt = x_ref.shape[0]

    # ---- in-kernel condition-bias gather via one-hot MXU matmul ----
    lane = jax.lax.broadcasted_iota(jnp.int32, (bt, CLASS_PAD), 1)
    onehot = jnp.where(lane == cond_ref[...], 1.0, 0.0).astype(bf16)     # (Bt, 128)
    cbias = jnp.dot(onehot, ctab_ref[...], preferred_element_type=f32)   # (Bt, 1024)
    cb1 = cbias[:, :HIDDEN]                                              # fc1 cond bias
    cb3 = cbias[:, HIDDEN:]                                              # fc3 cond bias

    # ---- encode: h1 = relu(x @ W1x + (emb @ W1c + b1)) ----
    h1 = jnp.dot(x_ref[...], w1x_ref[...], preferred_element_type=f32)
    h1 = jnp.maximum(h1 + cb1, 0.0)                                      # (Bt, 512) f32

    # ---- fused fc21|fc22 -> packed, lane-dense stats output ----
    stats = jnp.dot(h1.astype(bf16), wst_ref[...], preferred_element_type=f32)
    stats = stats + bst_ref[...]
    stats_ref[...] = stats

    # ---- reparameterize in packed lane space ----
    # shift=64 on a 128-lane axis is its own inverse, so rotate direction is moot.
    lv_rolled = pltpu.roll(stats, shift=LV_OFF, axis=1)
    # Mask junk lanes (>= LATENT_DIM): they hold mu; exp(0.5*mu) could overflow and
    # 0 * inf would otherwise produce NaN that 0-weights cannot remove.
    lv_rolled = jnp.where(lane < LATENT_DIM, lv_rolled, 0.0)
    z_packed = stats + eps_ref[...] * jnp.exp(0.5 * lv_rolled)           # lanes [0,20) = z

    # ---- decode: rows [20,128) of w3z are zero, so packed junk lanes contribute 0 ----
    h3 = jnp.dot(z_packed.astype(bf16), w3z_ref[...], preferred_element_type=f32)
    h3 = jnp.maximum(h3 + cb3, 0.0)                                      # (Bt, 512) f32

    logits = jnp.dot(h3.astype(bf16), w4_ref[...], preferred_element_type=f32)
    # TODO(synk): on v6e/v7x a bf16 sigmoid would halve EUP cost; kept f32 so the
    # returned recon matches the module's f32 output (and stays exact on v5e).
    recon_ref[...] = jax.nn.sigmoid(logits + b4_ref[...])                # (Bt, 784)


def prepare_kernel_params(p):
    """Build fused / padded / bf16 kernel-side weights from canonical f32 params."""
    bf16 = jnp.bfloat16
    w1x = p["w1x"].astype(bf16)                                          # (784, 512)

    w_stats = jnp.zeros((HIDDEN, STAT_PAD), jnp.float32)
    w_stats = w_stats.at[:, :LATENT_DIM].set(p["w21"])
    w_stats = w_stats.at[:, LV_OFF:LV_OFF + LATENT_DIM].set(p["w22"])
    b_stats = jnp.zeros((1, STAT_PAD), jnp.float32)
    b_stats = b_stats.at[0, :LATENT_DIM].set(p["b21"])
    b_stats = b_stats.at[0, LV_OFF:LV_OFF + LATENT_DIM].set(p["b22"])

    w3z = jnp.pad(p["w3z"], ((0, STAT_PAD - LATENT_DIM), (0, 0))).astype(bf16)
    w4 = p["w4"].astype(bf16)                                            # (512, 784)
    b4 = p["b4"].reshape(1, IMG_DIM)

    # Condition path folded into one per-class bias table: [emb@W1c+b1 | emb@W3c+b3],
    # zero-padded to 128 classes, stored bf16 (gathered exactly by the one-hot matmul).
    cb1 = p["emb_table"] @ p["w1c"] + p["b1"]                            # (10, 512)
    cb3 = p["emb_table"] @ p["w3c"] + p["b3"]                            # (10, 512)
    ctab = jnp.zeros((CLASS_PAD, 2 * HIDDEN), jnp.float32)
    ctab = ctab.at[:NUM_CLASSES, :HIDDEN].set(cb1)
    ctab = ctab.at[:NUM_CLASSES, HIDDEN:].set(cb3)

    return {
        "w1x": w1x,
        "cond_table": ctab.astype(bf16),
        "w_stats": w_stats.astype(bf16),
        "b_stats": b_stats,
        "w3z": w3z,
        "w4": w4,
        "b4": b4,
    }


def cvae_forward(x, condition, kparams, eps, *, block_b=BLOCK_B):
    """x: (B, 784) f32, condition: (B,) int32, eps: (B, 20) f32."""
    B = x.shape[0]

    # Glue: bf16 cast of x (halves the largest streamed input), tiny eps lane pad,
    # and the condition labels reshaped to a (B,1) int32 column. No image-dim pad.
    x_bf = x.astype(jnp.bfloat16)                                        # (B, 784)
    cond = condition.astype(jnp.int32).reshape(B, 1)
    eps_pad = jnp.pad(eps, ((0, 0), (0, STAT_PAD - LATENT_DIM)))         # (B, 128)

    # Pad batch to a multiple of the block.
    n_blocks = pl.cdiv(B, block_b)
    Bp = n_blocks * block_b
    if Bp != B:
        padb = ((0, Bp - B), (0, 0))
        x_bf = jnp.pad(x_bf, padb)
        cond = jnp.pad(cond, padb)
        eps_pad = jnp.pad(eps_pad, padb)

    def stream(shape):
        return pl.BlockSpec(shape, lambda b: (b, 0))

    def resident(shape):
        return pl.BlockSpec(shape, lambda b: (0, 0))

    recon_full, stats_full = pl.pallas_call(
        _cvae_kernel,
        grid=(n_blocks,),
        in_specs=[
            stream((block_b, IMG_DIM)),            # x (bf16)
            stream((block_b, 1)),                  # condition (int32)
            stream((block_b, STAT_PAD)),           # eps
            resident((IMG_DIM, HIDDEN)),           # w1x
            resident((CLASS_PAD, 2 * HIDDEN)),     # fused per-class bias table
            resident((HIDDEN, STAT_PAD)),          # fused w21|w22
            resident((1, STAT_PAD)),               # fused b21|b22
            resident((STAT_PAD, HIDDEN)),          # w3z (zero-padded rows)
            resident((HIDDEN, IMG_DIM)),           # w4
            resident((1, IMG_DIM)),                # b4
        ],
        out_specs=(
            stream((block_b, IMG_DIM)),
            stream((block_b, STAT_PAD)),
        ),
        out_shape=(
            jax.ShapeDtypeStruct((Bp, IMG_DIM), jnp.float32),
            jax.ShapeDtypeStruct((Bp, STAT_PAD), jnp.float32),
        ),
        compiler_params=pltpu.CompilerParams(
            # "parallel" lets v7x shard the batch grid over its 2 TensorCores
            # (keep n_blocks >= 2 there; use CORE_PARALLEL if a profile shows an idle TC).
            dimension_semantics=("parallel",),
            vmem_limit_bytes=32 * 1024 * 1024,     # usage ~8-10 MB at BLOCK_B=256
        ),
    )(x_bf, cond, eps_pad,
      kparams["w1x"], kparams["cond_table"], kparams["w_stats"], kparams["b_stats"],
      kparams["w3z"], kparams["w4"], kparams["b4"])

    recon = recon_full if Bp == B else recon_full[:B]
    mu = stats_full[:B, :LATENT_DIM]
    log_var = stats_full[:B, LV_OFF:LV_OFF + LATENT_DIM]
    return recon, mu, log_var


def init_params(key):
    """Deterministic synthetic parameters (shapes from CVAE.__init__), f32 canonical."""
    ks = jax.random.split(key, 16)

    def lin_w(k, fan_in, fan_out):
        bound = 1.0 / jnp.sqrt(fan_in)
        return jax.random.uniform(k, (fan_in, fan_out), jnp.float32, -bound, bound)

    def lin_b(k, fan_in, fan_out):
        bound = 1.0 / jnp.sqrt(fan_in)
        return jax.random.uniform(k, (fan_out,), jnp.float32, -bound, bound)

    return {
        # fc1: Linear(784 + 10, 512), stored split (image rows / condition rows)
        "w1x": lin_w(ks[0], IMG_DIM, HIDDEN),
        "w1c": lin_w(ks[1], EMB_DIM, HIDDEN),
        "b1": lin_b(ks[2], IMG_DIM + EMB_DIM, HIDDEN),
        # fc21 / fc22: Linear(512, 20)
        "w21": lin_w(ks[3], HIDDEN, LATENT_DIM),
        "b21": lin_b(ks[4], HIDDEN, LATENT_DIM),
        "w22": lin_w(ks[5], HIDDEN, LATENT_DIM),
        "b22": lin_b(ks[6], HIDDEN, LATENT_DIM),
        # fc3: Linear(20 + 10, 512), stored split (latent rows / condition rows)
        "w3z": lin_w(ks[7], LATENT_DIM, HIDDEN),
        "w3c": lin_w(ks[8], EMB_DIM, HIDDEN),
        "b3": lin_b(ks[9], LATENT_DIM + EMB_DIM, HIDDEN),
        # fc4: Linear(512, 784)
        "w4": lin_w(ks[10], HIDDEN, IMG_DIM),
        "b4": lin_b(ks[11], HIDDEN, IMG_DIM),
        # Embedding(10, 10)
        "emb_table": jax.random.normal(ks[12], (10, EMB_DIM), jnp.float32),
    }


def reference_forward(x, condition, params, eps):
    """Pure-JAX reference mirroring the kernel's bf16-weight / f32-accumulate numerics
    (including the bf16 per-class condition-bias table used by the in-kernel gather)."""
    bf16, f32 = jnp.bfloat16, jnp.float32
    cb1_tab = (params["emb_table"] @ params["w1c"] + params["b1"]).astype(bf16).astype(f32)
    cb3_tab = (params["emb_table"] @ params["w3c"] + params["b3"]).astype(bf16).astype(f32)
    cb1 = cb1_tab[condition]
    cb3 = cb3_tab[condition]
    h1 = jax.nn.relu(
        jnp.dot(x.astype(bf16), params["w1x"].astype(bf16), preferred_element_type=f32) + cb1)
    h1b = h1.astype(bf16)
    mu = jnp.dot(h1b, params["w21"].astype(bf16), preferred_element_type=f32) + params["b21"]
    log_var = jnp.dot(h1b, params["w22"].astype(bf16), preferred_element_type=f32) + params["b22"]
    z = mu + eps * jnp.exp(0.5 * log_var)
    h3 = jax.nn.relu(
        jnp.dot(z.astype(bf16), params["w3z"].astype(bf16), preferred_element_type=f32) + cb3)
    logits = jnp.dot(h3.astype(bf16), params["w4"].astype(bf16), preferred_element_type=f32) + params["b4"]
    return jax.nn.sigmoid(logits), mu, log_var


if __name__ == "__main__":
    key = jax.random.PRNGKey(0)
    k_params, k_x, k_cond, k_eps = jax.random.split(key, 4)

    B = 512  # 2 grid steps of BLOCK_B=256 (exercises the batch grid / v7x core split)
    params = init_params(k_params)
    kparams = prepare_kernel_params(params)

    # Image input: (B, 1, 28, 28) NCHW, flattened exactly like x.view(-1, 784).
    x_img = jax.random.uniform(k_x, (B, 1, 28, 28), jnp.float32)
    x = x_img.reshape(B, IMG_DIM)
    condition = jax.random.randint(k_cond, (B,), 0, 10, dtype=jnp.int32)
    # TODO(synk): torch.randn_like(std) is drawn here deterministically via PRNGKey.
    eps = jax.random.normal(k_eps, (B, LATENT_DIM), jnp.float32)

    fwd = jax.jit(cvae_forward)
    recon, mu, log_var = fwd(x, condition, kparams, eps)
    jax.block_until_ready((recon, mu, log_var))

    # Sanity check against a pure-JAX reference using identical bf16-weight numerics.
    r_ref, mu_ref, lv_ref = reference_forward(x, condition, params, eps)
    assert recon.shape == (B, IMG_DIM) and mu.shape == (B, LATENT_DIM)
    assert log_var.shape == (B, LATENT_DIM)
    assert jnp.allclose(recon, r_ref, atol=5e-3), "recon mismatch"
    assert jnp.allclose(mu, mu_ref, atol=5e-3), "mu mismatch"
    assert jnp.allclose(log_var, lv_ref, atol=5e-3), "log_var mismatch"

    print("KERNEL_OK")
</pallas_src>

<mosaic_0001>
module attributes {stable_mosaic.version = 11 : i64} {
  func.func @_cvae_kernel(%arg0: i32, %arg1: memref<256x784xbf16, #tpu.memory_space<vmem>>, %arg2: memref<256x1xi32, #tpu.memory_space<vmem>>, %arg3: memref<256x128xf32, #tpu.memory_space<vmem>>, %arg4: memref<784x512xbf16, #tpu.memory_space<vmem>>, %arg5: memref<128x1024xbf16, #tpu.memory_space<vmem>>, %arg6: memref<512x128xbf16, #tpu.memory_space<vmem>>, %arg7: memref<1x128xf32, #tpu.memory_space<vmem>>, %arg8: memref<128x512xbf16, #tpu.memory_space<vmem>>, %arg9: memref<512x784xbf16, #tpu.memory_space<vmem>>, %arg10: memref<1x784xf32, #tpu.memory_space<vmem>>, %arg11: memref<256x784xf32, #tpu.memory_space<vmem>>, %arg12: memref<256x128xf32, #tpu.memory_space<vmem>>) attributes {dimension_semantics = [#tpu.dimension_semantics<parallel>], iteration_bounds = array<i64: 2>, scalar_prefetch = 0 : i64, scratch_operands = 0 : i64, tpu.core_type = #tpu.core_type<tc>, window_params = [{transform_indices = @transform_0, window_bounds = array<i64: 256, 784>}, {transform_indices = @transform_1, window_bounds = array<i64: 256, 1>}, {transform_indices = @transform_2, window_bounds = array<i64: 256, 128>}, {pipeline_mode = #tpu.pipeline_mode<synchronous>, transform_indices = @transform_3, window_bounds = array<i64: 784, 512>}, {pipeline_mode = #tpu.pipeline_mode<synchronous>, transform_indices = @transform_4, window_bounds = array<i64: 128, 1024>}, {pipeline_mode = #tpu.pipeline_mode<synchronous>, transform_indices = @transform_5, window_bounds = array<i64: 512, 128>}, {pipeline_mode = #tpu.pipeline_mode<synchronous>, transform_indices = @transform_6, window_bounds = array<i64: 1, 128>}, {pipeline_mode = #tpu.pipeline_mode<synchronous>, transform_indices = @transform_7, window_bounds = array<i64: 128, 512>}, {pipeline_mode = #tpu.pipeline_mode<synchronous>, transform_indices = @transform_8, window_bounds = array<i64: 512, 784>}, {pipeline_mode = #tpu.pipeline_mode<synchronous>, transform_indices = @transform_9, window_bounds = array<i64: 1, 784>}, {transform_indices = @transform_10, window_bounds = array<i64: 256, 784>}, {transform_indices = @transform_11, window_bounds = array<i64: 256, 128>}]} {
    %0 = tpu.iota {dimensions = array<i32: 1>} : vector<256x128xi32>
    %c0 = arith.constant 0 : index
    %c0_0 = arith.constant 0 : index
    %1 = vector.load %arg2[%c0, %c0_0] : memref<256x1xi32, #tpu.memory_space<vmem>>, vector<256x1xi32>
    %2 = vector.broadcast %1 : vector<256x1xi32> to vector<256x128xi32>
    %3 = arith.cmpi eq, %0, %2 : vector<256x128xi32>
    %cst = arith.constant 1.000000e+00 : f32
    %cst_1 = arith.constant 0.000000e+00 : f32
    %4 = vector.broadcast %cst : f32 to vector<256x128xf32>
    %5 = vector.broadcast %cst_1 : f32 to vector<256x128xf32>
    %6 = arith.select %3, %4, %5 : vector<256x128xi1>, vector<256x128xf32>
    %7 = arith.truncf %6 : vector<256x128xf32> to vector<256x128xbf16>
    %c0_2 = arith.constant 0 : index
    %c0_3 = arith.constant 0 : index
    %8 = vector.load %arg5[%c0_2, %c0_3] : memref<128x1024xbf16, #tpu.memory_space<vmem>>, vector<128x1024xbf16>
    %cst_4 = arith.constant dense<0.000000e+00> : vector<256x1024xf32>
    %9 = tpu.matmul %7, %8, %cst_4 {dimension_numbers = #tpu.dot_dimension_numbers<[1], [0], [0], [1], [0, 0, 1, 1], [], []>} : vector<256x128xbf16>, vector<128x1024xbf16>, vector<256x1024xf32> -> vector<256x1024xf32>
    %10 = vector.extract_strided_slice %9 {offsets = [0, 0], sizes = [256, 512], strides = [1, 1]} : vector<256x1024xf32> to vector<256x512xf32>
    %11 = vector.extract_strided_slice %9 {offsets = [0, 512], sizes = [256, 512], strides = [1, 1]} : vector<256x1024xf32> to vector<256x512xf32>
    %c0_5 = arith.constant 0 : index
    %c0_6 = arith.constant 0 : index
    %12 = vector.load %arg1[%c0_5, %c0_6] : memref<256x784xbf16, #tpu.memory_space<vmem>>, vector<256x784xbf16>
    %c0_7 = arith.constant 0 : index
    %c0_8 = arith.constant 0 : index
    %13 = vector.load %arg4[%c0_7, %c0_8] : memref<784x512xbf16, #tpu.memory_space<vmem>>, vector<784x512xbf16>
    %cst_9 = arith.constant dense<0.000000e+00> : vector<256x512xf32>
    %14 = tpu.matmul %12, %13, %cst_9 {dimension_numbers = #tpu.dot_dimension_numbers<[1], [0], [0], [1], [0, 0, 1, 1], [], []>} : vector<256x784xbf16>, vector<784x512xbf16>, vector<256x512xf32> -> vector<256x512xf32>
    %15 = arith.addf %14, %10 : vector<256x512xf32>
    %cst_10 = arith.constant 0.000000e+00 : f32
    %16 = vector.broadcast %cst_10 : f32 to vector<256x512xf32>
    %17 = arith.maximumf %15, %16 : vector<256x512xf32>
    %18 = arith.truncf %17 : vector<256x512xf32> to vector<256x512xbf16>
    %c0_11 = arith.constant 0 : index
    %c0_12 = arith.constant 0 : index
    %19 = vector.load %arg6[%c0_11, %c0_12] : memref<512x128xbf16, #tpu.memory_space<vmem>>, vector<512x128xbf16>
    %cst_13 = arith.constant dense<0.000000e+00> : vector<256x128xf32>
    %20 = tpu.matmul %18, %19, %cst_13 {dimension_numbers = #tpu.dot_dimension_numbers<[1], [0], [0], [1], [0, 0, 1, 1], [], []>} : vector<256x512xbf16>, vector<512x128xbf16>, vector<256x128xf32> -> vector<256x128xf32>
    %c0_14 = arith.constant 0 : index
    %c0_15 = arith.constant 0 : index
    %21 = vector.load %arg7[%c0_14, %c0_15] : memref<1x128xf32, #tpu.memory_space<vmem>>, vector<1x128xf32>
    %22 = vector.broadcast %21 : vector<1x128xf32> to vector<256x128xf32>
    %23 = arith.addf %20, %22 : vector<256x128xf32>
    %c0_16 = arith.constant 0 : index
    %c0_17 = arith.constant 0 : index
    %24 = vector.load %arg12[%c0_16, %c0_17] : memref<256x128xf32, #tpu.memory_space<vmem>>, vector<256x128xf32>
    tpu.vector_store %arg12[%c0_16, %c0_17], %23 {strides = array<i32>} : memref<256x128xf32, #tpu.memory_space<vmem>>, vector<256x128xf32>,
    %c64_i32 = arith.constant 64 : i32
    %25 = tpu.dynamic_rotate %23 by %c64_i32 dim 1 : vector<256x128xf32>, i32 -> vector<256x128xf32>
    %c20_i32 = arith.constant 20 : i32
    %26 = vector.broadcast %c20_i32 : i32 to vector<256x128xi32>
    %27 = arith.cmpi slt, %0, %26 : vector<256x128xi32>
    %cst_18 = arith.constant 0.000000e+00 : f32
    %28 = vector.broadcast %cst_18 : f32 to vector<256x128xf32>
    %29 = arith.select %27, %25, %28 : vector<256x128xi1>, vector<256x128xf32>
    %c0_19 = arith.constant 0 : index
    %c0_20 = arith.constant 0 : index
    %30 = vector.load %arg3[%c0_19, %c0_20] : memref<256x128xf32, #tpu.memory_space<vmem>>, vector<256x128xf32>
    %cst_21 = arith.constant 5.000000e-01 : f32
    %31 = vector.broadcast %cst_21 : f32 to vector<256x128xf32>
    %32 = arith.mulf %31, %29 : vector<256x128xf32>
    %33 = math.exp %32 : vector<256x128xf32>
    %34 = arith.mulf %30, %33 : vector<256x128xf32>
    %35 = arith.addf %23, %34 : vector<256x128xf32>
    %36 = arith.truncf %35 : vector<256x128xf32> to vector<256x128xbf16>
    %c0_22 = arith.constant 0 : index
    %c0_23 = arith.constant 0 : index
    %37 = vector.load %arg8[%c0_22, %c0_23] : memref<128x512xbf16, #tpu.memory_space<vmem>>, vector<128x512xbf16>
    %cst_24 = arith.constant dense<0.000000e+00> : vector<256x512xf32>
    %38 = tpu.matmul %36, %37, %cst_24 {dimension_numbers = #tpu.dot_dimension_numbers<[1], [0], [0], [1], [0, 0, 1, 1], [], []>} : vector<256x128xbf16>, vector<128x512xbf16>, vector<256x512xf32> -> vector<256x512xf32>
    %39 = arith.addf %38, %11 : vector<256x512xf32>
    %cst_25 = arith.constant 0.000000e+00 : f32
    %40 = vector.broadcast %cst_25 : f32 to vector<256x512xf32>
    %41 = arith.maximumf %39, %40 : vector<256x512xf32>
    %42 = arith.truncf %41 : vector<256x512xf32> to vector<256x512xbf16>
    %c0_26 = arith.constant 0 : index
    %c0_27 = arith.constant 0 : index
    %43 = vector.load %arg9[%c0_26, %c0_27] : memref<512x784xbf16, #tpu.memory_space<vmem>>, vector<512x784xbf16>
    %cst_28 = arith.constant dense<0.000000e+00> : vector<256x784xf32>
    %44 = tpu.matmul %42, %43, %cst_28 {dimension_numbers = #tpu.dot_dimension_numbers<[1], [0], [0], [1], [0, 0, 1, 1], [], []>} : vector<256x512xbf16>, vector<512x784xbf16>, vector<256x784xf32> -> vector<256x784xf32>
    %c0_29 = arith.constant 0 : index
    %c0_30 = arith.constant 0 : index
    %45 = vector.load %arg10[%c0_29, %c0_30] : memref<1x784xf32, #tpu.memory_space<vmem>>, vector<1x784xf32>
    %46 = vector.broadcast %45 : vector<1x784xf32> to vector<256x784xf32>
    %47 = arith.addf %44, %46 : vector<256x784xf32>
    %48 = arith.negf %47 : vector<256x784xf32>
    %49 = math.exp %48 : vector<256x784xf32>
    %cst_31 = arith.constant 1.000000e+00 : f32
    %50 = vector.broadcast %cst_31 : f32 to vector<256x784xf32>
    %51 = arith.addf %50, %49 : vector<256x784xf32>
    %52 = arith.divf %50, %51 : vector<256x784xf32>
    %c0_32 = arith.constant 0 : index
    %c0_33 = arith.constant 0 : index
    %53 = vector.load %arg11[%c0_32, %c0_33] : memref<256x784xf32, #tpu.memory_space<vmem>>, vector<256x784xf32>
    tpu.vector_store %arg11[%c0_32, %c0_33], %52 {strides = array<i32>} : memref<256x784xf32, #tpu.memory_space<vmem>>, vector<256x784xf32>,
    return
  }
  func.func @transform_0(%arg0: i32) -> (i32, i32) {
    %c0_i32 = arith.constant 0 : i32
    %c0_i32_0 = arith.constant 0 : i32
    return %arg0, %c0_i32 : i32, i32
  }
  func.func @transform_1(%arg0: i32) -> (i32, i32) {
    %c0_i32 = arith.constant 0 : i32
    %c0_i32_0 = arith.constant 0 : i32
    return %arg0, %c0_i32 : i32, i32
  }
  func.func @transform_2(%arg0: i32) -> (i32, i32) {
    %c0_i32 = arith.constant 0 : i32
    %c0_i32_0 = arith.constant 0 : i32
    return %arg0, %c0_i32 : i32, i32
  }
  func.func @transform_3(%arg0: i32) -> (i32, i32) {
    %c0_i32 = arith.constant 0 : i32
    %c0_i32_0 = arith.constant 0 : i32
    %c0_i32_1 = arith.constant 0 : i32
    return %c0_i32, %c0_i32_0 : i32, i32
  }
  func.func @transform_4(%arg0: i32) -> (i32, i32) {
    %c0_i32 = arith.constant 0 : i32
    %c0_i32_0 = arith.constant 0 : i32
    %c0_i32_1 = arith.constant 0 : i32
    return %c0_i32, %c0_i32_0 : i32, i32
  }
  func.func @transform_5(%arg0: i32) -> (i32, i32) {
    %c0_i32 = arith.constant 0 : i32
    %c0_i32_0 = arith.constant 0 : i32
    %c0_i32_1 = arith.constant 0 : i32
    return %c0_i32, %c0_i32_0 : i32, i32
  }
  func.func @transform_6(%arg0: i32) -> (i32, i32) {
    %c0_i32 = arith.constant 0 : i32
    %c0_i32_0 = arith.constant 0 : i32
    %c0_i32_1 = arith.constant 0 : i32
    return %c0_i32, %c0_i32_0 : i32, i32
  }
  func.func @transform_7(%arg0: i32) -> (i32, i32) {
    %c0_i32 = arith.constant 0 : i32
    %c0_i32_0 = arith.constant 0 : i32
    %c0_i32_1 = arith.constant 0 : i32
    return %c0_i32, %c0_i32_0 : i32, i32
  }
  func.func @transform_8(%arg0: i32) -> (i32, i32) {
    %c0_i32 = arith.constant 0 : i32
    %c0_i32_0 = arith.constant 0 : i32
    %c0_i32_1 = arith.constant 0 : i32
    return %c0_i32, %c0_i32_0 : i32, i32
  }
  func.func @transform_9(%arg0: i32) -> (i32, i32) {
    %c0_i32 = arith.constant 0 : i32
    %c0_i32_0 = arith.constant 0 : i32
    %c0_i32_1 = arith.constant 0 : i32
    return %c0_i32, %c0_i32_0 : i32, i32
  }
  func.func @transform_10(%arg0: i32) -> (i32, i32) {
    %c0_i32 = arith.constant 0 : i32
    %c0_i32_0 = arith.constant 0 : i32
    return %arg0, %c0_i32 : i32, i32
  }
  func.func @transform_11(%arg0: i32) -> (i32, i32) {
    %c0_i32 = arith.constant 0 : i32
    %c0_i32_0 = arith.constant 0 : i32
    return %arg0, %c0_i32 : i32, i32
  }
}

</mosaic_0001>

<llo_original>
// kernel: cvae_forward.1
$region0: #{cvae_forward.1}
  #allocation0 [shape = 'u32[]', space=smem, size = 0x4, offset = 0x4, fixed_abs, tag = 'smem constant byte address 0x4 - core index']
  #allocation1 [shape = 'u32[144,128]{1,0:T(1,128)}', space=vmem, size = 0x12000, scoped, tag = 'internal scratch']
  %s0 = inlined_call_operand.vmem [shape: bf16[512,784], index: 0, kind: input, shape index: {}]
  %s1 = inlined_call_operand.vmem [shape: s32[512,1], index: 1, kind: input, shape index: {}]
  %s2 = inlined_call_operand.vmem [shape: f32[512,128], index: 2, kind: input, shape index: {}]
  %s3 = inlined_call_operand.vmem [shape: bf16[784,512], index: 3, kind: input, shape index: {}]
  %s4 = inlined_call_operand.vmem [shape: bf16[128,1024], index: 4, kind: input, shape index: {}]
  %s5 = inlined_call_operand.vmem [shape: bf16[512,128], index: 5, kind: input, shape index: {}]
  %s6 = inlined_call_operand.vmem [shape: f32[1,128], index: 6, kind: input, shape index: {}]
  %s7 = inlined_call_operand.vmem [shape: bf16[128,512], index: 7, kind: input, shape index: {}]
  %s8 = inlined_call_operand.vmem [shape: bf16[512,784], index: 8, kind: input, shape index: {}]
  %s9 = inlined_call_operand.vmem [shape: f32[1,784], index: 9, kind: input, shape index: {}]
  %s10 = inlined_call_operand.vmem [shape: f32[512,784], index: 10, kind: output, shape index: {0}]
  %s11 = inlined_call_operand.vmem [shape: f32[512,128], index: 11, kind: output, shape index: {1}]
  %12 = xla_tuple %s10, %s11
  %s13 = sld [smem:[#allocation0]]
  $region81: #{cvae_forward.1} parent=0
    _
  %s15 = ssub.s32 1, %s13
  %s16 = scalar_select 0, %s15, %s13
  loop: start=0, step=1, limit=4
  $region2: #{cvae_forward.1} parent=0 // loop_pre_header
    _
  $region3: #{cvae_forward.1} parent=0 // loop_header
    %s18 = sphi 0, %s22
    %p19 = scmp.ge.s32.totalorder %s18, 4
    %s28 = sphi 0, %s30
    %s31 = sphi 0, %s28
    %s32 = sphi 0, %s31
    %s48 = sphi 0, %s32
    %s54 = sphi 0, %s56
    %s57 = sphi 0, %s54
    %s58 = sphi 0, %s57
    %s74 = sphi 0, %s58
    %s80 = sphi 0, %s82
    %s83 = sphi 0, %s80
    %s84 = sphi 0, %s83
    %s100 = sphi 0, %s84
    %s104 = sphi 0, %s104
    %s106 = sphi 0, %s104
    %s107 = sphi 0, %s106
    %s121 = sphi 0, %s107
    %s125 = sphi 0, %s125
    %s127 = sphi 0, %s125
    %s128 = sphi 0, %s127
    %s142 = sphi 0, %s128
    %s146 = sphi 0, %s146
    %s148 = sphi 0, %s146
    %s149 = sphi 0, %s148
    %s163 = sphi 0, %s149
    %s167 = sphi 0, %s167
    %s169 = sphi 0, %s167
    %s170 = sphi 0, %s169
    %s184 = sphi 0, %s170
    %s188 = sphi 0, %s188
    %s190 = sphi 0, %s188
    %s191 = sphi 0, %s190
    %s205 = sphi 0, %s191
    %s209 = sphi 0, %s209
    %s211 = sphi 0, %s209
    %s212 = sphi 0, %s211
    %s226 = sphi 0, %s212
    %s230 = sphi 0, %s230
    %s232 = sphi 0, %s230
    %s233 = sphi 0, %s232
    %s247 = sphi 0, %s233
    %s253 = sphi 0, %s255
    %s256 = sphi 0, %s253
    %s257 = sphi 0, %s256
    %s273 = sphi 0, %s257
    %s279 = sphi 0, %s281
    %s282 = sphi 0, %s279
    %s283 = sphi 0, %s282
    %s299 = sphi 0, %s283
  $region4: #{cvae_forward.1} parent=0 // loop_header_branch
    %21 = sbr.rel (%p19) target = $region8
  $region5: #{cvae_forward.1} parent=0 // loop_body
    %s23 = ssub.s32 %s18, 1
    %s24 = ssub.s32 %s18, 2
    %s25 = sadd.s32 %s18, 1
    %s26 = ssub.s32 %s18, %s25
    %p27 = scmp.eq.s32.totalorder %s26, 0
    %s29 = sadd.s32 %s28, 1
    %s30 = scalar_select %p27, %s28, %s29
    %p33 = pneg %p27
    %p34 = scmp.eq.s32.totalorder %s18, 1
    %p35 = por %p33, %p34
    %p36 = scmp.ne.s32.totalorder %s28, %s31
    %p37 = scmp.eq.s32.totalorder %s18, 0
    %p38 = por %p36, %p37
    %p39 = scmp.ne.s32.totalorder %s28, %s31
    %p40 = scmp.eq.s32.totalorder %s23, 1
    %p41 = por %p39, %p40
    %p42 = scmp.ne.s32.totalorder %s31, %s32
    %p43 = scmp.eq.s32.totalorder %s23, 0
    %p44 = por %p42, %p43
    %p45 = scmp.ne.s32.totalorder %s31, %s32
    %p46 = scmp.eq.s32.totalorder %s24, 1
    %p47 = por %p45, %p46
    %p49 = scmp.ne.s32.totalorder %s32, %s48
    %p50 = scmp.eq.s32.totalorder %s24, 0
    %p51 = por %p49, %p50
    %s52 = ssub.s32 %s18, %s25
    %p53 = scmp.eq.s32.totalorder %s52, 0
    %s55 = sadd.s32 %s54, 1
    %s56 = scalar_select %p53, %s54, %s55
    %p59 = pneg %p53
    %p60 = scmp.eq.s32.totalorder %s18, 1
    %p61 = por %p59, %p60
    %p62 = scmp.ne.s32.totalorder %s54, %s57
    %p63 = scmp.eq.s32.totalorder %s18, 0
    %p64 = por %p62, %p63
    %p65 = scmp.ne.s32.totalorder %s54, %s57
    %p66 = scmp.eq.s32.totalorder %s23, 1
    %p67 = por %p65, %p66
    %p68 = scmp.ne.s32.totalorder %s57, %s58
    %p69 = scmp.eq.s32.totalorder %s23, 0
    %p70 = por %p68, %p69
    %p71 = scmp.ne.s32.totalorder %s57, %s58
    %p72 = scmp.eq.s32.totalorder %s24, 1
    %p73 = por %p71, %p72
    %p75 = scmp.ne.s32.totalorder %s58, %s74
    %p76 = scmp.eq.s32.totalorder %s24, 0
    %p77 = por %p75, %p76
    %s78 = ssub.s32 %s18, %s25
    %p79 = scmp.eq.s32.totalorder %s78, 0
    %s81 = sadd.s32 %s80, 1
    %s82 = scalar_select %p79, %s80, %s81
    %p85 = pneg %p79
    %p86 = scmp.eq.s32.totalorder %s18, 1
    %p87 = por %p85, %p86
    %p88 = scmp.ne.s32.totalorder %s80, %s83
    %p89 = scmp.eq.s32.totalorder %s18, 0
    %p90 = por %p88, %p89
    %p91 = scmp.ne.s32.totalorder %s80, %s83
    %p92 = scmp.eq.s32.totalorder %s23, 1
    %p93 = por %p91, %p92
    %p94 = scmp.ne.s32.totalorder %s83, %s84
    %p95 = scmp.eq.s32.totalorder %s23, 0
    %p96 = por %p94, %p95
    %p97 = scmp.ne.s32.totalorder %s83, %s84
    %p98 = scmp.eq.s32.totalorder %s24, 1
    %p99 = por %p97, %p98
    %p101 = scmp.ne.s32.totalorder %s84, %s100
    %p102 = scmp.eq.s32.totalorder %s24, 0
    %p103 = por %p101, %p102
    %s105 = sadd.s32 %s104, 1
    %p108 = scmp.eq.s32.totalorder %s18, 1
    %p109 = scmp.ne.s32.totalorder %s104, %s106
    %p110 = scmp.eq.s32.totalorder %s18, 0
    %p111 = por %p109, %p110
    %p112 = scmp.ne.s32.totalorder %s104, %s106
    %p113 = scmp.eq.s32.totalorder %s23, 1
    %p114 = por %p112, %p113
    %p115 = scmp.ne.s32.totalorder %s106, %s107
    %p116 = scmp.eq.s32.totalorder %s23, 0
    %p117 = por %p115, %p116
    %p118 = scmp.ne.s32.totalorder %s106, %s107
    %p119 = scmp.eq.s32.totalorder %s24, 1
    %p120 = por %p118, %p119
    %p122 = scmp.ne.s32.totalorder %s107, %s121
    %p123 = scmp.eq.s32.totalorder %s24, 0
    %p124 = por %p122, %p123
    %s126 = sadd.s32 %s125, 1
    %p129 = scmp.eq.s32.totalorder %s18, 1
    %p130 = scmp.ne.s32.totalorder %s125, %s127
    %p131 = scmp.eq.s32.totalorder %s18, 0
    %p132 = por %p130, %p131
    %p133 = scmp.ne.s32.totalorder %s125, %s127
    %p134 = scmp.eq.s32.totalorder %s23, 1
    %p135 = por %p133, %p134
    %p136 = scmp.ne.s32.totalorder %s127, %s128
    %p137 = scmp.eq.s32.totalorder %s23, 0
    %p138 = por %p136, %p137
    %p139 = scmp.ne.s32.totalorder %s127, %s128
    %p140 = scmp.eq.s32.totalorder %s24, 1
    %p141 = por %p139, %p140
    %p143 = scmp.ne.s32.totalorder %s128, %s142
    %p144 = scmp.eq.s32.totalorder %s24, 0
    %p145 = por %p143, %p144
    %s147 = sadd.s32 %s146, 1
    %p150 = scmp.eq.s32.totalorder %s18, 1
    %p151 = scmp.ne.s32.totalorder %s146, %s148
    %p152 = scmp.eq.s32.totalorder %s18, 0
    %p153 = por %p151, %p152
    %p154 = scmp.ne.s32.totalorder %s146, %s148
    %p155 = scmp.eq.s32.totalorder %s23, 1
    %p156 = por %p154, %p155
    %p157 = scmp.ne.s32.totalorder %s148, %s149
    %p158 = scmp.eq.s32.totalorder %s23, 0
    %p159 = por %p157, %p158
    %p160 = scmp.ne.s32.totalorder %s148, %s149
    %p161 = scmp.eq.s32.totalorder %s24, 1
    %p162 = por %p160, %p161
    %p164 = scmp.ne.s32.totalorder %s149, %s163
    %p165 = scmp.eq.s32.totalorder %s24, 0
    %p166 = por %p164, %p165
    %s168 = sadd.s32 %s167, 1
    %p171 = scmp.eq.s32.totalorder %s18, 1
    %p172 = scmp.ne.s32.totalorder %s167, %s169
    %p173 = scmp.eq.s32.totalorder %s18, 0
    %p174 = por %p172, %p173
    %p175 = scmp.ne.s32.totalorder %s167, %s169
    %p176 = scmp.eq.s32.totalorder %s23, 1
    %p177 = por %p175, %p176
    %p178 = scmp.ne.s32.totalorder %s169, %s170
    %p179 = scmp.eq.s32.totalorder %s23, 0
    %p180 = por %p178, %p179
    %p181 = scmp.ne.s32.totalorder %s169, %s170
    %p182 = scmp.eq.s32.totalorder %s24, 1
    %p183 = por %p181, %p182
    %p185 = scmp.ne.s32.totalorder %s170, %s184
    %p186 = scmp.eq.s32.totalorder %s24, 0
    %p187 = por %p185, %p186
    %s189 = sadd.s32 %s188, 1
    %p192 = scmp.eq.s32.totalorder %s18, 1
    %p193 = scmp.ne.s32.totalorder %s188, %s190
    %p194 = scmp.eq.s32.totalorder %s18, 0
    %p195 = por %p193, %p194
    %p196 = scmp.ne.s32.totalorder %s188, %s190
    %p197 = scmp.eq.s32.totalorder %s23, 1
    %p198 = por %p196, %p197
    %p199 = scmp.ne.s32.totalorder %s190, %s191
    %p200 = scmp.eq.s32.totalorder %s23, 0
    %p201 = por %p199, %p200
    %p202 = scmp.ne.s32.totalorder %s190, %s191
    %p203 = scmp.eq.s32.totalorder %s24, 1
    %p204 = por %p202, %p203
    %p206 = scmp.ne.s32.totalorder %s191, %s205
    %p207 = scmp.eq.s32.totalorder %s24, 0
    %p208 = por %p206, %p207
    %s210 = sadd.s32 %s209, 1
    %p213 = scmp.eq.s32.totalorder %s18, 1
    %p214 = scmp.ne.s32.totalorder %s209, %s211
    %p215 = scmp.eq.s32.totalorder %s18, 0
    %p216 = por %p214, %p215
    %p217 = scmp.ne.s32.totalorder %s209, %s211
    %p218 = scmp.eq.s32.totalorder %s23, 1
    %p219 = por %p217, %p218
    %p220 = scmp.ne.s32.totalorder %s211, %s212
    %p221 = scmp.eq.s32.totalorder %s23, 0
    %p222 = por %p220, %p221
    %p223 = scmp.ne.s32.totalorder %s211, %s212
    %p224 = scmp.eq.s32.totalorder %s24, 1
    %p225 = por %p223, %p224
    %p227 = scmp.ne.s32.totalorder %s212, %s226
    %p228 = scmp.eq.s32.totalorder %s24, 0
    %p229 = por %p227, %p228
    %s231 = sadd.s32 %s230, 1
    %p234 = scmp.eq.s32.totalorder %s18, 1
    %p235 = scmp.ne.s32.totalorder %s230, %s232
    %p236 = scmp.eq.s32.totalorder %s18, 0
    %p237 = por %p235, %p236
    %p238 = scmp.ne.s32.totalorder %s230, %s232
    %p239 = scmp.eq.s32.totalorder %s23, 1
    %p240 = por %p238, %p239
    %p241 = scmp.ne.s32.totalorder %s232, %s233
    %p242 = scmp.eq.s32.totalorder %s23, 0
    %p243 = por %p241, %p242
    %p244 = scmp.ne.s32.totalorder %s232, %s233
    %p245 = scmp.eq.s32.totalorder %s24, 1
    %p246 = por %p244, %p245
    %p248 = scmp.ne.s32.totalorder %s233, %s247
    %p249 = scmp.eq.s32.totalorder %s24, 0
    %p250 = por %p248, %p249
    %s251 = ssub.s32 %s18, %s25
    %p252 = scmp.eq.s32.totalorder %s251, 0
    %s254 = sadd.s32 %s253, 1
    %s255 = scalar_select %p252, %s253, %s254
    %p258 = pneg %p252
    %p259 = scmp.eq.s32.totalorder %s18, 1
    %p260 = por %p258, %p259
    %p261 = scmp.ne.s32.totalorder %s253, %s256
    %p262 = scmp.eq.s32.totalorder %s18, 0
    %p263 = por %p261, %p262
    %p264 = scmp.ne.s32.totalorder %s253, %s256
    %p265 = scmp.eq.s32.totalorder %s23, 1
    %p266 = por %p264, %p265
    %p267 = scmp.ne.s32.totalorder %s256, %s257
    %p268 = scmp.eq.s32.totalorder %s23, 0
    %p269 = por %p267, %p268
    %p270 = scmp.ne.s32.totalorder %s256, %s257
    %p271 = scmp.eq.s32.totalorder %s24, 1
    %p272 = por %p270, %p271
    %p274 = scmp.ne.s32.totalorder %s257, %s273
    %p275 = scmp.eq.s32.totalorder %s24, 0
    %p276 = por %p274, %p275
    %s277 = ssub.s32 %s18, %s25
    %p278 = scmp.eq.s32.totalorder %s277, 0
    %s280 = sadd.s32 %s279, 1
    %s281 = scalar_select %p278, %s279, %s280
    %p284 = pneg %p278
    %p285 = scmp.eq.s32.totalorder %s18, 1
    %p286 = por %p284, %p285
    %p287 = scmp.ne.s32.totalorder %s279, %s282
    %p288 = scmp.eq.s32.totalorder %s18, 0
    %p289 = por %p287, %p288
    %p290 = scmp.ne.s32.totalorder %s279, %s282
    %p291 = scmp.eq.s32.totalorder %s23, 1
    %p292 = por %p290, %p291
    %p293 = scmp.ne.s32.totalorder %s282, %s283
    %p294 = scmp.eq.s32.totalorder %s23, 0
    %p295 = por %p293, %p294
    %p296 = scmp.ne.s32.totalorder %s282, %s283
    %p297 = scmp.eq.s32.totalorder %s24, 1
    %p298 = por %p296, %p297
    %p300 = scmp.ne.s32.totalorder %s283, %s299
    %p301 = scmp.eq.s32.totalorder %s24, 0
    %p302 = por %p300, %p301
    %p303 = scmp.le.s32.totalorder 1, %s18
    %p304 = scmp.lt.s32.totalorder %s18, 3
    %p305 = pnand %p303, %p304
    %p306 = pneg %p305
    // Predicated region
    $region9: #{cvae_forward.1} parent=5 // pred_check
      _
    $region10: #{cvae_forward.1} parent=5 // pred_check_branch
      %308 = sbr.rel (%p305) target = $region12
    $region11: #{cvae_forward.1} parent=5 // pred_region
      %s309 = ssub.s32 %s18, 1
      // Predicated region
      $region13: #{cvae_forward.1} parent=11 // pred_check
        %p310 = pneg %p117
      $region14: #{cvae_forward.1} parent=11 // pred_check_branch
        %312 = sbr.rel (%p310) target = $region16
      $region15: #{cvae_forward.1} parent=11 // pred_region
        _
      $region16: #{cvae_forward.1} parent=11 // pred_fallthru
        _
      // Predicated region
      $region17: #{cvae_forward.1} parent=11 // pred_check
        %p313 = pneg %p138
      $region18: #{cvae_forward.1} parent=11 // pred_check_branch
        %315 = sbr.rel (%p313) target = $region20
      $region19: #{cvae_forward.1} parent=11 // pred_region
        _
      $region20: #{cvae_forward.1} parent=11 // pred_fallthru
        _
      // Predicated region
      $region21: #{cvae_forward.1} parent=11 // pred_check
        %p316 = pneg %p159
      $region22: #{cvae_forward.1} parent=11 // pred_check_branch
        %318 = sbr.rel (%p316) target = $region24
      $region23: #{cvae_forward.1} parent=11 // pred_region
        _
      $region24: #{cvae_forward.1} parent=11 // pred_fallthru
        _
      // Predicated region
      $region25: #{cvae_forward.1} parent=11 // pred_check
        %p319 = pneg %p180
      $region26: #{cvae_forward.1} parent=11 // pred_check_branch
        %321 = sbr.rel (%p319) target = $region28
      $region27: #{cvae_forward.1} parent=11 // pred_region
        _
      $region28: #{cvae_forward.1} parent=11 // pred_fallthru
        _
      // Predicated region
      $region29: #{cvae_forward.1} parent=11 // pred_check
        %p322 = pneg %p201
      $region30: #{cvae_forward.1} parent=11 // pred_check_branch
        %324 = sbr.rel (%p322) target = $region32
      $region31: #{cvae_forward.1} parent=11 // pred_region
        _
      $region32: #{cvae_forward.1} parent=11 // pred_fallthru
        _
      // Predicated region
      $region33: #{cvae_forward.1} parent=11 // pred_check
        %p325 = pneg %p222
      $region34: #{cvae_forward.1} parent=11 // pred_check_branch
        %327 = sbr.rel (%p325) target = $region36
      $region35: #{cvae_forward.1} parent=11 // pred_region
        _
      $region36: #{cvae_forward.1} parent=11 // pred_fallthru
        _
      // Predicated region
      $region37: #{cvae_forward.1} parent=11 // pred_check
        %p328 = pneg %p243
      $region38: #{cvae_forward.1} parent=11 // pred_check_branch
        %330 = sbr.rel (%p328) target = $region40
      $region39: #{cvae_forward.1} parent=11 // pred_region
        _
      $region40: #{cvae_forward.1} parent=11 // pred_fallthru
        _
    $region12: #{cvae_forward.1} parent=5 // pred_fallthru
      _
    %p331 = scmp.lt.s32.totalorder %s18, 2
    // Predicated region
    $region41: #{cvae_forward.1} parent=5 // pred_check
      %p332 = pneg %p331
    $region42: #{cvae_forward.1} parent=5 // pred_check_branch
      %334 = sbr.rel (%p332) target = $region44
    $region43: #{cvae_forward.1} parent=5 // pred_region
      // Predicated region
      $region45: #{cvae_forward.1} parent=43 // pred_check
        %p335 = pneg %p38
      $region46: #{cvae_forward.1} parent=43 // pred_check_branch
        %337 = sbr.rel (%p335) target = $region48
      $region47: #{cvae_forward.1} parent=43 // pred_region
        %s338 = smul.u32 32, %s18
        %p339 = scmp.lt.s32.totalorder %s338, 63
        %s340 = scalar_select %p339, %s338, 63
        %s341 = smul.addr %s340, 7
        %s342 = smul.addr %s341, 4
        %s343 = scalar_lea.vmem %s0, %s342
        %s344 = smul.u32 32, %s18
      $region48: #{cvae_forward.1} parent=43 // pred_fallthru
        _
      // Predicated region
      $region49: #{cvae_forward.1} parent=43 // pred_check
        %p345 = pneg %p64
      $region50: #{cvae_forward.1} parent=43 // pred_check_branch
        %347 = sbr.rel (%p345) target = $region52
      $region51: #{cvae_forward.1} parent=43 // pred_region
        %s348 = smul.u32 32, %s18
        %p349 = scmp.lt.s32.totalorder %s348, 63
        %s350 = scalar_select %p349, %s348, 63
        %s351 = smul.addr %s350, 8
        %s352 = scalar_lea.vmem %s1, %s351
        %s353 = smul.u32 32, %s18
      $region52: #{cvae_forward.1} parent=43 // pred_fallthru
        _
      // Predicated region
      $region53: #{cvae_forward.1} parent=43 // pred_check
        %p354 = pneg %p90
      $region54: #{cvae_forward.1} parent=43 // pred_check_branch
        %356 = sbr.rel (%p354) target = $region56
      $region55: #{cvae_forward.1} parent=43 // pred_region
        %s357 = smul.u32 32, %s18
        %p358 = scmp.lt.s32.totalorder %s357, 63
        %s359 = scalar_select %p358, %s357, 63
        %s360 = smul.addr %s359, 8
        %s361 = scalar_lea.vmem %s2, %s360
        %s362 = smul.u32 32, %s18
      $region56: #{cvae_forward.1} parent=43 // pred_fallthru
        _
    $region44: #{cvae_forward.1} parent=5 // pred_fallthru
      _
    %p363 = scmp.le.s32.totalorder 1, %s18
    %p364 = scmp.lt.s32.totalorder %s18, 3
    %p365 = pnand %p363, %p364
    %p366 = pneg %p365
    // Predicated region
    $region57: #{cvae_forward.1} parent=5 // pred_check
      _
    $region58: #{cvae_forward.1} parent=5 // pred_check_branch
      %368 = sbr.rel (%p365) target = $region60
    $region59: #{cvae_forward.1} parent=5 // pred_region
      %s369 = ssub.s32 %s18, 1
      %s370 = smul.u32 32, %s23
      %p371 = scmp.lt.s32.totalorder %s370, 63
      %s372 = scalar_select %p371, %s370, 63
      %s373 = smul.addr %s372, 7
      %s374 = smul.addr %s373, 4
      %s375 = scalar_lea.vmem %s0, %s374
      %p376 = pneg %p44
      %p377 = pneg %p41
      %s378 = smul.u32 32, %s23
      %p379 = scmp.lt.s32.totalorder %s378, 63
      %s380 = scalar_select %p379, %s378, 63
      %s381 = smul.addr %s380, 8
      %s382 = scalar_lea.vmem %s1, %s381
      %p383 = pneg %p70
      %p384 = pneg %p67
      %s385 = smul.u32 32, %s23
      %p386 = scmp.lt.s32.totalorder %s385, 63
      %s387 = scalar_select %p386, %s385, 63
      %s388 = smul.addr %s387, 8
      %s389 = scalar_lea.vmem %s2, %s388
      %p390 = pneg %p96
      %p391 = pneg %p93
      %p392 = pneg %p117
      %p393 = pneg %p114
      %p394 = pneg %p138
      %p395 = pneg %p135
      %p396 = pneg %p159
      %p397 = pneg %p156
      %p398 = pneg %p180
      %p399 = pneg %p177
      %p400 = pneg %p201
      %p401 = pneg %p198
      %p402 = pneg %p222
      %p403 = pneg %p219
      %p404 = pneg %p243
      %p405 = pneg %p240
      %p406 = pneg %p269
      %p407 = pneg %p266
      %s408 = smul.u32 32, %s23
      %p409 = scmp.lt.s32.totalorder %s408, 63
      %s410 = scalar_select %p409, %s408, 63
      %s411 = smul.addr %s410, 7
      %s412 = smul.addr %s411, 8
      %s413 = scalar_lea.vmem %s10, %s412
      %p414 = pneg %p295
      %p415 = pneg %p292
      %s416 = smul.u32 32, %s23
      %p417 = scmp.lt.s32.totalorder %s416, 63
      %s418 = scalar_select %p417, %s416, 63
      %s419 = smul.addr %s418, 8
      %s420 = scalar_lea.vmem %s11, %s419
      %s421 = smul.u32 32, %s23
      %p422 = scmp.lt.s32.totalorder %s421, 63
      %s423 = scalar_select %p422, %s421, 63
      %s424 = smul.addr %s423, 7
      %s425 = smul.addr %s424, 4
      %s426 = scalar_lea.vmem %s0, %s425
      %s427 = smul.u32 32, %s23
      %s428 = smul.u32 32, %s23
      %p429 = scmp.lt.s32.totalorder %s428, 63
      %s430 = scalar_select %p429, %s428, 63
      %s431 = smul.addr %s430, 8
      %s432 = scalar_lea.vmem %s1, %s431
      %s433 = smul.u32 32, %s23
      %s434 = smul.u32 32, %s23
      %p435 = scmp.lt.s32.totalorder %s434, 63
      %s436 = scalar_select %p435, %s434, 63
      %s437 = smul.addr %s436, 8
      %s438 = scalar_lea.vmem %s2, %s437
      %s439 = smul.u32 32, %s23
      %s440 = smul.u32 32, %s23
      %p441 = scmp.lt.s32.totalorder %s440, 63
      %s442 = scalar_select %p441, %s440, 63
      %s443 = smul.addr %s442, 7
      %s444 = smul.addr %s443, 8
      %s445 = scalar_lea.vmem %s10, %s444
      %s446 = smul.u32 32, %s23
      %s447 = smul.u32 32, %s23
      %p448 = scmp.lt.s32.totalorder %s447, 63
      %s449 = scalar_select %p448, %s447, 63
      %s450 = smul.addr %s449, 8
      %s451 = scalar_lea.vmem %s11, %s450
      %s452 = smul.u32 32, %s23
      %v454 = vlaneseq
      %v455 = vand.u32 %v454, 127
      %v456 = vld [vmem:[%s432] sm:$0xff]
      %v457 = vld [vmem:[%s432 + $0x8] sm:$0xff]
      %v458 = vld [vmem:[%s432 + $0x10] sm:$0xff]
      %v459 = vld [vmem:[%s432 + $0x18] sm:$0xff]
      %v460 = vld [vmem:[%s432 + $0x20] sm:$0xff]
      %v461 = vld [vmem:[%s432 + $0x28] sm:$0xff]
      %v462 = vld [vmem:[%s432 + $0x30] sm:$0xff]
      %v463 = vld [vmem:[%s432 + $0x38] sm:$0xff]
      %v464 = vld [vmem:[%s432 + $0x40] sm:$0xff]
      %v465 = vld [vmem:[%s432 + $0x48] sm:$0xff]
      %v466 = vld [vmem:[%s432 + $0x50] sm:$0xff]
      %v467 = vld [vmem:[%s432 + $0x58] sm:$0xff]
      %v468 = vld [vmem:[%s432 + $0x60] sm:$0xff]
      %v469 = vld [vmem:[%s432 + $0x68] sm:$0xff]
      %v470 = vld [vmem:[%s432 + $0x70] sm:$0xff]
      %v471 = vld [vmem:[%s432 + $0x78] sm:$0xff]
      %v472 = vld [vmem:[%s432 + $0x80] sm:$0xff]
      %v473 = vld [vmem:[%s432 + $0x88] sm:$0xff]
      %v474 = vld [vmem:[%s432 + $0x90] sm:$0xff]
      %v475 = vld [vmem:[%s432 + $0x98] sm:$0xff]
      %v476 = vld [vmem:[%s432 + $0xa0] sm:$0xff]
      %v477 = vld [vmem:[%s432 + $0xa8] sm:$0xff]
      %v478 = vld [vmem:[%s432 + $0xb0] sm:$0xff]
      %v479 = vld [vmem:[%s432 + $0xb8] sm:$0xff]
      %v480 = vld [vmem:[%s432 + $0xc0] sm:$0xff]
      %v481 = vld [vmem:[%s432 + $0xc8] sm:$0xff]
      %v482 = vld [vmem:[%s432 + $0xd0] sm:$0xff]
      %v483 = vld [vmem:[%s432 + $0xd8] sm:$0xff]
      %v484 = vld [vmem:[%s432 + $0xe0] sm:$0xff]
      %v485 = vld [vmem:[%s432 + $0xe8] sm:$0xff]
      %v486 = vld [vmem:[%s432 + $0xf0] sm:$0xff]
      %v487 = vld [vmem:[%s432 + $0xf8] sm:$0xff]
      %488 = vset.pattern.permute.xlu0 0
      %489 = vperm.xlu0 %488, %v456
      %v490 = vpop.permute.xlu0 %489
      %491 = vset.pattern.permute.xlu0 0
      %492 = vperm.xlu0 %491, %v457
      %v493 = vpop.permute.xlu0 %492
      %494 = vset.pattern.permute.xlu0 0
      %495 = vperm.xlu0 %494, %v458
      %v496 = vpop.permute.xlu0 %495
      %497 = vset.pattern.permute.xlu0 0
      %498 = vperm.xlu0 %497, %v459
      %v499 = vpop.permute.xlu0 %498
      %500 = vset.pattern.permute.xlu0 0
      %501 = vperm.xlu0 %500, %v460
      %v502 = vpop.permute.xlu0 %501
      %503 = vset.pattern.permute.xlu0 0
      %504 = vperm.xlu0 %503, %v461
      %v505 = vpop.permute.xlu0 %504
      %506 = vset.pattern.permute.xlu0 0
      %507 = vperm.xlu0 %506, %v462
      %v508 = vpop.permute.xlu0 %507
      %509 = vset.pattern.permute.xlu0 0
      %510 = vperm.xlu0 %509, %v463
      %v511 = vpop.permute.xlu0 %510
      %512 = vset.pattern.permute.xlu0 0
      %513 = vperm.xlu0 %512, %v464
      %v514 = vpop.permute.xlu0 %513
      %515 = vset.pattern.permute.xlu0 0
      %516 = vperm.xlu0 %515, %v465
      %v517 = vpop.permute.xlu0 %516
      %518 = vset.pattern.permute.xlu0 0
      %519 = vperm.xlu0 %518, %v466
      %v520 = vpop.permute.xlu0 %519
      %521 = vset.pattern.permute.xlu0 0
      %522 = vperm.xlu0 %521, %v467
      %v523 = vpop.permute.xlu0 %522
      %524 = vset.pattern.permute.xlu0 0
      %525 = vperm.xlu0 %524, %v468
      %v526 = vpop.permute.xlu0 %525
      %527 = vset.pattern.permute.xlu0 0
      %528 = vperm.xlu0 %527, %v469
      %v529 = vpop.permute.xlu0 %528
      %530 = vset.pattern.permute.xlu0 0
      %531 = vperm.xlu0 %530, %v470
      %v532 = vpop.permute.xlu0 %531
      %533 = vset.pattern.permute.xlu0 0
      %534 = vperm.xlu0 %533, %v471
      %v535 = vpop.permute.xlu0 %534
      %536 = vset.pattern.permute.xlu0 0
      %537 = vperm.xlu0 %536, %v472
      %v538 = vpop.permute.xlu0 %537
      %539 = vset.pattern.permute.xlu0 0
      %540 = vperm.xlu0 %539, %v473
      %v541 = vpop.permute.xlu0 %540
      %542 = vset.pattern.permute.xlu0 0
      %543 = vperm.xlu0 %542, %v474
      %v544 = vpop.permute.xlu0 %543
      %545 = vset.pattern.permute.xlu0 0
      %546 = vperm.xlu0 %545, %v475
      %v547 = vpop.permute.xlu0 %546
      %548 = vset.pattern.permute.xlu0 0
      %549 = vperm.xlu0 %548, %v476
      %v550 = vpop.permute.xlu0 %549
      %551 = vset.pattern.permute.xlu0 0
      %552 = vperm.xlu0 %551, %v477
      %v553 = vpop.permute.xlu0 %552
      %554 = vset.pattern.permute.xlu0 0
      %555 = vperm.xlu0 %554, %v478
      %v556 = vpop.permute.xlu0 %555
      %557 = vset.pattern.permute.xlu0 0
      %558 = vperm.xlu0 %557, %v479
      %v559 = vpop.permute.xlu0 %558
      %560 = vset.pattern.permute.xlu0 0
      %561 = vperm.xlu0 %560, %v480
      %v562 = vpop.permute.xlu0 %561
      %563 = vset.pattern.permute.xlu0 0
      %564 = vperm.xlu0 %563, %v481
      %v565 = vpop.permute.xlu0 %564
      %566 = vset.pattern.permute.xlu0 0
      %567 = vperm.xlu0 %566, %v482
      %v568 = vpop.permute.xlu0 %567
      %569 = vset.pattern.permute.xlu0 0
      %570 = vperm.xlu0 %569, %v483
      %v571 = vpop.permute.xlu0 %570
      %572 = vset.pattern.permute.xlu0 0
      %573 = vperm.xlu0 %572, %v484
      %v574 = vpop.permute.xlu0 %573
      %575 = vset.pattern.permute.xlu0 0
      %576 = vperm.xlu0 %575, %v485
      %v577 = vpop.permute.xlu0 %576
      %578 = vset.pattern.permute.xlu0 0
      %579 = vperm.xlu0 %578, %v486
      %v580 = vpop.permute.xlu0 %579
      %581 = vset.pattern.permute.xlu0 0
      %582 = vperm.xlu0 %581, %v487
      %v583 = vpop.permute.xlu0 %582
      %vm584 = vcmp.eq.s32.totalorder %v455, %v490
      %vm585 = vcmp.eq.s32.totalorder %v455, %v493
      %vm586 = vcmp.eq.s32.totalorder %v455, %v496
      %vm587 = vcmp.eq.s32.totalorder %v455, %v499
      %vm588 = vcmp.eq.s32.totalorder %v455, %v502
      %vm589 = vcmp.eq.s32.totalorder %v455, %v505
      %vm590 = vcmp.eq.s32.totalorder %v455, %v508
      %vm591 = vcmp.eq.s32.totalorder %v455, %v511
      %vm592 = vcmp.eq.s32.totalorder %v455, %v514
      %vm593 = vcmp.eq.s32.totalorder %v455, %v517
      %vm594 = vcmp.eq.s32.totalorder %v455, %v520
      %vm595 = vcmp.eq.s32.totalorder %v455, %v523
      %vm596 = vcmp.eq.s32.totalorder %v455, %v526
      %vm597 = vcmp.eq.s32.totalorder %v455, %v529
      %vm598 = vcmp.eq.s32.totalorder %v455, %v532
      %vm599 = vcmp.eq.s32.totalorder %v455, %v535
      %vm600 = vcmp.eq.s32.totalorder %v455, %v538
      %vm601 = vcmp.eq.s32.totalorder %v455, %v541
      %vm602 = vcmp.eq.s32.totalorder %v455, %v544
      %vm603 = vcmp.eq.s32.totalorder %v455, %v547
      %vm604 = vcmp.eq.s32.totalorder %v455, %v550
      %vm605 = vcmp.eq.s32.totalorder %v455, %v553
      %vm606 = vcmp.eq.s32.totalorder %v455, %v556
      %vm607 = vcmp.eq.s32.totalorder %v455, %v559
      %vm608 = vcmp.eq.s32.totalorder %v455, %v562
      %vm609 = vcmp.eq.s32.totalorder %v455, %v565
      %vm610 = vcmp.eq.s32.totalorder %v455, %v568
      %vm611 = vcmp.eq.s32.totalorder %v455, %v571
      %vm612 = vcmp.eq.s32.totalorder %v455, %v574
      %vm613 = vcmp.eq.s32.totalorder %v455, %v577
      %vm614 = vcmp.eq.s32.totalorder %v455, %v580
      %vm615 = vcmp.eq.s32.totalorder %v455, %v583
      %v616 = vsel %vm584, 1.0, 0.0
      %v617 = vsel %vm585, 1.0, 0.0
      %v618 = vsel %vm586, 1.0, 0.0
      %v619 = vsel %vm587, 1.0, 0.0
      %v620 = vsel %vm588, 1.0, 0.0
      %v621 = vsel %vm589, 1.0, 0.0
      %v622 = vsel %vm590, 1.0, 0.0
      %v623 = vsel %vm591, 1.0, 0.0
      %v624 = vsel %vm592, 1.0, 0.0
      %v625 = vsel %vm593, 1.0, 0.0
      %v626 = vsel %vm594, 1.0, 0.0
      %v627 = vsel %vm595, 1.0, 0.0
      %v628 = vsel %vm596, 1.0, 0.0
      %v629 = vsel %vm597, 1.0, 0.0
      %v630 = vsel %vm598, 1.0, 0.0
      %v631 = vsel %vm599, 1.0, 0.0
      %v632 = vsel %vm600, 1.0, 0.0
      %v633 = vsel %vm601, 1.0, 0.0
      %v634 = vsel %vm602, 1.0, 0.0
      %v635 = vsel %vm603, 1.0, 0.0
      %v636 = vsel %vm604, 1.0, 0.0
      %v637 = vsel %vm605, 1.0, 0.0
      %v638 = vsel %vm606, 1.0, 0.0
      %v639 = vsel %vm607, 1.0, 0.0
      %v640 = vsel %vm608, 1.0, 0.0
      %v641 = vsel %vm609, 1.0, 0.0
      %v642 = vsel %vm610, 1.0, 0.0
      %v643 = vsel %vm611, 1.0, 0.0
      %v644 = vsel %vm612, 1.0, 0.0
      %v645 = vsel %vm613, 1.0, 0.0
      %v646 = vsel %vm614, 1.0, 0.0
      %v647 = vsel %vm615, 1.0, 0.0
      %v648 = vpack.c.bf16 %v617, %v616
      %v649 = vpack.c.bf16 %v619, %v618
      %v650 = vpack.c.bf16 %v621, %v620
      %v651 = vpack.c.bf16 %v623, %v622
      %v652 = vpack.c.bf16 %v625, %v624
      %v653 = vpack.c.bf16 %v627, %v626
      %v654 = vpack.c.bf16 %v629, %v628
      %v655 = vpack.c.bf16 %v631, %v630
      %v656 = vpack.c.bf16 %v633, %v632
      %v657 = vpack.c.bf16 %v635, %v634
      %v658 = vpack.c.bf16 %v637, %v636
      %v659 = vpack.c.bf16 %v639, %v638
      %v660 = vpack.c.bf16 %v641, %v640
      %v661 = vpack.c.bf16 %v643, %v642
      %v662 = vpack.c.bf16 %v645, %v644
      %v663 = vpack.c.bf16 %v647, %v646
      %v664 = vld [vmem:[%s4] sm:$0xff]
      %v665 = vld [vmem:[%s4 + $0x8] sm:$0xff]
      %v666 = vld [vmem:[%s4 + $0x10] sm:$0xff]
      %v667 = vld [vmem:[%s4 + $0x18] sm:$0xff]
      %v668 = vld [vmem:[%s4 + $0x20] sm:$0xff]
      %v669 = vld [vmem:[%s4 + $0x28] sm:$0xff]
      %v670 = vld [vmem:[%s4 + $0x30] sm:$0xff]
      %v671 = vld [vmem:[%s4 + $0x38] sm:$0xff]
      %v672 = vld [vmem:[%s4 + $0x40] sm:$0xff]
      %v673 = vld [vmem:[%s4 + $0x48] sm:$0xff]
      %v674 = vld [vmem:[%s4 + $0x50] sm:$0xff]
      %v675 = vld [vmem:[%s4 + $0x58] sm:$0xff]
      %v676 = vld [vmem:[%s4 + $0x60] sm:$0xff]
      %v677 = vld [vmem:[%s4 + $0x68] sm:$0xff]
      %v678 = vld [vmem:[%s4 + $0x70] sm:$0xff]
      %v679 = vld [vmem:[%s4 + $0x78] sm:$0xff]
      %v680 = vld [vmem:[%s4 + $0x80] sm:$0xff]
      %v681 = vld [vmem:[%s4 + $0x88] sm:$0xff]
      %v682 = vld [vmem:[%s4 + $0x90] sm:$0xff]
      %v683 = vld [vmem:[%s4 + $0x98] sm:$0xff]
      %v684 = vld [vmem:[%s4 + $0xa0] sm:$0xff]
      %v685 = vld [vmem:[%s4 + $0xa8] sm:$0xff]
      %v686 = vld [vmem:[%s4 + $0xb0] sm:$0xff]
      %v687 = vld [vmem:[%s4 + $0xb8] sm:$0xff]
      %v688 = vld [vmem:[%s4 + $0xc0] sm:$0xff]
      %v689 = vld [vmem:[%s4 + $0xc8] sm:$0xff]
      %v690 = vld [vmem:[%s4 + $0xd0] sm:$0xff]
      %v691 = vld [vmem:[%s4 + $0xd8] sm:$0xff]
      %v692 = vld [vmem:[%s4 + $0xe0] sm:$0xff]
      %v693 = vld [vmem:[%s4 + $0xe8] sm:$0xff]
      %v694 = vld [vmem:[%s4 + $0xf0] sm:$0xff]
      %v695 = vld [vmem:[%s4 + $0xf8] sm:$0xff]
      %v696 = vld [vmem:[%s4 + $0x100] sm:$0xff]
      %v697 = vld [vmem:[%s4 + $0x108] sm:$0xff]
      %v698 = vld [vmem:[%s4 + $0x110] sm:$0xff]
      %v699 = vld [vmem:[%s4 + $0x118] sm:$0xff]
      %v700 = vld [vmem:[%s4 + $0x120] sm:$0xff]
      %v701 = vld [vmem:[%s4 + $0x128] sm:$0xff]
      %v702 = vld [vmem:[%s4 + $0x130] sm:$0xff]
      %v703 = vld [vmem:[%s4 + $0x138] sm:$0xff]
      %v704 = vld [vmem:[%s4 + $0x140] sm:$0xff]
      %v705 = vld [vmem:[%s4 + $0x148] sm:$0xff]
      %v706 = vld [vmem:[%s4 + $0x150] sm:$0xff]
      %v707 = vld [vmem:[%s4 + $0x158] sm:$0xff]
      %v708 = vld [vmem:[%s4 + $0x160] sm:$0xff]
      %v709 = vld [vmem:[%s4 + $0x168] sm:$0xff]
      %v710 = vld [vmem:[%s4 + $0x170] sm:$0xff]
      %v711 = vld [vmem:[%s4 + $0x178] sm:$0xff]
      %v712 = vld [vmem:[%s4 + $0x180] sm:$0xff]
      %v713 = vld [vmem:[%s4 + $0x188] sm:$0xff]
      %v714 = vld [vmem:[%s4 + $0x190] sm:$0xff]
      %v715 = vld [vmem:[%s4 + $0x198] sm:$0xff]
      %v716 = vld [vmem:[%s4 + $0x1a0] sm:$0xff]
      %v717 = vld [vmem:[%s4 + $0x1a8] sm:$0xff]
      %v718 = vld [vmem:[%s4 + $0x1b0] sm:$0xff]
      %v719 = vld [vmem:[%s4 + $0x1b8] sm:$0xff]
      %v720 = vld [vmem:[%s4 + $0x1c0] sm:$0xff]
      %v721 = vld [vmem:[%s4 + $0x1c8] sm:$0xff]
      %v722 = vld [vmem:[%s4 + $0x1d0] sm:$0xff]
      %v723 = vld [vmem:[%s4 + $0x1d8] sm:$0xff]
      %v724 = vld [vmem:[%s4 + $0x1e0] sm:$0xff]
      %v725 = vld [vmem:[%s4 + $0x1e8] sm:$0xff]
      %v726 = vld [vmem:[%s4 + $0x1f0] sm:$0xff]
      %v727 = vld [vmem:[%s4 + $0x1f8] sm:$0xff]
      %v792 = vunpack.c.l.b16 %v664
      %v793 = vunpack.c.h.b16 %v664
      %v794 = vunpack.c.l.b16 %v665
      %v795 = vunpack.c.h.b16 %v665
      %v796 = vunpack.c.l.b16 %v666
      %v797 = vunpack.c.h.b16 %v666
      %v798 = vunpack.c.l.b16 %v667
      %v799 = vunpack.c.h.b16 %v667
      %v800 = vunpack.c.l.b16 %v668
      %v801 = vunpack.c.h.b16 %v668
      %v802 = vunpack.c.l.b16 %v669
      %v803 = vunpack.c.h.b16 %v669
      %v804 = vunpack.c.l.b16 %v670
      %v805 = vunpack.c.h.b16 %v670
      %v806 = vunpack.c.l.b16 %v671
      %v807 = vunpack.c.h.b16 %v671
      %v808 = vunpack.c.l.b16 %v672
      %v809 = vunpack.c.h.b16 %v672
      %v810 = vunpack.c.l.b16 %v673
      %v811 = vunpack.c.h.b16 %v673
      %v812 = vunpack.c.l.b16 %v674
      %v813 = vunpack.c.h.b16 %v674
      %v814 = vunpack.c.l.b16 %v675
      %v815 = vunpack.c.h.b16 %v675
      %v816 = vunpack.c.l.b16 %v676
      %v817 = vunpack.c.h.b16 %v676
      %v818 = vunpack.c.l.b16 %v677
      %v819 = vunpack.c.h.b16 %v677
      %v820 = vunpack.c.l.b16 %v678
      %v821 = vunpack.c.h.b16 %v678
      %v822 = vunpack.c.l.b16 %v679
      %v823 = vunpack.c.h.b16 %v679
      %v824 = vunpack.c.l.b16 %v680
      %v825 = vunpack.c.h.b16 %v680
      %v826 = vunpack.c.l.b16 %v681
      %v827 = vunpack.c.h.b16 %v681
      %v828 = vunpack.c.l.b16 %v682
      %v829 = vunpack.c.h.b16 %v682
      %v830 = vunpack.c.l.b16 %v683
      %v831 = vunpack.c.h.b16 %v683
      %v832 = vunpack.c.l.b16 %v684
      %v833 = vunpack.c.h.b16 %v684
      %v834 = vunpack.c.l.b16 %v685
      %v835 = vunpack.c.h.b16 %v685
      %v836 = vunpack.c.l.b16 %v686
      %v837 = vunpack.c.h.b16 %v686
      %v838 = vunpack.c.l.b16 %v687
      %v839 = vunpack.c.h.b16 %v687
      %v840 = vunpack.c.l.b16 %v688
      %v841 = vunpack.c.h.b16 %v688
      %v842 = vunpack.c.l.b16 %v689
      %v843 = vunpack.c.h.b16 %v689
      %v844 = vunpack.c.l.b16 %v690
      %v845 = vunpack.c.h.b16 %v690
      %v846 = vunpack.c.l.b16 %v691
      %v847 = vunpack.c.h.b16 %v691
      %v848 = vunpack.c.l.b16 %v692
      %v849 = vunpack.c.h.b16 %v692
      %v850 = vunpack.c.l.b16 %v693
      %v851 = vunpack.c.h.b16 %v693
      %v852 = vunpack.c.l.b16 %v694
      %v853 = vunpack.c.h.b16 %v694
      %v854 = vunpack.c.l.b16 %v695
      %v855 = vunpack.c.h.b16 %v695
      %v856 = vunpack.c.l.b16 %v696
      %v857 = vunpack.c.h.b16 %v696
      %v858 = vunpack.c.l.b16 %v697
      %v859 = vunpack.c.h.b16 %v697
      %v860 = vunpack.c.l.b16 %v698
      %v861 = vunpack.c.h.b16 %v698
      %v862 = vunpack.c.l.b16 %v699
      %v863 = vunpack.c.h.b16 %v699
      %v864 = vunpack.c.l.b16 %v700
      %v865 = vunpack.c.h.b16 %v700
      %v866 = vunpack.c.l.b16 %v701
      %v867 = vunpack.c.h.b16 %v701
      %v868 = vunpack.c.l.b16 %v702
      %v869 = vunpack.c.h.b16 %v702
      %v870 = vunpack.c.l.b16 %v703
      %v871 = vunpack.c.h.b16 %v703
      %v872 = vunpack.c.l.b16 %v704
      %v873 = vunpack.c.h.b16 %v704
      %v874 = vunpack.c.l.b16 %v705
      %v875 = vunpack.c.h.b16 %v705
      %v876 = vunpack.c.l.b16 %v706
      %v877 = vunpack.c.h.b16 %v706
      %v878 = vunpack.c.l.b16 %v707
      %v879 = vunpack.c.h.b16 %v707
      %v880 = vunpack.c.l.b16 %v708
      %v881 = vunpack.c.h.b16 %v708
      %v882 = vunpack.c.l.b16 %v709
      %v883 = vunpack.c.h.b16 %v709
      %v884 = vunpack.c.l.b16 %v710
      %v885 = vunpack.c.h.b16 %v710
      %v886 = vunpack.c.l.b16 %v711
      %v887 = vunpack.c.h.b16 %v711
      %v888 = vunpack.c.l.b16 %v712
      %v889 = vunpack.c.h.b16 %v712
      %v890 = vunpack.c.l.b16 %v713
      %v891 = vunpack.c.h.b16 %v713
      %v892 = vunpack.c.l.b16 %v714
      %v893 = vunpack.c.h.b16 %v714
      %v894 = vunpack.c.l.b16 %v715
      %v895 = vunpack.c.h.b16 %v715
      %v896 = vunpack.c.l.b16 %v716
      %v897 = vunpack.c.h.b16 %v716
      %v898 = vunpack.c.l.b16 %v717
      %v899 = vunpack.c.h.b16 %v717
      %v900 = vunpack.c.l.b16 %v718
      %v901 = vunpack.c.h.b16 %v718
      %v902 = vunpack.c.l.b16 %v719
      %v903 = vunpack.c.h.b16 %v719
      %v904 = vunpack.c.l.b16 %v720
      %v905 = vunpack.c.h.b16 %v720
      %v906 = vunpack.c.l.b16 %v721
      %v907 = vunpack.c.h.b16 %v721
      %v908 = vunpack.c.l.b16 %v722
      %v909 = vunpack.c.h.b16 %v722
      %v910 = vunpack.c.l.b16 %v723
      %v911 = vunpack.c.h.b16 %v723
      %v912 = vunpack.c.l.b16 %v724
      %v913 = vunpack.c.h.b16 %v724
      %v914 = vunpack.c.l.b16 %v725
      %v915 = vunpack.c.h.b16 %v725
      %v916 = vunpack.c.l.b16 %v726
      %v917 = vunpack.c.h.b16 %v726
      %v918 = vunpack.c.l.b16 %v727
      %v919 = vunpack.c.h.b16 %v727
      %v920 = vpack.c.b16 %v800, %v792
      %v921 = vpack.c.b16 %v801, %v793
      %v922 = vpack.c.b16 %v802, %v794
      %v923 = vpack.c.b16 %v803, %v795
      %v924 = vpack.c.b16 %v804, %v796
      %v925 = vpack.c.b16 %v805, %v797
      %v926 = vpack.c.b16 %v806, %v798
      %v927 = vpack.c.b16 %v807, %v799
      %v928 = vpack.c.b16 %v816, %v808
      %v929 = vpack.c.b16 %v817, %v809
      %v930 = vpack.c.b16 %v818, %v810
      %v931 = vpack.c.b16 %v819, %v811
      %v932 = vpack.c.b16 %v820, %v812
      %v933 = vpack.c.b16 %v821, %v813
      %v934 = vpack.c.b16 %v822, %v814
      %v935 = vpack.c.b16 %v823, %v815
      %v936 = vpack.c.b16 %v832, %v824
      %v937 = vpack.c.b16 %v833, %v825
      %v938 = vpack.c.b16 %v834, %v826
      %v939 = vpack.c.b16 %v835, %v827
      %v940 = vpack.c.b16 %v836, %v828
      %v941 = vpack.c.b16 %v837, %v829
      %v942 = vpack.c.b16 %v838, %v830
      %v943 = vpack.c.b16 %v839, %v831
      %v944 = vpack.c.b16 %v848, %v840
      %v945 = vpack.c.b16 %v849, %v841
      %v946 = vpack.c.b16 %v850, %v842
      %v947 = vpack.c.b16 %v851, %v843
      %v948 = vpack.c.b16 %v852, %v844
      %v949 = vpack.c.b16 %v853, %v845
      %v950 = vpack.c.b16 %v854, %v846
      %v951 = vpack.c.b16 %v855, %v847
      %v952 = vpack.c.b16 %v864, %v856
      %v953 = vpack.c.b16 %v865, %v857
      %v954 = vpack.c.b16 %v866, %v858
      %v955 = vpack.c.b16 %v867, %v859
      %v956 = vpack.c.b16 %v868, %v860
      %v957 = vpack.c.b16 %v869, %v861
      %v958 = vpack.c.b16 %v870, %v862
      %v959 = vpack.c.b16 %v871, %v863
      %v960 = vpack.c.b16 %v880, %v872
      %v961 = vpack.c.b16 %v881, %v873
      %v962 = vpack.c.b16 %v882, %v874
      %v963 = vpack.c.b16 %v883, %v875
      %v964 = vpack.c.b16 %v884, %v876
      %v965 = vpack.c.b16 %v885, %v877
      %v966 = vpack.c.b16 %v886, %v878
      %v967 = vpack.c.b16 %v887, %v879
      %v968 = vpack.c.b16 %v896, %v888
      %v969 = vpack.c.b16 %v897, %v889
      %v970 = vpack.c.b16 %v898, %v890
      %v971 = vpack.c.b16 %v899, %v891
      %v972 = vpack.c.b16 %v900, %v892
      %v973 = vpack.c.b16 %v901, %v893
      %v974 = vpack.c.b16 %v902, %v894
      %v975 = vpack.c.b16 %v903, %v895
      %v976 = vpack.c.b16 %v912, %v904
      %v977 = vpack.c.b16 %v913, %v905
      %v978 = vpack.c.b16 %v914, %v906
      %v979 = vpack.c.b16 %v915, %v907
      %v980 = vpack.c.b16 %v916, %v908
      %v981 = vpack.c.b16 %v917, %v909
      %v982 = vpack.c.b16 %v918, %v910
      %v983 = vpack.c.b16 %v919, %v911
      %1048 = vmatprep.subr.bf16.mxu0 %v921
      %1049 = vmatpush1.bf16.msra.mxu0 %v920
      %1050 = vmatprep.subr.bf16.mxu0 %v929
      %1051 = vmatpush1.bf16.msra.mxu0 %v928
      %1052 = vmatprep.subr.bf16.mxu0 %v937
      %1053 = vmatpush1.bf16.msra.mxu0 %v936
      %1054 = vmatprep.subr.bf16.mxu0 %v945
      %1055 = vmatpush1.bf16.msra.mxu0 %v944
      %1056 = vmatprep.subr.bf16.mxu0 %v953
      %1057 = vmatpush1.bf16.msra.mxu0 %v952
      %1058 = vmatprep.subr.bf16.mxu0 %v961
      %1059 = vmatpush1.bf16.msra.mxu0 %v960
      %1060 = vmatprep.subr.bf16.mxu0 %v969
      %1061 = vmatpush1.bf16.msra.mxu0 %v968
      %1062 = vmatprep.subr.bf16.mxu0 %v977
      %1063 = vmatpush1.bf16.msra.mxu0 %v976
      %1064 = vmatprep.subr.bf16.mxu0 0
      %1065 = vmatpush1.bf16.msra.mxu0 0
      %1066 = vmatprep.subr.bf16.mxu0 0
      %1067 = vmatpush1.bf16.msra.mxu0 0
      %1068 = vmatprep.subr.bf16.mxu0 0
      %1069 = vmatpush1.bf16.msra.mxu0 0
      %1070 = vmatprep.subr.bf16.mxu0 0
      %1071 = vmatpush1.bf16.msra.mxu0 0
      %1072 = vmatprep.subr.bf16.mxu0 0
      %1073 = vmatpush1.bf16.msra.mxu0 0
      %1074 = vmatprep.subr.bf16.mxu0 0
      %1075 = vmatpush1.bf16.msra.mxu0 0
      %1076 = vmatprep.subr.bf16.mxu0 0
      %1077 = vmatpush1.bf16.msra.mxu0 0
      %1078 = vmatprep.subr.bf16.mxu0 0
      %1079 = vmatpush1.bf16.msra.mxu0 0
      %1080 = vmatprep.mubr.bf16.mxu0 0
      %1081 = vmatmul.mubr.bf16.gmra.mrb[0].mxu0 %v648
      %v1082 = vpop.f32.mrb[0].mxu0
      %v1083 = vadd.f32 0.0, %v1082
      %v1084 = vpop.f32.mrb[0].mxu0
      %v1085 = vadd.f32 0.0, %v1084
      %v1086 = vpop.f32.mrb[0].mxu0
      %v1087 = vadd.f32 0.0, %v1086
      %v1088 = vpop.f32.mrb[0].mxu0
      %v1089 = vadd.f32 0.0, %v1088
      %1090 = vmatprep.mubr.bf16.mxu0 0
      %1091 = vmatmul.mubr.bf16.gmra.mrb[0].mxu0 %v649
      %v1092 = vpop.f32.mrb[0].mxu0
      %v1093 = vadd.f32 0.0, %v1092
      %v1094 = vpop.f32.mrb[0].mxu0
      %v1095 = vadd.f32 0.0, %v1094
      %v1096 = vpop.f32.mrb[0].mxu0
      %v1097 = vadd.f32 0.0, %v1096
      %v1098 = vpop.f32.mrb[0].mxu0
      %v1099 = vadd.f32 0.0, %v1098
      %1100 = vmatprep.mubr.bf16.mxu0 0
      %1101 = vmatmul.mubr.bf16.gmra.mrb[0].mxu0 %v650
      %v1102 = vpop.f32.mrb[0].mxu0
      %v1103 = vadd.f32 0.0, %v1102
      %v1104 = vpop.f32.mrb[0].mxu0
      %v1105 = vadd.f32 0.0, %v1104
      %v1106 = vpop.f32.mrb[0].mxu0
      %v1107 = vadd.f32 0.0, %v1106
      %v1108 = vpop.f32.mrb[0].mxu0
      %v1109 = vadd.f32 0.0, %v1108
      %1110 = vmatprep.mubr.bf16.mxu0 0
      %1111 = vmatmul.mubr.bf16.gmra.mrb[0].mxu0 %v651
      %v1112 = vpop.f32.mrb[0].mxu0
      %v1113 = vadd.f32 0.0, %v1112
      %v1114 = vpop.f32.mrb[0].mxu0
      %v1115 = vadd.f32 0.0, %v1114
      %v1116 = vpop.f32.mrb[0].mxu0
      %v1117 = vadd.f32 0.0, %v1116
      %v1118 = vpop.f32.mrb[0].mxu0
      %v1119 = vadd.f32 0.0, %v1118
      %1120 = vmatprep.mubr.bf16.mxu0 0
      %1121 = vmatmul.mubr.bf16.gmra.mrb[0].mxu0 %v652
      %v1122 = vpop.f32.mrb[0].mxu0
      %v1123 = vadd.f32 0.0, %v1122
      %v1124 = vpop.f32.mrb[0].mxu0
      %v1125 = vadd.f32 0.0, %v1124
      %v1126 = vpop.f32.mrb[0].mxu0
      %v1127 = vadd.f32 0.0, %v1126
      %v1128 = vpop.f32.mrb[0].mxu0
      %v1129 = vadd.f32 0.0, %v1128
      %1130 = vmatprep.mubr.bf16.mxu0 0
      %1131 = vmatmul.mubr.bf16.gmra.mrb[0].mxu0 %v653
      %v1132 = vpop.f32.mrb[0].mxu0
      %v1133 = vadd.f32 0.0, %v1132
      %v1134 = vpop.f32.mrb[0].mxu0
      %v1135 = vadd.f32 0.0, %v1134
      %v1136 = vpop.f32.mrb[0].mxu0
      %v1137 = vadd.f32 0.0, %v1136
      %v1138 = vpop.f32.mrb[0].mxu0
      %v1139 = vadd.f32 0.0, %v1138
      %1140 = vmatprep.mubr.bf16.mxu0 0
      %1141 = vmatmul.mubr.bf16.gmra.mrb[0].mxu0 %v654
      %v1142 = vpop.f32.mrb[0].mxu0
      %v1143 = vadd.f32 0.0, %v1142
      %v1144 = vpop.f32.mrb[0].mxu0
      %v1145 = vadd.f32 0.0, %v1144
      %v1146 = vpop.f32.mrb[0].mxu0
      %v1147 = vadd.f32 0.0, %v1146
      %v1148 = vpop.f32.mrb[0].mxu0
      %v1149 = vadd.f32 0.0, %v1148
      %1150 = vmatprep.mubr.bf16.mxu0 0
      %1151 = vmatmul.mubr.bf16.gmra.mrb[0].mxu0 %v655
      %v1152 = vpop.f32.mrb[0].mxu0
      %v1153 = vadd.f32 0.0, %v1152
      %v1154 = vpop.f32.mrb[0].mxu0
      %v1155 = vadd.f32 0.0, %v1154
      %v1156 = vpop.f32.mrb[0].mxu0
      %v1157 = vadd.f32 0.0, %v1156
      %v1158 = vpop.f32.mrb[0].mxu0
      %v1159 = vadd.f32 0.0, %v1158
      %1160 = vmatprep.mubr.bf16.mxu0 0
      %1161 = vmatmul.mubr.bf16.gmra.mrb[0].mxu0 %v656
      %v1162 = vpop.f32.mrb[0].mxu0
      %v1163 = vadd.f32 0.0, %v1162
      %v1164 = vpop.f32.mrb[0].mxu0
      %v1165 = vadd.f32 0.0, %v1164
      %v1166 = vpop.f32.mrb[0].mxu0
      %v1167 = vadd.f32 0.0, %v1166
      %v1168 = vpop.f32.mrb[0].mxu0
      %v1169 = vadd.f32 0.0, %v1168
      %1170 = vmatprep.mubr.bf16.mxu0 0
      %1171 = vmatmul.mubr.bf16.gmra.mrb[0].mxu0 %v657
      %v1172 = vpop.f32.mrb[0].mxu0
      %v1173 = vadd.f32 0.0, %v1172
      %v1174 = vpop.f32.mrb[0].mxu0
      %v1175 = vadd.f32 0.0, %v1174
      %v1176 = vpop.f32.mrb[0].mxu0
      %v1177 = vadd.f32 0.0, %v1176
      %v1178 = vpop.f32.mrb[0].mxu0
      %v1179 = vadd.f32 0.0, %v1178
      %1180 = vmatprep.mubr.bf16.mxu0 0
      %1181 = vmatmul.mubr.bf16.gmra.mrb[0].mxu0 %v658
      %v1182 = vpop.f32.mrb[0].mxu0
      %v1183 = vadd.f32 0.0, %v1182
      %v1184 = vpop.f32.mrb[0].mxu0
      %v1185 = vadd.f32 0.0, %v1184
      %v1186 = vpop.f32.mrb[0].mxu0
      %v1187 = vadd.f32 0.0, %v1186
      %v1188 = vpop.f32.mrb[0].mxu0
      %v1189 = vadd.f32 0.0, %v1188
      %1190 = vmatprep.mubr.bf16.mxu0 0
      %1191 = vmatmul.mubr.bf16.gmra.mrb[0].mxu0 %v659
      %v1192 = vpop.f32.mrb[0].mxu0
      %v1193 = vadd.f32 0.0, %v1192
      %v1194 = vpop.f32.mrb[0].mxu0
      %v1195 = vadd.f32 0.0, %v1194
      %v1196 = vpop.f32.mrb[0].mxu0
      %v1197 = vadd.f32 0.0, %v1196
      %v1198 = vpop.f32.mrb[0].mxu0
      %v1199 = vadd.f32 0.0, %v1198
      %1200 = vmatprep.mubr.bf16.mxu0 0
      %1201 = vmatmul.mubr.bf16.gmra.mrb[0].mxu0 %v660
      %v1202 = vpop.f32.mrb[0].mxu0
      %v1203 = vadd.f32 0.0, %v1202
      %v1204 = vpop.f32.mrb[0].mxu0
      %v1205 = vadd.f32 0.0, %v1204
      %v1206 = vpop.f32.mrb[0].mxu0
      %v1207 = vadd.f32 0.0, %v1206
      %v1208 = vpop.f32.mrb[0].mxu0
      %v1209 = vadd.f32 0.0, %v1208
      %1210 = vmatprep.mubr.bf16.mxu0 0
      %1211 = vmatmul.mubr.bf16.gmra.mrb[0].mxu0 %v661
      %v1212 = vpop.f32.mrb[0].mxu0
      %v1213 = vadd.f32 0.0, %v1212
      %v1214 = vpop.f32.mrb[0].mxu0
      %v1215 = vadd.f32 0.0, %v1214
      %v1216 = vpop.f32.mrb[0].mxu0
      %v1217 = vadd.f32 0.0, %v1216
      %v1218 = vpop.f32.mrb[0].mxu0
      %v1219 = vadd.f32 0.0, %v1218
      %1220 = vmatprep.mubr.bf16.mxu0 0
      %1221 = vmatmul.mubr.bf16.gmra.mrb[0].mxu0 %v662
      %v1222 = vpop.f32.mrb[0].mxu0
      %v1223 = vadd.f32 0.0, %v1222
      %v1224 = vpop.f32.mrb[0].mxu0
      %v1225 = vadd.f32 0.0, %v1224
      %v1226 = vpop.f32.mrb[0].mxu0
      %v1227 = vadd.f32 0.0, %v1226
      %v1228 = vpop.f32.mrb[0].mxu0
      %v1229 = vadd.f32 0.0, %v1228
      %1230 = vmatprep.mubr.bf16.mxu0 0
      %1231 = vmatmul.mubr.bf16.gmra.mrb[0].mxu0 %v663
      %v1232 = vpop.f32.mrb[0].mxu0
      %v1233 = vadd.f32 0.0, %v1232
      %v1234 = vpop.f32.mrb[0].mxu0
      %v1235 = vadd.f32 0.0, %v1234
      %v1236 = vpop.f32.mrb[0].mxu0
      %v1237 = vadd.f32 0.0, %v1236
      %v1238 = vpop.f32.mrb[0].mxu0
      %v1239 = vadd.f32 0.0, %v1238
      %1240 = vdwg.mxu0
      %1241 = vmatprep.subr.bf16.mxu0 %v923
      %1242 = vmatpush1.bf16.msra.mxu0 %v922
      %1243 = vmatprep.subr.bf16.mxu0 %v931
      %1244 = vmatpush1.bf16.msra.mxu0 %v930
      %1245 = vmatprep.subr.bf16.mxu0 %v939
      %1246 = vmatpush1.bf16.msra.mxu0 %v938
      %1247 = vmatprep.subr.bf16.mxu0 %v947
      %1248 = vmatpush1.bf16.msra.mxu0 %v946
      %1249 = vmatprep.subr.bf16.mxu0 %v955
      %1250 = vmatpush1.bf16.msra.mxu0 %v954
      %1251 = vmatprep.subr.bf16.mxu0 %v963
      %1252 = vmatpush1.bf16.msra.mxu0 %v962
      %1253 = vmatprep.subr.bf16.mxu0 %v971
      %1254 = vmatpush1.bf16.msra.mxu0 %v970
      %1255 = vmatprep.subr.bf16.mxu0 %v979
      %1256 = vmatpush1.bf16.msra.mxu0 %v978
      %1257 = vmatprep.subr.bf16.mxu0 0
      %1258 = vmatpush1.bf16.msra.mxu0 0
      %1259 = vmatprep.subr.bf16.mxu0 0
      %1260 = vmatpush1.bf16.msra.mxu0 0
      %1261 = vmatprep.subr.bf16.mxu0 0
      %1262 = vmatpush1.bf16.msra.mxu0 0
      %1263 = vmatprep.subr.bf16.mxu0 0
      %1264 = vmatpush1.bf16.msra.mxu0 0
      %1265 = vmatprep.subr.bf16.mxu0 0
      %1266 = vmatpush1.bf16.msra.mxu0 0
      %1267 = vmatprep.subr.bf16.mxu0 0
      %1268 = vmatpush1.bf16.msra.mxu0 0
      %1269 = vmatprep.subr.bf16.mxu0 0
      %1270 = vmatpush1.bf16.msra.mxu0 0
      %1271 = vmatprep.subr.bf16.mxu0 0
      %1272 = vmatpush1.bf16.msra.mxu0 0
      %1273 = vmatprep.mubr.bf16.mxu0 0
      %1274 = vmatmul.mubr.bf16.gmra.mrb[0].mxu0 %v648
      %v1275 = vpop.f32.mrb[0].mxu0
      %v1276 = vadd.f32 0.0, %v1275
      %v1277 = vpop.f32.mrb[0].mxu0
      %v1278 = vadd.f32 0.0, %v1277
      %v1279 = vpop.f32.mrb[0].mxu0
      %v1280 = vadd.f32 0.0, %v1279
      %v1281 = vpop.f32.mrb[0].mxu0
      %v1282 = vadd.f32 0.0, %v1281
      %1283 = vmatprep.mubr.bf16.mxu0 0
      %1284 = vmatmul.mubr.bf16.gmra.mrb[0].mxu0 %v649
      %v1285 = vpop.f32.mrb[0].mxu0
      %v1286 = vadd.f32 0.0, %v1285
      %v1287 = vpop.f32.mrb[0].mxu0
      %v1288 = vadd.f32 0.0, %v1287
      %v1289 = vpop.f32.mrb[0].mxu0
      %v1290 = vadd.f32 0.0, %v1289
      %v1291 = vpop.f32.mrb[0].mxu0
      %v1292 = vadd.f32 0.0, %v1291
      %1293 = vmatprep.mubr.bf16.mxu0 0
      %1294 = vmatmul.mubr.bf16.gmra.mrb[0].mxu0 %v650
      %v1295 = vpop.f32.mrb[0].mxu0
      %v1296 = vadd.f32 0.0, %v1295
      %v1297 = vpop.f32.mrb[0].mxu0
      %v1298 = vadd.f32 0.0, %v1297
      %v1299 = vpop.f32.mrb[0].mxu0
      %v1300 = vadd.f32 0.0, %v1299
      %v1301 = vpop.f32.mrb[0].mxu0
      %v1302 = vadd.f32 0.0, %v1301
      %1303 = vmatprep.mubr.bf16.mxu0 0
      %1304 = vmatmul.mubr.bf16.gmra.mrb[0].mxu0 %v651
      %v1305 = vpop.f32.mrb[0].mxu0
      %v1306 = vadd.f32 0.0, %v1305
      %v1307 = vpop.f32.mrb[0].mxu0
      %v1308 = vadd.f32 0.0, %v1307
      %v1309 = vpop.f32.mrb[0].mxu0
      %v1310 = vadd.f32 0.0, %v1309
      %v1311 = vpop.f32.mrb[0].mxu0
      %v1312 = vadd.f32 0.0, %v1311
      %1313 = vmatprep.mubr.bf16.mxu0 0
      %1314 = vmatmul.mubr.bf16.gmra.mrb[0].mxu0 %v652
      %v1315 = vpop.f32.mrb[0].mxu0
      %v1316 = vadd.f32 0.0, %v1315
      %v1317 = vpop.f32.mrb[0].mxu0
      %v1318 = vadd.f32 0.0, %v1317
      %v1319 = vpop.f32.mrb[0].mxu0
      %v1320 = vadd.f32 0.0, %v1319
      %v1321 = vpop.f32.mrb[0].mxu0
      %v1322 = vadd.f32 0.0, %v1321
      %1323 = vmatprep.mubr.bf16.mxu0 0
      %1324 = vmatmul.mubr.bf16.gmra.mrb[0].mxu0 %v653
      %v1325 = vpop.f32.mrb[0].mxu0
      %v1326 = vadd.f32 0.0, %v1325
      %v1327 = vpop.f32.mrb[0].mxu0
      %v1328 = vadd.f32 0.0, %v1327
      %v1329 = vpop.f32.mrb[0].mxu0
      %v1330 = vadd.f32 0.0, %v1329
      %v1331 = vpop.f32.mrb[0].mxu0
      %v1332 = vadd.f32 0.0, %v1331
      %1333 = vmatprep.mubr.bf16.mxu0 0
      %1334 = vmatmul.mubr.bf16.gmra.mrb[0].mxu0 %v654
      %v1335 = vpop.f32.mrb[0].mxu0
      %v1336 = vadd.f32 0.0, %v1335
      %v1337 = vpop.f32.mrb[0].mxu0
      %v1338 = vadd.f32 0.0, %v1337
      %v1339 = vpop.f32.mrb[0].mxu0
      %v1340 = vadd.f32 0.0, %v1339
      %v1341 = vpop.f32.mrb[0].mxu0
      %v1342 = vadd.f32 0.0, %v1341
      %1343 = vmatprep.mubr.bf16.mxu0 0
      %1344 = vmatmul.mubr.bf16.gmra.mrb[0].mxu0 %v655
      %v1345 = vpop.f32.mrb[0].mxu0
      %v1346 = vadd.f32 0.0, %v1345
      %v1347 = vpop.f32.mrb[0].mxu0
      %v1348 = vadd.f32 0.0, %v1347
      %v1349 = vpop.f32.mrb[0].mxu0
      %v1350 = vadd.f32 0.0, %v1349
      %v1351 = vpop.f32.mrb[0].mxu0
      %v1352 = vadd.f32 0.0, %v1351
      %1353 = vmatprep.mubr.bf16.mxu0 0
      %1354 = vmatmul.mubr.bf16.gmra.mrb[0].mxu0 %v656
      %v1355 = vpop.f32.mrb[0].mxu0
      %v1356 = vadd.f32 0.0, %v1355
      %v1357 = vpop.f32.mrb[0].mxu0
      %v1358 = vadd.f32 0.0, %v1357
      %v1359 = vpop.f32.mrb[0].mxu0
      %v1360 = vadd.f32 0.0, %v1359
      %v1361 = vpop.f32.mrb[0].mxu0
      %v1362 = vadd.f32 0.0, %v1361
      %1363 = vmatprep.mubr.bf16.mxu0 0
      %1364 = vmatmul.mubr.bf16.gmra.mrb[0].mxu0 %v657
      %v1365 = vpop.f32.mrb[0].mxu0
      %v1366 = vadd.f32 0.0, %v1365
      %v1367 = vpop.f32.mrb[0].mxu0
      %v1368 = vadd.f32 0.0, %v1367
      %v1369 = vpop.f32.mrb[0].mxu0
      %v1370 = vadd.f32 0.0, %v1369
      %v1371 = vpop.f32.mrb[0].mxu0
      %v1372 = vadd.f32 0.0, %v1371
      %1373 = vmatprep.mubr.bf16.mxu0 0
      %1374 = vmatmul.mubr.bf16.gmra.mrb[0].mxu0 %v658
      %v1375 = vpop.f32.mrb[0].mxu0
      %v1376 = vadd.f32 0.0, %v1375
      %v1377 = vpop.f32.mrb[0].mxu0
      %v1378 = vadd.f32 0.0, %v1377
      %v1379 = vpop.f32.mrb[0].mxu0
      %v1380 = vadd.f32 0.0, %v1379
      %v1381 = vpop.f32.mrb[0].mxu0
      %v1382 = vadd.f32 0.0, %v1381
      %1383 = vmatprep.mubr.bf16.mxu0 0
      %1384 = vmatmul.mubr.bf16.gmra.mrb[0].mxu0 %v659
      %v1385 = vpop.f32.mrb[0].mxu0
      %v1386 = vadd.f32 0.0, %v1385
      %v1387 = vpop.f32.mrb[0].mxu0
      %v1388 = vadd.f32 0.0, %v1387
      %v1389 = vpop.f32.mrb[0].mxu0
      %v1390 = vadd.f32 0.0, %v1389
      %v1391 = vpop.f32.mrb[0].mxu0
      %v1392 = vadd.f32 0.0, %v1391
      %1393 = vmatprep.mubr.bf16.mxu0 0
      %1394 = vmatmul.mubr.bf16.gmra.mrb[0].mxu0 %v660
      %v1395 = vpop.f32.mrb[0].mxu0
      %v1396 = vadd.f32 0.0, %v1395
      %v1397 = vpop.f32.mrb[0].mxu0
      %v1398 = vadd.f32 0.0, %v1397
      %v1399 = vpop.f32.mrb[0].mxu0
      %v1400 = vadd.f32 0.0, %v1399
      %v1401 = vpop.f32.mrb[0].mxu0
      %v1402 = vadd.f32 0.0, %v1401
      %1403 = vmatprep.mubr.bf16.mxu0 0
      %1404 = vmatmul.mubr.bf16.gmra.mrb[0].mxu0 %v661
      %v1405 = vpop.f32.mrb[0].mxu0
      %v1406 = vadd.f32 0.0, %v1405
      %v1407 = vpop.f32.mrb[0].mxu0
      %v1408 = vadd.f32 0.0, %v1407
      %v1409 = vpop.f32.mrb[0].mxu0
      %v1410 = vadd.f32 0.0, %v1409
      %v1411 = vpop.f32.mrb[0].mxu0
      %v1412 = vadd.f32 0.0, %v1411
      %1413 = vmatprep.mubr.bf16.mxu0 0
      %1414 = vmatmul.mubr.bf16.gmra.mrb[0].mxu0 %v662
      %v1415 = vpop.f32.mrb[0].mxu0
      %v1416 = vadd.f32 0.0, %v1415
      %v1417 = vpop.f32.mrb[0].mxu0
      %v1418 = vadd.f32 0.0, %v1417
      %v1419 = vpop.f32.mrb[0].mxu0
      %v1420 = vadd.f32 0.0, %v1419
      %v1421 = vpop.f32.mrb[0].mxu0
      %v1422 = vadd.f32 0.0, %v1421
      %1423 = vmatprep.mubr.bf16.mxu0 0
      %1424 = vmatmul.mubr.bf16.gmra.mrb[0].mxu0 %v663
      %v1425 = vpop.f32.mrb[0].mxu0
      %v1426 = vadd.f32 0.0, %v1425
      %v1427 = vpop.f32.mrb[0].mxu0
      %v1428 = vadd.f32 0.0, %v1427
      %v1429 = vpop.f32.mrb[0].mxu0
      %v1430 = vadd.f32 0.0, %v1429
      %v1431 = vpop.f32.mrb[0].mxu0
      %v1432 = vadd.f32 0.0, %v1431
      %1433 = vdwg.mxu0
      %1434 = vmatprep.subr.bf16.mxu0 %v925
      %1435 = vmatpush1.bf16.msra.mxu0 %v924
      %1436 = vmatprep.subr.bf16.mxu0 %v933
      %1437 = vmatpush1.bf16.msra.mxu0 %v932
      %1438 = vmatprep.subr.bf16.mxu0 %v941
      %1439 = vmatpush1.bf16.msra.mxu0 %v940
      %1440 = vmatprep.subr.bf16.mxu0 %v949
      %1441 = vmatpush1.bf16.msra.mxu0 %v948
      %1442 = vmatprep.subr.bf16.mxu0 %v957
      %1443 = vmatpush1.bf16.msra.mxu0 %v956
      %1444 = vmatprep.subr.bf16.mxu0 %v965
      %1445 = vmatpush1.bf16.msra.mxu0 %v964
      %1446 = vmatprep.subr.bf16.mxu0 %v973
      %1447 = vmatpush1.bf16.msra.mxu0 %v972
      %1448 = vmatprep.subr.bf16.mxu0 %v981
      %1449 = vmatpush1.bf16.msra.mxu0 %v980
      %1450 = vmatprep.subr.bf16.mxu0 0
      %1451 = vmatpush1.bf16.msra.mxu0 0
      %1452 = vmatprep.subr.bf16.mxu0 0
      %1453 = vmatpush1.bf16.msra.mxu0 0
      %1454 = vmatprep.subr.bf16.mxu0 0
      %1455 = vmatpush1.bf16.msra.mxu0 0
      %1456 = vmatprep.subr.bf16.mxu0 0
      %1457 = vmatpush1.bf16.msra.mxu0 0
      %1458 = vmatprep.subr.bf16.mxu0 0
      %1459 = vmatpush1.bf16.msra.mxu0 0
      %1460 = vmatprep.subr.bf16.mxu0 0
      %1461 = vmatpush1.bf16.msra.mxu0 0
      %1462 = vmatprep.subr.bf16.mxu0 0
      %1463 = vmatpush1.bf16.msra.mxu0 0
      %1464 = vmatprep.subr.bf16.mxu0 0
      %1465 = vmatpush1.bf16.msra.mxu0 0
      %1466 = vmatprep.mubr.bf16.mxu0 0
      %1467 = vmatmul.mubr.bf16.gmra.mrb[0].mxu0 %v648
      %v1468 = vpop.f32.mrb[0].mxu0
      %v1469 = vadd.f32 0.0, %v1468
      %v1470 = vpop.f32.mrb[0].mxu0
      %v1471 = vadd.f32 0.0, %v1470
      %v1472 = vpop.f32.mrb[0].mxu0
      %v1473 = vadd.f32 0.0, %v1472
      %v1474 = vpop.f32.mrb[0].mxu0
      %v1475 = vadd.f32 0.0, %v1474
      %1476 = vmatprep.mubr.bf16.mxu0 0
      %1477 = vmatmul.mubr.bf16.gmra.mrb[0].mxu0 %v649
      %v1478 = vpop.f32.mrb[0].mxu0
      %v1479 = vadd.f32 0.0, %v1478
      %v1480 = vpop.f32.mrb[0].mxu0
      %v1481 = vadd.f32 0.0, %v1480
      %v1482 = vpop.f32.mrb[0].mxu0
      %v1483 = vadd.f32 0.0, %v1482
      %v1484 = vpop.f32.mrb[0].mxu0
      %v1485 = vadd.f32 0.0, %v1484
      %1486 = vmatprep.mubr.bf16.mxu0 0
      %1487 = vmatmul.mubr.bf16.gmra.mrb[0].mxu0 %v650
      %v1488 = vpop.f32.mrb[0].mxu0
      %v1489 = vadd.f32 0.0, %v1488
      %v1490 = vpop.f32.mrb[0].mxu0
      %v1491 = vadd.f32 0.0, %v1490
      %v1492 = vpop.f32.mrb[0].mxu0
      %v1493 = vadd.f32 0.0, %v1492
      %v1494 = vpop.f32.mrb[0].mxu0
      %v1495 = vadd.f32 0.0, %v1494
      %1496 = vmatprep.mubr.bf16.mxu0 0
      %1497 = vmatmul.mubr.bf16.gmra.mrb[0].mxu0 %v651
      %v1498 = vpop.f32.mrb[0].mxu0
      %v1499 = vadd.f32 0.0, %v1498
      %v1500 = vpop.f32.mrb[0].mxu0
      %v1501 = vadd.f32 0.0, %v1500
      %v1502 = vpop.f32.mrb[0].mxu0
      %v1503 = vadd.f32 0.0, %v1502
      %v1504 = vpop.f32.mrb[0].mxu0
      %v1505 = vadd.f32 0.0, %v1504
      %1506 = vmatprep.mubr.bf16.mxu0 0
      %1507 = vmatmul.mubr.bf16.gmra.mrb[0].mxu0 %v652
      %v1508 = vpop.f32.mrb[0].mxu0
      %v1509 = vadd.f32 0.0, %v1508
      %v1510 = vpop.f32.mrb[0].mxu0
      %v1511 = vadd.f32 0.0, %v1510
      %v1512 = vpop.f32.mrb[0].mxu0
      %v1513 = vadd.f32 0.0, %v1512
      %v1514 = vpop.f32.mrb[0].mxu0
      %v1515 = vadd.f32 0.0, %v1514
      %1516 = vmatprep.mubr.bf16.mxu0 0
      %1517 = vmatmul.mubr.bf16.gmra.mrb[0].mxu0 %v653
      %v1518 = vpop.f32.mrb[0].mxu0
      %v1519 = vadd.f32 0.0, %v1518
      %v1520 = vpop.f32.mrb[0].mxu0
      %v1521 = vadd.f32 0.0, %v1520
      %v1522 = vpop.f32.mrb[0].mxu0
      %v1523 = vadd.f32 0.0, %v1522
      %v1524 = vpop.f32.mrb[0].mxu0
      %v1525 = vadd.f32 0.0, %v1524
      %1526 = vmatprep.mubr.bf16.mxu0 0
      %1527 = vmatmul.mubr.bf16.gmra.mrb[0].mxu0 %v654
      %v1528 = vpop.f32.mrb[0].mxu0
      %v1529 = vadd.f32 0.0, %v1528
      %v1530 = vpop.f32.mrb[0].mxu0
      %v1531 = vadd.f32 0.0, %v1530
      %v1532 = vpop.f32.mrb[0].mxu0
      %v1533 = vadd.f32 0.0, %v1532
      %v1534 = vpop.f32.mrb[0].mxu0
      %v1535 = vadd.f32 0.0, %v1534
      %1536 = vmatprep.mubr.bf16.mxu0 0
      %1537 = vmatmul.mubr.bf16.gmra.mrb[0].mxu0 %v655
      %v1538 = vpop.f32.mrb[0].mxu0
      %v1539 = vadd.f32 0.0, %v1538
      %v1540 = vpop.f32.mrb[0].mxu0
      %v1541 = vadd.f32 0.0, %v1540
      %v1542 = vpop.f32.mrb[0].mxu0
      %v1543 = vadd.f32 0.0, %v1542
      %v1544 = vpop.f32.mrb[0].mxu0
      %v1545 = vadd.f32 0.0, %v1544
      %1546 = vmatprep.mubr.bf16.mxu0 0
      %1547 = vmatmul.mubr.bf16.gmra.mrb[0].mxu0 %v656
      %v1548 = vpop.f32.mrb[0].mxu0
      %v1549 = vadd.f32 0.0, %v1548
      %v1550 = vpop.f32.mrb[0].mxu0
      %v1551 = vadd.f32 0.0, %v1550
      %v1552 = vpop.f32.mrb[0].mxu0
      %v1553 = vadd.f32 0.0, %v1552
      %v1554 = vpop.f32.mrb[0].mxu0
      %v1555 = vadd.f32 0.0, %v1554
      %1556 = vmatprep.mubr.bf16.mxu0 0
      %1557 = vmatmul.mubr.bf16.gmra.mrb[0].mxu0 %v657
      %v1558 = vpop.f32.mrb[0].mxu0
      %v1559 = vadd.f32 0.0, %v1558
      %v1560 = vpop.f32.mrb[0].mxu0
      %v1561 = vadd.f32 0.0, %v1560
      %v1562 = vpop.f32.mrb[0].mxu0
      %v1563 = vadd.f32 0.0, %v1562
      %v1564 = vpop.f32.mrb[0].mxu0
      %v1565 = vadd.f32 0.0, %v1564
      %1566 = vmatprep.mubr.bf16.mxu0 0
      %1567 = vmatmul.mubr.bf16.gmra.mrb[0].mxu0 %v658
      %v1568 = vpop.f32.mrb[0].mxu0
      %v1569 = vadd.f32 0.0, %v1568
      %v1570 = vpop.f32.mrb[0].mxu0
      %v1571 = vadd.f32 0.0, %v1570
      %v1572 = vpop.f32.mrb[0].mxu0
      %v1573 = vadd.f32 0.0, %v1572
      %v1574 = vpop.f32.mrb[0].mxu0
      %v1575 = vadd.f32 0.0, %v1574
      %1576 = vmatprep.mubr.bf16.mxu0 0
      %1577 = vmatmul.mubr.bf16.gmra.mrb[0].mxu0 %v659
      %v1578 = vpop.f32.mrb[0].mxu0
      %v1579 = vadd.f32 0.0, %v1578
      %v1580 = vpop.f32.mrb[0].mxu0
      %v1581 = vadd.f32 0.0, %v1580
      %v1582 = vpop.f32.mrb[0].mxu0
      %v1583 = vadd.f32 0.0, %v1582
      %v1584 = vpop.f32.mrb[0].mxu0
      %v1585 = vadd.f32 0.0, %v1584
      %1586 = vmatprep.mubr.bf16.mxu0 0
      %1587 = vmatmul.mubr.bf16.gmra.mrb[0].mxu0 %v660
      %v1588 = vpop.f32.mrb[0].mxu0
      %v1589 = vadd.f32 0.0, %v1588
      %v1590 = vpop.f32.mrb[0].mxu0
      %v1591 = vadd.f32 0.0, %v1590
      %v1592 = vpop.f32.mrb[0].mxu0
      %v1593 = vadd.f32 0.0, %v1592
      %v1594 = vpop.f32.mrb[0].mxu0
      %v1595 = vadd.f32 0.0, %v1594
      %1596 = vmatprep.mubr.bf16.mxu0 0
      %1597 = vmatmul.mubr.bf16.gmra.mrb[0].mxu0 %v661
      %v1598 = vpop.f32.mrb[0].mxu0
      %v1599 = vadd.f32 0.0, %v1598
      %v1600 = vpop.f32.mrb[0].mxu0
      %v1601 = vadd.f32 0.0, %v1600
      %v1602 = vpop.f32.mrb[0].mxu0
      %v1603 = vadd.f32 0.0, %v1602
      %v1604 = vpop.f32.mrb[0].mxu0
      %v1605 = vadd.f32 0.0, %v1604
      %1606 = vmatprep.mubr.bf16.mxu0 0
      %1607 = vmatmul.mubr.bf16.gmra.mrb[0].mxu0 %v662
      %v1608 = vpop.f32.mrb[0].mxu0
      %v1609 = vadd.f32 0.0, %v1608
      %v1610 = vpop.f32.mrb[0].mxu0
      %v1611 = vadd.f32 0.0, %v1610
      %v1612 = vpop.f32.mrb[0].mxu0
      %v1613 = vadd.f32 0.0, %v1612
      %v1614 = vpop.f32.mrb[0].mxu0
      %v1615 = vadd.f32 0.0, %v1614
      %1616 = vmatprep.mubr.bf16.mxu0 0
      %1617 = vmatmul.mubr.bf16.gmra.mrb[0].mxu0 %v663
      %v1618 = vpop.f32.mrb[0].mxu0
      %v1619 = vadd.f32 0.0, %v1618
      %v1620 = vpop.f32.mrb[0].mxu0
      %v1621 = vadd.f32 0.0, %v1620
      %v1622 = vpop.f32.mrb[0].mxu0
      %v1623 = vadd.f32 0.0, %v1622
      %v1624 = vpop.f32.mrb[0].mxu0
      %v1625 = vadd.f32 0.0, %v1624
      %1626 = vdwg.mxu0
      %1627 = vmatprep.subr.bf16.mxu0 %v927
      %1628 = vmatpush1.bf16.msra.mxu0 %v926
      %1629 = vmatprep.subr.bf16.mxu0 %v935
      %1630 = vmatpush1.bf16.msra.mxu0 %v934
      %1631 = vmatprep.subr.bf16.mxu0 %v943
      %1632 = vmatpush1.bf16.msra.mxu0 %v942
      %1633 = vmatprep.subr.bf16.mxu0 %v951
      %1634 = vmatpush1.bf16.msra.mxu0 %v950
      %1635 = vmatprep.subr.bf16.mxu0 %v959
      %1636 = vmatpush1.bf16.msra.mxu0 %v958
      %1637 = vmatprep.subr.bf16.mxu0 %v967
      %1638 = vmatpush1.bf16.msra.mxu0 %v966
      %1639 = vmatprep.subr.bf16.mxu0 %v975
      %1640 = vmatpush1.bf16.msra.mxu0 %v974
      %1641 = vmatprep.subr.bf16.mxu0 %v983
      %1642 = vmatpush1.bf16.msra.mxu0 %v982
      %1643 = vmatprep.subr.bf16.mxu0 0
      %1644 = vmatpush1.bf16.msra.mxu0 0
      %1645 = vmatprep.subr.bf16.mxu0 0
      %1646 = vmatpush1.bf16.msra.mxu0 0
      %1647 = vmatprep.subr.bf16.mxu0 0
      %1648 = vmatpush1.bf16.msra.mxu0 0
      %1649 = vmatprep.subr.bf16.mxu0 0
      %1650 = vmatpush1.bf16.msra.mxu0 0
      %1651 = vmatprep.subr.bf16.mxu0 0
      %1652 = vmatpush1.bf16.msra.mxu0 0
      %1653 = vmatprep.subr.bf16.mxu0 0
      %1654 = vmatpush1.bf16.msra.mxu0 0
      %1655 = vmatprep.subr.bf16.mxu0 0
      %1656 = vmatpush1.bf16.msra.mxu0 0
      %1657 = vmatprep.subr.bf16.mxu0 0
      %1658 = vmatpush1.bf16.msra.mxu0 0
      %1659 = vmatprep.mubr.bf16.mxu0 0
      %1660 = vmatmul.mubr.bf16.gmra.mrb[0].mxu0 %v648
      %v1661 = vpop.f32.mrb[0].mxu0
      %v1662 = vadd.f32 0.0, %v1661
      %v1663 = vpop.f32.mrb[0].mxu0
      %v1664 = vadd.f32 0.0, %v1663
      %v1665 = vpop.f32.mrb[0].mxu0
      %v1666 = vadd.f32 0.0, %v1665
      %v1667 = vpop.f32.mrb[0].mxu0
      %v1668 = vadd.f32 0.0, %v1667
      %1669 = vmatprep.mubr.bf16.mxu0 0
      %1670 = vmatmul.mubr.bf16.gmra.mrb[0].mxu0 %v649
      %v1671 = vpop.f32.mrb[0].mxu0
      %v1672 = vadd.f32 0.0, %v1671
      %v1673 = vpop.f32.mrb[0].mxu0
      %v1674 = vadd.f32 0.0, %v1673
      %v1675 = vpop.f32.mrb[0].mxu0
      %v1676 = vadd.f32 0.0, %v1675
      %v1677 = vpop.f32.mrb[0].mxu0
      %v1678 = vadd.f32 0.0, %v1677
      %1679 = vmatprep.mubr.bf16.mxu0 0
      %1680 = vmatmul.mubr.bf16.gmra.mrb[0].mxu0 %v650
      %v1681 = vpop.f32.mrb[0].mxu0
      %v1682 = vadd.f32 0.0, %v1681
      %v1683 = vpop.f32.mrb[0].mxu0
      %v1684 = vadd.f32 0.0, %v1683
      %v1685 = vpop.f32.mrb[0].mxu0
      %v1686 = vadd.f32 0.0, %v1685
      %v1687 = vpop.f32.mrb[0].mxu0
      %v1688 = vadd.f32 0.0, %v1687
      %1689 = vmatprep.mubr.bf16.mxu0 0
      %1690 = vmatmul.mubr.bf16.gmra.mrb[0].mxu0 %v651
      %v1691 = vpop.f32.mrb[0].mxu0
      %v1692 = vadd.f32 0.0, %v1691
      %v1693 = vpop.f32.mrb[0].mxu0
      %v1694 = vadd.f32 0.0, %v1693
      %v1695 = vpop.f32.mrb[0].mxu0
      %v1696 = vadd.f32 0.0, %v1695
      %v1697 = vpop.f32.mrb[0].mxu0
      %v1698 = vadd.f32 0.0, %v1697
      %1699 = vmatprep.mubr.bf16.mxu0 0
      %1700 = vmatmul.mubr.bf16.gmra.mrb[0].mxu0 %v652
      %v1701 = vpop.f32.mrb[0].mxu0
      %v1702 = vadd.f32 0.0, %v1701
      %v1703 = vpop.f32.mrb[0].mxu0
      %v1704 = vadd.f32 0.0, %v1703
      %v1705 = vpop.f32.mrb[0].mxu0
      %v1706 = vadd.f32 0.0, %v1705
      %v1707 = vpop.f32.mrb[0].mxu0
      %v1708 = vadd.f32 0.0, %v1707
      %1709 = vmatprep.mubr.bf16.mxu0 0
      %1710 = vmatmul.mubr.bf16.gmra.mrb[0].mxu0 %v653
      %v1711 = vpop.f32.mrb[0].mxu0
      %v1712 = vadd.f32 0.0, %v1711
      %v1713 = vpop.f32.mrb[0].mxu0
      %v1714 = vadd.f32 0.0, %v1713
      %v1715 = vpop.f32.mrb[0].mxu0
      %v1716 = vadd.f32 0.0, %v1715
      %v1717 = vpop.f32.mrb[0].mxu0
      %v1718 = vadd.f32 0.0, %v1717
      %1719 = vmatprep.mubr.bf16.mxu0 0
      %1720 = vmatmul.mubr.bf16.gmra.mrb[0].mxu0 %v654
      %v1721 = vpop.f32.mrb[0].mxu0
      %v1722 = vadd.f32 0.0, %v1721
      %v1723 = vpop.f32.mrb[0].mxu0
      %v1724 = vadd.f32 0.0, %v1723
      %v1725 = vpop.f32.mrb[0].mxu0
      %v1726 = vadd.f32 0.0, %v1725
      %v1727 = vpop.f32.mrb[0].mxu0
      %v1728 = vadd.f32 0.0, %v1727
      %1729 = vmatprep.mubr.bf16.mxu0 0
      %1730 = vmatmul.mubr.bf16.gmra.mrb[0].mxu0 %v655
      %v1731 = vpop.f32.mrb[0].mxu0
      %v1732 = vadd.f32 0.0, %v1731
      %v1733 = vpop.f32.mrb[0].mxu0
      %v1734 = vadd.f32 0.0, %v1733
      %v1735 = vpop.f32.mrb[0].mxu0
      %v1736 = vadd.f32 0.0, %v1735
      %v1737 = vpop.f32.mrb[0].mxu0
      %v1738 = vadd.f32 0.0, %v1737
      %1739 = vmatprep.mubr.bf16.mxu0 0
      %1740 = vmatmul.mubr.bf16.gmra.mrb[0].mxu0 %v656
      %v1741 = vpop.f32.mrb[0].mxu0
      %v1742 = vadd.f32 0.0, %v1741
      %v1743 = vpop.f32.mrb[0].mxu0
      %v1744 = vadd.f32 0.0, %v1743
      %v1745 = vpop.f32.mrb[0].mxu0
      %v1746 = vadd.f32 0.0, %v1745
      %v1747 = vpop.f32.mrb[0].mxu0
      %v1748 = vadd.f32 0.0, %v1747
      %1749 = vmatprep.mubr.bf16.mxu0 0
      %1750 = vmatmul.mubr.bf16.gmra.mrb[0].mxu0 %v657
      %v1751 = vpop.f32.mrb[0].mxu0
      %v1752 = vadd.f32 0.0, %v1751
      %v1753 = vpop.f32.mrb[0].mxu0
      %v1754 = vadd.f32 0.0, %v1753
      %v1755 = vpop.f32.mrb[0].mxu0
      %v1756 = vadd.f32 0.0, %v1755
      %v1757 = vpop.f32.mrb[0].mxu0
      %v1758 = vadd.f32 0.0, %v1757
      %1759 = vmatprep.mubr.bf16.mxu0 0
      %1760 = vmatmul.mubr.bf16.gmra.mrb[0].mxu0 %v658
      %v1761 = vpop.f32.mrb[0].mxu0
      %v1762 = vadd.f32 0.0, %v1761
      %v1763 = vpop.f32.mrb[0].mxu0
      %v1764 = vadd.f32 0.0, %v1763
      %v1765 = vpop.f32.mrb[0].mxu0
      %v1766 = vadd.f32 0.0, %v1765
      %v1767 = vpop.f32.mrb[0].mxu0
      %v1768 = vadd.f32 0.0, %v1767
      %1769 = vmatprep.mubr.bf16.mxu0 0
      %1770 = vmatmul.mubr.bf16.gmra.mrb[0].mxu0 %v659
      %v1771 = vpop.f32.mrb[0].mxu0
      %v1772 = vadd.f32 0.0, %v1771
      %v1773 = vpop.f32.mrb[0].mxu0
      %v1774 = vadd.f32 0.0, %v1773
      %v1775 = vpop.f32.mrb[0].mxu0
      %v1776 = vadd.f32 0.0, %v1775
      %v1777 = vpop.f32.mrb[0].mxu0
      %v1778 = vadd.f32 0.0, %v1777
      %1779 = vmatprep.mubr.bf16.mxu0 0
      %1780 = vmatmul.mubr.bf16.gmra.mrb[0].mxu0 %v660
      %v1781 = vpop.f32.mrb[0].mxu0
      %v1782 = vadd.f32 0.0, %v1781
      %v1783 = vpop.f32.mrb[0].mxu0
      %v1784 = vadd.f32 0.0, %v1783
      %v1785 = vpop.f32.mrb[0].mxu0
      %v1786 = vadd.f32 0.0, %v1785
      %v1787 = vpop.f32.mrb[0].mxu0
      %v1788 = vadd.f32 0.0, %v1787
      %1789 = vmatprep.mubr.bf16.mxu0 0
      %1790 = vmatmul.mubr.bf16.gmra.mrb[0].mxu0 %v661
      %v1791 = vpop.f32.mrb[0].mxu0
      %v1792 = vadd.f32 0.0, %v1791
      %v1793 = vpop.f32.mrb[0].mxu0
      %v1794 = vadd.f32 0.0, %v1793
      %v1795 = vpop.f32.mrb[0].mxu0
      %v1796 = vadd.f32 0.0, %v1795
      %v1797 = vpop.f32.mrb[0].mxu0
      %v1798 = vadd.f32 0.0, %v1797
      %1799 = vmatprep.mubr.bf16.mxu0 0
      %1800 = vmatmul.mubr.bf16.gmra.mrb[0].mxu0 %v662
      %v1801 = vpop.f32.mrb[0].mxu0
      %v1802 = vadd.f32 0.0, %v1801
      %v1803 = vpop.f32.mrb[0].mxu0
      %v1804 = vadd.f32 0.0, %v1803
      %v1805 = vpop.f32.mrb[0].mxu0
      %v1806 = vadd.f32 0.0, %v1805
      %v1807 = vpop.f32.mrb[0].mxu0
      %v1808 = vadd.f32 0.0, %v1807
      %1809 = vmatprep.mubr.bf16.mxu0 0
      %1810 = vmatmul.mubr.bf16.gmra.mrb[0].mxu0 %v663
      %v1811 = vpop.f32.mrb[0].mxu0
      %v1812 = vadd.f32 0.0, %v1811
      %v1813 = vpop.f32.mrb[0].mxu0
      %v1814 = vadd.f32 0.0, %v1813
      %v1815 = vpop.f32.mrb[0].mxu0
      %v1816 = vadd.f32 0.0, %v1815
      %v1817 = vpop.f32.mrb[0].mxu0
      %v1818 = vadd.f32 0.0, %v1817
      %1819 = vdwg.mxu0
      %v1820 = vld [vmem:[%s426] sm:$0xff]
      %v1821 = vld [vmem:[%s426 + $0x8] sm:$0xff]
      %v1822 = vld [vmem:[%s426 + $0x10] sm:$0xff]
      %v1823 = vld [vmem:[%s426 + $0x18] sm:$0xf]
      %v1824 = vld [vmem:[%s426 + $0x1c] sm:$0xff]
      %v1825 = vld [vmem:[%s426 + $0x24] sm:$0xff]
      %v1826 = vld [vmem:[%s426 + $0x2c] sm:$0xff]
      %v1827 = vld [vmem:[%s426 + $0x34] sm:$0xf]
      %v1828 = vld [vmem:[%s426 + $0x38] sm:$0xff]
      %v1829 = vld [vmem:[%s426 + $0x40] sm:$0xff]
      %v1830 = vld [vmem:[%s426 + $0x48] sm:$0xff]
      %v1831 = vld [vmem:[%s426 + $0x50] sm:$0xf]
      %v1832 = vld [vmem:[%s426 + $0x54] sm:$0xff]
      %v1833 = vld [vmem:[%s426 + $0x5c] sm:$0xff]
      %v1834 = vld [vmem:[%s426 + $0x64] sm:$0xff]
      %v1835 = vld [vmem:[%s426 + $0x6c] sm:$0xf]
      %v1836 = vld [vmem:[%s426 + $0x70] sm:$0xff]
      %v1837 = vld [vmem:[%s426 + $0x78] sm:$0xff]
      %v1838 = vld [vmem:[%s426 + $0x80] sm:$0xff]
      %v1839 = vld [vmem:[%s426 + $0x88] sm:$0xf]
      %v1840 = vld [vmem:[%s426 + $0x8c] sm:$0xff]
      %v1841 = vld [vmem:[%s426 + $0x94] sm:$0xff]
      %v1842 = vld [vmem:[%s426 + $0x9c] sm:$0xff]
      %v1843 = vld [vmem:[%s426 + $0xa4] sm:$0xf]
      %v1844 = vld [vmem:[%s426 + $0xa8] sm:$0xff]
      %v1845 = vld [vmem:[%s426 + $0xb0] sm:$0xff]
      %v1846 = vld [vmem:[%s426 + $0xb8] sm:$0xff]
      %v1847 = vld [vmem:[%s426 + $0xc0] sm:$0xf]
      %v1848 = vld [vmem:[%s426 + $0xc4] sm:$0xff]
      %v1849 = vld [vmem:[%s426 + $0xcc] sm:$0xff]
      %v1850 = vld [vmem:[%s426 + $0xd4] sm:$0xff]
      %v1851 = vld [vmem:[%s426 + $0xdc] sm:$0xf]
      %v1852 = vld [vmem:[%s426 + $0xe0] sm:$0xff]
      %v1853 = vld [vmem:[%s426 + $0xe8] sm:$0xff]
      %v1854 = vld [vmem:[%s426 + $0xf0] sm:$0xff]
      %v1855 = vld [vmem:[%s426 + $0xf8] sm:$0xf]
      %v1856 = vld [vmem:[%s426 + $0xfc] sm:$0xff]
      %v1857 = vld [vmem:[%s426 + $0x104] sm:$0xff]
      %v1858 = vld [vmem:[%s426 + $0x10c] sm:$0xff]
      %v1859 = vld [vmem:[%s426 + $0x114] sm:$0xf]
      %v1860 = vld [vmem:[%s426 + $0x118] sm:$0xff]
      %v1861 = vld [vmem:[%s426 + $0x120] sm:$0xff]
      %v1862 = vld [vmem:[%s426 + $0x128] sm:$0xff]
      %v1863 = vld [vmem:[%s426 + $0x130] sm:$0xf]
      %v1864 = vld [vmem:[%s426 + $0x134] sm:$0xff]
      %v1865 = vld [vmem:[%s426 + $0x13c] sm:$0xff]
      %v1866 = vld [vmem:[%s426 + $0x144] sm:$0xff]
      %v1867 = vld [vmem:[%s426 + $0x14c] sm:$0xf]
      %v1868 = vld [vmem:[%s426 + $0x150] sm:$0xff]
      %v1869 = vld [vmem:[%s426 + $0x158] sm:$0xff]
      %v1870 = vld [vmem:[%s426 + $0x160] sm:$0xff]
      %v1871 = vld [vmem:[%s426 + $0x168] sm:$0xf]
      %v1872 = vld [vmem:[%s426 + $0x16c] sm:$0xff]
      %v1873 = vld [vmem:[%s426 + $0x174] sm:$0xff]
      %v1874 = vld [vmem:[%s426 + $0x17c] sm:$0xff]
      %v1875 = vld [vmem:[%s426 + $0x184] sm:$0xf]
      %v1876 = vld [vmem:[%s426 + $0x188] sm:$0xff]
      %v1877 = vld [vmem:[%s426 + $0x190] sm:$0xff]
      %v1878 = vld [vmem:[%s426 + $0x198] sm:$0xff]
      %v1879 = vld [vmem:[%s426 + $0x1a0] sm:$0xf]
      %v1880 = vld [vmem:[%s426 + $0x1a4] sm:$0xff]
      %v1881 = vld [vmem:[%s426 + $0x1ac] sm:$0xff]
      %v1882 = vld [vmem:[%s426 + $0x1b4] sm:$0xff]
      %v1883 = vld [vmem:[%s426 + $0x1bc] sm:$0xf]
      %v1884 = vld [vmem:[%s426 + $0x1c0] sm:$0xff]
      %v1885 = vld [vmem:[%s426 + $0x1c8] sm:$0xff]
      %v1886 = vld [vmem:[%s426 + $0x1d0] sm:$0xff]
      %v1887 = vld [vmem:[%s426 + $0x1d8] sm:$0xf]
      %v1888 = vld [vmem:[%s426 + $0x1dc] sm:$0xff]
      %v1889 = vld [vmem:[%s426 + $0x1e4] sm:$0xff]
      %v1890 = vld [vmem:[%s426 + $0x1ec] sm:$0xff]
      %v1891 = vld [vmem:[%s426 + $0x1f4] sm:$0xf]
      %v1892 = vld [vmem:[%s426 + $0x1f8] sm:$0xff]
      %v1893 = vld [vmem:[%s426 + $0x200] sm:$0xff]
      %v1894 = vld [vmem:[%s426 + $0x208] sm:$0xff]
      %v1895 = vld [vmem:[%s426 + $0x210] sm:$0xf]
      %v1896 = vld [vmem:[%s426 + $0x214] sm:$0xff]
      %v1897 = vld [vmem:[%s426 + $0x21c] sm:$0xff]
      %v1898 = vld [vmem:[%s426 + $0x224] sm:$0xff]
      %v1899 = vld [vmem:[%s426 + $0x22c] sm:$0xf]
      %v1900 = vld [vmem:[%s426 + $0x230] sm:$0xff]
      %v1901 = vld [vmem:[%s426 + $0x238] sm:$0xff]
      %v1902 = vld [vmem:[%s426 + $0x240] sm:$0xff]
      %v1903 = vld [vmem:[%s426 + $0x248] sm:$0xf]
      %v1904 = vld [vmem:[%s426 + $0x24c] sm:$0xff]
      %v1905 = vld [vmem:[%s426 + $0x254] sm:$0xff]
      %v1906 = vld [vmem:[%s426 + $0x25c] sm:$0xff]
      %v1907 = vld [vmem:[%s426 + $0x264] sm:$0xf]
      %v1908 = vld [vmem:[%s426 + $0x268] sm:$0xff]
      %v1909 = vld [vmem:[%s426 + $0x270] sm:$0xff]
      %v1910 = vld [vmem:[%s426 + $0x278] sm:$0xff]
      %v1911 = vld [vmem:[%s426 + $0x280] sm:$0xf]
      %v1912 = vld [vmem:[%s426 + $0x284] sm:$0xff]
      %v1913 = vld [vmem:[%s426 + $0x28c] sm:$0xff]
      %v1914 = vld [vmem:[%s426 + $0x294] sm:$0xff]
      %v1915 = vld [vmem:[%s426 + $0x29c] sm:$0xf]
      %v1916 = vld [vmem:[%s426 + $0x2a0] sm:$0xff]
      %v1917 = vld [vmem:[%s426 + $0x2a8] sm:$0xff]
      %v1918 = vld [vmem:[%s426 + $0x2b0] sm:$0xff]
      %v1919 = vld [vmem:[%s426 + $0x2b8] sm:$0xf]
      %v1920 = vld [vmem:[%s426 + $0x2bc] sm:$0xff]
      %v1921 = vld [vmem:[%s426 + $0x2c4] sm:$0xff]
      %v1922 = vld [vmem:[%s426 + $0x2cc] sm:$0xff]
      %v1923 = vld [vmem:[%s426 + $0x2d4] sm:$0xf]
      %v1924 = vld [vmem:[%s426 + $0x2d8] sm:$0xff]
      %v1925 = vld [vmem:[%s426 + $0x2e0] sm:$0xff]
      %v1926 = vld [vmem:[%s426 + $0x2e8] sm:$0xff]
      %v1927 = vld [vmem:[%s426 + $0x2f0] sm:$0xf]
      %v1928 = vld [vmem:[%s426 + $0x2f4] sm:$0xff]
      %v1929 = vld [vmem:[%s426 + $0x2fc] sm:$0xff]
      %v1930 = vld [vmem:[%s426 + $0x304] sm:$0xff]
      %v1931 = vld [vmem:[%s426 + $0x30c] sm:$0xf]
      %v1932 = vld [vmem:[%s426 + $0x310] sm:$0xff]
      %v1933 = vld [vmem:[%s426 + $0x318] sm:$0xff]
      %v1934 = vld [vmem:[%s426 + $0x320] sm:$0xff]
      %v1935 = vld [vmem:[%s426 + $0x328] sm:$0xf]
      %v1936 = vld [vmem:[%s426 + $0x32c] sm:$0xff]
      %v1937 = vld [vmem:[%s426 + $0x334] sm:$0xff]
      %v1938 = vld [vmem:[%s426 + $0x33c] sm:$0xff]
      %v1939 = vld [vmem:[%s426 + $0x344] sm:$0xf]
      %v1940 = vld [vmem:[%s426 + $0x348] sm:$0xff]
      %v1941 = vld [vmem:[%s426 + $0x350] sm:$0xff]
      %v1942 = vld [vmem:[%s426 + $0x358] sm:$0xff]
      %v1943 = vld [vmem:[%s426 + $0x360] sm:$0xf]
      %v1944 = vld [vmem:[%s426 + $0x364] sm:$0xff]
      %v1945 = vld [vmem:[%s426 + $0x36c] sm:$0xff]
      %v1946 = vld [vmem:[%s426 + $0x374] sm:$0xff]
      %v1947 = vld [vmem:[%s426 + $0x37c] sm:$0xf]
      %v1948 = vld [vmem:[%s3] sm:$0xff]
      %v1949 = vld [vmem:[%s3 + $0x8] sm:$0xff]
      %v1950 = vld [vmem:[%s3 + $0x10] sm:$0xff]
      %v1951 = vld [vmem:[%s3 + $0x18] sm:$0xff]
      %v1952 = vld [vmem:[%s3 + $0x20] sm:$0xff]
      %v1953 = vld [vmem:[%s3 + $0x28] sm:$0xff]
      %v1954 = vld [vmem:[%s3 + $0x30] sm:$0xff]
      %v1955 = vld [vmem:[%s3 + $0x38] sm:$0xff]
      %v1956 = vld [vmem:[%s3 + $0x40] sm:$0xff]
      %v1957 = vld [vmem:[%s3 + $0x48] sm:$0xff]
      %v1958 = vld [vmem:[%s3 + $0x50] sm:$0xff]
      %v1959 = vld [vmem:[%s3 + $0x58] sm:$0xff]
      %v1960 = vld [vmem:[%s3 + $0x60] sm:$0xff]
      %v1961 = vld [vmem:[%s3 + $0x68] sm:$0xff]
      %v1962 = vld [vmem:[%s3 + $0x70] sm:$0xff]
      %v1963 = vld [vmem:[%s3 + $0x78] sm:$0xff]
      %v1964 = vld [vmem:[%s3 + $0x80] sm:$0xff]
      %v1965 = vld [vmem:[%s3 + $0x88] sm:$0xff]
      %v1966 = vld [vmem:[%s3 + $0x90] sm:$0xff]
      %v1967 = vld [vmem:[%s3 + $0x98] sm:$0xff]
      %v1968 = vld [vmem:[%s3 + $0xa0] sm:$0xff]
      %v1969 = vld [vmem:[%s3 + $0xa8] sm:$0xff]
      %v1970 = vld [vmem:[%s3 + $0xb0] sm:$0xff]
      %v1971 = vld [vmem:[%s3 + $0xb8] sm:$0xff]
      %v1972 = vld [vmem:[%s3 + $0xc0] sm:$0xff]
      %v1973 = vld [vmem:[%s3 + $0xc8] sm:$0xff]
      %v1974 = vld [vmem:[%s3 + $0xd0] sm:$0xff]
      %v1975 = vld [vmem:[%s3 + $0xd8] sm:$0xff]
      %v1976 = vld [vmem:[%s3 + $0xe0] sm:$0xff]
      %v1977 = vld [vmem:[%s3 + $0xe8] sm:$0xff]
      %v1978 = vld [vmem:[%s3 + $0xf0] sm:$0xff]
      %v1979 = vld [vmem:[%s3 + $0xf8] sm:$0xff]
      %v1980 = vld [vmem:[%s3 + $0x100] sm:$0xff]
      %v1981 = vld [vmem:[%s3 + $0x108] sm:$0xff]
      %v1982 = vld [vmem:[%s3 + $0x110] sm:$0xff]
      %v1983 = vld [vmem:[%s3 + $0x118] sm:$0xff]
      %v1984 = vld [vmem:[%s3 + $0x120] sm:$0xff]
      %v1985 = vld [vmem:[%s3 + $0x128] sm:$0xff]
      %v1986 = vld [vmem:[%s3 + $0x130] sm:$0xff]
      %v1987 = vld [vmem:[%s3 + $0x138] sm:$0xff]
      %v1988 = vld [vmem:[%s3 + $0x140] sm:$0xff]
      %v1989 = vld [vmem:[%s3 + $0x148] sm:$0xff]
      %v1990 = vld [vmem:[%s3 + $0x150] sm:$0xff]
      %v1991 = vld [vmem:[%s3 + $0x158] sm:$0xff]
      %v1992 = vld [vmem:[%s3 + $0x160] sm:$0xff]
      %v1993 = vld [vmem:[%s3 + $0x168] sm:$0xff]
      %v1994 = vld [vmem:[%s3 + $0x170] sm:$0xff]
      %v1995 = vld [vmem:[%s3 + $0x178] sm:$0xff]
      %v1996 = vld [vmem:[%s3 + $0x180] sm:$0xff]
      %v1997 = vld [vmem:[%s3 + $0x188] sm:$0xff]
      %v1998 = vld [vmem:[%s3 + $0x190] sm:$0xff]
      %v1999 = vld [vmem:[%s3 + $0x198] sm:$0xff]
      %v2000 = vld [vmem:[%s3 + $0x1a0] sm:$0xff]
      %v2001 = vld [vmem:[%s3 + $0x1a8] sm:$0xff]
      %v2002 = vld [vmem:[%s3 + $0x1b0] sm:$0xff]
      %v2003 = vld [vmem:[%s3 + $0x1b8] sm:$0xff]
      %v2004 = vld [vmem:[%s3 + $0x1c0] sm:$0xff]
      %v2005 = vld [vmem:[%s3 + $0x1c8] sm:$0xff]
      %v2006 = vld [vmem:[%s3 + $0x1d0] sm:$0xff]
      %v2007 = vld [vmem:[%s3 + $0x1d8] sm:$0xff]
      %v2008 = vld [vmem:[%s3 + $0x1e0] sm:$0xff]
      %v2009 = vld [vmem:[%s3 + $0x1e8] sm:$0xff]
      %v2010 = vld [vmem:[%s3 + $0x1f0] sm:$0xff]
      %v2011 = vld [vmem:[%s3 + $0x1f8] sm:$0xff]
      %v2012 = vld [vmem:[%s3 + $0x200] sm:$0xff]
      %v2013 = vld [vmem:[%s3 + $0x208] sm:$0xff]
      %v2014 = vld [vmem:[%s3 + $0x210] sm:$0xff]
      %v2015 = vld [vmem:[%s3 + $0x218] sm:$0xff]
      %v2016 = vld [vmem:[%s3 + $0x220] sm:$0xff]
      %v2017 = vld [vmem:[%s3 + $0x228] sm:$0xff]
      %v2018 = vld [vmem:[%s3 + $0x230] sm:$0xff]
      %v2019 = vld [vmem:[%s3 + $0x238] sm:$0xff]
      %v2020 = vld [vmem:[%s3 + $0x240] sm:$0xff]
      %v2021 = vld [vmem:[%s3 + $0x248] sm:$0xff]
      %v2022 = vld [vmem:[%s3 + $0x250] sm:$0xff]
      %v2023 = vld [vmem:[%s3 + $0x258] sm:$0xff]
      %v2024 = vld [vmem:[%s3 + $0x260] sm:$0xff]
      %v2025 = vld [vmem:[%s3 + $0x268] sm:$0xff]
      %v2026 = vld [vmem:[%s3 + $0x270] sm:$0xff]
      %v2027 = vld [vmem:[%s3 + $0x278] sm:$0xff]
      %v2028 = vld [vmem:[%s3 + $0x280] sm:$0xff]
      %v2029 = vld [vmem:[%s3 + $0x288] sm:$0xff]
      %v2030 = vld [vmem:[%s3 + $0x290] sm:$0xff]
      %v2031 = vld [vmem:[%s3 + $0x298] sm:$0xff]
      %v2032 = vld [vmem:[%s3 + $0x2a0] sm:$0xff]
      %v2033 = vld [vmem:[%s3 + $0x2a8] sm:$0xff]
      %v2034 = vld [vmem:[%s3 + $0x2b0] sm:$0xff]
      %v2035 = vld [vmem:[%s3 + $0x2b8] sm:$0xff]
      %v2036 = vld [vmem:[%s3 + $0x2c0] sm:$0xff]
      %v2037 = vld [vmem:[%s3 + $0x2c8] sm:$0xff]
      %v2038 = vld [vmem:[%s3 + $0x2d0] sm:$0xff]
      %v2039 = vld [vmem:[%s3 + $0x2d8] sm:$0xff]
      %v2040 = vld [vmem:[%s3 + $0x2e0] sm:$0xff]
      %v2041 = vld [vmem:[%s3 + $0x2e8] sm:$0xff]
      %v2042 = vld [vmem:[%s3 + $0x2f0] sm:$0xff]
      %v2043 = vld [vmem:[%s3 + $0x2f8] sm:$0xff]
      %v2044 = vld [vmem:[%s3 + $0x300] sm:$0xff]
      %v2045 = vld [vmem:[%s3 + $0x308] sm:$0xff]
      %v2046 = vld [vmem:[%s3 + $0x310] sm:$0xff]
      %v2047 = vld [vmem:[%s3 + $0x318] sm:$0xff]
      %v2048 = vld [vmem:[%s3 + $0x320] sm:$0xff]
      %v2049 = vld [vmem:[%s3 + $0x328] sm:$0xff]
      %v2050 = vld [vmem:[%s3 + $0x330] sm:$0xff]
      %v2051 = vld [vmem:[%s3 + $0x338] sm:$0xff]
      %v2052 = vld [vmem:[%s3 + $0x340] sm:$0xff]
      %v2053 = vld [vmem:[%s3 + $0x348] sm:$0xff]
      %v2054 = vld [vmem:[%s3 + $0x350] sm:$0xff]
      %v2055 = vld [vmem:[%s3 + $0x358] sm:$0xff]
      %v2056 = vld [vmem:[%s3 + $0x360] sm:$0xff]
      %v2057 = vld [vmem:[%s3 + $0x368] sm:$0xff]
      %v2058 = vld [vmem:[%s3 + $0x370] sm:$0xff]
      %v2059 = vld [vmem:[%s3 + $0x378] sm:$0xff]
      %v2060 = vld [vmem:[%s3 + $0x380] sm:$0xff]
      %v2061 = vld [vmem:[%s3 + $0x388] sm:$0xff]
      %v2062 = vld [vmem:[%s3 + $0x390] sm:$0xff]
      %v2063 = vld [vmem:[%s3 + $0x398] sm:$0xff]
      %v2064 = vld [vmem:[%s3 + $0x3a0] sm:$0xff]
      %v2065 = vld [vmem:[%s3 + $0x3a8] sm:$0xff]
      %v2066 = vld [vmem:[%s3 + $0x3b0] sm:$0xff]
      %v2067 = vld [vmem:[%s3 + $0x3b8] sm:$0xff]
      %v2068 = vld [vmem:[%s3 + $0x3c0] sm:$0xff]
      %v2069 = vld [vmem:[%s3 + $0x3c8] sm:$0xff]
      %v2070 = vld [vmem:[%s3 + $0x3d0] sm:$0xff]
      %v2071 = vld [vmem:[%s3 + $0x3d8] sm:$0xff]
      %v2072 = vld [vmem:[%s3 + $0x3e0] sm:$0xff]
      %v2073 = vld [vmem:[%s3 + $0x3e8] sm:$0xff]
      %v2074 = vld [vmem:[%s3 + $0x3f0] sm:$0xff]
      %v2075 = vld [vmem:[%s3 + $0x3f8] sm:$0xff]
      %v2076 = vld [vmem:[%s3 + $0x400] sm:$0xff]
      %v2077 = vld [vmem:[%s3 + $0x408] sm:$0xff]
      %v2078 = vld [vmem:[%s3 + $0x410] sm:$0xff]
      %v2079 = vld [vmem:[%s3 + $0x418] sm:$0xff]
      %v2080 = vld [vmem:[%s3 + $0x420] sm:$0xff]
      %v2081 = vld [vmem:[%s3 + $0x428] sm:$0xff]
      %v2082 = vld [vmem:[%s3 + $0x430] sm:$0xff]
      %v2083 = vld [vmem:[%s3 + $0x438] sm:$0xff]
      %v2084 = vld [vmem:[%s3 + $0x440] sm:$0xff]
      %v2085 = vld [vmem:[%s3 + $0x448] sm:$0xff]
      %v2086 = vld [vmem:[%s3 + $0x450] sm:$0xff]
      %v2087 = vld [vmem:[%s3 + $0x458] sm:$0xff]
      %v2088 = vld [vmem:[%s3 + $0x460] sm:$0xff]
      %v2089 = vld [vmem:[%s3 + $0x468] sm:$0xff]
      %v2090 = vld [vmem:[%s3 + $0x470] sm:$0xff]
      %v2091 = vld [vmem:[%s3 + $0x478] sm:$0xff]
      %v2092 = vld [vmem:[%s3 + $0x480] sm:$0xff]
      %v2093 = vld [vmem:[%s3 + $0x488] sm:$0xff]
      %v2094 = vld [vmem:[%s3 + $0x490] sm:$0xff]
      %v2095 = vld [vmem:[%s3 + $0x498] sm:$0xff]
      %v2096 = vld [vmem:[%s3 + $0x4a0] sm:$0xff]
      %v2097 = vld [vmem:[%s3 + $0x4a8] sm:$0xff]
      %v2098 = vld [vmem:[%s3 + $0x4b0] sm:$0xff]
      %v2099 = vld [vmem:[%s3 + $0x4b8] sm:$0xff]
      %v2100 = vld [vmem:[%s3 + $0x4c0] sm:$0xff]
      %v2101 = vld [vmem:[%s3 + $0x4c8] sm:$0xff]
      %v2102 = vld [vmem:[%s3 + $0x4d0] sm:$0xff]
      %v2103 = vld [vmem:[%s3 + $0x4d8] sm:$0xff]
      %v2104 = vld [vmem:[%s3 + $0x4e0] sm:$0xff]
      %v2105 = vld [vmem:[%s3 + $0x4e8] sm:$0xff]
      %v2106 = vld [vmem:[%s3 + $0x4f0] sm:$0xff]
      %v2107 = vld [vmem:[%s3 + $0x4f8] sm:$0xff]
      %v2108 = vld [vmem:[%s3 + $0x500] sm:$0xff]
      %v2109 = vld [vmem:[%s3 + $0x508] sm:$0xff]
      %v2110 = vld [vmem:[%s3 + $0x510] sm:$0xff]
      %v2111 = vld [vmem:[%s3 + $0x518] sm:$0xff]
      %v2112 = vld [vmem:[%s3 + $0x520] sm:$0xff]
      %v2113 = vld [vmem:[%s3 + $0x528] sm:$0xff]
      %v2114 = vld [vmem:[%s3 + $0x530] sm:$0xff]
      %v2115 = vld [vmem:[%s3 + $0x538] sm:$0xff]
      %v2116 = vld [vmem:[%s3 + $0x540] sm:$0xff]
      %v2117 = vld [vmem:[%s3 + $0x548] sm:$0xff]
      %v2118 = vld [vmem:[%s3 + $0x550] sm:$0xff]
      %v2119 = vld [vmem:[%s3 + $0x558] sm:$0xff]
      %v2120 = vld [vmem:[%s3 + $0x560] sm:$0xff]
      %v2121 = vld [vmem:[%s3 + $0x568] sm:$0xff]
      %v2122 = vld [vmem:[%s3 + $0x570] sm:$0xff]
      %v2123 = vld [vmem:[%s3 + $0x578] sm:$0xff]
      %v2124 = vld [vmem:[%s3 + $0x580] sm:$0xff]
      %v2125 = vld [vmem:[%s3 + $0x588] sm:$0xff]
      %v2126 = vld [vmem:[%s3 + $0x590] sm:$0xff]
      %v2127 = vld [vmem:[%s3 + $0x598] sm:$0xff]
      %v2128 = vld [vmem:[%s3 + $0x5a0] sm:$0xff]
      %v2129 = vld [vmem:[%s3 + $0x5a8] sm:$0xff]
      %v2130 = vld [vmem:[%s3 + $0x5b0] sm:$0xff]
      %v2131 = vld [vmem:[%s3 + $0x5b8] sm:$0xff]
      %v2132 = vld [vmem:[%s3 + $0x5c0] sm:$0xff]
      %v2133 = vld [vmem:[%s3 + $0x5c8] sm:$0xff]
      %v2134 = vld [vmem:[%s3 + $0x5d0] sm:$0xff]
      %v2135 = vld [vmem:[%s3 + $0x5d8] sm:$0xff]
      %v2136 = vld [vmem:[%s3 + $0x5e0] sm:$0xff]
      %v2137 = vld [vmem:[%s3 + $0x5e8] sm:$0xff]
      %v2138 = vld [vmem:[%s3 + $0x5f0] sm:$0xff]
      %v2139 = vld [vmem:[%s3 + $0x5f8] sm:$0xff]
      %v2140 = vld [vmem:[%s3 + $0x600] sm:$0xff]
      %v2141 = vld [vmem:[%s3 + $0x608] sm:$0xff]
      %v2142 = vld [vmem:[%s3 + $0x610] sm:$0xff]
      %v2143 = vld [vmem:[%s3 + $0x618] sm:$0xff]
      %v2272 = vunpack.c.l.b16 %v1820
      %v2273 = vunpack.c.h.b16 %v1820
      %v2274 = vunpack.c.l.b16 %v1821
      %v2275 = vunpack.c.h.b16 %v1821
      %v2276 = vunpack.c.l.b16 %v1822
      %v2277 = vunpack.c.h.b16 %v1822
      %v2278 = vunpack.c.l.b16 %v1823
      %v2279 = vunpack.c.l.b16 %v1824
      %v2280 = vunpack.c.h.b16 %v1824
      %v2281 = vunpack.c.l.b16 %v1825
      %v2282 = vunpack.c.h.b16 %v1825
      %v2283 = vunpack.c.l.b16 %v1826
      %v2284 = vunpack.c.h.b16 %v1826
      %v2285 = vunpack.c.l.b16 %v1827
      %v2286 = vunpack.c.l.b16 %v1828
      %v2287 = vunpack.c.h.b16 %v1828
      %v2288 = vunpack.c.l.b16 %v1829
      %v2289 = vunpack.c.h.b16 %v1829
      %v2290 = vunpack.c.l.b16 %v1830
      %v2291 = vunpack.c.h.b16 %v1830
      %v2292 = vunpack.c.l.b16 %v1831
      %v2293 = vunpack.c.l.b16 %v1832
      %v2294 = vunpack.c.h.b16 %v1832
      %v2295 = vunpack.c.l.b16 %v1833
      %v2296 = vunpack.c.h.b16 %v1833
      %v2297 = vunpack.c.l.b16 %v1834
      %v2298 = vunpack.c.h.b16 %v1834
      %v2299 = vunpack.c.l.b16 %v1835
      %v2300 = vunpack.c.l.b16 %v1836
      %v2301 = vunpack.c.h.b16 %v1836
      %v2302 = vunpack.c.l.b16 %v1837
      %v2303 = vunpack.c.h.b16 %v1837
      %v2304 = vunpack.c.l.b16 %v1838
      %v2305 = vunpack.c.h.b16 %v1838
      %v2306 = vunpack.c.l.b16 %v1839
      %v2307 = vunpack.c.l.b16 %v1840
      %v2308 = vunpack.c.h.b16 %v1840
      %v2309 = vunpack.c.l.b16 %v1841
      %v2310 = vunpack.c.h.b16 %v1841
      %v2311 = vunpack.c.l.b16 %v1842
      %v2312 = vunpack.c.h.b16 %v1842
      %v2313 = vunpack.c.l.b16 %v1843
      %v2314 = vunpack.c.l.b16 %v1844
      %v2315 = vunpack.c.h.b16 %v1844
      %v2316 = vunpack.c.l.b16 %v1845
      %v2317 = vunpack.c.h.b16 %v1845
      %v2318 = vunpack.c.l.b16 %v1846
      %v2319 = vunpack.c.h.b16 %v1846
      %v2320 = vunpack.c.l.b16 %v1847
      %v2321 = vunpack.c.l.b16 %v1848
      %v2322 = vunpack.c.h.b16 %v1848
      %v2323 = vunpack.c.l.b16 %v1849
      %v2324 = vunpack.c.h.b16 %v1849
      %v2325 = vunpack.c.l.b16 %v1850
      %v2326 = vunpack.c.h.b16 %v1850
      %v2327 = vunpack.c.l.b16 %v1851
      %v2328 = vunpack.c.l.b16 %v1852
      %v2329 = vunpack.c.h.b16 %v1852
      %v2330 = vunpack.c.l.b16 %v1853
      %v2331 = vunpack.c.h.b16 %v1853
      %v2332 = vunpack.c.l.b16 %v1854
      %v2333 = vunpack.c.h.b16 %v1854
      %v2334 = vunpack.c.l.b16 %v1855
      %v2335 = vunpack.c.l.b16 %v1856
      %v2336 = vunpack.c.h.b16 %v1856
      %v2337 = vunpack.c.l.b16 %v1857
      %v2338 = vunpack.c.h.b16 %v1857
      %v2339 = vunpack.c.l.b16 %v1858
      %v2340 = vunpack.c.h.b16 %v1858
      %v2341 = vunpack.c.l.b16 %v1859
      %v2342 = vunpack.c.l.b16 %v1860
      %v2343 = vunpack.c.h.b16 %v1860
      %v2344 = vunpack.c.l.b16 %v1861
      %v2345 = vunpack.c.h.b16 %v1861
      %v2346 = vunpack.c.l.b16 %v1862
      %v2347 = vunpack.c.h.b16 %v1862
      %v2348 = vunpack.c.l.b16 %v1863
      %v2349 = vunpack.c.l.b16 %v1864
      %v2350 = vunpack.c.h.b16 %v1864
      %v2351 = vunpack.c.l.b16 %v1865
      %v2352 = vunpack.c.h.b16 %v1865
      %v2353 = vunpack.c.l.b16 %v1866
      %v2354 = vunpack.c.h.b16 %v1866
      %v2355 = vunpack.c.l.b16 %v1867
      %v2356 = vunpack.c.l.b16 %v1868
      %v2357 = vunpack.c.h.b16 %v1868
      %v2358 = vunpack.c.l.b16 %v1869
      %v2359 = vunpack.c.h.b16 %v1869
      %v2360 = vunpack.c.l.b16 %v1870
      %v2361 = vunpack.c.h.b16 %v1870
      %v2362 = vunpack.c.l.b16 %v1871
      %v2363 = vunpack.c.l.b16 %v1872
      %v2364 = vunpack.c.h.b16 %v1872
      %v2365 = vunpack.c.l.b16 %v1873
      %v2366 = vunpack.c.h.b16 %v1873
      %v2367 = vunpack.c.l.b16 %v1874
      %v2368 = vunpack.c.h.b16 %v1874
      %v2369 = vunpack.c.l.b16 %v1875
      %v2370 = vunpack.c.l.b16 %v1876
      %v2371 = vunpack.c.h.b16 %v1876
      %v2372 = vunpack.c.l.b16 %v1877
      %v2373 = vunpack.c.h.b16 %v1877
      %v2374 = vunpack.c.l.b16 %v1878
      %v2375 = vunpack.c.h.b16 %v1878
      %v2376 = vunpack.c.l.b16 %v1879
      %v2377 = vunpack.c.l.b16 %v1880
      %v2378 = vunpack.c.h.b16 %v1880
      %v2379 = vunpack.c.l.b16 %v1881
      %v2380 = vunpack.c.h.b16 %v1881
      %v2381 = vunpack.c.l.b16 %v1882
      %v2382 = vunpack.c.h.b16 %v1882
      %v2383 = vunpack.c.l.b16 %v1883
      %v2384 = vunpack.c.l.b16 %v1884
      %v2385 = vunpack.c.h.b16 %v1884
      %v2386 = vunpack.c.l.b16 %v1885
      %v2387 = vunpack.c.h.b16 %v1885
      %v2388 = vunpack.c.l.b16 %v1886
      %v2389 = vunpack.c.h.b16 %v1886
      %v2390 = vunpack.c.l.b16 %v1887
      %v2391 = vunpack.c.l.b16 %v1888
      %v2392 = vunpack.c.h.b16 %v1888
      %v2393 = vunpack.c.l.b16 %v1889
      %v2394 = vunpack.c.h.b16 %v1889
      %v2395 = vunpack.c.l.b16 %v1890
      %v2396 = vunpack.c.h.b16 %v1890
      %v2397 = vunpack.c.l.b16 %v1891
      %v2398 = vunpack.c.l.b16 %v1892
      %v2399 = vunpack.c.h.b16 %v1892
      %v2400 = vunpack.c.l.b16 %v1893
      %v2401 = vunpack.c.h.b16 %v1893
      %v2402 = vunpack.c.l.b16 %v1894
      %v2403 = vunpack.c.h.b16 %v1894
      %v2404 = vunpack.c.l.b16 %v1895
      %v2405 = vunpack.c.l.b16 %v1896
      %v2406 = vunpack.c.h.b16 %v1896
      %v2407 = vunpack.c.l.b16 %v1897
      %v2408 = vunpack.c.h.b16 %v1897
      %v2409 = vunpack.c.l.b16 %v1898
      %v2410 = vunpack.c.h.b16 %v1898
      %v2411 = vunpack.c.l.b16 %v1899
      %v2412 = vunpack.c.l.b16 %v1900
      %v2413 = vunpack.c.h.b16 %v1900
      %v2414 = vunpack.c.l.b16 %v1901
      %v2415 = vunpack.c.h.b16 %v1901
      %v2416 = vunpack.c.l.b16 %v1902
      %v2417 = vunpack.c.h.b16 %v1902
      %v2418 = vunpack.c.l.b16 %v1903
      %v2419 = vunpack.c.l.b16 %v1904
      %v2420 = vunpack.c.h.b16 %v1904
      %v2421 = vunpack.c.l.b16 %v1905
      %v2422 = vunpack.c.h.b16 %v1905
      %v2423 = vunpack.c.l.b16 %v1906
      %v2424 = vunpack.c.h.b16 %v1906
      %v2425 = vunpack.c.l.b16 %v1907
      %v2426 = vunpack.c.l.b16 %v1908
      %v2427 = vunpack.c.h.b16 %v1908
      %v2428 = vunpack.c.l.b16 %v1909
      %v2429 = vunpack.c.h.b16 %v1909
      %v2430 = vunpack.c.l.b16 %v1910
      %v2431 = vunpack.c.h.b16 %v1910
      %v2432 = vunpack.c.l.b16 %v1911
      %v2433 = vunpack.c.l.b16 %v1912
      %v2434 = vunpack.c.h.b16 %v1912
      %v2435 = vunpack.c.l.b16 %v1913
      %v2436 = vunpack.c.h.b16 %v1913
      %v2437 = vunpack.c.l.b16 %v1914
      %v2438 = vunpack.c.h.b16 %v1914
      %v2439 = vunpack.c.l.b16 %v1915
      %v2440 = vunpack.c.l.b16 %v1916
      %v2441 = vunpack.c.h.b16 %v1916
      %v2442 = vunpack.c.l.b16 %v1917
      %v2443 = vunpack.c.h.b16 %v1917
      %v2444 = vunpack.c.l.b16 %v1918
      %v2445 = vunpack.c.h.b16 %v1918
      %v2446 = vunpack.c.l.b16 %v1919
      %v2447 = vunpack.c.l.b16 %v1920
      %v2448 = vunpack.c.h.b16 %v1920
      %v2449 = vunpack.c.l.b16 %v1921
      %v2450 = vunpack.c.h.b16 %v1921
      %v2451 = vunpack.c.l.b16 %v1922
      %v2452 = vunpack.c.h.b16 %v1922
      %v2453 = vunpack.c.l.b16 %v1923
      %v2454 = vunpack.c.l.b16 %v1924
      %v2455 = vunpack.c.h.b16 %v1924
      %v2456 = vunpack.c.l.b16 %v1925
      %v2457 = vunpack.c.h.b16 %v1925
      %v2458 = vunpack.c.l.b16 %v1926
      %v2459 = vunpack.c.h.b16 %v1926
      %v2460 = vunpack.c.l.b16 %v1927
      %v2461 = vunpack.c.l.b16 %v1928
      %v2462 = vunpack.c.h.b16 %v1928
      %v2463 = vunpack.c.l.b16 %v1929
      %v2464 = vunpack.c.h.b16 %v1929
      %v2465 = vunpack.c.l.b16 %v1930
      %v2466 = vunpack.c.h.b16 %v1930
      %v2467 = vunpack.c.l.b16 %v1931
      %v2468 = vunpack.c.l.b16 %v1932
      %v2469 = vunpack.c.h.b16 %v1932
      %v2470 = vunpack.c.l.b16 %v1933
      %v2471 = vunpack.c.h.b16 %v1933
      %v2472 = vunpack.c.l.b16 %v1934
      %v2473 = vunpack.c.h.b16 %v1934
      %v2474 = vunpack.c.l.b16 %v1935
      %v2475 = vunpack.c.l.b16 %v1936
      %v2476 = vunpack.c.h.b16 %v1936
      %v2477 = vunpack.c.l.b16 %v1937
      %v2478 = vunpack.c.h.b16 %v1937
      %v2479 = vunpack.c.l.b16 %v1938
      %v2480 = vunpack.c.h.b16 %v1938
      %v2481 = vunpack.c.l.b16 %v1939
      %v2482 = vunpack.c.l.b16 %v1940
      %v2483 = vunpack.c.h.b16 %v1940
      %v2484 = vunpack.c.l.b16 %v1941
      %v2485 = vunpack.c.h.b16 %v1941
      %v2486 = vunpack.c.l.b16 %v1942
      %v2487 = vunpack.c.h.b16 %v1942
      %v2488 = vunpack.c.l.b16 %v1943
      %v2489 = vunpack.c.l.b16 %v1944
      %v2490 = vunpack.c.h.b16 %v1944
      %v2491 = vunpack.c.l.b16 %v1945
      %v2492 = vunpack.c.h.b16 %v1945
      %v2493 = vunpack.c.l.b16 %v1946
      %v2494 = vunpack.c.h.b16 %v1946
      %v2495 = vunpack.c.l.b16 %v1947
      %v2496 = vpack.c.b16 %v2279, %v2272
      %v2497 = vpack.c.b16 %v2280, %v2273
      %v2498 = vpack.c.b16 %v2281, %v2274
      %v2499 = vpack.c.b16 %v2282, %v2275
      %v2500 = vpack.c.b16 %v2283, %v2276
      %v2501 = vpack.c.b16 %v2284, %v2277
      %v2502 = vpack.c.b16 %v2285, %v2278
      %v2503 = vpack.c.b16 %v2293, %v2286
      %v2504 = vpack.c.b16 %v2294, %v2287
      %v2505 = vpack.c.b16 %v2295, %v2288
      %v2506 = vpack.c.b16 %v2296, %v2289
      %v2507 = vpack.c.b16 %v2297, %v2290
      %v2508 = vpack.c.b16 %v2298, %v2291
      %v2509 = vpack.c.b16 %v2299, %v2292
      %v2510 = vpack.c.b16 %v2307, %v2300
      %v2511 = vpack.c.b16 %v2308, %v2301
      %v2512 = vpack.c.b16 %v2309, %v2302
      %v2513 = vpack.c.b16 %v2310, %v2303
      %v2514 = vpack.c.b16 %v2311, %v2304
      %v2515 = vpack.c.b16 %v2312, %v2305
      %v2516 = vpack.c.b16 %v2313, %v2306
      %v2517 = vpack.c.b16 %v2321, %v2314
      %v2518 = vpack.c.b16 %v2322, %v2315
      %v2519 = vpack.c.b16 %v2323, %v2316
      %v2520 = vpack.c.b16 %v2324, %v2317
      %v2521 = vpack.c.b16 %v2325, %v2318
      %v2522 = vpack.c.b16 %v2326, %v2319
      %v2523 = vpack.c.b16 %v2327, %v2320
      %v2524 = vpack.c.b16 %v2335, %v2328
      %v2525 = vpack.c.b16 %v2336, %v2329
      %v2526 = vpack.c.b16 %v2337, %v2330
      %v2527 = vpack.c.b16 %v2338, %v2331
      %v2528 = vpack.c.b16 %v2339, %v2332
      %v2529 = vpack.c.b16 %v2340, %v2333
      %v2530 = vpack.c.b16 %v2341, %v2334
      %v2531 = vpack.c.b16 %v2349, %v2342
      %v2532 = vpack.c.b16 %v2350, %v2343
      %v2533 = vpack.c.b16 %v2351, %v2344
      %v2534 = vpack.c.b16 %v2352, %v2345
      %v2535 = vpack.c.b16 %v2353, %v2346
      %v2536 = vpack.c.b16 %v2354, %v2347
      %v2537 = vpack.c.b16 %v2355, %v2348
      %v2538 = vpack.c.b16 %v2363, %v2356
      %v2539 = vpack.c.b16 %v2364, %v2357
      %v2540 = vpack.c.b16 %v2365, %v2358
      %v2541 = vpack.c.b16 %v2366, %v2359
      %v2542 = vpack.c.b16 %v2367, %v2360
      %v2543 = vpack.c.b16 %v2368, %v2361
      %v2544 = vpack.c.b16 %v2369, %v2362
      %v2545 = vpack.c.b16 %v2377, %v2370
      %v2546 = vpack.c.b16 %v2378, %v2371
      %v2547 = vpack.c.b16 %v2379, %v2372
      %v2548 = vpack.c.b16 %v2380, %v2373
      %v2549 = vpack.c.b16 %v2381, %v2374
      %v2550 = vpack.c.b16 %v2382, %v2375
      %v2551 = vpack.c.b16 %v2383, %v2376
      %v2552 = vpack.c.b16 %v2391, %v2384
      %v2553 = vpack.c.b16 %v2392, %v2385
      %v2554 = vpack.c.b16 %v2393, %v2386
      %v2555 = vpack.c.b16 %v2394, %v2387
      %v2556 = vpack.c.b16 %v2395, %v2388
      %v2557 = vpack.c.b16 %v2396, %v2389
      %v2558 = vpack.c.b16 %v2397, %v2390
      %v2559 = vpack.c.b16 %v2405, %v2398
      %v2560 = vpack.c.b16 %v2406, %v2399
      %v2561 = vpack.c.b16 %v2407, %v2400
      %v2562 = vpack.c.b16 %v2408, %v2401
      %v2563 = vpack.c.b16 %v2409, %v2402
      %v2564 = vpack.c.b16 %v2410, %v2403
      %v2565 = vpack.c.b16 %v2411, %v2404
      %v2566 = vpack.c.b16 %v2419, %v2412
      %v2567 = vpack.c.b16 %v2420, %v2413
      %v2568 = vpack.c.b16 %v2421, %v2414
      %v2569 = vpack.c.b16 %v2422, %v2415
      %v2570 = vpack.c.b16 %v2423, %v2416
      %v2571 = vpack.c.b16 %v2424, %v2417
      %v2572 = vpack.c.b16 %v2425, %v2418
      %v2573 = vpack.c.b16 %v2433, %v2426
      %v2574 = vpack.c.b16 %v2434, %v2427
      %v2575 = vpack.c.b16 %v2435, %v2428
      %v2576 = vpack.c.b16 %v2436, %v2429
      %v2577 = vpack.c.b16 %v2437, %v2430
      %v2578 = vpack.c.b16 %v2438, %v2431
      %v2579 = vpack.c.b16 %v2439, %v2432
      %v2580 = vpack.c.b16 %v2447, %v2440
      %v2581 = vpack.c.b16 %v2448, %v2441
      %v2582 = vpack.c.b16 %v2449, %v2442
      %v2583 = vpack.c.b16 %v2450, %v2443
      %v2584 = vpack.c.b16 %v2451, %v2444
      %v2585 = vpack.c.b16 %v2452, %v2445
      %v2586 = vpack.c.b16 %v2453, %v2446
      %v2587 = vpack.c.b16 %v2461, %v2454
      %v2588 = vpack.c.b16 %v2462, %v2455
      %v2589 = vpack.c.b16 %v2463, %v2456
      %v2590 = vpack.c.b16 %v2464, %v2457
      %v2591 = vpack.c.b16 %v2465, %v2458
      %v2592 = vpack.c.b16 %v2466, %v2459
      %v2593 = vpack.c.b16 %v2467, %v2460
      %v2594 = vpack.c.b16 %v2475, %v2468
      %v2595 = vpack.c.b16 %v2476, %v2469
      %v2596 = vpack.c.b16 %v2477, %v2470
      %v2597 = vpack.c.b16 %v2478, %v2471
      %v2598 = vpack.c.b16 %v2479, %v2472
      %v2599 = vpack.c.b16 %v2480, %v2473
      %v2600 = vpack.c.b16 %v2481, %v2474
      %v2601 = vpack.c.b16 %v2489, %v2482
      %v2602 = vpack.c.b16 %v2490, %v2483
      %v2603 = vpack.c.b16 %v2491, %v2484
      %v2604 = vpack.c.b16 %v2492, %v2485
      %v2605 = vpack.c.b16 %v2493, %v2486
      %v2606 = vpack.c.b16 %v2494, %v2487
      %v2607 = vpack.c.b16 %v2495, %v2488
      %v2900 = vunpack.c.l.b16 %v1948
      %v2901 = vunpack.c.h.b16 %v1948
      %v2902 = vunpack.c.l.b16 %v1949
      %v2903 = vunpack.c.h.b16 %v1949
      %v2904 = vunpack.c.l.b16 %v1950
      %v2905 = vunpack.c.h.b16 %v1950
      %v2906 = vunpack.c.l.b16 %v1951
      %v2907 = vunpack.c.h.b16 %v1951
      %v2908 = vunpack.c.l.b16 %v1952
      %v2909 = vunpack.c.h.b16 %v1952
      %v2910 = vunpack.c.l.b16 %v1953
      %v2911 = vunpack.c.h.b16 %v1953
      %v2912 = vunpack.c.l.b16 %v1954
      %v2913 = vunpack.c.h.b16 %v1954
      %v2914 = vunpack.c.l.b16 %v1955
      %v2915 = vunpack.c.h.b16 %v1955
      %v2916 = vunpack.c.l.b16 %v1956
      %v2917 = vunpack.c.h.b16 %v1956
      %v2918 = vunpack.c.l.b16 %v1957
      %v2919 = vunpack.c.h.b16 %v1957
      %v2920 = vunpack.c.l.b16 %v1958
      %v2921 = vunpack.c.h.b16 %v1958
      %v2922 = vunpack.c.l.b16 %v1959
      %v2923 = vunpack.c.h.b16 %v1959
      %v2924 = vunpack.c.l.b16 %v1960
      %v2925 = vunpack.c.h.b16 %v1960
      %v2926 = vunpack.c.l.b16 %v1961
      %v2927 = vunpack.c.h.b16 %v1961
      %v2928 = vunpack.c.l.b16 %v1962
      %v2929 = vunpack.c.h.b16 %v1962
      %v2930 = vunpack.c.l.b16 %v1963
      %v2931 = vunpack.c.h.b16 %v1963
      %v2932 = vunpack.c.l.b16 %v1964
      %v2933 = vunpack.c.h.b16 %v1964
      %v2934 = vunpack.c.l.b16 %v1965
      %v2935 = vunpack.c.h.b16 %v1965
      %v2936 = vunpack.c.l.b16 %v1966
      %v2937 = vunpack.c.h.b16 %v1966
      %v2938 = vunpack.c.l.b16 %v1967
      %v2939 = vunpack.c.h.b16 %v1967
      %v2940 = vunpack.c.l.b16 %v1968
      %v2941 = vunpack.c.h.b16 %v1968
      %v2942 = vunpack.c.l.b16 %v1969
      %v2943 = vunpack.c.h.b16 %v1969
      %v2944 = vunpack.c.l.b16 %v1970
      %v2945 = vunpack.c.h.b16 %v1970
      %v2946 = vunpack.c.l.b16 %v1971
      %v2947 = vunpack.c.h.b16 %v1971
      %v2948 = vunpack.c.l.b16 %v1972
      %v2949 = vunpack.c.h.b16 %v1972
      %v2950 = vunpack.c.l.b16 %v1973
      %v2951 = vunpack.c.h.b16 %v1973
      %v2952 = vunpack.c.l.b16 %v1974
      %v2953 = vunpack.c.h.b16 %v1974
      %v2954 = vunpack.c.l.b16 %v1975
      %v2955 = vunpack.c.h.b16 %v1975
      %v2956 = vunpack.c.l.b16 %v1976
      %v2957 = vunpack.c.h.b16 %v1976
      %v2958 = vunpack.c.l.b16 %v1977
      %v2959 = vunpack.c.h.b16 %v1977
      %v2960 = vunpack.c.l.b16 %v1978
      %v2961 = vunpack.c.h.b16 %v1978
      %v2962 = vunpack.c.l.b16 %v1979
      %v2963 = vunpack.c.h.b16 %v1979
      %v2964 = vunpack.c.l.b16 %v1980
      %v2965 = vunpack.c.h.b16 %v1980
      %v2966 = vunpack.c.l.b16 %v1981
      %v2967 = vunpack.c.h.b16 %v1981
      %v2968 = vunpack.c.l.b16 %v1982
      %v2969 = vunpack.c.h.b16 %v1982
      %v2970 = vunpack.c.l.b16 %v1983
      %v2971 = vunpack.c.h.b16 %v1983
      %v2972 = vunpack.c.l.b16 %v1984
      %v2973 = vunpack.c.h.b16 %v1984
      %v2974 = vunpack.c.l.b16 %v1985
      %v2975 = vunpack.c.h.b16 %v1985
      %v2976 = vunpack.c.l.b16 %v1986
      %v2977 = vunpack.c.h.b16 %v1986
      %v2978 = vunpack.c.l.b16 %v1987
      %v2979 = vunpack.c.h.b16 %v1987
      %v2980 = vunpack.c.l.b16 %v1988
      %v2981 = vunpack.c.h.b16 %v1988
      %v2982 = vunpack.c.l.b16 %v1989
      %v2983 = vunpack.c.h.b16 %v1989
      %v2984 = vunpack.c.l.b16 %v1990
      %v2985 = vunpack.c.h.b16 %v1990
      %v2986 = vunpack.c.l.b16 %v1991
      %v2987 = vunpack.c.h.b16 %v1991
      %v2988 = vunpack.c.l.b16 %v1992
      %v2989 = vunpack.c.h.b16 %v1992
      %v2990 = vunpack.c.l.b16 %v1993
      %v2991 = vunpack.c.h.b16 %v1993
      %v2992 = vunpack.c.l.b16 %v1994
      %v2993 = vunpack.c.h.b16 %v1994
      %v2994 = vunpack.c.l.b16 %v1995
      %v2995 = vunpack.c.h.b16 %v1995
      %v2996 = vunpack.c.l.b16 %v1996
      %v2997 = vunpack.c.h.b16 %v1996
      %v2998 = vunpack.c.l.b16 %v1997
      %v2999 = vunpack.c.h.b16 %v1997
      %v3000 = vunpack.c.l.b16 %v1998
      %v3001 = vunpack.c.h.b16 %v1998
      %v3002 = vunpack.c.l.b16 %v1999
      %v3003 = vunpack.c.h.b16 %v1999
      %v3004 = vunpack.c.l.b16 %v2000
      %v3005 = vunpack.c.h.b16 %v2000
      %v3006 = vunpack.c.l.b16 %v2001
      %v3007 = vunpack.c.h.b16 %v2001
      %v3008 = vunpack.c.l.b16 %v2002
      %v3009 = vunpack.c.h.b16 %v2002
      %v3010 = vunpack.c.l.b16 %v2003
      %v3011 = vunpack.c.h.b16 %v2003
      %v3012 = vunpack.c.l.b16 %v2004
      %v3013 = vunpack.c.h.b16 %v2004
      %v3014 = vunpack.c.l.b16 %v2005
      %v3015 = vunpack.c.h.b16 %v2005
      %v3016 = vunpack.c.l.b16 %v2006
      %v3017 = vunpack.c.h.b16 %v2006
      %v3018 = vunpack.c.l.b16 %v2007
      %v3019 = vunpack.c.h.b16 %v2007
      %v3020 = vunpack.c.l.b16 %v2008
      %v3021 = vunpack.c.h.b16 %v2008
      %v3022 = vunpack.c.l.b16 %v2009
      %v3023 = vunpack.c.h.b16 %v2009
      %v3024 = vunpack.c.l.b16 %v2010
      %v3025 = vunpack.c.h.b16 %v2010
      %v3026 = vunpack.c.l.b16 %v2011
      %v3027 = vunpack.c.h.b16 %v2011
      %v3028 = vunpack.c.l.b16 %v2012
      %v3029 = vunpack.c.h.b16 %v2012
      %v3030 = vunpack.c.l.b16 %v2013
      %v3031 = vunpack.c.h.b16 %v2013
      %v3032 = vunpack.c.l.b16 %v2014
      %v3033 = vunpack.c.h.b16 %v2014
      %v3034 = vunpack.c.l.b16 %v2015
      %v3035 = vunpack.c.h.b16 %v2015
      %v3036 = vunpack.c.l.b16 %v2016
      %v3037 = vunpack.c.h.b16 %v2016
      %v3038 = vunpack.c.l.b16 %v2017
      %v3039 = vunpack.c.h.b16 %v2017
      %v3040 = vunpack.c.l.b16 %v2018
      %v3041 = vunpack.c.h.b16 %v2018
      %v3042 = vunpack.c.l.b16 %v2019
      %v3043 = vunpack.c.h.b16 %v2019
      %v3044 = vunpack.c.l.b16 %v2020
      %v3045 = vunpack.c.h.b16 %v2020
      %v3046 = vunpack.c.l.b16 %v2021
      %v3047 = vunpack.c.h.b16 %v2021
      %v3048 = vunpack.c.l.b16 %v2022
      %v3049 = vunpack.c.h.b16 %v2022
      %v3050 = vunpack.c.l.b16 %v2023
      %v3051 = vunpack.c.h.b16 %v2023
      %v3052 = vunpack.c.l.b16 %v2024
      %v3053 = vunpack.c.h.b16 %v2024
      %v3054 = vunpack.c.l.b16 %v2025
      %v3055 = vunpack.c.h.b16 %v2025
      %v3056 = vunpack.c.l.b16 %v2026
      %v3057 = vunpack.c.h.b16 %v2026
      %v3058 = vunpack.c.l.b16 %v2027
      %v3059 = vunpack.c.h.b16 %v2027
      %v3060 = vunpack.c.l.b16 %v2028
      %v3061 = vunpack.c.h.b16 %v2028
      %v3062 = vunpack.c.l.b16 %v2029
      %v3063 = vunpack.c.h.b16 %v2029
      %v3064 = vunpack.c.l.b16 %v2030
      %v3065 = vunpack.c.h.b16 %v2030
      %v3066 = vunpack.c.l.b16 %v2031
      %v3067 = vunpack.c.h.b16 %v2031
      %v3068 = vunpack.c.l.b16 %v2032
      %v3069 = vunpack.c.h.b16 %v2032
      %v3070 = vunpack.c.l.b16 %v2033
      %v3071 = vunpack.c.h.b16 %v2033
      %v3072 = vunpack.c.l.b16 %v2034
      %v3073 = vunpack.c.h.b16 %v2034
      %v3074 = vunpack.c.l.b16 %v2035
      %v3075 = vunpack.c.h.b16 %v2035
      %v3076 = vunpack.c.l.b16 %v2036
      %v3077 = vunpack.c.h.b16 %v2036
      %v3078 = vunpack.c.l.b16 %v2037
      %v3079 = vunpack.c.h.b16 %v2037
      %v3080 = vunpack.c.l.b16 %v2038
      %v3081 = vunpack.c.h.b16 %v2038
      %v3082 = vunpack.c.l.b16 %v2039
      %v3083 = vunpack.c.h.b16 %v2039
      %v3084 = vunpack.c.l.b16 %v2040
      %v3085 = vunpack.c.h.b16 %v2040
      %v3086 = vunpack.c.l.b16 %v2041
      %v3087 = vunpack.c.h.b16 %v2041
      %v3088 = vunpack.c.l.b16 %v2042
      %v3089 = vunpack.c.h.b16 %v2042
      %v3090 = vunpack.c.l.b16 %v2043
      %v3091 = vunpack.c.h.b16 %v2043
      %v3092 = vunpack.c.l.b16 %v2044
      %v3093 = vunpack.c.h.b16 %v2044
      %v3094 = vunpack.c.l.b16 %v2045
      %v3095 = vunpack.c.h.b16 %v2045
      %v3096 = vunpack.c.l.b16 %v2046
      %v3097 = vunpack.c.h.b16 %v2046
      %v3098 = vunpack.c.l.b16 %v2047
      %v3099 = vunpack.c.h.b16 %v2047
      %v3100 = vunpack.c.l.b16 %v2048
      %v3101 = vunpack.c.h.b16 %v2048
      %v3102 = vunpack.c.l.b16 %v2049
      %v3103 = vunpack.c.h.b16 %v2049
      %v3104 = vunpack.c.l.b16 %v2050
      %v3105 = vunpack.c.h.b16 %v2050
      %v3106 = vunpack.c.l.b16 %v2051
      %v3107 = vunpack.c.h.b16 %v2051
      %v3108 = vunpack.c.l.b16 %v2052
      %v3109 = vunpack.c.h.b16 %v2052
      %v3110 = vunpack.c.l.b16 %v2053
      %v3111 = vunpack.c.h.b16 %v2053
      %v3112 = vunpack.c.l.b16 %v2054
      %v3113 = vunpack.c.h.b16 %v2054
      %v3114 = vunpack.c.l.b16 %v2055
      %v3115 = vunpack.c.h.b16 %v2055
      %v3116 = vunpack.c.l.b16 %v2056
      %v3117 = vunpack.c.h.b16 %v2056
      %v3118 = vunpack.c.l.b16 %v2057
      %v3119 = vunpack.c.h.b16 %v2057
      %v3120 = vunpack.c.l.b16 %v2058
      %v3121 = vunpack.c.h.b16 %v2058
      %v3122 = vunpack.c.l.b16 %v2059
      %v3123 = vunpack.c.h.b16 %v2059
      %v3124 = vunpack.c.l.b16 %v2060
      %v3125 = vunpack.c.h.b16 %v2060
      %v3126 = vunpack.c.l.b16 %v2061
      %v3127 = vunpack.c.h.b16 %v2061
      %v3128 = vunpack.c.l.b16 %v2062
      %v3129 = vunpack.c.h.b16 %v2062
      %v3130 = vunpack.c.l.b16 %v2063
      %v3131 = vunpack.c.h.b16 %v2063
      %v3132 = vunpack.c.l.b16 %v2064
      %v3133 = vunpack.c.h.b16 %v2064
      %v3134 = vunpack.c.l.b16 %v2065
      %v3135 = vunpack.c.h.b16 %v2065
      %v3136 = vunpack.c.l.b16 %v2066
      %v3137 = vunpack.c.h.b16 %v2066
      %v3138 = vunpack.c.l.b16 %v2067
      %v3139 = vunpack.c.h.b16 %v2067
      %v3140 = vunpack.c.l.b16 %v2068
      %v3141 = vunpack.c.h.b16 %v2068
      %v3142 = vunpack.c.l.b16 %v2069
      %v3143 = vunpack.c.h.b16 %v2069
      %v3144 = vunpack.c.l.b16 %v2070
      %v3145 = vunpack.c.h.b16 %v2070
      %v3146 = vunpack.c.l.b16 %v2071
      %v3147 = vunpack.c.h.b16 %v2071
      %v3148 = vunpack.c.l.b16 %v2072
      %v3149 = vunpack.c.h.b16 %v2072
      %v3150 = vunpack.c.l.b16 %v2073
      %v3151 = vunpack.c.h.b16 %v2073
      %v3152 = vunpack.c.l.b16 %v2074
      %v3153 = vunpack.c.h.b16 %v2074
      %v3154 = vunpack.c.l.b16 %v2075
      %v3155 = vunpack.c.h.b16 %v2075
      %v3156 = vunpack.c.l.b16 %v2076
      %v3157 = vunpack.c.h.b16 %v2076
      %v3158 = vunpack.c.l.b16 %v2077
      %v3159 = vunpack.c.h.b16 %v2077
      %v3160 = vunpack.c.l.b16 %v2078
      %v3161 = vunpack.c.h.b16 %v2078
      %v3162 = vunpack.c.l.b16 %v2079
      %v3163 = vunpack.c.h.b16 %v2079
      %v3164 = vunpack.c.l.b16 %v2080
      %v3165 = vunpack.c.h.b16 %v2080
      %v3166 = vunpack.c.l.b16 %v2081
      %v3167 = vunpack.c.h.b16 %v2081
      %v3168 = vunpack.c.l.b16 %v2082
      %v3169 = vunpack.c.h.b16 %v2082
      %v3170 = vunpack.c.l.b16 %v2083
      %v3171 = vunpack.c.h.b16 %v2083
      %v3172 = vunpack.c.l.b16 %v2084
      %v3173 = vunpack.c.h.b16 %v2084
      %v3174 = vunpack.c.l.b16 %v2085
      %v3175 = vunpack.c.h.b16 %v2085
      %v3176 = vunpack.c.l.b16 %v2086
      %v3177 = vunpack.c.h.b16 %v2086
      %v3178 = vunpack.c.l.b16 %v2087
      %v3179 = vunpack.c.h.b16 %v2087
      %v3180 = vunpack.c.l.b16 %v2088
      %v3181 = vunpack.c.h.b16 %v2088
      %v3182 = vunpack.c.l.b16 %v2089
      %v3183 = vunpack.c.h.b16 %v2089
      %v3184 = vunpack.c.l.b16 %v2090
      %v3185 = vunpack.c.h.b16 %v2090
      %v3186 = vunpack.c.l.b16 %v2091
      %v3187 = vunpack.c.h.b16 %v2091
      %v3188 = vunpack.c.l.b16 %v2092
      %v3189 = vunpack.c.h.b16 %v2092
      %v3190 = vunpack.c.l.b16 %v2093
      %v3191 = vunpack.c.h.b16 %v2093
      %v3192 = vunpack.c.l.b16 %v2094
      %v3193 = vunpack.c.h.b16 %v2094
      %v3194 = vunpack.c.l.b16 %v2095
      %v3195 = vunpack.c.h.b16 %v2095
      %v3196 = vunpack.c.l.b16 %v2096
      %v3197 = vunpack.c.h.b16 %v2096
      %v3198 = vunpack.c.l.b16 %v2097
      %v3199 = vunpack.c.h.b16 %v2097
      %v3200 = vunpack.c.l.b16 %v2098
      %v3201 = vunpack.c.h.b16 %v2098
      %v3202 = vunpack.c.l.b16 %v2099
      %v3203 = vunpack.c.h.b16 %v2099
      %v3204 = vunpack.c.l.b16 %v2100
      %v3205 = vunpack.c.h.b16 %v2100
      %v3206 = vunpack.c.l.b16 %v2101
      %v3207 = vunpack.c.h.b16 %v2101
      %v3208 = vunpack.c.l.b16 %v2102
      %v3209 = vunpack.c.h.b16 %v2102
      %v3210 = vunpack.c.l.b16 %v2103
      %v3211 = vunpack.c.h.b16 %v2103
      %v3212 = vunpack.c.l.b16 %v2104
      %v3213 = vunpack.c.h.b16 %v2104
      %v3214 = vunpack.c.l.b16 %v2105
      %v3215 = vunpack.c.h.b16 %v2105
      %v3216 = vunpack.c.l.b16 %v2106
      %v3217 = vunpack.c.h.b16 %v2106
      %v3218 = vunpack.c.l.b16 %v2107
      %v3219 = vunpack.c.h.b16 %v2107
      %v3220 = vunpack.c.l.b16 %v2108
      %v3221 = vunpack.c.h.b16 %v2108
      %v3222 = vunpack.c.l.b16 %v2109
      %v3223 = vunpack.c.h.b16 %v2109
      %v3224 = vunpack.c.l.b16 %v2110
      %v3225 = vunpack.c.h.b16 %v2110
      %v3226 = vunpack.c.l.b16 %v2111
      %v3227 = vunpack.c.h.b16 %v2111
      %v3228 = vunpack.c.l.b16 %v2112
      %v3229 = vunpack.c.h.b16 %v2112
      %v3230 = vunpack.c.l.b16 %v2113
      %v3231 = vunpack.c.h.b16 %v2113
      %v3232 = vunpack.c.l.b16 %v2114
      %v3233 = vunpack.c.h.b16 %v2114
      %v3234 = vunpack.c.l.b16 %v2115
      %v3235 = vunpack.c.h.b16 %v2115
      %v3236 = vunpack.c.l.b16 %v2116
      %v3237 = vunpack.c.h.b16 %v2116
      %v3238 = vunpack.c.l.b16 %v2117
      %v3239 = vunpack.c.h.b16 %v2117
      %v3240 = vunpack.c.l.b16 %v2118
      %v3241 = vunpack.c.h.b16 %v2118
      %v3242 = vunpack.c.l.b16 %v2119
      %v3243 = vunpack.c.h.b16 %v2119
      %v3244 = vunpack.c.l.b16 %v2120
      %v3245 = vunpack.c.h.b16 %v2120
      %v3246 = vunpack.c.l.b16 %v2121
      %v3247 = vunpack.c.h.b16 %v2121
      %v3248 = vunpack.c.l.b16 %v2122
      %v3249 = vunpack.c.h.b16 %v2122
      %v3250 = vunpack.c.l.b16 %v2123
      %v3251 = vunpack.c.h.b16 %v2123
      %v3252 = vunpack.c.l.b16 %v2124
      %v3253 = vunpack.c.h.b16 %v2124
      %v3254 = vunpack.c.l.b16 %v2125
      %v3255 = vunpack.c.h.b16 %v2125
      %v3256 = vunpack.c.l.b16 %v2126
      %v3257 = vunpack.c.h.b16 %v2126
      %v3258 = vunpack.c.l.b16 %v2127
      %v3259 = vunpack.c.h.b16 %v2127
      %v3260 = vunpack.c.l.b16 %v2128
      %v3261 = vunpack.c.h.b16 %v2128
      %v3262 = vunpack.c.l.b16 %v2129
      %v3263 = vunpack.c.h.b16 %v2129
      %v3264 = vunpack.c.l.b16 %v2130
      %v3265 = vunpack.c.h.b16 %v2130
      %v3266 = vunpack.c.l.b16 %v2131
      %v3267 = vunpack.c.h.b16 %v2131
      %v3268 = vunpack.c.l.b16 %v2132
      %v3269 = vunpack.c.h.b16 %v2132
      %v3270 = vunpack.c.l.b16 %v2133
      %v3271 = vunpack.c.h.b16 %v2133
      %v3272 = vunpack.c.l.b16 %v2134
      %v3273 = vunpack.c.h.b16 %v2134
      %v3274 = vunpack.c.l.b16 %v2135
      %v3275 = vunpack.c.h.b16 %v2135
      %v3276 = vunpack.c.l.b16 %v2136
      %v3277 = vunpack.c.h.b16 %v2136
      %v3278 = vunpack.c.l.b16 %v2137
      %v3279 = vunpack.c.h.b16 %v2137
      %v3280 = vunpack.c.l.b16 %v2138
      %v3281 = vunpack.c.h.b16 %v2138
      %v3282 = vunpack.c.l.b16 %v2139
      %v3283 = vunpack.c.h.b16 %v2139
      %v3284 = vunpack.c.l.b16 %v2140
      %v3285 = vunpack.c.h.b16 %v2140
      %v3286 = vunpack.c.l.b16 %v2141
      %v3287 = vunpack.c.h.b16 %v2141
      %v3288 = vunpack.c.l.b16 %v2142
      %v3289 = vunpack.c.h.b16 %v2142
      %v3290 = vunpack.c.l.b16 %v2143
      %v3291 = vunpack.c.h.b16 %v2143
      %v3292 = vpack.c.b16 %v2904, %v2900
      %v3293 = vpack.c.b16 %v2905, %v2901
      %v3294 = vpack.c.b16 %v2906, %v2902
      %v3295 = vpack.c.b16 %v2907, %v2903
      %v3296 = vpack.c.b16 %v2912, %v2908
      %v3297 = vpack.c.b16 %v2913, %v2909
      %v3298 = vpack.c.b16 %v2914, %v2910
      %v3299 = vpack.c.b16 %v2915, %v2911
      %v3300 = vpack.c.b16 %v2920, %v2916
      %v3301 = vpack.c.b16 %v2921, %v2917
      %v3302 = vpack.c.b16 %v2922, %v2918
      %v3303 = vpack.c.b16 %v2923, %v2919
      %v3304 = vpack.c.b16 %v2928, %v2924
      %v3305 = vpack.c.b16 %v2929, %v2925
      %v3306 = vpack.c.b16 %v2930, %v2926
      %v3307 = vpack.c.b16 %v2931, %v2927
      %v3308 = vpack.c.b16 %v2936, %v2932
      %v3309 = vpack.c.b16 %v2937, %v2933
      %v3310 = vpack.c.b16 %v2938, %v2934
      %v3311 = vpack.c.b16 %v2939, %v2935
      %v3312 = vpack.c.b16 %v2944, %v2940
      %v3313 = vpack.c.b16 %v2945, %v2941
      %v3314 = vpack.c.b16 %v2946, %v2942
      %v3315 = vpack.c.b16 %v2947, %v2943
      %v3316 = vpack.c.b16 %v2952, %v2948
      %v3317 = vpack.c.b16 %v2953, %v2949
      %v3318 = vpack.c.b16 %v2954, %v2950
      %v3319 = vpack.c.b16 %v2955, %v2951
      %v3320 = vpack.c.b16 %v2960, %v2956
      %v3321 = vpack.c.b16 %v2961, %v2957
      %v3322 = vpack.c.b16 %v2962, %v2958
      %v3323 = vpack.c.b16 %v2963, %v2959
      %v3324 = vpack.c.b16 %v2968, %v2964
      %v3325 = vpack.c.b16 %v2969, %v2965
      %v3326 = vpack.c.b16 %v2970, %v2966
      %v3327 = vpack.c.b16 %v2971, %v2967
      %v3328 = vpack.c.b16 %v2976, %v2972
      %v3329 = vpack.c.b16 %v2977, %v2973
      %v3330 = vpack.c.b16 %v2978, %v2974
      %v3331 = vpack.c.b16 %v2979, %v2975
      %v3332 = vpack.c.b16 %v2984, %v2980
      %v3333 = vpack.c.b16 %v2985, %v2981
      %v3334 = vpack.c.b16 %v2986, %v2982
      %v3335 = vpack.c.b16 %v2987, %v2983
      %v3336 = vpack.c.b16 %v2992, %v2988
      %v3337 = vpack.c.b16 %v2993, %v2989
      %v3338 = vpack.c.b16 %v2994, %v2990
      %v3339 = vpack.c.b16 %v2995, %v2991
      %v3340 = vpack.c.b16 %v3000, %v2996
      %v3341 = vpack.c.b16 %v3001, %v2997
      %v3342 = vpack.c.b16 %v3002, %v2998
      %v3343 = vpack.c.b16 %v3003, %v2999
      %v3344 = vpack.c.b16 %v3008, %v3004
      %v3345 = vpack.c.b16 %v3009, %v3005
      %v3346 = vpack.c.b16 %v3010, %v3006
      %v3347 = vpack.c.b16 %v3011, %v3007
      %v3348 = vpack.c.b16 %v3016, %v3012
      %v3349 = vpack.c.b16 %v3017, %v3013
      %v3350 = vpack.c.b16 %v3018, %v3014
      %v3351 = vpack.c.b16 %v3019, %v3015
      %v3352 = vpack.c.b16 %v3024, %v3020
      %v3353 = vpack.c.b16 %v3025, %v3021
      %v3354 = vpack.c.b16 %v3026, %v3022
      %v3355 = vpack.c.b16 %v3027, %v3023
      %v3356 = vpack.c.b16 %v3032, %v3028
      %v3357 = vpack.c.b16 %v3033, %v3029
      %v3358 = vpack.c.b16 %v3034, %v3030
      %v3359 = vpack.c.b16 %v3035, %v3031
      %v3360 = vpack.c.b16 %v3040, %v3036
      %v3361 = vpack.c.b16 %v3041, %v3037
      %v3362 = vpack.c.b16 %v3042, %v3038
      %v3363 = vpack.c.b16 %v3043, %v3039
      %v3364 = vpack.c.b16 %v3048, %v3044
      %v3365 = vpack.c.b16 %v3049, %v3045
      %v3366 = vpack.c.b16 %v3050, %v3046
      %v3367 = vpack.c.b16 %v3051, %v3047
      %v3368 = vpack.c.b16 %v3056, %v3052
      %v3369 = vpack.c.b16 %v3057, %v3053
      %v3370 = vpack.c.b16 %v3058, %v3054
      %v3371 = vpack.c.b16 %v3059, %v3055
      %v3372 = vpack.c.b16 %v3064, %v3060
      %v3373 = vpack.c.b16 %v3065, %v3061
      %v3374 = vpack.c.b16 %v3066, %v3062
      %v3375 = vpack.c.b16 %v3067, %v3063
      %v3376 = vpack.c.b16 %v3072, %v3068
      %v3377 = vpack.c.b16 %v3073, %v3069
      %v3378 = vpack.c.b16 %v3074, %v3070
      %v3379 = vpack.c.b16 %v3075, %v3071
      %v3380 = vpack.c.b16 %v3080, %v3076
      %v3381 = vpack.c.b16 %v3081, %v3077
      %v3382 = vpack.c.b16 %v3082, %v3078
      %v3383 = vpack.c.b16 %v3083, %v3079
      %v3384 = vpack.c.b16 %v3088, %v3084
      %v3385 = vpack.c.b16 %v3089, %v3085
      %v3386 = vpack.c.b16 %v3090, %v3086
      %v3387 = vpack.c.b16 %v3091, %v3087
      %v3388 = vpack.c.b16 %v3096, %v3092
      %v3389 = vpack.c.b16 %v3097, %v3093
      %v3390 = vpack.c.b16 %v3098, %v3094
      %v3391 = vpack.c.b16 %v3099, %v3095
      %v3392 = vpack.c.b16 %v3104, %v3100
      %v3393 = vpack.c.b16 %v3105, %v3101
      %v3394 = vpack.c.b16 %v3106, %v3102
      %v3395 = vpack.c.b16 %v3107, %v3103
      %v3396 = vpack.c.b16 %v3112, %v3108
      %v3397 = vpack.c.b16 %v3113, %v3109
      %v3398 = vpack.c.b16 %v3114, %v3110
      %v3399 = vpack.c.b16 %v3115, %v3111
      %v3400 = vpack.c.b16 %v3120, %v3116
      %v3401 = vpack.c.b16 %v3121, %v3117
      %v3402 = vpack.c.b16 %v3122, %v3118
      %v3403 = vpack.c.b16 %v3123, %v3119
      %v3404 = vpack.c.b16 %v3128, %v3124
      %v3405 = vpack.c.b16 %v3129, %v3125
      %v3406 = vpack.c.b16 %v3130, %v3126
      %v3407 = vpack.c.b16 %v3131, %v3127
      %v3408 = vpack.c.b16 %v3136, %v3132
      %v3409 = vpack.c.b16 %v3137, %v3133
      %v3410 = vpack.c.b16 %v3138, %v3134
      %v3411 = vpack.c.b16 %v3139, %v3135
      %v3412 = vpack.c.b16 %v3144, %v3140
      %v3413 = vpack.c.b16 %v3145, %v3141
      %v3414 = vpack.c.b16 %v3146, %v3142
      %v3415 = vpack.c.b16 %v3147, %v3143
      %v3416 = vpack.c.b16 %v3152, %v3148
      %v3417 = vpack.c.b16 %v3153, %v3149
      %v3418 = vpack.c.b16 %v3154, %v3150
      %v3419 = vpack.c.b16 %v3155, %v3151
      %v3420 = vpack.c.b16 %v3160, %v3156
      %v3421 = vpack.c.b16 %v3161, %v3157
      %v3422 = vpack.c.b16 %v3162, %v3158
      %v3423 = vpack.c.b16 %v3163, %v3159
      %v3424 = vpack.c.b16 %v3168, %v3164
      %v3425 = vpack.c.b16 %v3169, %v3165
      %v3426 = vpack.c.b16 %v3170, %v3166
      %v3427 = vpack.c.b16 %v3171, %v3167
      %v3428 = vpack.c.b16 %v3176, %v3172
      %v3429 = vpack.c.b16 %v3177, %v3173
      %v3430 = vpack.c.b16 %v3178, %v3174
      %v3431 = vpack.c.b16 %v3179, %v3175
      %v3432 = vpack.c.b16 %v3184, %v3180
      %v3433 = vpack.c.b16 %v3185, %v3181
      %v3434 = vpack.c.b16 %v3186, %v3182
      %v3435 = vpack.c.b16 %v3187, %v3183
      %v3436 = vpack.c.b16 %v3192, %v3188
      %v3437 = vpack.c.b16 %v3193, %v3189
      %v3438 = vpack.c.b16 %v3194, %v3190
      %v3439 = vpack.c.b16 %v3195, %v3191
      %v3440 = vpack.c.b16 %v3200, %v3196
      %v3441 = vpack.c.b16 %v3201, %v3197
      %v3442 = vpack.c.b16 %v3202, %v3198
      %v3443 = vpack.c.b16 %v3203, %v3199
      %v3444 = vpack.c.b16 %v3208, %v3204
      %v3445 = vpack.c.b16 %v3209, %v3205
      %v3446 = vpack.c.b16 %v3210, %v3206
      %v3447 = vpack.c.b16 %v3211, %v3207
      %v3448 = vpack.c.b16 %v3216, %v3212
      %v3449 = vpack.c.b16 %v3217, %v3213
      %v3450 = vpack.c.b16 %v3218, %v3214
      %v3451 = vpack.c.b16 %v3219, %v3215
      %v3452 = vpack.c.b16 %v3224, %v3220
      %v3453 = vpack.c.b16 %v3225, %v3221
      %v3454 = vpack.c.b16 %v3226, %v3222
      %v3455 = vpack.c.b16 %v3227, %v3223
      %v3456 = vpack.c.b16 %v3232, %v3228
      %v3457 = vpack.c.b16 %v3233, %v3229
      %v3458 = vpack.c.b16 %v3234, %v3230
      %v3459 = vpack.c.b16 %v3235, %v3231
      %v3460 = vpack.c.b16 %v3240, %v3236
      %v3461 = vpack.c.b16 %v3241, %v3237
      %v3462 = vpack.c.b16 %v3242, %v3238
      %v3463 = vpack.c.b16 %v3243, %v3239
      %v3464 = vpack.c.b16 %v3248, %v3244
      %v3465 = vpack.c.b16 %v3249, %v3245
      %v3466 = vpack.c.b16 %v3250, %v3246
      %v3467 = vpack.c.b16 %v3251, %v3247
      %v3468 = vpack.c.b16 %v3256, %v3252
      %v3469 = vpack.c.b16 %v3257, %v3253
      %v3470 = vpack.c.b16 %v3258, %v3254
      %v3471 = vpack.c.b16 %v3259, %v3255
      %v3472 = vpack.c.b16 %v3264, %v3260
      %v3473 = vpack.c.b16 %v3265, %v3261
      %v3474 = vpack.c.b16 %v3266, %v3262
      %v3475 = vpack.c.b16 %v3267, %v3263
      %v3476 = vpack.c.b16 %v3272, %v3268
      %v3477 = vpack.c.b16 %v3273, %v3269
      %v3478 = vpack.c.b16 %v3274, %v3270
      %v3479 = vpack.c.b16 %v3275, %v3271
      %v3480 = vpack.c.b16 %v3280, %v3276
      %v3481 = vpack.c.b16 %v3281, %v3277
      %v3482 = vpack.c.b16 %v3282, %v3278
      %v3483 = vpack.c.b16 %v3283, %v3279
      %v3484 = vpack.c.b16 %v3288, %v3284
      %v3485 = vpack.c.b16 %v3289, %v3285
      %v3486 = vpack.c.b16 %v3290, %v3286
      %v3487 = vpack.c.b16 %v3291, %v3287
      %vm3684 = vcmask 130048
      %v3686 = vsel %vm3684, %v2502, 0
      %v3689 = vsel %vm3684, %v2509, 0
      %v3692 = vsel %vm3684, %v2516, 0
      %v3695 = vsel %vm3684, %v2523, 0
      %v3698 = vsel %vm3684, %v2530, 0
      %v3701 = vsel %vm3684, %v2537, 0
      %v3704 = vsel %vm3684, %v2544, 0
      %v3707 = vsel %vm3684, %v2551, 0
      %v3710 = vsel %vm3684, %v2558, 0
      %v3713 = vsel %vm3684, %v2565, 0
      %v3716 = vsel %vm3684, %v2572, 0
      %v3719 = vsel %vm3684, %v2579, 0
      %v3722 = vsel %vm3684, %v2586, 0
      %v3725 = vsel %vm3684, %v2593, 0
      %v3728 = vsel %vm3684, %v2600, 0
      %v3731 = vsel %vm3684, %v2607, 0
      %3733 = vmatprep.subr.bf16.mxu0 %v3293
      %3734 = vmatpush1.bf16.msra.mxu0 %v3292
      %3735 = vmatprep.subr.bf16.mxu0 %v3297
      %3736 = vmatpush1.bf16.msra.mxu0 %v3296
      %3737 = vmatprep.subr.bf16.mxu0 %v3301
      %3738 = vmatpush1.bf16.msra.mxu0 %v3300
      %3739 = vmatprep.subr.bf16.mxu0 %v3305
      %3740 = vmatpush1.bf16.msra.mxu0 %v3304
      %3741 = vmatprep.subr.bf16.mxu0 %v3309
      %3742 = vmatpush1.bf16.msra.mxu0 %v3308
      %3743 = vmatprep.subr.bf16.mxu0 %v3313
      %3744 = vmatpush1.bf16.msra.mxu0 %v3312
      %3745 = vmatprep.subr.bf16.mxu0 %v3317
      %3746 = vmatpush1.bf16.msra.mxu0 %v3316
      %3747 = vmatprep.subr.bf16.mxu0 %v3321
      %3748 = vmatpush1.bf16.msra.mxu0 %v3320
      %3749 = vmatprep.subr.bf16.mxu0 %v3325
      %3750 = vmatpush1.bf16.msra.mxu0 %v3324
      %3751 = vmatprep.subr.bf16.mxu0 %v3329
      %3752 = vmatpush1.bf16.msra.mxu0 %v3328
      %3753 = vmatprep.subr.bf16.mxu0 %v3333
      %3754 = vmatpush1.bf16.msra.mxu0 %v3332
      %3755 = vmatprep.subr.bf16.mxu0 %v3337
      %3756 = vmatpush1.bf16.msra.mxu0 %v3336
      %3757 = vmatprep.subr.bf16.mxu0 %v3341
      %3758 = vmatpush1.bf16.msra.mxu0 %v3340
      %3759 = vmatprep.subr.bf16.mxu0 %v3345
      %3760 = vmatpush1.bf16.msra.mxu0 %v3344
      %3761 = vmatprep.subr.bf16.mxu0 %v3349
      %3762 = vmatpush1.bf16.msra.mxu0 %v3348
      %3763 = vmatprep.subr.bf16.mxu0 %v3353
      %3764 = vmatpush1.bf16.msra.mxu0 %v3352
      %3765 = vmatprep.mubr.bf16.mxu0 %v2497
      %3766 = vmatmul.mubr.bf16.gmra.mrb[0].mxu0 %v2496
      %v3767 = vpop.f32.mrb[0].mxu0
      %v3768 = vadd.f32 %v1083, %v3767
      %v3769 = vpop.f32.mrb[0].mxu0
      %v3770 = vadd.f32 %v1085, %v3769
      %v3771 = vpop.f32.mrb[0].mxu0
      %v3772 = vadd.f32 %v1087, %v3771
      %v3773 = vpop.f32.mrb[0].mxu0
      %v3774 = vadd.f32 %v1089, %v3773
      %3775 = vmatprep.mubr.bf16.mxu0 %v2504
      %3776 = vmatmul.mubr.bf16.gmra.mrb[0].mxu0 %v2503
      %v3777 = vpop.f32.mrb[0].mxu0
      %v3778 = vadd.f32 %v1093, %v3777
      %v3779 = vpop.f32.mrb[0].mxu0
      %v3780 = vadd.f32 %v1095, %v3779
      %v3781 = vpop.f32.mrb[0].mxu0
      %v3782 = vadd.f32 %v1097, %v3781
      %v3783 = vpop.f32.mrb[0].mxu0
      %v3784 = vadd.f32 %v1099, %v3783
      %3785 = vmatprep.mubr.bf16.mxu0 %v2511
      %3786 = vmatmul.mubr.bf16.gmra.mrb[0].mxu0 %v2510
      %v3787 = vpop.f32.mrb[0].mxu0
      %v3788 = vadd.f32 %v1103, %v3787
      %v3789 = vpop.f32.mrb[0].mxu0
      %v3790 = vadd.f32 %v1105, %v3789
      %v3791 = vpop.f32.mrb[0].mxu0
      %v3792 = vadd.f32 %v1107, %v3791
      %v3793 = vpop.f32.mrb[0].mxu0
      %v3794 = vadd.f32 %v1109, %v3793
      %3795 = vmatprep.mubr.bf16.mxu0 %v2518
      %3796 = vmatmul.mubr.bf16.gmra.mrb[0].mxu0 %v2517
      %v3797 = vpop.f32.mrb[0].mxu0
      %v3798 = vadd.f32 %v1113, %v3797
      %v3799 = vpop.f32.mrb[0].mxu0
      %v3800 = vadd.f32 %v1115, %v3799
      %v3801 = vpop.f32.mrb[0].mxu0
      %v3802 = vadd.f32 %v1117, %v3801
      %v3803 = vpop.f32.mrb[0].mxu0
      %v3804 = vadd.f32 %v1119, %v3803
      %3805 = vmatprep.mubr.bf16.mxu0 %v2525
      %3806 = vmatmul.mubr.bf16.gmra.mrb[0].mxu0 %v2524
      %v3807 = vpop.f32.mrb[0].mxu0
      %v3808 = vadd.f32 %v1123, %v3807
      %v3809 = vpop.f32.mrb[0].mxu0
      %v3810 = vadd.f32 %v1125, %v3809
      %v3811 = vpop.f32.mrb[0].mxu0
      %v3812 = vadd.f32 %v1127, %v3811
      %v3813 = vpop.f32.mrb[0].mxu0
      %v3814 = vadd.f32 %v1129, %v3813
      %3815 = vmatprep.mubr.bf16.mxu0 %v2532
      %3816 = vmatmul.mubr.bf16.gmra.mrb[0].mxu0 %v2531
      %v3817 = vpop.f32.mrb[0].mxu0
      %v3818 = vadd.f32 %v1133, %v3817
      %v3819 = vpop.f32.mrb[0].mxu0
      %v3820 = vadd.f32 %v1135, %v3819
      %v3821 = vpop.f32.mrb[0].mxu0
      %v3822 = vadd.f32 %v1137, %v3821
      %v3823 = vpop.f32.mrb[0].mxu0
      %v3824 = vadd.f32 %v1139, %v3823
      %3825 = vmatprep.mubr.bf16.mxu0 %v2539
      %3826 = vmatmul.mubr.bf16.gmra.mrb[0].mxu0 %v2538
      %v3827 = vpop.f32.mrb[0].mxu0
      %v3828 = vadd.f32 %v1143, %v3827
      %v3829 = vpop.f32.mrb[0].mxu0
      %v3830 = vadd.f32 %v1145, %v3829
      %v3831 = vpop.f32.mrb[0].mxu0
      %v3832 = vadd.f32 %v1147, %v3831
      %v3833 = vpop.f32.mrb[0].mxu0
      %v3834 = vadd.f32 %v1149, %v3833
      %3835 = vmatprep.mubr.bf16.mxu0 %v2546
      %3836 = vmatmul.mubr.bf16.gmra.mrb[0].mxu0 %v2545
      %v3837 = vpop.f32.mrb[0].mxu0
      %v3838 = vadd.f32 %v1153, %v3837
      %v3839 = vpop.f32.mrb[0].mxu0
      %v3840 = vadd.f32 %v1155, %v3839
      %v3841 = vpop.f32.mrb[0].mxu0
      %v3842 = vadd.f32 %v1157, %v3841
      %v3843 = vpop.f32.mrb[0].mxu0
      %v3844 = vadd.f32 %v1159, %v3843
      %3845 = vmatprep.mubr.bf16.mxu0 %v2553
      %3846 = vmatmul.mubr.bf16.gmra.mrb[0].mxu0 %v2552
      %v3847 = vpop.f32.mrb[0].mxu0
      %v3848 = vadd.f32 %v1163, %v3847
      %v3849 = vpop.f32.mrb[0].mxu0
      %v3850 = vadd.f32 %v1165, %v3849
      %v3851 = vpop.f32.mrb[0].mxu0
      %v3852 = vadd.f32 %v1167, %v3851
      %v3853 = vpop.f32.mrb[0].mxu0
      %v3854 = vadd.f32 %v1169, %v3853
      %3855 = vmatprep.mubr.bf16.mxu0 %v2560
      %3856 = vmatmul.mubr.bf16.gmra.mrb[0].mxu0 %v2559
      %v3857 = vpop.f32.mrb[0].mxu0
      %v3858 = vadd.f32 %v1173, %v3857
      %v3859 = vpop.f32.mrb[0].mxu0
      %v3860 = vadd.f32 %v1175, %v3859
      %v3861 = vpop.f32.mrb[0].mxu0
      %v3862 = vadd.f32 %v1177, %v3861
      %v3863 = vpop.f32.mrb[0].mxu0
      %v3864 = vadd.f32 %v1179, %v3863
      %3865 = vmatprep.mubr.bf16.mxu0 %v2567
      %3866 = vmatmul.mubr.bf16.gmra.mrb[0].mxu0 %v2566
      %v3867 = vpop.f32.mrb[0].mxu0
      %v3868 = vadd.f32 %v1183, %v3867
      %v3869 = vpop.f32.mrb[0].mxu0
      %v3870 = vadd.f32 %v1185, %v3869
      %v3871 = vpop.f32.mrb[0].mxu0
      %v3872 = vadd.f32 %v1187, %v3871
      %v3873 = vpop.f32.mrb[0].mxu0
      %v3874 = vadd.f32 %v1189, %v3873
      %3875 = vmatprep.mubr.bf16.mxu0 %v2574
      %3876 = vmatmul.mubr.bf16.gmra.mrb[0].mxu0 %v2573
      %v3877 = vpop.f32.mrb[0].mxu0
      %v3878 = vadd.f32 %v1193, %v3877
      %v3879 = vpop.f32.mrb[0].mxu0
      %v3880 = vadd.f32 %v1195, %v3879
      %v3881 = vpop.f32.mrb[0].mxu0
      %v3882 = vadd.f32 %v1197, %v3881
      %v3883 = vpop.f32.mrb[0].mxu0
      %v3884 = vadd.f32 %v1199, %v3883
      %3885 = vmatprep.mubr.bf16.mxu0 %v2581
      %3886 = vmatmul.mubr.bf16.gmra.mrb[0].mxu0 %v2580
      %v3887 = vpop.f32.mrb[0].mxu0
      %v3888 = vadd.f32 %v1203, %v3887
      %v3889 = vpop.f32.mrb[0].mxu0
      %v3890 = vadd.f32 %v1205, %v3889
      %v3891 = vpop.f32.mrb[0].mxu0
      %v3892 = vadd.f32 %v1207, %v3891
      %v3893 = vpop.f32.mrb[0].mxu0
      %v3894 = vadd.f32 %v1209, %v3893
      %3895 = vmatprep.mubr.bf16.mxu0 %v2588
      %3896 = vmatmul.mubr.bf16.gmra.mrb[0].mxu0 %v2587
      %v3897 = vpop.f32.mrb[0].mxu0
      %v3898 = vadd.f32 %v1213, %v3897
      %v3899 = vpop.f32.mrb[0].mxu0
      %v3900 = vadd.f32 %v1215, %v3899
      %v3901 = vpop.f32.mrb[0].mxu0
      %v3902 = vadd.f32 %v1217, %v3901
      %v3903 = vpop.f32.mrb[0].mxu0
      %v3904 = vadd.f32 %v1219, %v3903
      %3905 = vmatprep.mubr.bf16.mxu0 %v2595
      %3906 = vmatmul.mubr.bf16.gmra.mrb[0].mxu0 %v2594
      %v3907 = vpop.f32.mrb[0].mxu0
      %v3908 = vadd.f32 %v1223, %v3907
      %v3909 = vpop.f32.mrb[0].mxu0
      %v3910 = vadd.f32 %v1225, %v3909
      %v3911 = vpop.f32.mrb[0].mxu0
      %v3912 = vadd.f32 %v1227, %v3911
      %v3913 = vpop.f32.mrb[0].mxu0
      %v3914 = vadd.f32 %v1229, %v3913
      %3915 = vmatprep.mubr.bf16.mxu0 %v2602
      %3916 = vmatmul.mubr.bf16.gmra.mrb[0].mxu0 %v2601
      %v3917 = vpop.f32.mrb[0].mxu0
      %v3918 = vadd.f32 %v1233, %v3917
      %v3919 = vpop.f32.mrb[0].mxu0
      %v3920 = vadd.f32 %v1235, %v3919
      %v3921 = vpop.f32.mrb[0].mxu0
      %v3922 = vadd.f32 %v1237, %v3921
      %v3923 = vpop.f32.mrb[0].mxu0
      %v3924 = vadd.f32 %v1239, %v3923
      %3925 = vdwg.mxu0
      %3926 = vmatprep.subr.bf16.mxu0 %v3357
      %3927 = vmatpush1.bf16.msra.mxu0 %v3356
      %3928 = vmatprep.subr.bf16.mxu0 %v3361
      %3929 = vmatpush1.bf16.msra.mxu0 %v3360
      %3930 = vmatprep.subr.bf16.mxu0 %v3365
      %3931 = vmatpush1.bf16.msra.mxu0 %v3364
      %3932 = vmatprep.subr.bf16.mxu0 %v3369
      %3933 = vmatpush1.bf16.msra.mxu0 %v3368
      %3934 = vmatprep.subr.bf16.mxu0 %v3373
      %3935 = vmatpush1.bf16.msra.mxu0 %v3372
      %3936 = vmatprep.subr.bf16.mxu0 %v3377
      %3937 = vmatpush1.bf16.msra.mxu0 %v3376
      %3938 = vmatprep.subr.bf16.mxu0 %v3381
      %3939 = vmatpush1.bf16.msra.mxu0 %v3380
      %3940 = vmatprep.subr.bf16.mxu0 %v3385
      %3941 = vmatpush1.bf16.msra.mxu0 %v3384
      %3942 = vmatprep.subr.bf16.mxu0 %v3389
      %3943 = vmatpush1.bf16.msra.mxu0 %v3388
      %3944 = vmatprep.subr.bf16.mxu0 %v3393
      %3945 = vmatpush1.bf16.msra.mxu0 %v3392
      %3946 = vmatprep.subr.bf16.mxu0 %v3397
      %3947 = vmatpush1.bf16.msra.mxu0 %v3396
      %3948 = vmatprep.subr.bf16.mxu0 %v3401
      %3949 = vmatpush1.bf16.msra.mxu0 %v3400
      %3950 = vmatprep.subr.bf16.mxu0 %v3405
      %3951 = vmatpush1.bf16.msra.mxu0 %v3404
      %3952 = vmatprep.subr.bf16.mxu0 %v3409
      %3953 = vmatpush1.bf16.msra.mxu0 %v3408
      %3954 = vmatprep.subr.bf16.mxu0 %v3413
      %3955 = vmatpush1.bf16.msra.mxu0 %v3412
      %3956 = vmatprep.subr.bf16.mxu0 %v3417
      %3957 = vmatpush1.bf16.msra.mxu0 %v3416
      %3958 = vmatprep.mubr.bf16.mxu0 %v2499
      %3959 = vmatmul.mubr.bf16.gmra.mrb[0].mxu0 %v2498
      %v3960 = vpop.f32.mrb[0].mxu0
      %v3961 = vadd.f32 %v3768, %v3960
      %v3962 = vpop.f32.mrb[0].mxu0
      %v3963 = vadd.f32 %v3770, %v3962
      %v3964 = vpop.f32.mrb[0].mxu0
      %v3965 = vadd.f32 %v3772, %v3964
      %v3966 = vpop.f32.mrb[0].mxu0
      %v3967 = vadd.f32 %v3774, %v3966
      %3968 = vmatprep.mubr.bf16.mxu0 %v2506
      %3969 = vmatmul.mubr.bf16.gmra.mrb[0].mxu0 %v2505
      %v3970 = vpop.f32.mrb[0].mxu0
      %v3971 = vadd.f32 %v3778, %v3970
      %v3972 = vpop.f32.mrb[0].mxu0
      %v3973 = vadd.f32 %v3780, %v3972
      %v3974 = vpop.f32.mrb[0].mxu0
      %v3975 = vadd.f32 %v3782, %v3974
      %v3976 = vpop.f32.mrb[0].mxu0
      %v3977 = vadd.f32 %v3784, %v3976
      %3978 = vmatprep.mubr.bf16.mxu0 %v2513
      %3979 = vmatmul.mubr.bf16.gmra.mrb[0].mxu0 %v2512
      %v3980 = vpop.f32.mrb[0].mxu0
      %v3981 = vadd.f32 %v3788, %v3980
      %v3982 = vpop.f32.mrb[0].mxu0
      %v3983 = vadd.f32 %v3790, %v3982
      %v3984 = vpop.f32.mrb[0].mxu0
      %v3985 = vadd.f32 %v3792, %v3984
      %v3986 = vpop.f32.mrb[0].mxu0
      %v3987 = vadd.f32 %v3794, %v3986
      %3988 = vmatprep.mubr.bf16.mxu0 %v2520
      %3989 = vmatmul.mubr.bf16.gmra.mrb[0].mxu0 %v2519
      %v3990 = vpop.f32.mrb[0].mxu0
      %v3991 = vadd.f32 %v3798, %v3990
      %v3992 = vpop.f32.mrb[0].mxu0
      %v3993 = vadd.f32 %v3800, %v3992
      %v3994 = vpop.f32.mrb[0].mxu0
      %v3995 = vadd.f32 %v3802, %v3994
      %v3996 = vpop.f32.mrb[0].mxu0
      %v3997 = vadd.f32 %v3804, %v3996
      %3998 = vmatprep.mubr.bf16.mxu0 %v2527
      %3999 = vmatmul.mubr.bf16.gmra.mrb[0].mxu0 %v2526
      %v4000 = vpop.f32.mrb[0].mxu0
      %v4001 = vadd.f32 %v3808, %v4000
      %v4002 = vpop.f32.mrb[0].mxu0
      %v4003 = vadd.f32 %v3810, %v4002
      %v4004 = vpop.f32.mrb[0].mxu0
      %v4005 = vadd.f32 %v3812, %v4004
      %v4006 = vpop.f32.mrb[0].mxu0
      %v4007 = vadd.f32 %v3814, %v4006
      %4008 = vmatprep.mubr.bf16.mxu0 %v2534
      %4009 = vmatmul.mubr.bf16.gmra.mrb[0].mxu0 %v2533
      %v4010 = vpop.f32.mrb[0].mxu0
      %v4011 = vadd.f32 %v3818, %v4010
      %v4012 = vpop.f32.mrb[0].mxu0
      %v4013 = vadd.f32 %v3820, %v4012
      %v4014 = vpop.f32.mrb[0].mxu0
      %v4015 = vadd.f32 %v3822, %v4014
      %v4016 = vpop.f32.mrb[0].mxu0
      %v4017 = vadd.f32 %v3824, %v4016
      %4018 = vmatprep.mubr.bf16.mxu0 %v2541
      %4019 = vmatmul.mubr.bf16.gmra.mrb[0].mxu0 %v2540
      %v4020 = vpop.f32.mrb[0].mxu0
      %v4021 = vadd.f32 %v3828, %v4020
      %v4022 = vpop.f32.mrb[0].mxu0
      %v4023 = vadd.f32 %v3830, %v4022
      %v4024 = vpop.f32.mrb[0].mxu0
      %v4025 = vadd.f32 %v3832, %v4024
      %v4026 = vpop.f32.mrb[0].mxu0
      %v4027 = vadd.f32 %v3834, %v4026
      %4028 = vmatprep.mubr.bf16.mxu0 %v2548
      %4029 = vmatmul.mubr.bf16.gmra.mrb[0].mxu0 %v2547
      %v4030 = vpop.f32.mrb[0].mxu0
      %v4031 = vadd.f32 %v3838, %v4030
      %v4032 = vpop.f32.mrb[0].mxu0
      %v4033 = vadd.f32 %v3840, %v4032
      %v4034 = vpop.f32.mrb[0].mxu0
      %v4035 = vadd.f32 %v3842, %v4034
      %v4036 = vpop.f32.mrb[0].mxu0
      %v4037 = vadd.f32 %v3844, %v4036
      %4038 = vmatprep.mubr.bf16.mxu0 %v2555
      %4039 = vmatmul.mubr.bf16.gmra.mrb[0].mxu0 %v2554
      %v4040 = vpop.f32.mrb[0].mxu0
      %v4041 = vadd.f32 %v3848, %v4040
      %v4042 = vpop.f32.mrb[0].mxu0
      %v4043 = vadd.f32 %v3850, %v4042
      %v4044 = vpop.f32.mrb[0].mxu0
      %v4045 = vadd.f32 %v3852, %v4044
      %v4046 = vpop.f32.mrb[0].mxu0
      %v4047 = vadd.f32 %v3854, %v4046
      %4048 = vmatprep.mubr.bf16.mxu0 %v2562
      %4049 = vmatmul.mubr.bf16.gmra.mrb[0].mxu0 %v2561
      %v4050 = vpop.f32.mrb[0].mxu0
      %v4051 = vadd.f32 %v3858, %v4050
      %v4052 = vpop.f32.mrb[0].mxu0
      %v4053 = vadd.f32 %v3860, %v4052
      %v4054 = vpop.f32.mrb[0].mxu0
      %v4055 = vadd.f32 %v3862, %v4054
      %v4056 = vpop.f32.mrb[0].mxu0
      %v4057 = vadd.f32 %v3864, %v4056
      %4058 = vmatprep.mubr.bf16.mxu0 %v2569
      %4059 = vmatmul.mubr.bf16.gmra.mrb[0].mxu0 %v2568
      %v4060 = vpop.f32.mrb[0].mxu0
      %v4061 = vadd.f32 %v3868, %v4060
      %v4062 = vpop.f32.mrb[0].mxu0
      %v4063 = vadd.f32 %v3870, %v4062
      %v4064 = vpop.f32.mrb[0].mxu0
      %v4065 = vadd.f32 %v3872, %v4064
      %v4066 = vpop.f32.mrb[0].mxu0
      %v4067 = vadd.f32 %v3874, %v4066
      %4068 = vmatprep.mubr.bf16.mxu0 %v2576
      %4069 = vmatmul.mubr.bf16.gmra.mrb[0].mxu0 %v2575
      %v4070 = vpop.f32.mrb[0].mxu0
      %v4071 = vadd.f32 %v3878, %v4070
      %v4072 = vpop.f32.mrb[0].mxu0
      %v4073 = vadd.f32 %v3880, %v4072
      %v4074 = vpop.f32.mrb[0].mxu0
      %v4075 = vadd.f32 %v3882, %v4074
      %v4076 = vpop.f32.mrb[0].mxu0
      %v4077 = vadd.f32 %v3884, %v4076
      %4078 = vmatprep.mubr.bf16.mxu0 %v2583
      %4079 = vmatmul.mubr.bf16.gmra.mrb[0].mxu0 %v2582
      %v4080 = vpop.f32.mrb[0].mxu0
      %v4081 = vadd.f32 %v3888, %v4080
      %v4082 = vpop.f32.mrb[0].mxu0
      %v4083 = vadd.f32 %v3890, %v4082
      %v4084 = vpop.f32.mrb[0].mxu0
      %v4085 = vadd.f32 %v3892, %v4084
      %v4086 = vpop.f32.mrb[0].mxu0
      %v4087 = vadd.f32 %v3894, %v4086
      %4088 = vmatprep.mubr.bf16.mxu0 %v2590
      %4089 = vmatmul.mubr.bf16.gmra.mrb[0].mxu0 %v2589
      %v4090 = vpop.f32.mrb[0].mxu0
      %v4091 = vadd.f32 %v3898, %v4090
      %v4092 = vpop.f32.mrb[0].mxu0
      %v4093 = vadd.f32 %v3900, %v4092
      %v4094 = vpop.f32.mrb[0].mxu0
      %v4095 = vadd.f32 %v3902, %v4094
      %v4096 = vpop.f32.mrb[0].mxu0
      %v4097 = vadd.f32 %v3904, %v4096
      %4098 = vmatprep.mubr.bf16.mxu0 %v2597
      %4099 = vmatmul.mubr.bf16.gmra.mrb[0].mxu0 %v2596
      %v4100 = vpop.f32.mrb[0].mxu0
      %v4101 = vadd.f32 %v3908, %v4100
      %v4102 = vpop.f32.mrb[0].mxu0
      %v4103 = vadd.f32 %v3910, %v4102
      %v4104 = vpop.f32.mrb[0].mxu0
      %v4105 = vadd.f32 %v3912, %v4104
      %v4106 = vpop.f32.mrb[0].mxu0
      %v4107 = vadd.f32 %v3914, %v4106
      %4108 = vmatprep.mubr.bf16.mxu0 %v2604
      %4109 = vmatmul.mubr.bf16.gmra.mrb[0].mxu0 %v2603
      %v4110 = vpop.f32.mrb[0].mxu0
      %v4111 = vadd.f32 %v3918, %v4110
      %v4112 = vpop.f32.mrb[0].mxu0
      %v4113 = vadd.f32 %v3920, %v4112
      %v4114 = vpop.f32.mrb[0].mxu0
      %v4115 = vadd.f32 %v3922, %v4114
      %v4116 = vpop.f32.mrb[0].mxu0
      %v4117 = vadd.f32 %v3924, %v4116
      %4118 = vdwg.mxu0
      %4119 = vmatprep.subr.bf16.mxu0 %v3421
      %4120 = vmatpush1.bf16.msra.mxu0 %v3420
      %4121 = vmatprep.subr.bf16.mxu0 %v3425
      %4122 = vmatpush1.bf16.msra.mxu0 %v3424
      %4123 = vmatprep.subr.bf16.mxu0 %v3429
      %4124 = vmatpush1.bf16.msra.mxu0 %v3428
      %4125 = vmatprep.subr.bf16.mxu0 %v3433
      %4126 = vmatpush1.bf16.msra.mxu0 %v3432
      %4127 = vmatprep.subr.bf16.mxu0 %v3437
      %4128 = vmatpush1.bf16.msra.mxu0 %v3436
      %4129 = vmatprep.subr.bf16.mxu0 %v3441
      %4130 = vmatpush1.bf16.msra.mxu0 %v3440
      %4131 = vmatprep.subr.bf16.mxu0 %v3445
      %4132 = vmatpush1.bf16.msra.mxu0 %v3444
      %4133 = vmatprep.subr.bf16.mxu0 %v3449
      %4134 = vmatpush1.bf16.msra.mxu0 %v3448
      %4135 = vmatprep.subr.bf16.mxu0 %v3453
      %4136 = vmatpush1.bf16.msra.mxu0 %v3452
      %4137 = vmatprep.subr.bf16.mxu0 %v3457
      %4138 = vmatpush1.bf16.msra.mxu0 %v3456
      %4139 = vmatprep.subr.bf16.mxu0 %v3461
      %4140 = vmatpush1.bf16.msra.mxu0 %v3460
      %4141 = vmatprep.subr.bf16.mxu0 %v3465
      %4142 = vmatpush1.bf16.msra.mxu0 %v3464
      %4143 = vmatprep.subr.bf16.mxu0 %v3469
      %4144 = vmatpush1.bf16.msra.mxu0 %v3468
      %4145 = vmatprep.subr.bf16.mxu0 %v3473
      %4146 = vmatpush1.bf16.msra.mxu0 %v3472
      %4147 = vmatprep.subr.bf16.mxu0 %v3477
      %4148 = vmatpush1.bf16.msra.mxu0 %v3476
      %4149 = vmatprep.subr.bf16.mxu0 %v3481
      %4150 = vmatpush1.bf16.msra.mxu0 %v3480
      %4151 = vmatprep.mubr.bf16.mxu0 %v2501
      %4152 = vmatmul.mubr.bf16.gmra.mrb[0].mxu0 %v2500
      %v4153 = vpop.f32.mrb[0].mxu0
      %v4154 = vadd.f32 %v3961, %v4153
      %v4155 = vpop.f32.mrb[0].mxu0
      %v4156 = vadd.f32 %v3963, %v4155
      %v4157 = vpop.f32.mrb[0].mxu0
      %v4158 = vadd.f32 %v3965, %v4157
      %v4159 = vpop.f32.mrb[0].mxu0
      %v4160 = vadd.f32 %v3967, %v4159
      %4161 = vmatprep.mubr.bf16.mxu0 %v2508
      %4162 = vmatmul.mubr.bf16.gmra.mrb[0].mxu0 %v2507
      %v4163 = vpop.f32.mrb[0].mxu0
      %v4164 = vadd.f32 %v3971, %v4163
      %v4165 = vpop.f32.mrb[0].mxu0
      %v4166 = vadd.f32 %v3973, %v4165
      %v4167 = vpop.f32.mrb[0].mxu0
      %v4168 = vadd.f32 %v3975, %v4167
      %v4169 = vpop.f32.mrb[0].mxu0
      %v4170 = vadd.f32 %v3977, %v4169
      %4171 = vmatprep.mubr.bf16.mxu0 %v2515
      %4172 = vmatmul.mubr.bf16.gmra.mrb[0].mxu0 %v2514
      %v4173 = vpop.f32.mrb[0].mxu0
      %v4174 = vadd.f32 %v3981, %v4173
      %v4175 = vpop.f32.mrb[0].mxu0
      %v4176 = vadd.f32 %v3983, %v4175
      %v4177 = vpop.f32.mrb[0].mxu0
      %v4178 = vadd.f32 %v3985, %v4177
      %v4179 = vpop.f32.mrb[0].mxu0
      %v4180 = vadd.f32 %v3987, %v4179
      %4181 = vmatprep.mubr.bf16.mxu0 %v2522
      %4182 = vmatmul.mubr.bf16.gmra.mrb[0].mxu0 %v2521
      %v4183 = vpop.f32.mrb[0].mxu0
      %v4184 = vadd.f32 %v3991, %v4183
      %v4185 = vpop.f32.mrb[0].mxu0
      %v4186 = vadd.f32 %v3993, %v4185
      %v4187 = vpop.f32.mrb[0].mxu0
      %v4188 = vadd.f32 %v3995, %v4187
      %v4189 = vpop.f32.mrb[0].mxu0
      %v4190 = vadd.f32 %v3997, %v4189
      %4191 = vmatprep.mubr.bf16.mxu0 %v2529
      %4192 = vmatmul.mubr.bf16.gmra.mrb[0].mxu0 %v2528
      %v4193 = vpop.f32.mrb[0].mxu0
      %v4194 = vadd.f32 %v4001, %v4193
      %v4195 = vpop.f32.mrb[0].mxu0
      %v4196 = vadd.f32 %v4003, %v4195
      %v4197 = vpop.f32.mrb[0].mxu0
      %v4198 = vadd.f32 %v4005, %v4197
      %v4199 = vpop.f32.mrb[0].mxu0
      %v4200 = vadd.f32 %v4007, %v4199
      %4201 = vmatprep.mubr.bf16.mxu0 %v2536
      %4202 = vmatmul.mubr.bf16.gmra.mrb[0].mxu0 %v2535
      %v4203 = vpop.f32.mrb[0].mxu0
      %v4204 = vadd.f32 %v4011, %v4203
      %v4205 = vpop.f32.mrb[0].mxu0
      %v4206 = vadd.f32 %v4013, %v4205
      %v4207 = vpop.f32.mrb[0].mxu0
      %v4208 = vadd.f32 %v4015, %v4207
      %v4209 = vpop.f32.mrb[0].mxu0
      %v4210 = vadd.f32 %v4017, %v4209
      %4211 = vmatprep.mubr.bf16.mxu0 %v2543
      %4212 = vmatmul.mubr.bf16.gmra.mrb[0].mxu0 %v2542
      %v4213 = vpop.f32.mrb[0].mxu0
      %v4214 = vadd.f32 %v4021, %v4213
      %v4215 = vpop.f32.mrb[0].mxu0
      %v4216 = vadd.f32 %v4023, %v4215
      %v4217 = vpop.f32.mrb[0].mxu0
      %v4218 = vadd.f32 %v4025, %v4217
      %v4219 = vpop.f32.mrb[0].mxu0
      %v4220 = vadd.f32 %v4027, %v4219
      %4221 = vmatprep.mubr.bf16.mxu0 %v2550
      %4222 = vmatmul.mubr.bf16.gmra.mrb[0].mxu0 %v2549
      %v4223 = vpop.f32.mrb[0].mxu0
      %v4224 = vadd.f32 %v4031, %v4223
      %v4225 = vpop.f32.mrb[0].mxu0
      %v4226 = vadd.f32 %v4033, %v4225
      %v4227 = vpop.f32.mrb[0].mxu0
      %v4228 = vadd.f32 %v4035, %v4227
      %v4229 = vpop.f32.mrb[0].mxu0
      %v4230 = vadd.f32 %v4037, %v4229
      %4231 = vmatprep.mubr.bf16.mxu0 %v2557
      %4232 = vmatmul.mubr.bf16.gmra.mrb[0].mxu0 %v2556
      %v4233 = vpop.f32.mrb[0].mxu0
      %v4234 = vadd.f32 %v4041, %v4233
      %v4235 = vpop.f32.mrb[0].mxu0
      %v4236 = vadd.f32 %v4043, %v4235
      %v4237 = vpop.f32.mrb[0].mxu0
      %v4238 = vadd.f32 %v4045, %v4237
      %v4239 = vpop.f32.mrb[0].mxu0
      %v4240 = vadd.f32 %v4047, %v4239
      %4241 = vmatprep.mubr.bf16.mxu0 %v2564
      %4242 = vmatmul.mubr.bf16.gmra.mrb[0].mxu0 %v2563
      %v4243 = vpop.f32.mrb[0].mxu0
      %v4244 = vadd.f32 %v4051, %v4243
      %v4245 = vpop.f32.mrb[0].mxu0
      %v4246 = vadd.f32 %v4053, %v4245
      %v4247 = vpop.f32.mrb[0].mxu0
      %v4248 = vadd.f32 %v4055, %v4247
      %v4249 = vpop.f32.mrb[0].mxu0
      %v4250 = vadd.f32 %v4057, %v4249
      %4251 = vmatprep.mubr.bf16.mxu0 %v2571
      %4252 = vmatmul.mubr.bf16.gmra.mrb[0].mxu0 %v2570
      %v4253 = vpop.f32.mrb[0].mxu0
      %v4254 = vadd.f32 %v4061, %v4253
      %v4255 = vpop.f32.mrb[0].mxu0
      %v4256 = vadd.f32 %v4063, %v4255
      %v4257 = vpop.f32.mrb[0].mxu0
      %v4258 = vadd.f32 %v4065, %v4257
      %v4259 = vpop.f32.mrb[0].mxu0
      %v4260 = vadd.f32 %v4067, %v4259
      %4261 = vmatprep.mubr.bf16.mxu0 %v2578
      %4262 = vmatmul.mubr.bf16.gmra.mrb[0].mxu0 %v2577
      %v4263 = vpop.f32.mrb[0].mxu0
      %v4264 = vadd.f32 %v4071, %v4263
      %v4265 = vpop.f32.mrb[0].mxu0
      %v4266 = vadd.f32 %v4073, %v4265
      %v4267 = vpop.f32.mrb[0].mxu0
      %v4268 = vadd.f32 %v4075, %v4267
      %v4269 = vpop.f32.mrb[0].mxu0
      %v4270 = vadd.f32 %v4077, %v4269
      %4271 = vmatprep.mubr.bf16.mxu0 %v2585
      %4272 = vmatmul.mubr.bf16.gmra.mrb[0].mxu0 %v2584
      %v4273 = vpop.f32.mrb[0].mxu0
      %v4274 = vadd.f32 %v4081, %v4273
      %v4275 = vpop.f32.mrb[0].mxu0
      %v4276 = vadd.f32 %v4083, %v4275
      %v4277 = vpop.f32.mrb[0].mxu0
      %v4278 = vadd.f32 %v4085, %v4277
      %v4279 = vpop.f32.mrb[0].mxu0
      %v4280 = vadd.f32 %v4087, %v4279
      %4281 = vmatprep.mubr.bf16.mxu0 %v2592
      %4282 = vmatmul.mubr.bf16.gmra.mrb[0].mxu0 %v2591
      %v4283 = vpop.f32.mrb[0].mxu0
      %v4284 = vadd.f32 %v4091, %v4283
      %v4285 = vpop.f32.mrb[0].mxu0
      %v4286 = vadd.f32 %v4093, %v4285
      %v4287 = vpop.f32.mrb[0].mxu0
      %v4288 = vadd.f32 %v4095, %v4287
      %v4289 = vpop.f32.mrb[0].mxu0
      %v4290 = vadd.f32 %v4097, %v4289
      %4291 = vmatprep.mubr.bf16.mxu0 %v2599
      %4292 = vmatmul.mubr.bf16.gmra.mrb[0].mxu0 %v2598
      %v4293 = vpop.f32.mrb[0].mxu0
      %v4294 = vadd.f32 %v4101, %v4293
      %v4295 = vpop.f32.mrb[0].mxu0
      %v4296 = vadd.f32 %v4103, %v4295
      %v4297 = vpop.f32.mrb[0].mxu0
      %v4298 = vadd.f32 %v4105, %v4297
      %v4299 = vpop.f32.mrb[0].mxu0
      %v4300 = vadd.f32 %v4107, %v4299
      %4301 = vmatprep.mubr.bf16.mxu0 %v2606
      %4302 = vmatmul.mubr.bf16.gmra.mrb[0].mxu0 %v2605
      %v4303 = vpop.f32.mrb[0].mxu0
      %v4304 = vadd.f32 %v4111, %v4303
      %v4305 = vpop.f32.mrb[0].mxu0
      %v4306 = vadd.f32 %v4113, %v4305
      %v4307 = vpop.f32.mrb[0].mxu0
      %v4308 = vadd.f32 %v4115, %v4307
      %v4309 = vpop.f32.mrb[0].mxu0
      %v4310 = vadd.f32 %v4117, %v4309
      %4311 = vdwg.mxu0
      %4312 = vmatprep.subr.bf16.mxu0 %v3485
      %4313 = vmatpush1.bf16.msra.mxu0 %v3484
      %4314 = vmatprep.subr.bf16.mxu0 0
      %4315 = vmatpush1.bf16.msra.mxu0 0
      %4316 = vmatprep.subr.bf16.mxu0 0
      %4317 = vmatpush1.bf16.msra.mxu0 0
      %4318 = vmatprep.subr.bf16.mxu0 0
      %4319 = vmatpush1.bf16.msra.mxu0 0
      %4320 = vmatprep.subr.bf16.mxu0 0
      %4321 = vmatpush1.bf16.msra.mxu0 0
      %4322 = vmatprep.subr.bf16.mxu0 0
      %4323 = vmatpush1.bf16.msra.mxu0 0
      %4324 = vmatprep.subr.bf16.mxu0 0
      %4325 = vmatpush1.bf16.msra.mxu0 0
      %4326 = vmatprep.subr.bf16.mxu0 0
      %4327 = vmatpush1.bf16.msra.mxu0 0
      %4328 = vmatprep.subr.bf16.mxu0 0
      %4329 = vmatpush1.bf16.msra.mxu0 0
      %4330 = vmatprep.subr.bf16.mxu0 0
      %4331 = vmatpush1.bf16.msra.mxu0 0
      %4332 = vmatprep.subr.bf16.mxu0 0
      %4333 = vmatpush1.bf16.msra.mxu0 0
      %4334 = vmatprep.subr.bf16.mxu0 0
      %4335 = vmatpush1.bf16.msra.mxu0 0
      %4336 = vmatprep.subr.bf16.mxu0 0
      %4337 = vmatpush1.bf16.msra.mxu0 0
      %4338 = vmatprep.subr.bf16.mxu0 0
      %4339 = vmatpush1.bf16.msra.mxu0 0
      %4340 = vmatprep.subr.bf16.mxu0 0
      %4341 = vmatpush1.bf16.msra.mxu0 0
      %4342 = vmatprep.subr.bf16.mxu0 0
      %4343 = vmatpush1.bf16.msra.mxu0 0
      %4344 = vmatprep.mubr.bf16.mxu0 0
      %4345 = vmatmul.mubr.bf16.gmra.mrb[0].mxu0 %v3686
      %v4346 = vpop.f32.mrb[0].mxu0
      %v4347 = vadd.f32 %v4154, %v4346
      %v4348 = vpop.f32.mrb[0].mxu0
      %v4349 = vadd.f32 %v4156, %v4348
      %v4350 = vpop.f32.mrb[0].mxu0
      %v4351 = vadd.f32 %v4158, %v4350
      %v4352 = vpop.f32.mrb[0].mxu0
      %v4353 = vadd.f32 %v4160, %v4352
      %4354 = vmatprep.mubr.bf16.mxu0 0
      %4355 = vmatmul.mubr.bf16.gmra.mrb[0].mxu0 %v3689
      %v4356 = vpop.f32.mrb[0].mxu0
      %v4357 = vadd.f32 %v4164, %v4356
      %v4358 = vpop.f32.mrb[0].mxu0
      %v4359 = vadd.f32 %v4166, %v4358
      %v4360 = vpop.f32.mrb[0].mxu0
      %v4361 = vadd.f32 %v4168, %v4360
      %v4362 = vpop.f32.mrb[0].mxu0
      %v4363 = vadd.f32 %v4170, %v4362
      %4364 = vmatprep.mubr.bf16.mxu0 0
      %4365 = vmatmul.mubr.bf16.gmra.mrb[0].mxu0 %v3692
      %v4366 = vpop.f32.mrb[0].mxu0
      %v4367 = vadd.f32 %v4174, %v4366
      %v4368 = vpop.f32.mrb[0].mxu0
      %v4369 = vadd.f32 %v4176, %v4368
      %v4370 = vpop.f32.mrb[0].mxu0
      %v4371 = vadd.f32 %v4178, %v4370
      %v4372 = vpop.f32.mrb[0].mxu0
      %v4373 = vadd.f32 %v4180, %v4372
      %4374 = vmatprep.mubr.bf16.mxu0 0
      %4375 = vmatmul.mubr.bf16.gmra.mrb[0].mxu0 %v3695
      %v4376 = vpop.f32.mrb[0].mxu0
      %v4377 = vadd.f32 %v4184, %v4376
      %v4378 = vpop.f32.mrb[0].mxu0
      %v4379 = vadd.f32 %v4186, %v4378
      %v4380 = vpop.f32.mrb[0].mxu0
      %v4381 = vadd.f32 %v4188, %v4380
      %v4382 = vpop.f32.mrb[0].mxu0
      %v4383 = vadd.f32 %v4190, %v4382
      %4384 = vmatprep.mubr.bf16.mxu0 0
      %4385 = vmatmul.mubr.bf16.gmra.mrb[0].mxu0 %v3698
      %v4386 = vpop.f32.mrb[0].mxu0
      %v4387 = vadd.f32 %v4194, %v4386
      %v4388 = vpop.f32.mrb[0].mxu0
      %v4389 = vadd.f32 %v4196, %v4388
      %v4390 = vpop.f32.mrb[0].mxu0
      %v4391 = vadd.f32 %v4198, %v4390
      %v4392 = vpop.f32.mrb[0].mxu0
      %v4393 = vadd.f32 %v4200, %v4392
      %4394 = vmatprep.mubr.bf16.mxu0 0
      %4395 = vmatmul.mubr.bf16.gmra.mrb[0].mxu0 %v3701
      %v4396 = vpop.f32.mrb[0].mxu0
      %v4397 = vadd.f32 %v4204, %v4396
      %v4398 = vpop.f32.mrb[0].mxu0
      %v4399 = vadd.f32 %v4206, %v4398
      %v4400 = vpop.f32.mrb[0].mxu0
      %v4401 = vadd.f32 %v4208, %v4400
      %v4402 = vpop.f32.mrb[0].mxu0
      %v4403 = vadd.f32 %v4210, %v4402
      %4404 = vmatprep.mubr.bf16.mxu0 0
      %4405 = vmatmul.mubr.bf16.gmra.mrb[0].mxu0 %v3704
      %v4406 = vpop.f32.mrb[0].mxu0
      %v4407 = vadd.f32 %v4214, %v4406
      %v4408 = vpop.f32.mrb[0].mxu0
      %v4409 = vadd.f32 %v4216, %v4408
      %v4410 = vpop.f32.mrb[0].mxu0
      %v4411 = vadd.f32 %v4218, %v4410
      %v4412 = vpop.f32.mrb[0].mxu0
      %v4413 = vadd.f32 %v4220, %v4412
      %4414 = vmatprep.mubr.bf16.mxu0 0
      %4415 = vmatmul.mubr.bf16.gmra.mrb[0].mxu0 %v3707
      %v4416 = vpop.f32.mrb[0].mxu0
      %v4417 = vadd.f32 %v4224, %v4416
      %v4418 = vpop.f32.mrb[0].mxu0
      %v4419 = vadd.f32 %v4226, %v4418
      %v4420 = vpop.f32.mrb[0].mxu0
      %v4421 = vadd.f32 %v4228, %v4420
      %v4422 = vpop.f32.mrb[0].mxu0
      %v4423 = vadd.f32 %v4230, %v4422
      %4424 = vmatprep.mubr.bf16.mxu0 0
      %4425 = vmatmul.mubr.bf16.gmra.mrb[0].mxu0 %v3710
      %v4426 = vpop.f32.mrb[0].mxu0
      %v4427 = vadd.f32 %v4234, %v4426
      %v4428 = vpop.f32.mrb[0].mxu0
      %v4429 = vadd.f32 %v4236, %v4428
      %v4430 = vpop.f32.mrb[0].mxu0
      %v4431 = vadd.f32 %v4238, %v4430
      %v4432 = vpop.f32.mrb[0].mxu0
      %v4433 = vadd.f32 %v4240, %v4432
      %4434 = vmatprep.mubr.bf16.mxu0 0
      %4435 = vmatmul.mubr.bf16.gmra.mrb[0].mxu0 %v3713
      %v4436 = vpop.f32.mrb[0].mxu0
      %v4437 = vadd.f32 %v4244, %v4436
      %v4438 = vpop.f32.mrb[0].mxu0
      %v4439 = vadd.f32 %v4246, %v4438
      %v4440 = vpop.f32.mrb[0].mxu0
      %v4441 = vadd.f32 %v4248, %v4440
      %v4442 = vpop.f32.mrb[0].mxu0
      %v4443 = vadd.f32 %v4250, %v4442
      %4444 = vmatprep.mubr.bf16.mxu0 0
      %4445 = vmatmul.mubr.bf16.gmra.mrb[0].mxu0 %v3716
      %v4446 = vpop.f32.mrb[0].mxu0
      %v4447 = vadd.f32 %v4254, %v4446
      %v4448 = vpop.f32.mrb[0].mxu0
      %v4449 = vadd.f32 %v4256, %v4448
      %v4450 = vpop.f32.mrb[0].mxu0
      %v4451 = vadd.f32 %v4258, %v4450
      %v4452 = vpop.f32.mrb[0].mxu0
      %v4453 = vadd.f32 %v4260, %v4452
      %4454 = vmatprep.mubr.bf16.mxu0 0
      %4455 = vmatmul.mubr.bf16.gmra.mrb[0].mxu0 %v3719
      %v4456 = vpop.f32.mrb[0].mxu0
      %v4457 = vadd.f32 %v4264, %v4456
      %v4458 = vpop.f32.mrb[0].mxu0
      %v4459 = vadd.f32 %v4266, %v4458
      %v4460 = vpop.f32.mrb[0].mxu0
      %v4461 = vadd.f32 %v4268, %v4460
      %v4462 = vpop.f32.mrb[0].mxu0
      %v4463 = vadd.f32 %v4270, %v4462
      %4464 = vmatprep.mubr.bf16.mxu0 0
      %4465 = vmatmul.mubr.bf16.gmra.mrb[0].mxu0 %v3722
      %v4466 = vpop.f32.mrb[0].mxu0
      %v4467 = vadd.f32 %v4274, %v4466
      %v4468 = vpop.f32.mrb[0].mxu0
      %v4469 = vadd.f32 %v4276, %v4468
      %v4470 = vpop.f32.mrb[0].mxu0
      %v4471 = vadd.f32 %v4278, %v4470
      %v4472 = vpop.f32.mrb[0].mxu0
      %v4473 = vadd.f32 %v4280, %v4472
      %4474 = vmatprep.mubr.bf16.mxu0 0
      %4475 = vmatmul.mubr.bf16.gmra.mrb[0].mxu0 %v3725
      %v4476 = vpop.f32.mrb[0].mxu0
      %v4477 = vadd.f32 %v4284, %v4476
      %v4478 = vpop.f32.mrb[0].mxu0
      %v4479 = vadd.f32 %v4286, %v4478
      %v4480 = vpop.f32.mrb[0].mxu0
      %v4481 = vadd.f32 %v4288, %v4480
      %v4482 = vpop.f32.mrb[0].mxu0
      %v4483 = vadd.f32 %v4290, %v4482
      %4484 = vmatprep.mubr.bf16.mxu0 0
      %4485 = vmatmul.mubr.bf16.gmra.mrb[0].mxu0 %v3728
      %v4486 = vpop.f32.mrb[0].mxu0
      %v4487 = vadd.f32 %v4294, %v4486
      %v4488 = vpop.f32.mrb[0].mxu0
      %v4489 = vadd.f32 %v4296, %v4488
      %v4490 = vpop.f32.mrb[0].mxu0
      %v4491 = vadd.f32 %v4298, %v4490
      %v4492 = vpop.f32.mrb[0].mxu0
      %v4493 = vadd.f32 %v4300, %v4492
      %4494 = vmatprep.mubr.bf16.mxu0 0
      %4495 = vmatmul.mubr.bf16.gmra.mrb[0].mxu0 %v3731
      %v4496 = vpop.f32.mrb[0].mxu0
      %v4497 = vadd.f32 %v4304, %v4496
      %v4498 = vpop.f32.mrb[0].mxu0
      %v4499 = vadd.f32 %v4306, %v4498
      %v4500 = vpop.f32.mrb[0].mxu0
      %v4501 = vadd.f32 %v4308, %v4500
      %v4502 = vpop.f32.mrb[0].mxu0
      %v4503 = vadd.f32 %v4310, %v4502
      %4504 = vdwg.mxu0
      %4505 = vmatprep.subr.bf16.mxu0 %v3295
      %4506 = vmatpush1.bf16.msra.mxu0 %v3294
      %4507 = vmatprep.subr.bf16.mxu0 %v3299
      %4508 = vmatpush1.bf16.msra.mxu0 %v3298
      %4509 = vmatprep.subr.bf16.mxu0 %v3303
      %4510 = vmatpush1.bf16.msra.mxu0 %v3302
      %4511 = vmatprep.subr.bf16.mxu0 %v3307
      %4512 = vmatpush1.bf16.msra.mxu0 %v3306
      %4513 = vmatprep.subr.bf16.mxu0 %v3311
      %4514 = vmatpush1.bf16.msra.mxu0 %v3310
      %4515 = vmatprep.subr.bf16.mxu0 %v3315
      %4516 = vmatpush1.bf16.msra.mxu0 %v3314
      %4517 = vmatprep.subr.bf16.mxu0 %v3319
      %4518 = vmatpush1.bf16.msra.mxu0 %v3318
      %4519 = vmatprep.subr.bf16.mxu0 %v3323
      %4520 = vmatpush1.bf16.msra.mxu0 %v3322
      %4521 = vmatprep.subr.bf16.mxu0 %v3327
      %4522 = vmatpush1.bf16.msra.mxu0 %v3326
      %4523 = vmatprep.subr.bf16.mxu0 %v3331
      %4524 = vmatpush1.bf16.msra.mxu0 %v3330
      %4525 = vmatprep.subr.bf16.mxu0 %v3335
      %4526 = vmatpush1.bf16.msra.mxu0 %v3334
      %4527 = vmatprep.subr.bf16.mxu0 %v3339
      %4528 = vmatpush1.bf16.msra.mxu0 %v3338
      %4529 = vmatprep.subr.bf16.mxu0 %v3343
      %4530 = vmatpush1.bf16.msra.mxu0 %v3342
      %4531 = vmatprep.subr.bf16.mxu0 %v3347
      %4532 = vmatpush1.bf16.msra.mxu0 %v3346
      %4533 = vmatprep.subr.bf16.mxu0 %v3351
      %4534 = vmatpush1.bf16.msra.mxu0 %v3350
      %4535 = vmatprep.subr.bf16.mxu0 %v3355
      %4536 = vmatpush1.bf16.msra.mxu0 %v3354
      %4537 = vmatprep.mubr.bf16.mxu0 %v2497
      %4538 = vmatmul.mubr.bf16.gmra.mrb[0].mxu0 %v2496
      %v4539 = vpop.f32.mrb[0].mxu0
      %v4540 = vadd.f32 %v1276, %v4539
      %v4541 = vpop.f32.mrb[0].mxu0
      %v4542 = vadd.f32 %v1278, %v4541
      %v4543 = vpop.f32.mrb[0].mxu0
      %v4544 = vadd.f32 %v1280, %v4543
      %v4545 = vpop.f32.mrb[0].mxu0
      %v4546 = vadd.f32 %v1282, %v4545
      %4547 = vmatprep.mubr.bf16.mxu0 %v2504
      %4548 = vmatmul.mubr.bf16.gmra.mrb[0].mxu0 %v2503
      %v4549 = vpop.f32.mrb[0].mxu0
      %v4550 = vadd.f32 %v1286, %v4549
      %v4551 = vpop.f32.mrb[0].mxu0
      %v4552 = vadd.f32 %v1288, %v4551
      %v4553 = vpop.f32.mrb[0].mxu0
      %v4554 = vadd.f32 %v1290, %v4553
      %v4555 = vpop.f32.mrb[0].mxu0
      %v4556 = vadd.f32 %v1292, %v4555
      %4557 = vmatprep.mubr.bf16.mxu0 %v2511
      %4558 = vmatmul.mubr.bf16.gmra.mrb[0].mxu0 %v2510
      %v4559 = vpop.f32.mrb[0].mxu0
      %v4560 = vadd.f32 %v1296, %v4559
      %v4561 = vpop.f32.mrb[0].mxu0
      %v4562 = vadd.f32 %v1298, %v4561
      %v4563 = vpop.f32.mrb[0].mxu0
      %v4564 = vadd.f32 %v1300, %v4563
      %v4565 = vpop.f32.mrb[0].mxu0
      %v4566 = vadd.f32 %v1302, %v4565
      %4567 = vmatprep.mubr.bf16.mxu0 %v2518
      %4568 = vmatmul.mubr.bf16.gmra.mrb[0].mxu0 %v2517
      %v4569 = vpop.f32.mrb[0].mxu0
      %v4570 = vadd.f32 %v1306, %v4569
      %v4571 = vpop.f32.mrb[0].mxu0
      %v4572 = vadd.f32 %v1308, %v4571
      %v4573 = vpop.f32.mrb[0].mxu0
      %v4574 = vadd.f32 %v1310, %v4573
      %v4575 = vpop.f32.mrb[0].mxu0
      %v4576 = vadd.f32 %v1312, %v4575
      %4577 = vmatprep.mubr.bf16.mxu0 %v2525
      %4578 = vmatmul.mubr.bf16.gmra.mrb[0].mxu0 %v2524
      %v4579 = vpop.f32.mrb[0].mxu0
      %v4580 = vadd.f32 %v1316, %v4579
      %v4581 = vpop.f32.mrb[0].mxu0
      %v4582 = vadd.f32 %v1318, %v4581
      %v4583 = vpop.f32.mrb[0].mxu0
      %v4584 = vadd.f32 %v1320, %v4583
      %v4585 = vpop.f32.mrb[0].mxu0
      %v4586 = vadd.f32 %v1322, %v4585
      %4587 = vmatprep.mubr.bf16.mxu0 %v2532
      %4588 = vmatmul.mubr.bf16.gmra.mrb[0].mxu0 %v2531
      %v4589 = vpop.f32.mrb[0].mxu0
      %v4590 = vadd.f32 %v1326, %v4589
      %v4591 = vpop.f32.mrb[0].mxu0
      %v4592 = vadd.f32 %v1328, %v4591
      %v4593 = vpop.f32.mrb[0].mxu0
      %v4594 = vadd.f32 %v1330, %v4593
      %v4595 = vpop.f32.mrb[0].mxu0
      %v4596 = vadd.f32 %v1332, %v4595
      %4597 = vmatprep.mubr.bf16.mxu0 %v2539
      %4598 = vmatmul.mubr.bf16.gmra.mrb[0].mxu0 %v2538
      %v4599 = vpop.f32.mrb[0].mxu0
      %v4600 = vadd.f32 %v1336, %v4599
      %v4601 = vpop.f32.mrb[0].mxu0
      %v4602 = vadd.f32 %v1338, %v4601
      %v4603 = vpop.f32.mrb[0].mxu0
      %v4604 = vadd.f32 %v1340, %v4603
      %v4605 = vpop.f32.mrb[0].mxu0
      %v4606 = vadd.f32 %v1342, %v4605
      %4607 = vmatprep.mubr.bf16.mxu0 %v2546
      %4608 = vmatmul.mubr.bf16.gmra.mrb[0].mxu0 %v2545
      %v4609 = vpop.f32.mrb[0].mxu0
      %v4610 = vadd.f32 %v1346, %v4609
      %v4611 = vpop.f32.mrb[0].mxu0
      %v4612 = vadd.f32 %v1348, %v4611
      %v4613 = vpop.f32.mrb[0].mxu0
      %v4614 = vadd.f32 %v1350, %v4613
      %v4615 = vpop.f32.mrb[0].mxu0
      %v4616 = vadd.f32 %v1352, %v4615
      %4617 = vmatprep.mubr.bf16.mxu0 %v2553
      %4618 = vmatmul.mubr.bf16.gmra.mrb[0].mxu0 %v2552
      %v4619 = vpop.f32.mrb[0].mxu0
      %v4620 = vadd.f32 %v1356, %v4619
      %v4621 = vpop.f32.mrb[0].mxu0
      %v4622 = vadd.f32 %v1358, %v4621
      %v4623 = vpop.f32.mrb[0].mxu0
      %v4624 = vadd.f32 %v1360, %v4623
      %v4625 = vpop.f32.mrb[0].mxu0
      %v4626 = vadd.f32 %v1362, %v4625
      %4627 = vmatprep.mubr.bf16.mxu0 %v2560
      %4628 = vmatmul.mubr.bf16.gmra.mrb[0].mxu0 %v2559
      %v4629 = vpop.f32.mrb[0].mxu0
      %v4630 = vadd.f32 %v1366, %v4629
      %v4631 = vpop.f32.mrb[0].mxu0
      %v4632 = vadd.f32 %v1368, %v4631
      %v4633 = vpop.f32.mrb[0].mxu0
      %v4634 = vadd.f32 %v1370, %v4633
      %v4635 = vpop.f32.mrb[0].mxu0
      %v4636 = vadd.f32 %v1372, %v4635
      %4637 = vmatprep.mubr.bf16.mxu0 %v2567
      %4638 = vmatmul.mubr.bf16.gmra.mrb[0].mxu0 %v2566
      %v4639 = vpop.f32.mrb[0].mxu0
      %v4640 = vadd.f32 %v1376, %v4639
      %v4641 = vpop.f32.mrb[0].mxu0
      %v4642 = vadd.f32 %v1378, %v4641
      %v4643 = vpop.f32.mrb[0].mxu0
      %v4644 = vadd.f32 %v1380, %v4643
      %v4645 = vpop.f32.mrb[0].mxu0
      %v4646 = vadd.f32 %v1382, %v4645
      %4647 = vmatprep.mubr.bf16.mxu0 %v2574
      %4648 = vmatmul.mubr.bf16.gmra.mrb[0].mxu0 %v2573
      %v4649 = vpop.f32.mrb[0].mxu0
      %v4650 = vadd.f32 %v1386, %v4649
      %v4651 = vpop.f32.mrb[0].mxu0
      %v4652 = vadd.f32 %v1388, %v4651
      %v4653 = vpop.f32.mrb[0].mxu0
      %v4654 = vadd.f32 %v1390, %v4653
      %v4655 = vpop.f32.mrb[0].mxu0
      %v4656 = vadd.f32 %v1392, %v4655
      %4657 = vmatprep.mubr.bf16.mxu0 %v2581
      %4658 = vmatmul.mubr.bf16.gmra.mrb[0].mxu0 %v2580
      %v4659 = vpop.f32.mrb[0].mxu0
      %v4660 = vadd.f32 %v1396, %v4659
      %v4661 = vpop.f32.mrb[0].mxu0
      %v4662 = vadd.f32 %v1398, %v4661
      %v4663 = vpop.f32.mrb[0].mxu0
      %v4664 = vadd.f32 %v1400, %v4663
      %v4665 = vpop.f32.mrb[0].mxu0
      %v4666 = vadd.f32 %v1402, %v4665
      %4667 = vmatprep.mubr.bf16.mxu0 %v2588
      %4668 = vmatmul.mubr.bf16.gmra.mrb[0].mxu0 %v2587
      %v4669 = vpop.f32.mrb[0].mxu0
      %v4670 = vadd.f32 %v1406, %v4669
      %v4671 = vpop.f32.mrb[0].mxu0
      %v4672 = vadd.f32 %v1408, %v4671
      %v4673 = vpop.f32.mrb[0].mxu0
      %v4674 = vadd.f32 %v1410, %v4673
      %v4675 = vpop.f32.mrb[0].mxu0
      %v4676 = vadd.f32 %v1412, %v4675
      %4677 = vmatprep.mubr.bf16.mxu0 %v2595
      %4678 = vmatmul.mubr.bf16.gmra.mrb[0].mxu0 %v2594
      %v4679 = vpop.f32.mrb[0].mxu0
      %v4680 = vadd.f32 %v1416, %v4679
      %v4681 = vpop.f32.mrb[0].mxu0
      %v4682 = vadd.f32 %v1418, %v4681
      %v4683 = vpop.f32.mrb[0].mxu0
      %v4684 = vadd.f32 %v1420, %v4683
      %v4685 = vpop.f32.mrb[0].mxu0
      %v4686 = vadd.f32 %v1422, %v4685
      %4687 = vmatprep.mubr.bf16.mxu0 %v2602
      %4688 = vmatmul.mubr.bf16.gmra.mrb[0].mxu0 %v2601
      %v4689 = vpop.f32.mrb[0].mxu0
      %v4690 = vadd.f32 %v1426, %v4689
      %v4691 = vpop.f32.mrb[0].mxu0
      %v4692 = vadd.f32 %v1428, %v4691
      %v4693 = vpop.f32.mrb[0].mxu0
      %v4694 = vadd.f32 %v1430, %v4693
      %v4695 = vpop.f32.mrb[0].mxu0
      %v4696 = vadd.f32 %v1432, %v4695
      %4697 = vdwg.mxu0
      %4698 = vmatprep.subr.bf16.mxu0 %v3359
      %4699 = vmatpush1.bf16.msra.mxu0 %v3358
      %4700 = vmatprep.subr.bf16.mxu0 %v3363
      %4701 = vmatpush1.bf16.msra.mxu0 %v3362
      %4702 = vmatprep.subr.bf16.mxu0 %v3367
      %4703 = vmatpush1.bf16.msra.mxu0 %v3366
      %4704 = vmatprep.subr.bf16.mxu0 %v3371
      %4705 = vmatpush1.bf16.msra.mxu0 %v3370
      %4706 = vmatprep.subr.bf16.mxu0 %v3375
      %4707 = vmatpush1.bf16.msra.mxu0 %v3374
      %4708 = vmatprep.subr.bf16.mxu0 %v3379
      %4709 = vmatpush1.bf16.msra.mxu0 %v3378
      %4710 = vmatprep.subr.bf16.mxu0 %v3383
      %4711 = vmatpush1.bf16.msra.mxu0 %v3382
      %4712 = vmatprep.subr.bf16.mxu0 %v3387
      %4713 = vmatpush1.bf16.msra.mxu0 %v3386
      %4714 = vmatprep.subr.bf16.mxu0 %v3391
      %4715 = vmatpush1.bf16.msra.mxu0 %v3390
      %4716 = vmatprep.subr.bf16.mxu0 %v3395
      %4717 = vmatpush1.bf16.msra.mxu0 %v3394
      %4718 = vmatprep.subr.bf16.mxu0 %v3399
      %4719 = vmatpush1.bf16.msra.mxu0 %v3398
      %4720 = vmatprep.subr.bf16.mxu0 %v3403
      %4721 = vmatpush1.bf16.msra.mxu0 %v3402
      %4722 = vmatprep.subr.bf16.mxu0 %v3407
      %4723 = vmatpush1.bf16.msra.mxu0 %v3406
      %4724 = vmatprep.subr.bf16.mxu0 %v3411
      %4725 = vmatpush1.bf16.msra.mxu0 %v3410
      %4726 = vmatprep.subr.bf16.mxu0 %v3415
      %4727 = vmatpush1.bf16.msra.mxu0 %v3414
      %4728 = vmatprep.subr.bf16.mxu0 %v3419
      %4729 = vmatpush1.bf16.msra.mxu0 %v3418
      %4730 = vmatprep.mubr.bf16.mxu0 %v2499
      %4731 = vmatmul.mubr.bf16.gmra.mrb[0].mxu0 %v2498
      %v4732 = vpop.f32.mrb[0].mxu0
      %v4733 = vadd.f32 %v4540, %v4732
      %v4734 = vpop.f32.mrb[0].mxu0
      %v4735 = vadd.f32 %v4542, %v4734
      %v4736 = vpop.f32.mrb[0].mxu0
      %v4737 = vadd.f32 %v4544, %v4736
      %v4738 = vpop.f32.mrb[0].mxu0
      %v4739 = vadd.f32 %v4546, %v4738
      %4740 = vmatprep.mubr.bf16.mxu0 %v2506
      %4741 = vmatmul.mubr.bf16.gmra.mrb[0].mxu0 %v2505
      %v4742 = vpop.f32.mrb[0].mxu0
      %v4743 = vadd.f32 %v4550, %v4742
      %v4744 = vpop.f32.mrb[0].mxu0
      %v4745 = vadd.f32 %v4552, %v4744
      %v4746 = vpop.f32.mrb[0].mxu0
      %v4747 = vadd.f32 %v4554, %v4746
      %v4748 = vpop.f32.mrb[0].mxu0
      %v4749 = vadd.f32 %v4556, %v4748
      %4750 = vmatprep.mubr.bf16.mxu0 %v2513
      %4751 = vmatmul.mubr.bf16.gmra.mrb[0].mxu0 %v2512
      %v4752 = vpop.f32.mrb[0].mxu0
      %v4753 = vadd.f32 %v4560, %v4752
      %v4754 = vpop.f32.mrb[0].mxu0
      %v4755 = vadd.f32 %v4562, %v4754
      %v4756 = vpop.f32.mrb[0].mxu0
      %v4757 = vadd.f32 %v4564, %v4756
      %v4758 = vpop.f32.mrb[0].mxu0
      %v4759 = vadd.f32 %v4566, %v4758
      %4760 = vmatprep.mubr.bf16.mxu0 %v2520
      %4761 = vmatmul.mubr.bf16.gmra.mrb[0].mxu0 %v2519
      %v4762 = vpop.f32.mrb[0].mxu0
      %v4763 = vadd.f32 %v4570, %v4762
      %v4764 = vpop.f32.mrb[0].mxu0
      %v4765 = vadd.f32 %v4572, %v4764
      %v4766 = vpop.f32.mrb[0].mxu0
      %v4767 = vadd.f32 %v4574, %v4766
      %v4768 = vpop.f32.mrb[0].mxu0
      %v4769 = vadd.f32 %v4576, %v4768
      %4770 = vmatprep.mubr.bf16.mxu0 %v2527
      %4771 = vmatmul.mubr.bf16.gmra.mrb[0].mxu0 %v2526
      %v4772 = vpop.f32.mrb[0].mxu0
      %v4773 = vadd.f32 %v4580, %v4772
      %v4774 = vpop.f32.mrb[0].mxu0
      %v4775 = vadd.f32 %v4582, %v4774
      %v4776 = vpop.f32.mrb[0].mxu0
      %v4777 = vadd.f32 %v4584, %v4776
      %v4778 = vpop.f32.mrb[0].mxu0
      %v4779 = vadd.f32 %v4586, %v4778
      %4780 = vmatprep.mubr.bf16.mxu0 %v2534
      %4781 = vmatmul.mubr.bf16.gmra.mrb[0].mxu0 %v2533
      %v4782 = vpop.f32.mrb[0].mxu0
      %v4783 = vadd.f32 %v4590, %v4782
      %v4784 = vpop.f32.mrb[0].mxu0
      %v4785 = vadd.f32 %v4592, %v4784
      %v4786 = vpop.f32.mrb[0].mxu0
      %v4787 = vadd.f32 %v4594, %v4786
      %v4788 = vpop.f32.mrb[0].mxu0
      %v4789 = vadd.f32 %v4596, %v4788
      %4790 = vmatprep.mubr.bf16.mxu0 %v2541
      %4791 = vmatmul.mubr.bf16.gmra.mrb[0].mxu0 %v2540
      %v4792 = vpop.f32.mrb[0].mxu0
      %v4793 = vadd.f32 %v4600, %v4792
      %v4794 = vpop.f32.mrb[0].mxu0
      %v4795 = vadd.f32 %v4602, %v4794
      %v4796 = vpop.f32.mrb[0].mxu0
      %v4797 = vadd.f32 %v4604, %v4796
      %v4798 = vpop.f32.mrb[0].mxu0
      %v4799 = vadd.f32 %v4606, %v4798
      %4800 = vmatprep.mubr.bf16.mxu0 %v2548
      %4801 = vmatmul.mubr.bf16.gmra.mrb[0].mxu0 %v2547
      %v4802 = vpop.f32.mrb[0].mxu0
      %v4803 = vadd.f32 %v4610, %v4802
      %v4804 = vpop.f32.mrb[0].mxu0
      %v4805 = vadd.f32 %v4612, %v4804
      %v4806 = vpop.f32.mrb[0].mxu0
      %v4807 = vadd.f32 %v4614, %v4806
      %v4808 = vpop.f32.mrb[0].mxu0
      %v4809 = vadd.f32 %v4616, %v4808
      %4810 = vmatprep.mubr.bf16.mxu0 %v2555
      %4811 = vmatmul.mubr.bf16.gmra.mrb[0].mxu0 %v2554
      %v4812 = vpop.f32.mrb[0].mxu0
      %v4813 = vadd.f32 %v4620, %v4812
      %v4814 = vpop.f32.mrb[0].mxu0
      %v4815 = vadd.f32 %v4622, %v4814
      %v4816 = vpop.f32.mrb[0].mxu0
      %v4817 = vadd.f32 %v4624, %v4816
      %v4818 = vpop.f32.mrb[0].mxu0
      %v4819 = vadd.f32 %v4626, %v4818
      %4820 = vmatprep.mubr.bf16.mxu0 %v2562
      %4821 = vmatmul.mubr.bf16.gmra.mrb[0].mxu0 %v2561
      %v4822 = vpop.f32.mrb[0].mxu0
      %v4823 = vadd.f32 %v4630, %v4822
      %v4824 = vpop.f32.mrb[0].mxu0
      %v4825 = vadd.f32 %v4632, %v4824
      %v4826 = vpop.f32.mrb[0].mxu0
      %v4827 = vadd.f32 %v4634, %v4826
      %v4828 = vpop.f32.mrb[0].mxu0
      %v4829 = vadd.f32 %v4636, %v4828
      %4830 = vmatprep.mubr.bf16.mxu0 %v2569
      %4831 = vmatmul.mubr.bf16.gmra.mrb[0].mxu0 %v2568
      %v4832 = vpop.f32.mrb[0].mxu0
      %v4833 = vadd.f32 %v4640, %v4832
      %v4834 = vpop.f32.mrb[0].mxu0
      %v4835 = vadd.f32 %v4642, %v4834
      %v4836 = vpop.f32.mrb[0].mxu0
      %v4837 = vadd.f32 %v4644, %v4836
      %v4838 = vpop.f32.mrb[0].mxu0
      %v4839 = vadd.f32 %v4646, %v4838
      %4840 = vmatprep.mubr.bf16.mxu0 %v2576
      %4841 = vmatmul.mubr.bf16.gmra.mrb[0].mxu0 %v2575
      %v4842 = vpop.f32.mrb[0].mxu0
      %v4843 = vadd.f32 %v4650, %v4842
      %v4844 = vpop.f32.mrb[0].mxu0
      %v4845 = vadd.f32 %v4652, %v4844
      %v4846 = vpop.f32.mrb[0].mxu0
      %v4847 = vadd.f32 %v4654, %v4846
      %v4848 = vpop.f32.mrb[0].mxu0
      %v4849 = vadd.f32 %v4656, %v4848
      %4850 = vmatprep.mubr.bf16.mxu0 %v2583
      %4851 = vmatmul.mubr.bf16.gmra.mrb[0].mxu0 %v2582
      %v4852 = vpop.f32.mrb[0].mxu0
      %v4853 = vadd.f32 %v4660, %v4852
      %v4854 = vpop.f32.mrb[0].mxu0
      %v4855 = vadd.f32 %v4662, %v4854
      %v4856 = vpop.f32.mrb[0].mxu0
      %v4857 = vadd.f32 %v4664, %v4856
      %v4858 = vpop.f32.mrb[0].mxu0
      %v4859 = vadd.f32 %v4666, %v4858
      %4860 = vmatprep.mubr.bf16.mxu0 %v2590
      %4861 = vmatmul.mubr.bf16.gmra.mrb[0].mxu0 %v2589
      %v4862 = vpop.f32.mrb[0].mxu0
      %v4863 = vadd.f32 %v4670, %v4862
      %v4864 = vpop.f32.mrb[0].mxu0
      %v4865 = vadd.f32 %v4672, %v4864
      %v4866 = vpop.f32.mrb[0].mxu0
      %v4867 = vadd.f32 %v4674, %v4866
      %v4868 = vpop.f32.mrb[0].mxu0
      %v4869 = vadd.f32 %v4676, %v4868
      %4870 = vmatprep.mubr.bf16.mxu0 %v2597
      %4871 = vmatmul.mubr.bf16.gmra.mrb[0].mxu0 %v2596
      %v4872 = vpop.f32.mrb[0].mxu0
      %v4873 = vadd.f32 %v4680, %v4872
      %v4874 = vpop.f32.mrb[0].mxu0
      %v4875 = vadd.f32 %v4682, %v4874
      %v4876 = vpop.f32.mrb[0].mxu0
      %v4877 = vadd.f32 %v4684, %v4876
      %v4878 = vpop.f32.mrb[0].mxu0
      %v4879 = vadd.f32 %v4686, %v4878
      %4880 = vmatprep.mubr.bf16.mxu0 %v2604
      %4881 = vmatmul.mubr.bf16.gmra.mrb[0].mxu0 %v2603
      %v4882 = vpop.f32.mrb[0].mxu0
      %v4883 = vadd.f32 %v4690, %v4882
      %v4884 = vpop.f32.mrb[0].mxu0
      %v4885 = vadd.f32 %v4692, %v4884
      %v4886 = vpop.f32.mrb[0].mxu0
      %v4887 = vadd.f32 %v4694, %v4886
      %v4888 = vpop.f32.mrb[0].mxu0
      %v4889 = vadd.f32 %v4696, %v4888
      %4890 = vdwg.mxu0
      %4891 = vmatprep.subr.bf16.mxu0 %v3423
      %4892 = vmatpush1.bf16.msra.mxu0 %v3422
      %4893 = vmatprep.subr.bf16.mxu0 %v3427
      %4894 = vmatpush1.bf16.msra.mxu0 %v3426
      %4895 = vmatprep.subr.bf16.mxu0 %v3431
      %4896 = vmatpush1.bf16.msra.mxu0 %v3430
      %4897 = vmatprep.subr.bf16.mxu0 %v3435
      %4898 = vmatpush1.bf16.msra.mxu0 %v3434
      %4899 = vmatprep.subr.bf16.mxu0 %v3439
      %4900 = vmatpush1.bf16.msra.mxu0 %v3438
      %4901 = vmatprep.subr.bf16.mxu0 %v3443
      %4902 = vmatpush1.bf16.msra.mxu0 %v3442
      %4903 = vmatprep.subr.bf16.mxu0 %v3447
      %4904 = vmatpush1.bf16.msra.mxu0 %v3446
      %4905 = vmatprep.subr.bf16.mxu0 %v3451
      %4906 = vmatpush1.bf16.msra.mxu0 %v3450
      %4907 = vmatprep.subr.bf16.mxu0 %v3455
      %4908 = vmatpush1.bf16.msra.mxu0 %v3454
      %4909 = vmatprep.subr.bf16.mxu0 %v3459
      %4910 = vmatpush1.bf16.msra.mxu0 %v3458
      %4911 = vmatprep.subr.bf16.mxu0 %v3463
      %4912 = vmatpush1.bf16.msra.mxu0 %v3462
      %4913 = vmatprep.subr.bf16.mxu0 %v3467
      %4914 = vmatpush1.bf16.msra.mxu0 %v3466
      %4915 = vmatprep.subr.bf16.mxu0 %v3471
      %4916 = vmatpush1.bf16.msra.mxu0 %v3470
      %4917 = vmatprep.subr.bf16.mxu0 %v3475
      %4918 = vmatpush1.bf16.msra.mxu0 %v3474
      %4919 = vmatprep.subr.bf16.mxu0 %v3479
      %4920 = vmatpush1.bf16.msra.mxu0 %v3478
      %4921 = vmatprep.subr.bf16.mxu0 %v3483
      %4922 = vmatpush1.bf16.msra.mxu0 %v3482
      %4923 = vmatprep.mubr.bf16.mxu0 %v2501
      %4924 = vmatmul.mubr.bf16.gmra.mrb[0].mxu0 %v2500
      %v4925 = vpop.f32.mrb[0].mxu0
      %v4926 = vadd.f32 %v4733, %v4925
      %v4927 = vpop.f32.mrb[0].mxu0
      %v4928 = vadd.f32 %v4735, %v4927
      %v4929 = vpop.f32.mrb[0].mxu0
      %v4930 = vadd.f32 %v4737, %v4929
      %v4931 = vpop.f32.mrb[0].mxu0
      %v4932 = vadd.f32 %v4739, %v4931
      %4933 = vmatprep.mubr.bf16.mxu0 %v2508
      %4934 = vmatmul.mubr.bf16.gmra.mrb[0].mxu0 %v2507
      %v4935 = vpop.f32.mrb[0].mxu0
      %v4936 = vadd.f32 %v4743, %v4935
      %v4937 = vpop.f32.mrb[0].mxu0
      %v4938 = vadd.f32 %v4745, %v4937
      %v4939 = vpop.f32.mrb[0].mxu0
      %v4940 = vadd.f32 %v4747, %v4939
      %v4941 = vpop.f32.mrb[0].mxu0
      %v4942 = vadd.f32 %v4749, %v4941
      %4943 = vmatprep.mubr.bf16.mxu0 %v2515
      %4944 = vmatmul.mubr.bf16.gmra.mrb[0].mxu0 %v2514
      %v4945 = vpop.f32.mrb[0].mxu0
      %v4946 = vadd.f32 %v4753, %v4945
      %v4947 = vpop.f32.mrb[0].mxu0
      %v4948 = vadd.f32 %v4755, %v4947
      %v4949 = vpop.f32.mrb[0].mxu0
      %v4950 = vadd.f32 %v4757, %v4949
      %v4951 = vpop.f32.mrb[0].mxu0
      %v4952 = vadd.f32 %v4759, %v4951
      %4953 = vmatprep.mubr.bf16.mxu0 %v2522
      %4954 = vmatmul.mubr.bf16.gmra.mrb[0].mxu0 %v2521
      %v4955 = vpop.f32.mrb[0].mxu0
      %v4956 = vadd.f32 %v4763, %v4955
      %v4957 = vpop.f32.mrb[0].mxu0
      %v4958 = vadd.f32 %v4765, %v4957
      %v4959 = vpop.f32.mrb[0].mxu0
      %v4960 = vadd.f32 %v4767, %v4959
      %v4961 = vpop.f32.mrb[0].mxu0
      %v4962 = vadd.f32 %v4769, %v4961
      %4963 = vmatprep.mubr.bf16.mxu0 %v2529
      %4964 = vmatmul.mubr.bf16.gmra.mrb[0].mxu0 %v2528
      %v4965 = vpop.f32.mrb[0].mxu0
      %v4966 = vadd.f32 %v4773, %v4965
      %v4967 = vpop.f32.mrb[0].mxu0
      %v4968 = vadd.f32 %v4775, %v4967
      %v4969 = vpop.f32.mrb[0].mxu0
      %v4970 = vadd.f32 %v4777, %v4969
      %v4971 = vpop.f32.mrb[0].mxu0
      %v4972 = vadd.f32 %v4779, %v4971
      %4973 = vmatprep.mubr.bf16.mxu0 %v2536
      %4974 = vmatmul.mubr.bf16.gmra.mrb[0].mxu0 %v2535
      %v4975 = vpop.f32.mrb[0].mxu0
      %v4976 = vadd.f32 %v4783, %v4975
      %v4977 = vpop.f32.mrb[0].mxu0
      %v4978 = vadd.f32 %v4785, %v4977
      %v4979 = vpop.f32.mrb[0].mxu0
      %v4980 = vadd.f32 %v4787, %v4979
      %v4981 = vpop.f32.mrb[0].mxu0
      %v4982 = vadd.f32 %v4789, %v4981
      %4983 = vmatprep.mubr.bf16.mxu0 %v2543
      %4984 = vmatmul.mubr.bf16.gmra.mrb[0].mxu0 %v2542
      %v4985 = vpop.f32.mrb[0].mxu0
      %v4986 = vadd.f32 %v4793, %v4985
      %v4987 = vpop.f32.mrb[0].mxu0
      %v4988 = vadd.f32 %v4795, %v4987
      %v4989 = vpop.f32.mrb[0].mxu0
      %v4990 = vadd.f32 %v4797, %v4989
      %v4991 = vpop.f32.mrb[0].mxu0
      %v4992 = vadd.f32 %v4799, %v4991
      %4993 = vmatprep.mubr.bf16.mxu0 %v2550
      %4994 = vmatmul.mubr.bf16.gmra.mrb[0].mxu0 %v2549
      %v4995 = vpop.f32.mrb[0].mxu0
      %v4996 = vadd.f32 %v4803, %v4995
      %v4997 = vpop.f32.mrb[0].mxu0
      %v4998 = vadd.f32 %v4805, %v4997
      %v4999 = vpop.f32.mrb[0].mxu0
      %v5000 = vadd.f32 %v4807, %v4999
      %v5001 = vpop.f32.mrb[0].mxu0
      %v5002 = vadd.f32 %v4809, %v5001
      %5003 = vmatprep.mubr.bf16.mxu0 %v2557
      %5004 = vmatmul.mubr.bf16.gmra.mrb[0].mxu0 %v2556
      %v5005 = vpop.f32.mrb[0].mxu0
      %v5006 = vadd.f32 %v4813, %v5005
      %v5007 = vpop.f32.mrb[0].mxu0
      %v5008 = vadd.f32 %v4815, %v5007
      %v5009 = vpop.f32.mrb[0].mxu0
      %v5010 = vadd.f32 %v4817, %v5009
      %v5011 = vpop.f32.mrb[0].mxu0
      %v5012 = vadd.f32 %v4819, %v5011
      %5013 = vmatprep.mubr.bf16.mxu0 %v2564
      %5014 = vmatmul.mubr.bf16.gmra.mrb[0].mxu0 %v2563
      %v5015 = vpop.f32.mrb[0].mxu0
      %v5016 = vadd.f32 %v4823, %v5015
      %v5017 = vpop.f32.mrb[0].mxu0
      %v5018 = vadd.f32 %v4825, %v5017
      %v5019 = vpop.f32.mrb[0].mxu0
      %v5020 = vadd.f32 %v4827, %v5019
      %v5021 = vpop.f32.mrb[0].mxu0
      %v5022 = vadd.f32 %v4829, %v5021
      %5023 = vmatprep.mubr.bf16.mxu0 %v2571
      %5024 = vmatmul.mubr.bf16.gmra.mrb[0].mxu0 %v2570
      %v5025 = vpop.f32.mrb[0].mxu0
      %v5026 = vadd.f32 %v4833, %v5025
      %v5027 = vpop.f32.mrb[0].mxu0
      %v5028 = vadd.f32 %v4835, %v5027
      %v5029 = vpop.f32.mrb[0].mxu0
      %v5030 = vadd.f32 %v4837, %v5029
      %v5031 = vpop.f32.mrb[0].mxu0
      %v5032 = vadd.f32 %v4839, %v5031
      %5033 = vmatprep.mubr.bf16.mxu0 %v2578
      %5034 = vmatmul.mubr.bf16.gmra.mrb[0].mxu0 %v2577
      %v5035 = vpop.f32.mrb[0].mxu0
      %v5036 = vadd.f32 %v4843, %v5035
      %v5037 = vpop.f32.mrb[0].mxu0
      %v5038 = vadd.f32 %v4845, %v5037
      %v5039 = vpop.f32.mrb[0].mxu0
      %v5040 = vadd.f32 %v4847, %v5039
      %v5041 = vpop.f32.mrb[0].mxu0
      %v5042 = vadd.f32 %v4849, %v5041
      %5043 = vmatprep.mubr.bf16.mxu0 %v2585
      %5044 = vmatmul.mubr.bf16.gmra.mrb[0].mxu0 %v2584
      %v5045 = vpop.f32.mrb[0].mxu0
      %v5046 = vadd.f32 %v4853, %v5045
      %v5047 = vpop.f32.mrb[0].mxu0
      %v5048 = vadd.f32 %v4855, %v5047
      %v5049 = vpop.f32.mrb[0].mxu0
      %v5050 = vadd.f32 %v4857, %v5049
      %v5051 = vpop.f32.mrb[0].mxu0
      %v5052 = vadd.f32 %v4859, %v5051
      %5053 = vmatprep.mubr.bf16.mxu0 %v2592
      %5054 = vmatmul.mubr.bf16.gmra.mrb[0].mxu0 %v2591
      %v5055 = vpop.f32.mrb[0].mxu0
      %v5056 = vadd.f32 %v4863, %v5055
      %v5057 = vpop.f32.mrb[0].mxu0
      %v5058 = vadd.f32 %v4865, %v5057
      %v5059 = vpop.f32.mrb[0].mxu0
      %v5060 = vadd.f32 %v4867, %v5059
      %v5061 = vpop.f32.mrb[0].mxu0
      %v5062 = vadd.f32 %v4869, %v5061
      %5063 = vmatprep.mubr.bf16.mxu0 %v2599
      %5064 = vmatmul.mubr.bf16.gmra.mrb[0].mxu0 %v2598
      %v5065 = vpop.f32.mrb[0].mxu0
      %v5066 = vadd.f32 %v4873, %v5065
      %v5067 = vpop.f32.mrb[0].mxu0
      %v5068 = vadd.f32 %v4875, %v5067
      %v5069 = vpop.f32.mrb[0].mxu0
      %v5070 = vadd.f32 %v4877, %v5069
      %v5071 = vpop.f32.mrb[0].mxu0
      %v5072 = vadd.f32 %v4879, %v5071
      %5073 = vmatprep.mubr.bf16.mxu0 %v2606
      %5074 = vmatmul.mubr.bf16.gmra.mrb[0].mxu0 %v2605
      %v5075 = vpop.f32.mrb[0].mxu0
      %v5076 = vadd.f32 %v4883, %v5075
      %v5077 = vpop.f32.mrb[0].mxu0
      %v5078 = vadd.f32 %v4885, %v5077
      %v5079 = vpop.f32.mrb[0].mxu0
      %v5080 = vadd.f32 %v4887, %v5079
      %v5081 = vpop.f32.mrb[0].mxu0
      %v5082 = vadd.f32 %v4889, %v5081
      %5083 = vdwg.mxu0
      %5084 = vmatprep.subr.bf16.mxu0 %v3487
      %5085 = vmatpush1.bf16.msra.mxu0 %v3486
      %5086 = vmatprep.subr.bf16.mxu0 0
      %5087 = vmatpush1.bf16.msra.mxu0 0
      %5088 = vmatprep.subr.bf16.mxu0 0
      %5089 = vmatpush1.bf16.msra.mxu0 0
      %5090 = vmatprep.subr.bf16.mxu0 0
      %5091 = vmatpush1.bf16.msra.mxu0 0
      %5092 = vmatprep.subr.bf16.mxu0 0
      %5093 = vmatpush1.bf16.msra.mxu0 0
      %5094 = vmatprep.subr.bf16.mxu0 0
      %5095 = vmatpush1.bf16.msra.mxu0 0
      %5096 = vmatprep.subr.bf16.mxu0 0
      %5097 = vmatpush1.bf16.msra.mxu0 0
      %5098 = vmatprep.subr.bf16.mxu0 0
      %5099 = vmatpush1.bf16.msra.mxu0 0
      %5100 = vmatprep.subr.bf16.mxu0 0
      %5101 = vmatpush1.bf16.msra.mxu0 0
      %5102 = vmatprep.subr.bf16.mxu0 0
      %5103 = vmatpush1.bf16.msra.mxu0 0
      %5104 = vmatprep.subr.bf16.mxu0 0
      %5105 = vmatpush1.bf16.msra.mxu0 0
      %5106 = vmatprep.subr.bf16.mxu0 0
      %5107 = vmatpush1.bf16.msra.mxu0 0
      %5108 = vmatprep.subr.bf16.mxu0 0
      %5109 = vmatpush1.bf16.msra.mxu0 0
      %5110 = vmatprep.subr.bf16.mxu0 0
      %5111 = vmatpush1.bf16.msra.mxu0 0
      %5112 = vmatprep.subr.bf16.mxu0 0
      %5113 = vmatpush1.bf16.msra.mxu0 0
      %5114 = vmatprep.subr.bf16.mxu0 0
      %5115 = vmatpush1.bf16.msra.mxu0 0
      %5116 = vmatprep.mubr.bf16.mxu0 0
      %5117 = vmatmul.mubr.bf16.gmra.mrb[0].mxu0 %v3686
      %v5118 = vpop.f32.mrb[0].mxu0
      %v5119 = vadd.f32 %v4926, %v5118
      %v5120 = vpop.f32.mrb[0].mxu0
      %v5121 = vadd.f32 %v4928, %v5120
      %v5122 = vpop.f32.mrb[0].mxu0
      %v5123 = vadd.f32 %v4930, %v5122
      %v5124 = vpop.f32.mrb[0].mxu0
      %v5125 = vadd.f32 %v4932, %v5124
      %5126 = vmatprep.mubr.bf16.mxu0 0
      %5127 = vmatmul.mubr.bf16.gmra.mrb[0].mxu0 %v3689
      %v5128 = vpop.f32.mrb[0].mxu0
      %v5129 = vadd.f32 %v4936, %v5128
      %v5130 = vpop.f32.mrb[0].mxu0
      %v5131 = vadd.f32 %v4938, %v5130
      %v5132 = vpop.f32.mrb[0].mxu0
      %v5133 = vadd.f32 %v4940, %v5132
      %v5134 = vpop.f32.mrb[0].mxu0
      %v5135 = vadd.f32 %v4942, %v5134
      %5136 = vmatprep.mubr.bf16.mxu0 0
      %5137 = vmatmul.mubr.bf16.gmra.mrb[0].mxu0 %v3692
      %v5138 = vpop.f32.mrb[0].mxu0
      %v5139 = vadd.f32 %v4946, %v5138
      %v5140 = vpop.f32.mrb[0].mxu0
      %v5141 = vadd.f32 %v4948, %v5140
      %v5142 = vpop.f32.mrb[0].mxu0
      %v5143 = vadd.f32 %v4950, %v5142
      %v5144 = vpop.f32.mrb[0].mxu0
      %v5145 = vadd.f32 %v4952, %v5144
      %5146 = vmatprep.mubr.bf16.mxu0 0
      %5147 = vmatmul.mubr.bf16.gmra.mrb[0].mxu0 %v3695
      %v5148 = vpop.f32.mrb[0].mxu0
      %v5149 = vadd.f32 %v4956, %v5148
      %v5150 = vpop.f32.mrb[0].mxu0
      %v5151 = vadd.f32 %v4958, %v5150
      %v5152 = vpop.f32.mrb[0].mxu0
      %v5153 = vadd.f32 %v4960, %v5152
      %v5154 = vpop.f32.mrb[0].mxu0
      %v5155 = vadd.f32 %v4962, %v5154
      %5156 = vmatprep.mubr.bf16.mxu0 0
      %5157 = vmatmul.mubr.bf16.gmra.mrb[0].mxu0 %v3698
      %v5158 = vpop.f32.mrb[0].mxu0
      %v5159 = vadd.f32 %v4966, %v5158
      %v5160 = vpop.f32.mrb[0].mxu0
      %v5161 = vadd.f32 %v4968, %v5160
      %v5162 = vpop.f32.mrb[0].mxu0
      %v5163 = vadd.f32 %v4970, %v5162
      %v5164 = vpop.f32.mrb[0].mxu0
      %v5165 = vadd.f32 %v4972, %v5164
      %5166 = vmatprep.mubr.bf16.mxu0 0
      %5167 = vmatmul.mubr.bf16.gmra.mrb[0].mxu0 %v3701
      %v5168 = vpop.f32.mrb[0].mxu0
      %v5169 = vadd.f32 %v4976, %v5168
      %v5170 = vpop.f32.mrb[0].mxu0
      %v5171 = vadd.f32 %v4978, %v5170
      %v5172 = vpop.f32.mrb[0].mxu0
      %v5173 = vadd.f32 %v4980, %v5172
      %v5174 = vpop.f32.mrb[0].mxu0
      %v5175 = vadd.f32 %v4982, %v5174
      %5176 = vmatprep.mubr.bf16.mxu0 0
      %5177 = vmatmul.mubr.bf16.gmra.mrb[0].mxu0 %v3704
      %v5178 = vpop.f32.mrb[0].mxu0
      %v5179 = vadd.f32 %v4986, %v5178
      %v5180 = vpop.f32.mrb[0].mxu0
      %v5181 = vadd.f32 %v4988, %v5180
      %v5182 = vpop.f32.mrb[0].mxu0
      %v5183 = vadd.f32 %v4990, %v5182
      %v5184 = vpop.f32.mrb[0].mxu0
      %v5185 = vadd.f32 %v4992, %v5184
      %5186 = vmatprep.mubr.bf16.mxu0 0
      %5187 = vmatmul.mubr.bf16.gmra.mrb[0].mxu0 %v3707
      %v5188 = vpop.f32.mrb[0].mxu0
      %v5189 = vadd.f32 %v4996, %v5188
      %v5190 = vpop.f32.mrb[0].mxu0
      %v5191 = vadd.f32 %v4998, %v5190
      %v5192 = vpop.f32.mrb[0].mxu0
      %v5193 = vadd.f32 %v5000, %v5192
      %v5194 = vpop.f32.mrb[0].mxu0
      %v5195 = vadd.f32 %v5002, %v5194
      %5196 = vmatprep.mubr.bf16.mxu0 0
      %5197 = vmatmul.mubr.bf16.gmra.mrb[0].mxu0 %v3710
      %v5198 = vpop.f32.mrb[0].mxu0
      %v5199 = vadd.f32 %v5006, %v5198
      %v5200 = vpop.f32.mrb[0].mxu0
      %v5201 = vadd.f32 %v5008, %v5200
      %v5202 = vpop.f32.mrb[0].mxu0
      %v5203 = vadd.f32 %v5010, %v5202
      %v5204 = vpop.f32.mrb[0].mxu0
      %v5205 = vadd.f32 %v5012, %v5204
      %5206 = vmatprep.mubr.bf16.mxu0 0
      %5207 = vmatmul.mubr.bf16.gmra.mrb[0].mxu0 %v3713
      %v5208 = vpop.f32.mrb[0].mxu0
      %v5209 = vadd.f32 %v5016, %v5208
      %v5210 = vpop.f32.mrb[0].mxu0
      %v5211 = vadd.f32 %v5018, %v5210
      %v5212 = vpop.f32.mrb[0].mxu0
      %v5213 = vadd.f32 %v5020, %v5212
      %v5214 = vpop.f32.mrb[0].mxu0
      %v5215 = vadd.f32 %v5022, %v5214
      %5216 = vmatprep.mubr.bf16.mxu0 0
      %5217 = vmatmul.mubr.bf16.gmra.mrb[0].mxu0 %v3716
      %v5218 = vpop.f32.mrb[0].mxu0
      %v5219 = vadd.f32 %v5026, %v5218
      %v5220 = vpop.f32.mrb[0].mxu0
      %v5221 = vadd.f32 %v5028, %v5220
      %v5222 = vpop.f32.mrb[0].mxu0
      %v5223 = vadd.f32 %v5030, %v5222
      %v5224 = vpop.f32.mrb[0].mxu0
      %v5225 = vadd.f32 %v5032, %v5224
      %5226 = vmatprep.mubr.bf16.mxu0 0
      %5227 = vmatmul.mubr.bf16.gmra.mrb[0].mxu0 %v3719
      %v5228 = vpop.f32.mrb[0].mxu0
      %v5229 = vadd.f32 %v5036, %v5228
      %v5230 = vpop.f32.mrb[0].mxu0
      %v5231 = vadd.f32 %v5038, %v5230
      %v5232 = vpop.f32.mrb[0].mxu0
      %v5233 = vadd.f32 %v5040, %v5232
      %v5234 = vpop.f32.mrb[0].mxu0
      %v5235 = vadd.f32 %v5042, %v5234
      %5236 = vmatprep.mubr.bf16.mxu0 0
      %5237 = vmatmul.mubr.bf16.gmra.mrb[0].mxu0 %v3722
      %v5238 = vpop.f32.mrb[0].mxu0
      %v5239 = vadd.f32 %v5046, %v5238
      %v5240 = vpop.f32.mrb[0].mxu0
      %v5241 = vadd.f32 %v5048, %v5240
      %v5242 = vpop.f32.mrb[0].mxu0
      %v5243 = vadd.f32 %v5050, %v5242
      %v5244 = vpop.f32.mrb[0].mxu0
      %v5245 = vadd.f32 %v5052, %v5244
      %5246 = vmatprep.mubr.bf16.mxu0 0
      %5247 = vmatmul.mubr.bf16.gmra.mrb[0].mxu0 %v3725
      %v5248 = vpop.f32.mrb[0].mxu0
      %v5249 = vadd.f32 %v5056, %v5248
      %v5250 = vpop.f32.mrb[0].mxu0
      %v5251 = vadd.f32 %v5058, %v5250
      %v5252 = vpop.f32.mrb[0].mxu0
      %v5253 = vadd.f32 %v5060, %v5252
      %v5254 = vpop.f32.mrb[0].mxu0
      %v5255 = vadd.f32 %v5062, %v5254
      %5256 = vmatprep.mubr.bf16.mxu0 0
      %5257 = vmatmul.mubr.bf16.gmra.mrb[0].mxu0 %v3728
      %v5258 = vpop.f32.mrb[0].mxu0
      %v5259 = vadd.f32 %v5066, %v5258
      %v5260 = vpop.f32.mrb[0].mxu0
      %v5261 = vadd.f32 %v5068, %v5260
      %v5262 = vpop.f32.mrb[0].mxu0
      %v5263 = vadd.f32 %v5070, %v5262
      %v5264 = vpop.f32.mrb[0].mxu0
      %v5265 = vadd.f32 %v5072, %v5264
      %5266 = vmatprep.mubr.bf16.mxu0 0
      %5267 = vmatmul.mubr.bf16.gmra.mrb[0].mxu0 %v3731
      %v5268 = vpop.f32.mrb[0].mxu0
      %v5269 = vadd.f32 %v5076, %v5268
      %v5270 = vpop.f32.mrb[0].mxu0
      %v5271 = vadd.f32 %v5078, %v5270
      %v5272 = vpop.f32.mrb[0].mxu0
      %v5273 = vadd.f32 %v5080, %v5272
      %v5274 = vpop.f32.mrb[0].mxu0
      %v5275 = vadd.f32 %v5082, %v5274
      %5276 = vdwg.mxu0
      %v5277 = vmax.f32 %v4347, 0.0
      %v5278 = vmax.f32 %v4349, 0.0
      %v5279 = vmax.f32 %v5119, 0.0
      %v5280 = vmax.f32 %v5121, 0.0
      %v5281 = vmax.f32 %v4351, 0.0
      %v5282 = vmax.f32 %v4353, 0.0
      %v5283 = vmax.f32 %v5123, 0.0
      %v5284 = vmax.f32 %v5125, 0.0
      %v5285 = vmax.f32 %v4357, 0.0
      %v5286 = vmax.f32 %v4359, 0.0
      %v5287 = vmax.f32 %v5129, 0.0
      %v5288 = vmax.f32 %v5131, 0.0
      %v5289 = vmax.f32 %v4361, 0.0
      %v5290 = vmax.f32 %v4363, 0.0
      %v5291 = vmax.f32 %v5133, 0.0
      %v5292 = vmax.f32 %v5135, 0.0
      %v5293 = vmax.f32 %v4367, 0.0
      %v5294 = vmax.f32 %v4369, 0.0
      %v5295 = vmax.f32 %v5139, 0.0
      %v5296 = vmax.f32 %v5141, 0.0
      %v5297 = vmax.f32 %v4371, 0.0
      %v5298 = vmax.f32 %v4373, 0.0
      %v5299 = vmax.f32 %v5143, 0.0
      %v5300 = vmax.f32 %v5145, 0.0
      %v5301 = vmax.f32 %v4377, 0.0
      %v5302 = vmax.f32 %v4379, 0.0
      %v5303 = vmax.f32 %v5149, 0.0
      %v5304 = vmax.f32 %v5151, 0.0
      %v5305 = vmax.f32 %v4381, 0.0
      %v5306 = vmax.f32 %v4383, 0.0
      %v5307 = vmax.f32 %v5153, 0.0
      %v5308 = vmax.f32 %v5155, 0.0
      %v5309 = vmax.f32 %v4387, 0.0
      %v5310 = vmax.f32 %v4389, 0.0
      %v5311 = vmax.f32 %v5159, 0.0
      %v5312 = vmax.f32 %v5161, 0.0
      %v5313 = vmax.f32 %v4391, 0.0
      %v5314 = vmax.f32 %v4393, 0.0
      %v5315 = vmax.f32 %v5163, 0.0
      %v5316 = vmax.f32 %v5165, 0.0
      %v5317 = vmax.f32 %v4397, 0.0
      %v5318 = vmax.f32 %v4399, 0.0
      %v5319 = vmax.f32 %v5169, 0.0
      %v5320 = vmax.f32 %v5171, 0.0
      %v5321 = vmax.f32 %v4401, 0.0
      %v5322 = vmax.f32 %v4403, 0.0
      %v5323 = vmax.f32 %v5173, 0.0
      %v5324 = vmax.f32 %v5175, 0.0
      %v5325 = vmax.f32 %v4407, 0.0
      %v5326 = vmax.f32 %v4409, 0.0
      %v5327 = vmax.f32 %v5179, 0.0
      %v5328 = vmax.f32 %v5181, 0.0
      %v5329 = vmax.f32 %v4411, 0.0
      %v5330 = vmax.f32 %v4413, 0.0
      %v5331 = vmax.f32 %v5183, 0.0
      %v5332 = vmax.f32 %v5185, 0.0
      %v5333 = vmax.f32 %v4417, 0.0
      %v5334 = vmax.f32 %v4419, 0.0
      %v5335 = vmax.f32 %v5189, 0.0
      %v5336 = vmax.f32 %v5191, 0.0
      %v5337 = vmax.f32 %v4421, 0.0
      %v5338 = vmax.f32 %v4423, 0.0
      %v5339 = vmax.f32 %v5193, 0.0
      %v5340 = vmax.f32 %v5195, 0.0
      %v5341 = vmax.f32 %v4427, 0.0
      %v5342 = vmax.f32 %v4429, 0.0
      %v5343 = vmax.f32 %v5199, 0.0
      %v5344 = vmax.f32 %v5201, 0.0
      %v5345 = vmax.f32 %v4431, 0.0
      %v5346 = vmax.f32 %v4433, 0.0
      %v5347 = vmax.f32 %v5203, 0.0
      %v5348 = vmax.f32 %v5205, 0.0
      %v5349 = vmax.f32 %v4437, 0.0
      %v5350 = vmax.f32 %v4439, 0.0
      %v5351 = vmax.f32 %v5209, 0.0
      %v5352 = vmax.f32 %v5211, 0.0
      %v5353 = vmax.f32 %v4441, 0.0
      %v5354 = vmax.f32 %v4443, 0.0
      %v5355 = vmax.f32 %v5213, 0.0
      %v5356 = vmax.f32 %v5215, 0.0
      %v5357 = vmax.f32 %v4447, 0.0
      %v5358 = vmax.f32 %v4449, 0.0
      %v5359 = vmax.f32 %v5219, 0.0
      %v5360 = vmax.f32 %v5221, 0.0
      %v5361 = vmax.f32 %v4451, 0.0
      %v5362 = vmax.f32 %v4453, 0.0
      %v5363 = vmax.f32 %v5223, 0.0
      %v5364 = vmax.f32 %v5225, 0.0
      %v5365 = vmax.f32 %v4457, 0.0
      %v5366 = vmax.f32 %v4459, 0.0
      %v5367 = vmax.f32 %v5229, 0.0
      %v5368 = vmax.f32 %v5231, 0.0
      %v5369 = vmax.f32 %v4461, 0.0
      %v5370 = vmax.f32 %v4463, 0.0
      %v5371 = vmax.f32 %v5233, 0.0
      %v5372 = vmax.f32 %v5235, 0.0
      %v5373 = vmax.f32 %v4467, 0.0
      %v5374 = vmax.f32 %v4469, 0.0
      %v5375 = vmax.f32 %v5239, 0.0
      %v5376 = vmax.f32 %v5241, 0.0
      %v5377 = vmax.f32 %v4471, 0.0
      %v5378 = vmax.f32 %v4473, 0.0
      %v5379 = vmax.f32 %v5243, 0.0
      %v5380 = vmax.f32 %v5245, 0.0
      %v5381 = vmax.f32 %v4477, 0.0
      %v5382 = vmax.f32 %v4479, 0.0
      %v5383 = vmax.f32 %v5249, 0.0
      %v5384 = vmax.f32 %v5251, 0.0
      %v5385 = vmax.f32 %v4481, 0.0
      %v5386 = vmax.f32 %v4483, 0.0
      %v5387 = vmax.f32 %v5253, 0.0
      %v5388 = vmax.f32 %v5255, 0.0
      %v5389 = vmax.f32 %v4487, 0.0
      %v5390 = vmax.f32 %v4489, 0.0
      %v5391 = vmax.f32 %v5259, 0.0
      %v5392 = vmax.f32 %v5261, 0.0
      %v5393 = vmax.f32 %v4491, 0.0
      %v5394 = vmax.f32 %v4493, 0.0
      %v5395 = vmax.f32 %v5263, 0.0
      %v5396 = vmax.f32 %v5265, 0.0
      %v5397 = vmax.f32 %v4497, 0.0
      %v5398 = vmax.f32 %v4499, 0.0
      %v5399 = vmax.f32 %v5269, 0.0
      %v5400 = vmax.f32 %v5271, 0.0
      %v5401 = vmax.f32 %v4501, 0.0
      %v5402 = vmax.f32 %v4503, 0.0
      %v5403 = vmax.f32 %v5273, 0.0
      %v5404 = vmax.f32 %v5275, 0.0
      %v5405 = vpack.c.bf16 %v5281, %v5277
      %v5406 = vpack.c.bf16 %v5282, %v5278
      %v5407 = vpack.c.bf16 %v5283, %v5279
      %v5408 = vpack.c.bf16 %v5284, %v5280
      %v5409 = vpack.c.bf16 %v5289, %v5285
      %v5410 = vpack.c.bf16 %v5290, %v5286
      %v5411 = vpack.c.bf16 %v5291, %v5287
      %v5412 = vpack.c.bf16 %v5292, %v5288
      %v5413 = vpack.c.bf16 %v5297, %v5293
      %v5414 = vpack.c.bf16 %v5298, %v5294
      %v5415 = vpack.c.bf16 %v5299, %v5295
      %v5416 = vpack.c.bf16 %v5300, %v5296
      %v5417 = vpack.c.bf16 %v5305, %v5301
      %v5418 = vpack.c.bf16 %v5306, %v5302
      %v5419 = vpack.c.bf16 %v5307, %v5303
      %v5420 = vpack.c.bf16 %v5308, %v5304
      %v5421 = vpack.c.bf16 %v5313, %v5309
      %v5422 = vpack.c.bf16 %v5314, %v5310
      %v5423 = vpack.c.bf16 %v5315, %v5311
      %v5424 = vpack.c.bf16 %v5316, %v5312
      %v5425 = vpack.c.bf16 %v5321, %v5317
      %v5426 = vpack.c.bf16 %v5322, %v5318
      %v5427 = vpack.c.bf16 %v5323, %v5319
      %v5428 = vpack.c.bf16 %v5324, %v5320
      %v5429 = vpack.c.bf16 %v5329, %v5325
      %v5430 = vpack.c.bf16 %v5330, %v5326
      %v5431 = vpack.c.bf16 %v5331, %v5327
      %v5432 = vpack.c.bf16 %v5332, %v5328
      %v5433 = vpack.c.bf16 %v5337, %v5333
      %v5434 = vpack.c.bf16 %v5338, %v5334
      %v5435 = vpack.c.bf16 %v5339, %v5335
      %v5436 = vpack.c.bf16 %v5340, %v5336
      %v5437 = vpack.c.bf16 %v5345, %v5341
      %v5438 = vpack.c.bf16 %v5346, %v5342
      %v5439 = vpack.c.bf16 %v5347, %v5343
      %v5440 = vpack.c.bf16 %v5348, %v5344
      %v5441 = vpack.c.bf16 %v5353, %v5349
      %v5442 = vpack.c.bf16 %v5354, %v5350
      %v5443 = vpack.c.bf16 %v5355, %v5351
      %v5444 = vpack.c.bf16 %v5356, %v5352
      %v5445 = vpack.c.bf16 %v5361, %v5357
      %v5446 = vpack.c.bf16 %v5362, %v5358
      %v5447 = vpack.c.bf16 %v5363, %v5359
      %v5448 = vpack.c.bf16 %v5364, %v5360
      %v5449 = vpack.c.bf16 %v5369, %v5365
      %v5450 = vpack.c.bf16 %v5370, %v5366
      %v5451 = vpack.c.bf16 %v5371, %v5367
      %v5452 = vpack.c.bf16 %v5372, %v5368
      %v5453 = vpack.c.bf16 %v5377, %v5373
      %v5454 = vpack.c.bf16 %v5378, %v5374
      %v5455 = vpack.c.bf16 %v5379, %v5375
      %v5456 = vpack.c.bf16 %v5380, %v5376
      %v5457 = vpack.c.bf16 %v5385, %v5381
      %v5458 = vpack.c.bf16 %v5386, %v5382
      %v5459 = vpack.c.bf16 %v5387, %v5383
      %v5460 = vpack.c.bf16 %v5388, %v5384
      %v5461 = vpack.c.bf16 %v5393, %v5389
      %v5462 = vpack.c.bf16 %v5394, %v5390
      %v5463 = vpack.c.bf16 %v5395, %v5391
      %v5464 = vpack.c.bf16 %v5396, %v5392
      %v5465 = vpack.c.bf16 %v5401, %v5397
      %v5466 = vpack.c.bf16 %v5402, %v5398
      %v5467 = vpack.c.bf16 %v5403, %v5399
      %v5468 = vpack.c.bf16 %v5404, %v5400
      %v5469 = vld [vmem:[%s5] sm:$0xf]
      %v5470 = vld [vmem:[%s5 + $0x4] sm:$0xf]
      %v5471 = vld [vmem:[%s5 + $0x8] sm:$0xf]
      %v5472 = vld [vmem:[%s5 + $0xc] sm:$0xf]
      %v5473 = vld [vmem:[%s5 + $0x10] sm:$0xf]
      %v5474 = vld [vmem:[%s5 + $0x14] sm:$0xf]
      %v5475 = vld [vmem:[%s5 + $0x18] sm:$0xf]
      %v5476 = vld [vmem:[%s5 + $0x1c] sm:$0xf]
      %v5477 = vld [vmem:[%s5 + $0x20] sm:$0xf]
      %v5478 = vld [vmem:[%s5 + $0x24] sm:$0xf]
      %v5479 = vld [vmem:[%s5 + $0x28] sm:$0xf]
      %v5480 = vld [vmem:[%s5 + $0x2c] sm:$0xf]
      %v5481 = vld [vmem:[%s5 + $0x30] sm:$0xf]
      %v5482 = vld [vmem:[%s5 + $0x34] sm:$0xf]
      %v5483 = vld [vmem:[%s5 + $0x38] sm:$0xf]
      %v5484 = vld [vmem:[%s5 + $0x3c] sm:$0xf]
      %v5485 = vld [vmem:[%s5 + $0x40] sm:$0xf]
      %v5486 = vld [vmem:[%s5 + $0x44] sm:$0xf]
      %v5487 = vld [vmem:[%s5 + $0x48] sm:$0xf]
      %v5488 = vld [vmem:[%s5 + $0x4c] sm:$0xf]
      %v5489 = vld [vmem:[%s5 + $0x50] sm:$0xf]
      %v5490 = vld [vmem:[%s5 + $0x54] sm:$0xf]
      %v5491 = vld [vmem:[%s5 + $0x58] sm:$0xf]
      %v5492 = vld [vmem:[%s5 + $0x5c] sm:$0xf]
      %v5493 = vld [vmem:[%s5 + $0x60] sm:$0xf]
      %v5494 = vld [vmem:[%s5 + $0x64] sm:$0xf]
      %v5495 = vld [vmem:[%s5 + $0x68] sm:$0xf]
      %v5496 = vld [vmem:[%s5 + $0x6c] sm:$0xf]
      %v5497 = vld [vmem:[%s5 + $0x70] sm:$0xf]
      %v5498 = vld [vmem:[%s5 + $0x74] sm:$0xf]
      %v5499 = vld [vmem:[%s5 + $0x78] sm:$0xf]
      %v5500 = vld [vmem:[%s5 + $0x7c] sm:$0xf]
      %v5501 = vld [vmem:[%s5 + $0x80] sm:$0xf]
      %v5502 = vld [vmem:[%s5 + $0x84] sm:$0xf]
      %v5503 = vld [vmem:[%s5 + $0x88] sm:$0xf]
      %v5504 = vld [vmem:[%s5 + $0x8c] sm:$0xf]
      %v5505 = vld [vmem:[%s5 + $0x90] sm:$0xf]
      %v5506 = vld [vmem:[%s5 + $0x94] sm:$0xf]
      %v5507 = vld [vmem:[%s5 + $0x98] sm:$0xf]
      %v5508 = vld [vmem:[%s5 + $0x9c] sm:$0xf]
      %v5509 = vld [vmem:[%s5 + $0xa0] sm:$0xf]
      %v5510 = vld [vmem:[%s5 + $0xa4] sm:$0xf]
      %v5511 = vld [vmem:[%s5 + $0xa8] sm:$0xf]
      %v5512 = vld [vmem:[%s5 + $0xac] sm:$0xf]
      %v5513 = vld [vmem:[%s5 + $0xb0] sm:$0xf]
      %v5514 = vld [vmem:[%s5 + $0xb4] sm:$0xf]
      %v5515 = vld [vmem:[%s5 + $0xb8] sm:$0xf]
      %v5516 = vld [vmem:[%s5 + $0xbc] sm:$0xf]
      %v5517 = vld [vmem:[%s5 + $0xc0] sm:$0xf]
      %v5518 = vld [vmem:[%s5 + $0xc4] sm:$0xf]
      %v5519 = vld [vmem:[%s5 + $0xc8] sm:$0xf]
      %v5520 = vld [vmem:[%s5 + $0xcc] sm:$0xf]
      %v5521 = vld [vmem:[%s5 + $0xd0] sm:$0xf]
      %v5522 = vld [vmem:[%s5 + $0xd4] sm:$0xf]
      %v5523 = vld [vmem:[%s5 + $0xd8] sm:$0xf]
      %v5524 = vld [vmem:[%s5 + $0xdc] sm:$0xf]
      %v5525 = vld [vmem:[%s5 + $0xe0] sm:$0xf]
      %v5526 = vld [vmem:[%s5 + $0xe4] sm:$0xf]
      %v5527 = vld [vmem:[%s5 + $0xe8] sm:$0xf]
      %v5528 = vld [vmem:[%s5 + $0xec] sm:$0xf]
      %v5529 = vld [vmem:[%s5 + $0xf0] sm:$0xf]
      %v5530 = vld [vmem:[%s5 + $0xf4] sm:$0xf]
      %v5531 = vld [vmem:[%s5 + $0xf8] sm:$0xf]
      %v5532 = vld [vmem:[%s5 + $0xfc] sm:$0xf]
      %v5533 = vld [vmem:[%s6] sm:$0x1]
      %v5535 = vlaneseq
      %v5536 = vshrl.u32 %v5535, 7
      %v5537 = vsub.s32 0, %v5536
      %v5538 = vrot.slane %v5533, %v5537
      %v5604 = vunpack.c.l.b16 %v5469
      %v5605 = vunpack.c.l.b16 %v5470
      %v5606 = vunpack.c.l.b16 %v5471
      %v5607 = vunpack.c.l.b16 %v5472
      %v5608 = vunpack.c.l.b16 %v5473
      %v5609 = vunpack.c.l.b16 %v5474
      %v5610 = vunpack.c.l.b16 %v5475
      %v5611 = vunpack.c.l.b16 %v5476
      %v5612 = vunpack.c.l.b16 %v5477
      %v5613 = vunpack.c.l.b16 %v5478
      %v5614 = vunpack.c.l.b16 %v5479
      %v5615 = vunpack.c.l.b16 %v5480
      %v5616 = vunpack.c.l.b16 %v5481
      %v5617 = vunpack.c.l.b16 %v5482
      %v5618 = vunpack.c.l.b16 %v5483
      %v5619 = vunpack.c.l.b16 %v5484
      %v5620 = vunpack.c.l.b16 %v5485
      %v5621 = vunpack.c.l.b16 %v5486
      %v5622 = vunpack.c.l.b16 %v5487
      %v5623 = vunpack.c.l.b16 %v5488
      %v5624 = vunpack.c.l.b16 %v5489
      %v5625 = vunpack.c.l.b16 %v5490
      %v5626 = vunpack.c.l.b16 %v5491
      %v5627 = vunpack.c.l.b16 %v5492
      %v5628 = vunpack.c.l.b16 %v5493
      %v5629 = vunpack.c.l.b16 %v5494
      %v5630 = vunpack.c.l.b16 %v5495
      %v5631 = vunpack.c.l.b16 %v5496
      %v5632 = vunpack.c.l.b16 %v5497
      %v5633 = vunpack.c.l.b16 %v5498
      %v5634 = vunpack.c.l.b16 %v5499
      %v5635 = vunpack.c.l.b16 %v5500
      %v5636 = vunpack.c.l.b16 %v5501
      %v5637 = vunpack.c.l.b16 %v5502
      %v5638 = vunpack.c.l.b16 %v5503
      %v5639 = vunpack.c.l.b16 %v5504
      %v5640 = vunpack.c.l.b16 %v5505
      %v5641 = vunpack.c.l.b16 %v5506
      %v5642 = vunpack.c.l.b16 %v5507
      %v5643 = vunpack.c.l.b16 %v5508
      %v5644 = vunpack.c.l.b16 %v5509
      %v5645 = vunpack.c.l.b16 %v5510
      %v5646 = vunpack.c.l.b16 %v5511
      %v5647 = vunpack.c.l.b16 %v5512
      %v5648 = vunpack.c.l.b16 %v5513
      %v5649 = vunpack.c.l.b16 %v5514
      %v5650 = vunpack.c.l.b16 %v5515
      %v5651 = vunpack.c.l.b16 %v5516
      %v5652 = vunpack.c.l.b16 %v5517
      %v5653 = vunpack.c.l.b16 %v5518
      %v5654 = vunpack.c.l.b16 %v5519
      %v5655 = vunpack.c.l.b16 %v5520
      %v5656 = vunpack.c.l.b16 %v5521
      %v5657 = vunpack.c.l.b16 %v5522
      %v5658 = vunpack.c.l.b16 %v5523
      %v5659 = vunpack.c.l.b16 %v5524
      %v5660 = vunpack.c.l.b16 %v5525
      %v5661 = vunpack.c.l.b16 %v5526
      %v5662 = vunpack.c.l.b16 %v5527
      %v5663 = vunpack.c.l.b16 %v5528
      %v5664 = vunpack.c.l.b16 %v5529
      %v5665 = vunpack.c.l.b16 %v5530
      %v5666 = vunpack.c.l.b16 %v5531
      %v5667 = vunpack.c.l.b16 %v5532
      %v5668 = vpack.c.b16 %v5605, %v5604
      %v5669 = vpack.c.b16 %v5607, %v5606
      %v5670 = vpack.c.b16 %v5609, %v5608
      %v5671 = vpack.c.b16 %v5611, %v5610
      %v5672 = vpack.c.b16 %v5613, %v5612
      %v5673 = vpack.c.b16 %v5615, %v5614
      %v5674 = vpack.c.b16 %v5617, %v5616
      %v5675 = vpack.c.b16 %v5619, %v5618
      %v5676 = vpack.c.b16 %v5621, %v5620
      %v5677 = vpack.c.b16 %v5623, %v5622
      %v5678 = vpack.c.b16 %v5625, %v5624
      %v5679 = vpack.c.b16 %v5627, %v5626
      %v5680 = vpack.c.b16 %v5629, %v5628
      %v5681 = vpack.c.b16 %v5631, %v5630
      %v5682 = vpack.c.b16 %v5633, %v5632
      %v5683 = vpack.c.b16 %v5635, %v5634
      %v5684 = vpack.c.b16 %v5637, %v5636
      %v5685 = vpack.c.b16 %v5639, %v5638
      %v5686 = vpack.c.b16 %v5641, %v5640
      %v5687 = vpack.c.b16 %v5643, %v5642
      %v5688 = vpack.c.b16 %v5645, %v5644
      %v5689 = vpack.c.b16 %v5647, %v5646
      %v5690 = vpack.c.b16 %v5649, %v5648
      %v5691 = vpack.c.b16 %v5651, %v5650
      %v5692 = vpack.c.b16 %v5653, %v5652
      %v5693 = vpack.c.b16 %v5655, %v5654
      %v5694 = vpack.c.b16 %v5657, %v5656
      %v5695 = vpack.c.b16 %v5659, %v5658
      %v5696 = vpack.c.b16 %v5661, %v5660
      %v5697 = vpack.c.b16 %v5663, %v5662
      %v5698 = vpack.c.b16 %v5665, %v5664
      %v5699 = vpack.c.b16 %v5667, %v5666
      %5732 = vmatprep.subr.bf16.mxu0 0
      %5733 = vmatpush1.bf16.msra.mxu0 %v5668
      %5734 = vmatprep.subr.bf16.mxu0 0
      %5735 = vmatpush1.bf16.msra.mxu0 %v5669
      %5736 = vmatprep.subr.bf16.mxu0 0
      %5737 = vmatpush1.bf16.msra.mxu0 %v5670
      %5738 = vmatprep.subr.bf16.mxu0 0
      %5739 = vmatpush1.bf16.msra.mxu0 %v5671
      %5740 = vmatprep.subr.bf16.mxu0 0
      %5741 = vmatpush1.bf16.msra.mxu0 %v5672
      %5742 = vmatprep.subr.bf16.mxu0 0
      %5743 = vmatpush1.bf16.msra.mxu0 %v5673
      %5744 = vmatprep.subr.bf16.mxu0 0
      %5745 = vmatpush1.bf16.msra.mxu0 %v5674
      %5746 = vmatprep.subr.bf16.mxu0 0
      %5747 = vmatpush1.bf16.msra.mxu0 %v5675
      %5748 = vmatprep.subr.bf16.mxu0 0
      %5749 = vmatpush1.bf16.msra.mxu0 %v5676
      %5750 = vmatprep.subr.bf16.mxu0 0
      %5751 = vmatpush1.bf16.msra.mxu0 %v5677
      %5752 = vmatprep.subr.bf16.mxu0 0
      %5753 = vmatpush1.bf16.msra.mxu0 %v5678
      %5754 = vmatprep.subr.bf16.mxu0 0
      %5755 = vmatpush1.bf16.msra.mxu0 %v5679
      %5756 = vmatprep.subr.bf16.mxu0 0
      %5757 = vmatpush1.bf16.msra.mxu0 %v5680
      %5758 = vmatprep.subr.bf16.mxu0 0
      %5759 = vmatpush1.bf16.msra.mxu0 %v5681
      %5760 = vmatprep.subr.bf16.mxu0 0
      %5761 = vmatpush1.bf16.msra.mxu0 %v5682
      %5762 = vmatprep.subr.bf16.mxu0 0
      %5763 = vmatpush1.bf16.msra.mxu0 %v5683
      %5764 = vmatprep.mubr.bf16.mxu0 %v5406
      %5765 = vmatmul.mubr.bf16.gmra.mrb[0].mxu0 %v5405
      %v5766 = vpop.f32.mrb[0].mxu0
      %v5767 = vadd.f32 %v5538, %v5766
      %v5768 = vpop.f32.mrb[0].mxu0
      %v5769 = vpop.f32.mrb[0].mxu0
      %v5770 = vadd.f32 %v5538, %v5769
      %v5771 = vpop.f32.mrb[0].mxu0
      %5772 = vmatprep.mubr.bf16.mxu0 %v5410
      %5773 = vmatmul.mubr.bf16.gmra.mrb[0].mxu0 %v5409
      %v5774 = vpop.f32.mrb[0].mxu0
      %v5775 = vadd.f32 %v5538, %v5774
      %v5776 = vpop.f32.mrb[0].mxu0
      %v5777 = vpop.f32.mrb[0].mxu0
      %v5778 = vadd.f32 %v5538, %v5777
      %v5779 = vpop.f32.mrb[0].mxu0
      %5780 = vmatprep.mubr.bf16.mxu0 %v5414
      %5781 = vmatmul.mubr.bf16.gmra.mrb[0].mxu0 %v5413
      %v5782 = vpop.f32.mrb[0].mxu0
      %v5783 = vadd.f32 %v5538, %v5782
      %v5784 = vpop.f32.mrb[0].mxu0
      %v5785 = vpop.f32.mrb[0].mxu0
      %v5786 = vadd.f32 %v5538, %v5785
      %v5787 = vpop.f32.mrb[0].mxu0
      %5788 = vmatprep.mubr.bf16.mxu0 %v5418
      %5789 = vmatmul.mubr.bf16.gmra.mrb[0].mxu0 %v5417
      %v5790 = vpop.f32.mrb[0].mxu0
      %v5791 = vadd.f32 %v5538, %v5790
      %v5792 = vpop.f32.mrb[0].mxu0
      %v5793 = vpop.f32.mrb[0].mxu0
      %v5794 = vadd.f32 %v5538, %v5793
      %v5795 = vpop.f32.mrb[0].mxu0
      %5796 = vmatprep.mubr.bf16.mxu0 %v5422
      %5797 = vmatmul.mubr.bf16.gmra.mrb[0].mxu0 %v5421
      %v5798 = vpop.f32.mrb[0].mxu0
      %v5799 = vadd.f32 %v5538, %v5798
      %v5800 = vpop.f32.mrb[0].mxu0
      %v5801 = vpop.f32.mrb[0].mxu0
      %v5802 = vadd.f32 %v5538, %v5801
      %v5803 = vpop.f32.mrb[0].mxu0
      %5804 = vmatprep.mubr.bf16.mxu0 %v5426
      %5805 = vmatmul.mubr.bf16.gmra.mrb[0].mxu0 %v5425
      %v5806 = vpop.f32.mrb[0].mxu0
      %v5807 = vadd.f32 %v5538, %v5806
      %v5808 = vpop.f32.mrb[0].mxu0
      %v5809 = vpop.f32.mrb[0].mxu0
      %v5810 = vadd.f32 %v5538, %v5809
      %v5811 = vpop.f32.mrb[0].mxu0
      %5812 = vmatprep.mubr.bf16.mxu0 %v5430
      %5813 = vmatmul.mubr.bf16.gmra.mrb[0].mxu0 %v5429
      %v5814 = vpop.f32.mrb[0].mxu0
      %v5815 = vadd.f32 %v5538, %v5814
      %v5816 = vpop.f32.mrb[0].mxu0
      %v5817 = vpop.f32.mrb[0].mxu0
      %v5818 = vadd.f32 %v5538, %v5817
      %v5819 = vpop.f32.mrb[0].mxu0
      %5820 = vmatprep.mubr.bf16.mxu0 %v5434
      %5821 = vmatmul.mubr.bf16.gmra.mrb[0].mxu0 %v5433
      %v5822 = vpop.f32.mrb[0].mxu0
      %v5823 = vadd.f32 %v5538, %v5822
      %v5824 = vpop.f32.mrb[0].mxu0
      %v5825 = vpop.f32.mrb[0].mxu0
      %v5826 = vadd.f32 %v5538, %v5825
      %v5827 = vpop.f32.mrb[0].mxu0
      %5828 = vmatprep.mubr.bf16.mxu0 %v5438
      %5829 = vmatmul.mubr.bf16.gmra.mrb[0].mxu0 %v5437
      %v5830 = vpop.f32.mrb[0].mxu0
      %v5831 = vadd.f32 %v5538, %v5830
      %v5832 = vpop.f32.mrb[0].mxu0
      %v5833 = vpop.f32.mrb[0].mxu0
      %v5834 = vadd.f32 %v5538, %v5833
      %v5835 = vpop.f32.mrb[0].mxu0
      %5836 = vmatprep.mubr.bf16.mxu0 %v5442
      %5837 = vmatmul.mubr.bf16.gmra.mrb[0].mxu0 %v5441
      %v5838 = vpop.f32.mrb[0].mxu0
      %v5839 = vadd.f32 %v5538, %v5838
      %v5840 = vpop.f32.mrb[0].mxu0
      %v5841 = vpop.f32.mrb[0].mxu0
      %v5842 = vadd.f32 %v5538, %v5841
      %v5843 = vpop.f32.mrb[0].mxu0
      %5844 = vmatprep.mubr.bf16.mxu0 %v5446
      %5845 = vmatmul.mubr.bf16.gmra.mrb[0].mxu0 %v5445
      %v5846 = vpop.f32.mrb[0].mxu0
      %v5847 = vadd.f32 %v5538, %v5846
      %v5848 = vpop.f32.mrb[0].mxu0
      %v5849 = vpop.f32.mrb[0].mxu0
      %v5850 = vadd.f32 %v5538, %v5849
      %v5851 = vpop.f32.mrb[0].mxu0
      %5852 = vmatprep.mubr.bf16.mxu0 %v5450
      %5853 = vmatmul.mubr.bf16.gmra.mrb[0].mxu0 %v5449
      %v5854 = vpop.f32.mrb[0].mxu0
      %v5855 = vadd.f32 %v5538, %v5854
      %v5856 = vpop.f32.mrb[0].mxu0
      %v5857 = vpop.f32.mrb[0].mxu0
      %v5858 = vadd.f32 %v5538, %v5857
      %v5859 = vpop.f32.mrb[0].mxu0
      %5860 = vmatprep.mubr.bf16.mxu0 %v5454
      %5861 = vmatmul.mubr.bf16.gmra.mrb[0].mxu0 %v5453
      %v5862 = vpop.f32.mrb[0].mxu0
      %v5863 = vadd.f32 %v5538, %v5862
      %v5864 = vpop.f32.mrb[0].mxu0
      %v5865 = vpop.f32.mrb[0].mxu0
      %v5866 = vadd.f32 %v5538, %v5865
      %v5867 = vpop.f32.mrb[0].mxu0
      %5868 = vmatprep.mubr.bf16.mxu0 %v5458
      %5869 = vmatmul.mubr.bf16.gmra.mrb[0].mxu0 %v5457
      %v5870 = vpop.f32.mrb[0].mxu0
      %v5871 = vadd.f32 %v5538, %v5870
      %v5872 = vpop.f32.mrb[0].mxu0
      %v5873 = vpop.f32.mrb[0].mxu0
      %v5874 = vadd.f32 %v5538, %v5873
      %v5875 = vpop.f32.mrb[0].mxu0
      %5876 = vmatprep.mubr.bf16.mxu0 %v5462
      %5877 = vmatmul.mubr.bf16.gmra.mrb[0].mxu0 %v5461
      %v5878 = vpop.f32.mrb[0].mxu0
      %v5879 = vadd.f32 %v5538, %v5878
      %v5880 = vpop.f32.mrb[0].mxu0
      %v5881 = vpop.f32.mrb[0].mxu0
      %v5882 = vadd.f32 %v5538, %v5881
      %v5883 = vpop.f32.mrb[0].mxu0
      %5884 = vmatprep.mubr.bf16.mxu0 %v5466
      %5885 = vmatmul.mubr.bf16.gmra.mrb[0].mxu0 %v5465
      %v5886 = vpop.f32.mrb[0].mxu0
      %v5887 = vadd.f32 %v5538, %v5886
      %v5888 = vpop.f32.mrb[0].mxu0
      %v5889 = vpop.f32.mrb[0].mxu0
      %v5890 = vadd.f32 %v5538, %v5889
      %v5891 = vpop.f32.mrb[0].mxu0
      %5892 = vdwg.mxu0
      %5893 = vmatprep.subr.bf16.mxu0 0
      %5894 = vmatpush1.bf16.msra.mxu0 %v5684
      %5895 = vmatprep.subr.bf16.mxu0 0
      %5896 = vmatpush1.bf16.msra.mxu0 %v5685
      %5897 = vmatprep.subr.bf16.mxu0 0
      %5898 = vmatpush1.bf16.msra.mxu0 %v5686
      %5899 = vmatprep.subr.bf16.mxu0 0
      %5900 = vmatpush1.bf16.msra.mxu0 %v5687
      %5901 = vmatprep.subr.bf16.mxu0 0
      %5902 = vmatpush1.bf16.msra.mxu0 %v5688
      %5903 = vmatprep.subr.bf16.mxu0 0
      %5904 = vmatpush1.bf16.msra.mxu0 %v5689
      %5905 = vmatprep.subr.bf16.mxu0 0
      %5906 = vmatpush1.bf16.msra.mxu0 %v5690
      %5907 = vmatprep.subr.bf16.mxu0 0
      %5908 = vmatpush1.bf16.msra.mxu0 %v5691
      %5909 = vmatprep.subr.bf16.mxu0 0
      %5910 = vmatpush1.bf16.msra.mxu0 %v5692
      %5911 = vmatprep.subr.bf16.mxu0 0
      %5912 = vmatpush1.bf16.msra.mxu0 %v5693
      %5913 = vmatprep.subr.bf16.mxu0 0
      %5914 = vmatpush1.bf16.msra.mxu0 %v5694
      %5915 = vmatprep.subr.bf16.mxu0 0
      %5916 = vmatpush1.bf16.msra.mxu0 %v5695
      %5917 = vmatprep.subr.bf16.mxu0 0
      %5918 = vmatpush1.bf16.msra.mxu0 %v5696
      %5919 = vmatprep.subr.bf16.mxu0 0
      %5920 = vmatpush1.bf16.msra.mxu0 %v5697
      %5921 = vmatprep.subr.bf16.mxu0 0
      %5922 = vmatpush1.bf16.msra.mxu0 %v5698
      %5923 = vmatprep.subr.bf16.mxu0 0
      %5924 = vmatpush1.bf16.msra.mxu0 %v5699
      %5925 = vmatprep.mubr.bf16.mxu0 %v5408
      %5926 = vmatmul.mubr.bf16.gmra.mrb[0].mxu0 %v5407
      %v5927 = vpop.f32.mrb[0].mxu0
      %v5928 = vadd.f32 %v5767, %v5927
      %v5929 = vpop.f32.mrb[0].mxu0
      %v5930 = vpop.f32.mrb[0].mxu0
      %v5931 = vadd.f32 %v5770, %v5930
      %v5932 = vpop.f32.mrb[0].mxu0
      %5933 = vmatprep.mubr.bf16.mxu0 %v5412
      %5934 = vmatmul.mubr.bf16.gmra.mrb[0].mxu0 %v5411
      %v5935 = vpop.f32.mrb[0].mxu0
      %v5936 = vadd.f32 %v5775, %v5935
      %v5937 = vpop.f32.mrb[0].mxu0
      %v5938 = vpop.f32.mrb[0].mxu0
      %v5939 = vadd.f32 %v5778, %v5938
      %v5940 = vpop.f32.mrb[0].mxu0
      %5941 = vmatprep.mubr.bf16.mxu0 %v5416
      %5942 = vmatmul.mubr.bf16.gmra.mrb[0].mxu0 %v5415
      %v5943 = vpop.f32.mrb[0].mxu0
      %v5944 = vadd.f32 %v5783, %v5943
      %v5945 = vpop.f32.mrb[0].mxu0
      %v5946 = vpop.f32.mrb[0].mxu0
      %v5947 = vadd.f32 %v5786, %v5946
      %v5948 = vpop.f32.mrb[0].mxu0
      %5949 = vmatprep.mubr.bf16.mxu0 %v5420
      %5950 = vmatmul.mubr.bf16.gmra.mrb[0].mxu0 %v5419
      %v5951 = vpop.f32.mrb[0].mxu0
      %v5952 = vadd.f32 %v5791, %v5951
      %v5953 = vpop.f32.mrb[0].mxu0
      %v5954 = vpop.f32.mrb[0].mxu0
      %v5955 = vadd.f32 %v5794, %v5954
      %v5956 = vpop.f32.mrb[0].mxu0
      %5957 = vmatprep.mubr.bf16.mxu0 %v5424
      %5958 = vmatmul.mubr.bf16.gmra.mrb[0].mxu0 %v5423
      %v5959 = vpop.f32.mrb[0].mxu0
      %v5960 = vadd.f32 %v5799, %v5959
      %v5961 = vpop.f32.mrb[0].mxu0
      %v5962 = vpop.f32.mrb[0].mxu0
      %v5963 = vadd.f32 %v5802, %v5962
      %v5964 = vpop.f32.mrb[0].mxu0
      %5965 = vmatprep.mubr.bf16.mxu0 %v5428
      %5966 = vmatmul.mubr.bf16.gmra.mrb[0].mxu0 %v5427
      %v5967 = vpop.f32.mrb[0].mxu0
      %v5968 = vadd.f32 %v5807, %v5967
      %v5969 = vpop.f32.mrb[0].mxu0
      %v5970 = vpop.f32.mrb[0].mxu0
      %v5971 = vadd.f32 %v5810, %v5970
      %v5972 = vpop.f32.mrb[0].mxu0
      %5973 = vmatprep.mubr.bf16.mxu0 %v5432
      %5974 = vmatmul.mubr.bf16.gmra.mrb[0].mxu0 %v5431
      %v5975 = vpop.f32.mrb[0].mxu0
      %v5976 = vadd.f32 %v5815, %v5975
      %v5977 = vpop.f32.mrb[0].mxu0
      %v5978 = vpop.f32.mrb[0].mxu0
      %v5979 = vadd.f32 %v5818, %v5978
      %v5980 = vpop.f32.mrb[0].mxu0
      %5981 = vmatprep.mubr.bf16.mxu0 %v5436
      %5982 = vmatmul.mubr.bf16.gmra.mrb[0].mxu0 %v5435
      %v5983 = vpop.f32.mrb[0].mxu0
      %v5984 = vadd.f32 %v5823, %v5983
      %v5985 = vpop.f32.mrb[0].mxu0
      %v5986 = vpop.f32.mrb[0].mxu0
      %v5987 = vadd.f32 %v5826, %v5986
      %v5988 = vpop.f32.mrb[0].mxu0
      %5989 = vmatprep.mubr.bf16.mxu0 %v5440
      %5990 = vmatmul.mubr.bf16.gmra.mrb[0].mxu0 %v5439
      %v5991 = vpop.f32.mrb[0].mxu0
      %v5992 = vadd.f32 %v5831, %v5991
      %v5993 = vpop.f32.mrb[0].mxu0
      %v5994 = vpop.f32.mrb[0].mxu0
      %v5995 = vadd.f32 %v5834, %v5994
      %v5996 = vpop.f32.mrb[0].mxu0
      %5997 = vmatprep.mubr.bf16.mxu0 %v5444
      %5998 = vmatmul.mubr.bf16.gmra.mrb[0].mxu0 %v5443
      %v5999 = vpop.f32.mrb[0].mxu0
      %v6000 = vadd.f32 %v5839, %v5999
      %v6001 = vpop.f32.mrb[0].mxu0
      %v6002 = vpop.f32.mrb[0].mxu0
      %v6003 = vadd.f32 %v5842, %v6002
      %v6004 = vpop.f32.mrb[0].mxu0
      %6005 = vmatprep.mubr.bf16.mxu0 %v5448
      %6006 = vmatmul.mubr.bf16.gmra.mrb[0].mxu0 %v5447
      %v6007 = vpop.f32.mrb[0].mxu0
      %v6008 = vadd.f32 %v5847, %v6007
      %v6009 = vpop.f32.mrb[0].mxu0
      %v6010 = vpop.f32.mrb[0].mxu0
      %v6011 = vadd.f32 %v5850, %v6010
      %v6012 = vpop.f32.mrb[0].mxu0
      %6013 = vmatprep.mubr.bf16.mxu0 %v5452
      %6014 = vmatmul.mubr.bf16.gmra.mrb[0].mxu0 %v5451
      %v6015 = vpop.f32.mrb[0].mxu0
      %v6016 = vadd.f32 %v5855, %v6015
      %v6017 = vpop.f32.mrb[0].mxu0
      %v6018 = vpop.f32.mrb[0].mxu0
      %v6019 = vadd.f32 %v5858, %v6018
      %v6020 = vpop.f32.mrb[0].mxu0
      %6021 = vmatprep.mubr.bf16.mxu0 %v5456
      %6022 = vmatmul.mubr.bf16.gmra.mrb[0].mxu0 %v5455
      %v6023 = vpop.f32.mrb[0].mxu0
      %v6024 = vadd.f32 %v5863, %v6023
      %v6025 = vpop.f32.mrb[0].mxu0
      %v6026 = vpop.f32.mrb[0].mxu0
      %v6027 = vadd.f32 %v5866, %v6026
      %v6028 = vpop.f32.mrb[0].mxu0
      %6029 = vmatprep.mubr.bf16.mxu0 %v5460
      %6030 = vmatmul.mubr.bf16.gmra.mrb[0].mxu0 %v5459
      %v6031 = vpop.f32.mrb[0].mxu0
      %v6032 = vadd.f32 %v5871, %v6031
      %v6033 = vpop.f32.mrb[0].mxu0
      %v6034 = vpop.f32.mrb[0].mxu0
      %v6035 = vadd.f32 %v5874, %v6034
      %v6036 = vpop.f32.mrb[0].mxu0
      %6037 = vmatprep.mubr.bf16.mxu0 %v5464
      %6038 = vmatmul.mubr.bf16.gmra.mrb[0].mxu0 %v5463
      %v6039 = vpop.f32.mrb[0].mxu0
      %v6040 = vadd.f32 %v5879, %v6039
      %v6041 = vpop.f32.mrb[0].mxu0
      %v6042 = vpop.f32.mrb[0].mxu0
      %v6043 = vadd.f32 %v5882, %v6042
      %v6044 = vpop.f32.mrb[0].mxu0
      %6045 = vmatprep.mubr.bf16.mxu0 %v5468
      %6046 = vmatmul.mubr.bf16.gmra.mrb[0].mxu0 %v5467
      %v6047 = vpop.f32.mrb[0].mxu0
      %v6048 = vadd.f32 %v5887, %v6047
      %v6049 = vpop.f32.mrb[0].mxu0
      %v6050 = vpop.f32.mrb[0].mxu0
      %v6051 = vadd.f32 %v5890, %v6050
      %v6052 = vpop.f32.mrb[0].mxu0
      %6053 = vdwg.mxu0
      %6054 = vst [vmem:[%s451] sm:$0xff] %v5928
      %6055 = vst [vmem:[%s451 + $0x8] sm:$0xff] %v5931
      %6056 = vst [vmem:[%s451 + $0x10] sm:$0xff] %v5936
      %6057 = vst [vmem:[%s451 + $0x18] sm:$0xff] %v5939
      %6058 = vst [vmem:[%s451 + $0x20] sm:$0xff] %v5944
      %6059 = vst [vmem:[%s451 + $0x28] sm:$0xff] %v5947
      %6060 = vst [vmem:[%s451 + $0x30] sm:$0xff] %v5952
      %6061 = vst [vmem:[%s451 + $0x38] sm:$0xff] %v5955
      %6062 = vst [vmem:[%s451 + $0x40] sm:$0xff] %v5960
      %6063 = vst [vmem:[%s451 + $0x48] sm:$0xff] %v5963
      %6064 = vst [vmem:[%s451 + $0x50] sm:$0xff] %v5968
      %6065 = vst [vmem:[%s451 + $0x58] sm:$0xff] %v5971
      %6066 = vst [vmem:[%s451 + $0x60] sm:$0xff] %v5976
      %6067 = vst [vmem:[%s451 + $0x68] sm:$0xff] %v5979
      %6068 = vst [vmem:[%s451 + $0x70] sm:$0xff] %v5984
      %6069 = vst [vmem:[%s451 + $0x78] sm:$0xff] %v5987
      %6070 = vst [vmem:[%s451 + $0x80] sm:$0xff] %v5992
      %6071 = vst [vmem:[%s451 + $0x88] sm:$0xff] %v5995
      %6072 = vst [vmem:[%s451 + $0x90] sm:$0xff] %v6000
      %6073 = vst [vmem:[%s451 + $0x98] sm:$0xff] %v6003
      %6074 = vst [vmem:[%s451 + $0xa0] sm:$0xff] %v6008
      %6075 = vst [vmem:[%s451 + $0xa8] sm:$0xff] %v6011
      %6076 = vst [vmem:[%s451 + $0xb0] sm:$0xff] %v6016
      %6077 = vst [vmem:[%s451 + $0xb8] sm:$0xff] %v6019
      %6078 = vst [vmem:[%s451 + $0xc0] sm:$0xff] %v6024
      %6079 = vst [vmem:[%s451 + $0xc8] sm:$0xff] %v6027
      %6080 = vst [vmem:[%s451 + $0xd0] sm:$0xff] %v6032
      %6081 = vst [vmem:[%s451 + $0xd8] sm:$0xff] %v6035
      %6082 = vst [vmem:[%s451 + $0xe0] sm:$0xff] %v6040
      %6083 = vst [vmem:[%s451 + $0xe8] sm:$0xff] %v6043
      %6084 = vst [vmem:[%s451 + $0xf0] sm:$0xff] %v6048
      %6085 = vst [vmem:[%s451 + $0xf8] sm:$0xff] %v6051
      %6086 = vrot.lane.b32.xlu0 %v5928, 64
      %v6087 = vpop.permute.xlu0 %6086
      %6088 = vrot.lane.b32.xlu0 %v5931, 64
      %v6089 = vpop.permute.xlu0 %6088
      %6090 = vrot.lane.b32.xlu0 %v5936, 64
      %v6091 = vpop.permute.xlu0 %6090
      %6092 = vrot.lane.b32.xlu0 %v5939, 64
      %v6093 = vpop.permute.xlu0 %6092
      %6094 = vrot.lane.b32.xlu0 %v5944, 64
      %v6095 = vpop.permute.xlu0 %6094
      %6096 = vrot.lane.b32.xlu0 %v5947, 64
      %v6097 = vpop.permute.xlu0 %6096
      %6098 = vrot.lane.b32.xlu0 %v5952, 64
      %v6099 = vpop.permute.xlu0 %6098
      %6100 = vrot.lane.b32.xlu0 %v5955, 64
      %v6101 = vpop.permute.xlu0 %6100
      %6102 = vrot.lane.b32.xlu0 %v5960, 64
      %v6103 = vpop.permute.xlu0 %6102
      %6104 = vrot.lane.b32.xlu0 %v5963, 64
      %v6105 = vpop.permute.xlu0 %6104
      %6106 = vrot.lane.b32.xlu0 %v5968, 64
      %v6107 = vpop.permute.xlu0 %6106
      %6108 = vrot.lane.b32.xlu0 %v5971, 64
      %v6109 = vpop.permute.xlu0 %6108
      %6110 = vrot.lane.b32.xlu0 %v5976, 64
      %v6111 = vpop.permute.xlu0 %6110
      %6112 = vrot.lane.b32.xlu0 %v5979, 64
      %v6113 = vpop.permute.xlu0 %6112
      %6114 = vrot.lane.b32.xlu0 %v5984, 64
      %v6115 = vpop.permute.xlu0 %6114
      %6116 = vrot.lane.b32.xlu0 %v5987, 64
      %v6117 = vpop.permute.xlu0 %6116
      %6118 = vrot.lane.b32.xlu0 %v5992, 64
      %v6119 = vpop.permute.xlu0 %6118
      %6120 = vrot.lane.b32.xlu0 %v5995, 64
      %v6121 = vpop.permute.xlu0 %6120
      %6122 = vrot.lane.b32.xlu0 %v6000, 64
      %v6123 = vpop.permute.xlu0 %6122
      %6124 = vrot.lane.b32.xlu0 %v6003, 64
      %v6125 = vpop.permute.xlu0 %6124
      %6126 = vrot.lane.b32.xlu0 %v6008, 64
      %v6127 = vpop.permute.xlu0 %6126
      %6128 = vrot.lane.b32.xlu0 %v6011, 64
      %v6129 = vpop.permute.xlu0 %6128
      %6130 = vrot.lane.b32.xlu0 %v6016, 64
      %v6131 = vpop.permute.xlu0 %6130
      %6132 = vrot.lane.b32.xlu0 %v6019, 64
      %v6133 = vpop.permute.xlu0 %6132
      %6134 = vrot.lane.b32.xlu0 %v6024, 64
      %v6135 = vpop.permute.xlu0 %6134
      %6136 = vrot.lane.b32.xlu0 %v6027, 64
      %v6137 = vpop.permute.xlu0 %6136
      %6138 = vrot.lane.b32.xlu0 %v6032, 64
      %v6139 = vpop.permute.xlu0 %6138
      %6140 = vrot.lane.b32.xlu0 %v6035, 64
      %v6141 = vpop.permute.xlu0 %6140
      %6142 = vrot.lane.b32.xlu0 %v6040, 64
      %v6143 = vpop.permute.xlu0 %6142
      %6144 = vrot.lane.b32.xlu0 %v6043, 64
      %v6145 = vpop.permute.xlu0 %6144
      %6146 = vrot.lane.b32.xlu0 %v6048, 64
      %v6147 = vpop.permute.xlu0 %6146
      %6148 = vrot.lane.b32.xlu0 %v6051, 64
      %v6149 = vpop.permute.xlu0 %6148
      %vm6150 = vcmp.lt.s32.totalorder %v455, 20
      %v6151 = vsel %vm6150, %v6087, 0.0
      %v6152 = vsel %vm6150, %v6089, 0.0
      %v6153 = vsel %vm6150, %v6091, 0.0
      %v6154 = vsel %vm6150, %v6093, 0.0
      %v6155 = vsel %vm6150, %v6095, 0.0
      %v6156 = vsel %vm6150, %v6097, 0.0
      %v6157 = vsel %vm6150, %v6099, 0.0
      %v6158 = vsel %vm6150, %v6101, 0.0
      %v6159 = vsel %vm6150, %v6103, 0.0
      %v6160 = vsel %vm6150, %v6105, 0.0
      %v6161 = vsel %vm6150, %v6107, 0.0
      %v6162 = vsel %vm6150, %v6109, 0.0
      %v6163 = vsel %vm6150, %v6111, 0.0
      %v6164 = vsel %vm6150, %v6113, 0.0
      %v6165 = vsel %vm6150, %v6115, 0.0
      %v6166 = vsel %vm6150, %v6117, 0.0
      %v6167 = vsel %vm6150, %v6119, 0.0
      %v6168 = vsel %vm6150, %v6121, 0.0
      %v6169 = vsel %vm6150, %v6123, 0.0
      %v6170 = vsel %vm6150, %v6125, 0.0
      %v6171 = vsel %vm6150, %v6127, 0.0
      %v6172 = vsel %vm6150, %v6129, 0.0
      %v6173 = vsel %vm6150, %v6131, 0.0
      %v6174 = vsel %vm6150, %v6133, 0.0
      %v6175 = vsel %vm6150, %v6135, 0.0
      %v6176 = vsel %vm6150, %v6137, 0.0
      %v6177 = vsel %vm6150, %v6139, 0.0
      %v6178 = vsel %vm6150, %v6141, 0.0
      %v6179 = vsel %vm6150, %v6143, 0.0
      %v6180 = vsel %vm6150, %v6145, 0.0
      %v6181 = vsel %vm6150, %v6147, 0.0
      %v6182 = vsel %vm6150, %v6149, 0.0
      %v6183 = vld [vmem:[%s438] sm:$0xff]
      %v6184 = vld [vmem:[%s438 + $0x8] sm:$0xff]
      %v6185 = vld [vmem:[%s438 + $0x10] sm:$0xff]
      %v6186 = vld [vmem:[%s438 + $0x18] sm:$0xff]
      %v6187 = vld [vmem:[%s438 + $0x20] sm:$0xff]
      %v6188 = vld [vmem:[%s438 + $0x28] sm:$0xff]
      %v6189 = vld [vmem:[%s438 + $0x30] sm:$0xff]
      %v6190 = vld [vmem:[%s438 + $0x38] sm:$0xff]
      %v6191 = vld [vmem:[%s438 + $0x40] sm:$0xff]
      %v6192 = vld [vmem:[%s438 + $0x48] sm:$0xff]
      %v6193 = vld [vmem:[%s438 + $0x50] sm:$0xff]
      %v6194 = vld [vmem:[%s438 + $0x58] sm:$0xff]
      %v6195 = vld [vmem:[%s438 + $0x60] sm:$0xff]
      %v6196 = vld [vmem:[%s438 + $0x68] sm:$0xff]
      %v6197 = vld [vmem:[%s438 + $0x70] sm:$0xff]
      %v6198 = vld [vmem:[%s438 + $0x78] sm:$0xff]
      %v6199 = vld [vmem:[%s438 + $0x80] sm:$0xff]
      %v6200 = vld [vmem:[%s438 + $0x88] sm:$0xff]
      %v6201 = vld [vmem:[%s438 + $0x90] sm:$0xff]
      %v6202 = vld [vmem:[%s438 + $0x98] sm:$0xff]
      %v6203 = vld [vmem:[%s438 + $0xa0] sm:$0xff]
      %v6204 = vld [vmem:[%s438 + $0xa8] sm:$0xff]
      %v6205 = vld [vmem:[%s438 + $0xb0] sm:$0xff]
      %v6206 = vld [vmem:[%s438 + $0xb8] sm:$0xff]
      %v6207 = vld [vmem:[%s438 + $0xc0] sm:$0xff]
      %v6208 = vld [vmem:[%s438 + $0xc8] sm:$0xff]
      %v6209 = vld [vmem:[%s438 + $0xd0] sm:$0xff]
      %v6210 = vld [vmem:[%s438 + $0xd8] sm:$0xff]
      %v6211 = vld [vmem:[%s438 + $0xe0] sm:$0xff]
      %v6212 = vld [vmem:[%s438 + $0xe8] sm:$0xff]
      %v6213 = vld [vmem:[%s438 + $0xf0] sm:$0xff]
      %v6214 = vld [vmem:[%s438 + $0xf8] sm:$0xff]
      %v6215 = vmul.f32 %v6151, 0.5
      %v6216 = vmul.f32 %v6152, 0.5
      %v6217 = vmul.f32 %v6153, 0.5
      %v6218 = vmul.f32 %v6154, 0.5
      %v6219 = vmul.f32 %v6155, 0.5
      %v6220 = vmul.f32 %v6156, 0.5
      %v6221 = vmul.f32 %v6157, 0.5
      %v6222 = vmul.f32 %v6158, 0.5
      %v6223 = vmul.f32 %v6159, 0.5
      %v6224 = vmul.f32 %v6160, 0.5
      %v6225 = vmul.f32 %v6161, 0.5
      %v6226 = vmul.f32 %v6162, 0.5
      %v6227 = vmul.f32 %v6163, 0.5
      %v6228 = vmul.f32 %v6164, 0.5
      %v6229 = vmul.f32 %v6165, 0.5
      %v6230 = vmul.f32 %v6166, 0.5
      %v6231 = vmul.f32 %v6167, 0.5
      %v6232 = vmul.f32 %v6168, 0.5
      %v6233 = vmul.f32 %v6169, 0.5
      %v6234 = vmul.f32 %v6170, 0.5
      %v6235 = vmul.f32 %v6171, 0.5
      %v6236 = vmul.f32 %v6172, 0.5
      %v6237 = vmul.f32 %v6173, 0.5
      %v6238 = vmul.f32 %v6174, 0.5
      %v6239 = vmul.f32 %v6175, 0.5
      %v6240 = vmul.f32 %v6176, 0.5
      %v6241 = vmul.f32 %v6177, 0.5
      %v6242 = vmul.f32 %v6178, 0.5
      %v6243 = vmul.f32 %v6179, 0.5
      %v6244 = vmul.f32 %v6180, 0.5
      %v6245 = vmul.f32 %v6181, 0.5
      %v6246 = vmul.f32 %v6182, 0.5
      %v6247 = vmul.f32 %v6215, 1.442695
      %v6248 = vpow.pop %v6247
      %v6249 = vmul.f32 %v6216, 1.442695
      %v6250 = vpow.pop %v6249
      %v6251 = vmul.f32 %v6217, 1.442695
      %v6252 = vpow.pop %v6251
      %v6253 = vmul.f32 %v6218, 1.442695
      %v6254 = vpow.pop %v6253
      %v6255 = vmul.f32 %v6219, 1.442695
      %v6256 = vpow.pop %v6255
      %v6257 = vmul.f32 %v6220, 1.442695
      %v6258 = vpow.pop %v6257
      %v6259 = vmul.f32 %v6221, 1.442695
      %v6260 = vpow.pop %v6259
      %v6261 = vmul.f32 %v6222, 1.442695
      %v6262 = vpow.pop %v6261
      %v6263 = vmul.f32 %v6223, 1.442695
      %v6264 = vpow.pop %v6263
      %v6265 = vmul.f32 %v6224, 1.442695
      %v6266 = vpow.pop %v6265
      %v6267 = vmul.f32 %v6225, 1.442695
      %v6268 = vpow.pop %v6267
      %v6269 = vmul.f32 %v6226, 1.442695
      %v6270 = vpow.pop %v6269
      %v6271 = vmul.f32 %v6227, 1.442695
      %v6272 = vpow.pop %v6271
      %v6273 = vmul.f32 %v6228, 1.442695
      %v6274 = vpow.pop %v6273
      %v6275 = vmul.f32 %v6229, 1.442695
      %v6276 = vpow.pop %v6275
      %v6277 = vmul.f32 %v6230, 1.442695
      %v6278 = vpow.pop %v6277
      %v6279 = vmul.f32 %v6231, 1.442695
      %v6280 = vpow.pop %v6279
      %v6281 = vmul.f32 %v6232, 1.442695
      %v6282 = vpow.pop %v6281
      %v6283 = vmul.f32 %v6233, 1.442695
      %v6284 = vpow.pop %v6283
      %v6285 = vmul.f32 %v6234, 1.442695
      %v6286 = vpow.pop %v6285
      %v6287 = vmul.f32 %v6235, 1.442695
      %v6288 = vpow.pop %v6287
      %v6289 = vmul.f32 %v6236, 1.442695
      %v6290 = vpow.pop %v6289
      %v6291 = vmul.f32 %v6237, 1.442695
      %v6292 = vpow.pop %v6291
      %v6293 = vmul.f32 %v6238, 1.442695
      %v6294 = vpow.pop %v6293
      %v6295 = vmul.f32 %v6239, 1.442695
      %v6296 = vpow.pop %v6295
      %v6297 = vmul.f32 %v6240, 1.442695
      %v6298 = vpow.pop %v6297
      %v6299 = vmul.f32 %v6241, 1.442695
      %v6300 = vpow.pop %v6299
      %v6301 = vmul.f32 %v6242, 1.442695
      %v6302 = vpow.pop %v6301
      %v6303 = vmul.f32 %v6243, 1.442695
      %v6304 = vpow.pop %v6303
      %v6305 = vmul.f32 %v6244, 1.442695
      %v6306 = vpow.pop %v6305
      %v6307 = vmul.f32 %v6245, 1.442695
      %v6308 = vpow.pop %v6307
      %v6309 = vmul.f32 %v6246, 1.442695
      %v6310 = vpow.pop %v6309
      %v6311 = vmul.f32 %v6183, %v6248
      %v6312 = vmul.f32 %v6184, %v6250
      %v6313 = vmul.f32 %v6185, %v6252
      %v6314 = vmul.f32 %v6186, %v6254
      %v6315 = vmul.f32 %v6187, %v6256
      %v6316 = vmul.f32 %v6188, %v6258
      %v6317 = vmul.f32 %v6189, %v6260
      %v6318 = vmul.f32 %v6190, %v6262
      %v6319 = vmul.f32 %v6191, %v6264
      %v6320 = vmul.f32 %v6192, %v6266
      %v6321 = vmul.f32 %v6193, %v6268
      %v6322 = vmul.f32 %v6194, %v6270
      %v6323 = vmul.f32 %v6195, %v6272
      %v6324 = vmul.f32 %v6196, %v6274
      %v6325 = vmul.f32 %v6197, %v6276
      %v6326 = vmul.f32 %v6198, %v6278
      %v6327 = vmul.f32 %v6199, %v6280
      %v6328 = vmul.f32 %v6200, %v6282
      %v6329 = vmul.f32 %v6201, %v6284
      %v6330 = vmul.f32 %v6202, %v6286
      %v6331 = vmul.f32 %v6203, %v6288
      %v6332 = vmul.f32 %v6204, %v6290
      %v6333 = vmul.f32 %v6205, %v6292
      %v6334 = vmul.f32 %v6206, %v6294
      %v6335 = vmul.f32 %v6207, %v6296
      %v6336 = vmul.f32 %v6208, %v6298
      %v6337 = vmul.f32 %v6209, %v6300
      %v6338 = vmul.f32 %v6210, %v6302
      %v6339 = vmul.f32 %v6211, %v6304
      %v6340 = vmul.f32 %v6212, %v6306
      %v6341 = vmul.f32 %v6213, %v6308
      %v6342 = vmul.f32 %v6214, %v6310
      %v6343 = vadd.f32 %v5928, %v6311
      %v6344 = vadd.f32 %v5931, %v6312
      %v6345 = vadd.f32 %v5936, %v6313
      %v6346 = vadd.f32 %v5939, %v6314
      %v6347 = vadd.f32 %v5944, %v6315
      %v6348 = vadd.f32 %v5947, %v6316
      %v6349 = vadd.f32 %v5952, %v6317
      %v6350 = vadd.f32 %v5955, %v6318
      %v6351 = vadd.f32 %v5960, %v6319
      %v6352 = vadd.f32 %v5963, %v6320
      %v6353 = vadd.f32 %v5968, %v6321
      %v6354 = vadd.f32 %v5971, %v6322
      %v6355 = vadd.f32 %v5976, %v6323
      %v6356 = vadd.f32 %v5979, %v6324
      %v6357 = vadd.f32 %v5984, %v6325
      %v6358 = vadd.f32 %v5987, %v6326
      %v6359 = vadd.f32 %v5992, %v6327
      %v6360 = vadd.f32 %v5995, %v6328
      %v6361 = vadd.f32 %v6000, %v6329
      %v6362 = vadd.f32 %v6003, %v6330
      %v6363 = vadd.f32 %v6008, %v6331
      %v6364 = vadd.f32 %v6011, %v6332
      %v6365 = vadd.f32 %v6016, %v6333
      %v6366 = vadd.f32 %v6019, %v6334
      %v6367 = vadd.f32 %v6024, %v6335
      %v6368 = vadd.f32 %v6027, %v6336
      %v6369 = vadd.f32 %v6032, %v6337
      %v6370 = vadd.f32 %v6035, %v6338
      %v6371 = vadd.f32 %v6040, %v6339
      %v6372 = vadd.f32 %v6043, %v6340
      %v6373 = vadd.f32 %v6048, %v6341
      %v6374 = vadd.f32 %v6051, %v6342
      %v6375 = vpack.c.bf16 %v6344, %v6343
      %v6376 = vpack.c.bf16 %v6346, %v6345
      %v6377 = vpack.c.bf16 %v6348, %v6347
      %v6378 = vpack.c.bf16 %v6350, %v6349
      %v6379 = vpack.c.bf16 %v6352, %v6351
      %v6380 = vpack.c.bf16 %v6354, %v6353
      %v6381 = vpack.c.bf16 %v6356, %v6355
      %v6382 = vpack.c.bf16 %v6358, %v6357
      %v6383 = vpack.c.bf16 %v6360, %v6359
      %v6384 = vpack.c.bf16 %v6362, %v6361
      %v6385 = vpack.c.bf16 %v6364, %v6363
      %v6386 = vpack.c.bf16 %v6366, %v6365
      %v6387 = vpack.c.bf16 %v6368, %v6367
      %v6388 = vpack.c.bf16 %v6370, %v6369
      %v6389 = vpack.c.bf16 %v6372, %v6371
      %v6390 = vpack.c.bf16 %v6374, %v6373
      %v6391 = vld [vmem:[%s7] sm:$0xff]
      %v6392 = vld [vmem:[%s7 + $0x8] sm:$0xff]
      %v6393 = vld [vmem:[%s7 + $0x10] sm:$0xff]
      %v6394 = vld [vmem:[%s7 + $0x18] sm:$0xff]
      %v6395 = vld [vmem:[%s7 + $0x20] sm:$0xff]
      %v6396 = vld [vmem:[%s7 + $0x28] sm:$0xff]
      %v6397 = vld [vmem:[%s7 + $0x30] sm:$0xff]
      %v6398 = vld [vmem:[%s7 + $0x38] sm:$0xff]
      %v6399 = vld [vmem:[%s7 + $0x40] sm:$0xff]
      %v6400 = vld [vmem:[%s7 + $0x48] sm:$0xff]
      %v6401 = vld [vmem:[%s7 + $0x50] sm:$0xff]
      %v6402 = vld [vmem:[%s7 + $0x58] sm:$0xff]
      %v6403 = vld [vmem:[%s7 + $0x60] sm:$0xff]
      %v6404 = vld [vmem:[%s7 + $0x68] sm:$0xff]
      %v6405 = vld [vmem:[%s7 + $0x70] sm:$0xff]
      %v6406 = vld [vmem:[%s7 + $0x78] sm:$0xff]
      %v6407 = vld [vmem:[%s7 + $0x80] sm:$0xff]
      %v6408 = vld [vmem:[%s7 + $0x88] sm:$0xff]
      %v6409 = vld [vmem:[%s7 + $0x90] sm:$0xff]
      %v6410 = vld [vmem:[%s7 + $0x98] sm:$0xff]
      %v6411 = vld [vmem:[%s7 + $0xa0] sm:$0xff]
      %v6412 = vld [vmem:[%s7 + $0xa8] sm:$0xff]
      %v6413 = vld [vmem:[%s7 + $0xb0] sm:$0xff]
      %v6414 = vld [vmem:[%s7 + $0xb8] sm:$0xff]
      %v6415 = vld [vmem:[%s7 + $0xc0] sm:$0xff]
      %v6416 = vld [vmem:[%s7 + $0xc8] sm:$0xff]
      %v6417 = vld [vmem:[%s7 + $0xd0] sm:$0xff]
      %v6418 = vld [vmem:[%s7 + $0xd8] sm:$0xff]
      %v6419 = vld [vmem:[%s7 + $0xe0] sm:$0xff]
      %v6420 = vld [vmem:[%s7 + $0xe8] sm:$0xff]
      %v6421 = vld [vmem:[%s7 + $0xf0] sm:$0xff]
      %v6422 = vld [vmem:[%s7 + $0xf8] sm:$0xff]
      %v6455 = vunpack.c.l.b16 %v6391
      %v6456 = vunpack.c.h.b16 %v6391
      %v6457 = vunpack.c.l.b16 %v6392
      %v6458 = vunpack.c.h.b16 %v6392
      %v6459 = vunpack.c.l.b16 %v6393
      %v6460 = vunpack.c.h.b16 %v6393
      %v6461 = vunpack.c.l.b16 %v6394
      %v6462 = vunpack.c.h.b16 %v6394
      %v6463 = vunpack.c.l.b16 %v6395
      %v6464 = vunpack.c.h.b16 %v6395
      %v6465 = vunpack.c.l.b16 %v6396
      %v6466 = vunpack.c.h.b16 %v6396
      %v6467 = vunpack.c.l.b16 %v6397
      %v6468 = vunpack.c.h.b16 %v6397
      %v6469 = vunpack.c.l.b16 %v6398
      %v6470 = vunpack.c.h.b16 %v6398
      %v6471 = vunpack.c.l.b16 %v6399
      %v6472 = vunpack.c.h.b16 %v6399
      %v6473 = vunpack.c.l.b16 %v6400
      %v6474 = vunpack.c.h.b16 %v6400
      %v6475 = vunpack.c.l.b16 %v6401
      %v6476 = vunpack.c.h.b16 %v6401
      %v6477 = vunpack.c.l.b16 %v6402
      %v6478 = vunpack.c.h.b16 %v6402
      %v6479 = vunpack.c.l.b16 %v6403
      %v6480 = vunpack.c.h.b16 %v6403
      %v6481 = vunpack.c.l.b16 %v6404
      %v6482 = vunpack.c.h.b16 %v6404
      %v6483 = vunpack.c.l.b16 %v6405
      %v6484 = vunpack.c.h.b16 %v6405
      %v6485 = vunpack.c.l.b16 %v6406
      %v6486 = vunpack.c.h.b16 %v6406
      %v6487 = vunpack.c.l.b16 %v6407
      %v6488 = vunpack.c.h.b16 %v6407
      %v6489 = vunpack.c.l.b16 %v6408
      %v6490 = vunpack.c.h.b16 %v6408
      %v6491 = vunpack.c.l.b16 %v6409
      %v6492 = vunpack.c.h.b16 %v6409
      %v6493 = vunpack.c.l.b16 %v6410
      %v6494 = vunpack.c.h.b16 %v6410
      %v6495 = vunpack.c.l.b16 %v6411
      %v6496 = vunpack.c.h.b16 %v6411
      %v6497 = vunpack.c.l.b16 %v6412
      %v6498 = vunpack.c.h.b16 %v6412
      %v6499 = vunpack.c.l.b16 %v6413
      %v6500 = vunpack.c.h.b16 %v6413
      %v6501 = vunpack.c.l.b16 %v6414
      %v6502 = vunpack.c.h.b16 %v6414
      %v6503 = vunpack.c.l.b16 %v6415
      %v6504 = vunpack.c.h.b16 %v6415
      %v6505 = vunpack.c.l.b16 %v6416
      %v6506 = vunpack.c.h.b16 %v6416
      %v6507 = vunpack.c.l.b16 %v6417
      %v6508 = vunpack.c.h.b16 %v6417
      %v6509 = vunpack.c.l.b16 %v6418
      %v6510 = vunpack.c.h.b16 %v6418
      %v6511 = vunpack.c.l.b16 %v6419
      %v6512 = vunpack.c.h.b16 %v6419
      %v6513 = vunpack.c.l.b16 %v6420
      %v6514 = vunpack.c.h.b16 %v6420
      %v6515 = vunpack.c.l.b16 %v6421
      %v6516 = vunpack.c.h.b16 %v6421
      %v6517 = vunpack.c.l.b16 %v6422
      %v6518 = vunpack.c.h.b16 %v6422
      %v6519 = vpack.c.b16 %v6459, %v6455
      %v6520 = vpack.c.b16 %v6460, %v6456
      %v6521 = vpack.c.b16 %v6461, %v6457
      %v6522 = vpack.c.b16 %v6462, %v6458
      %v6523 = vpack.c.b16 %v6467, %v6463
      %v6524 = vpack.c.b16 %v6468, %v6464
      %v6525 = vpack.c.b16 %v6469, %v6465
      %v6526 = vpack.c.b16 %v6470, %v6466
      %v6527 = vpack.c.b16 %v6475, %v6471
      %v6528 = vpack.c.b16 %v6476, %v6472
      %v6529 = vpack.c.b16 %v6477, %v6473
      %v6530 = vpack.c.b16 %v6478, %v6474
      %v6531 = vpack.c.b16 %v6483, %v6479
      %v6532 = vpack.c.b16 %v6484, %v6480
      %v6533 = vpack.c.b16 %v6485, %v6481
      %v6534 = vpack.c.b16 %v6486, %v6482
      %v6535 = vpack.c.b16 %v6491, %v6487
      %v6536 = vpack.c.b16 %v6492, %v6488
      %v6537 = vpack.c.b16 %v6493, %v6489
      %v6538 = vpack.c.b16 %v6494, %v6490
      %v6539 = vpack.c.b16 %v6499, %v6495
      %v6540 = vpack.c.b16 %v6500, %v6496
      %v6541 = vpack.c.b16 %v6501, %v6497
      %v6542 = vpack.c.b16 %v6502, %v6498
      %v6543 = vpack.c.b16 %v6507, %v6503
      %v6544 = vpack.c.b16 %v6508, %v6504
      %v6545 = vpack.c.b16 %v6509, %v6505
      %v6546 = vpack.c.b16 %v6510, %v6506
      %v6547 = vpack.c.b16 %v6515, %v6511
      %v6548 = vpack.c.b16 %v6516, %v6512
      %v6549 = vpack.c.b16 %v6517, %v6513
      %v6550 = vpack.c.b16 %v6518, %v6514
      %6583 = vmatprep.subr.bf16.mxu0 %v6520
      %6584 = vmatpush1.bf16.msra.mxu0 %v6519
      %6585 = vmatprep.subr.bf16.mxu0 %v6524
      %6586 = vmatpush1.bf16.msra.mxu0 %v6523
      %6587 = vmatprep.subr.bf16.mxu0 %v6528
      %6588 = vmatpush1.bf16.msra.mxu0 %v6527
      %6589 = vmatprep.subr.bf16.mxu0 %v6532
      %6590 = vmatpush1.bf16.msra.mxu0 %v6531
      %6591 = vmatprep.subr.bf16.mxu0 %v6536
      %6592 = vmatpush1.bf16.msra.mxu0 %v6535
      %6593 = vmatprep.subr.bf16.mxu0 %v6540
      %6594 = vmatpush1.bf16.msra.mxu0 %v6539
      %6595 = vmatprep.subr.bf16.mxu0 %v6544
      %6596 = vmatpush1.bf16.msra.mxu0 %v6543
      %6597 = vmatprep.subr.bf16.mxu0 %v6548
      %6598 = vmatpush1.bf16.msra.mxu0 %v6547
      %6599 = vmatprep.subr.bf16.mxu0 0
      %6600 = vmatpush1.bf16.msra.mxu0 0
      %6601 = vmatprep.subr.bf16.mxu0 0
      %6602 = vmatpush1.bf16.msra.mxu0 0
      %6603 = vmatprep.subr.bf16.mxu0 0
      %6604 = vmatpush1.bf16.msra.mxu0 0
      %6605 = vmatprep.subr.bf16.mxu0 0
      %6606 = vmatpush1.bf16.msra.mxu0 0
      %6607 = vmatprep.subr.bf16.mxu0 0
      %6608 = vmatpush1.bf16.msra.mxu0 0
      %6609 = vmatprep.subr.bf16.mxu0 0
      %6610 = vmatpush1.bf16.msra.mxu0 0
      %6611 = vmatprep.subr.bf16.mxu0 0
      %6612 = vmatpush1.bf16.msra.mxu0 0
      %6613 = vmatprep.subr.bf16.mxu0 0
      %6614 = vmatpush1.bf16.msra.mxu0 0
      %6615 = vmatprep.mubr.bf16.mxu0 0
      %6616 = vmatmul.mubr.bf16.gmra.mrb[0].mxu0 %v6375
      %v6617 = vpop.f32.mrb[0].mxu0
      %v6618 = vadd.f32 %v1469, %v6617
      %v6619 = vpop.f32.mrb[0].mxu0
      %v6620 = vadd.f32 %v1471, %v6619
      %v6621 = vpop.f32.mrb[0].mxu0
      %v6622 = vadd.f32 %v1473, %v6621
      %v6623 = vpop.f32.mrb[0].mxu0
      %v6624 = vadd.f32 %v1475, %v6623
      %6625 = vmatprep.mubr.bf16.mxu0 0
      %6626 = vmatmul.mubr.bf16.gmra.mrb[0].mxu0 %v6376
      %v6627 = vpop.f32.mrb[0].mxu0
      %v6628 = vadd.f32 %v1479, %v6627
      %v6629 = vpop.f32.mrb[0].mxu0
      %v6630 = vadd.f32 %v1481, %v6629
      %v6631 = vpop.f32.mrb[0].mxu0
      %v6632 = vadd.f32 %v1483, %v6631
      %v6633 = vpop.f32.mrb[0].mxu0
      %v6634 = vadd.f32 %v1485, %v6633
      %6635 = vmatprep.mubr.bf16.mxu0 0
      %6636 = vmatmul.mubr.bf16.gmra.mrb[0].mxu0 %v6377
      %v6637 = vpop.f32.mrb[0].mxu0
      %v6638 = vadd.f32 %v1489, %v6637
      %v6639 = vpop.f32.mrb[0].mxu0
      %v6640 = vadd.f32 %v1491, %v6639
      %v6641 = vpop.f32.mrb[0].mxu0
      %v6642 = vadd.f32 %v1493, %v6641
      %v6643 = vpop.f32.mrb[0].mxu0
      %v6644 = vadd.f32 %v1495, %v6643
      %6645 = vmatprep.mubr.bf16.mxu0 0
      %6646 = vmatmul.mubr.bf16.gmra.mrb[0].mxu0 %v6378
      %v6647 = vpop.f32.mrb[0].mxu0
      %v6648 = vadd.f32 %v1499, %v6647
      %v6649 = vpop.f32.mrb[0].mxu0
      %v6650 = vadd.f32 %v1501, %v6649
      %v6651 = vpop.f32.mrb[0].mxu0
      %v6652 = vadd.f32 %v1503, %v6651
      %v6653 = vpop.f32.mrb[0].mxu0
      %v6654 = vadd.f32 %v1505, %v6653
      %6655 = vmatprep.mubr.bf16.mxu0 0
      %6656 = vmatmul.mubr.bf16.gmra.mrb[0].mxu0 %v6379
      %v6657 = vpop.f32.mrb[0].mxu0
      %v6658 = vadd.f32 %v1509, %v6657
      %v6659 = vpop.f32.mrb[0].mxu0
      %v6660 = vadd.f32 %v1511, %v6659
      %v6661 = vpop.f32.mrb[0].mxu0
      %v6662 = vadd.f32 %v1513, %v6661
      %v6663 = vpop.f32.mrb[0].mxu0
      %v6664 = vadd.f32 %v1515, %v6663
      %6665 = vmatprep.mubr.bf16.mxu0 0
      %6666 = vmatmul.mubr.bf16.gmra.mrb[0].mxu0 %v6380
      %v6667 = vpop.f32.mrb[0].mxu0
      %v6668 = vadd.f32 %v1519, %v6667
      %v6669 = vpop.f32.mrb[0].mxu0
      %v6670 = vadd.f32 %v1521, %v6669
      %v6671 = vpop.f32.mrb[0].mxu0
      %v6672 = vadd.f32 %v1523, %v6671
      %v6673 = vpop.f32.mrb[0].mxu0
      %v6674 = vadd.f32 %v1525, %v6673
      %6675 = vmatprep.mubr.bf16.mxu0 0
      %6676 = vmatmul.mubr.bf16.gmra.mrb[0].mxu0 %v6381
      %v6677 = vpop.f32.mrb[0].mxu0
      %v6678 = vadd.f32 %v1529, %v6677
      %v6679 = vpop.f32.mrb[0].mxu0
      %v6680 = vadd.f32 %v1531, %v6679
      %v6681 = vpop.f32.mrb[0].mxu0
      %v6682 = vadd.f32 %v1533, %v6681
      %v6683 = vpop.f32.mrb[0].mxu0
      %v6684 = vadd.f32 %v1535, %v6683
      %6685 = vmatprep.mubr.bf16.mxu0 0
      %6686 = vmatmul.mubr.bf16.gmra.mrb[0].mxu0 %v6382
      %v6687 = vpop.f32.mrb[0].mxu0
      %v6688 = vadd.f32 %v1539, %v6687
      %v6689 = vpop.f32.mrb[0].mxu0
      %v6690 = vadd.f32 %v1541, %v6689
      %v6691 = vpop.f32.mrb[0].mxu0
      %v6692 = vadd.f32 %v1543, %v6691
      %v6693 = vpop.f32.mrb[0].mxu0
      %v6694 = vadd.f32 %v1545, %v6693
      %6695 = vmatprep.mubr.bf16.mxu0 0
      %6696 = vmatmul.mubr.bf16.gmra.mrb[0].mxu0 %v6383
      %v6697 = vpop.f32.mrb[0].mxu0
      %v6698 = vadd.f32 %v1549, %v6697
      %v6699 = vpop.f32.mrb[0].mxu0
      %v6700 = vadd.f32 %v1551, %v6699
      %v6701 = vpop.f32.mrb[0].mxu0
      %v6702 = vadd.f32 %v1553, %v6701
      %v6703 = vpop.f32.mrb[0].mxu0
      %v6704 = vadd.f32 %v1555, %v6703
      %6705 = vmatprep.mubr.bf16.mxu0 0
      %6706 = vmatmul.mubr.bf16.gmra.mrb[0].mxu0 %v6384
      %v6707 = vpop.f32.mrb[0].mxu0
      %v6708 = vadd.f32 %v1559, %v6707
      %v6709 = vpop.f32.mrb[0].mxu0
      %v6710 = vadd.f32 %v1561, %v6709
      %v6711 = vpop.f32.mrb[0].mxu0
      %v6712 = vadd.f32 %v1563, %v6711
      %v6713 = vpop.f32.mrb[0].mxu0
      %v6714 = vadd.f32 %v1565, %v6713
      %6715 = vmatprep.mubr.bf16.mxu0 0
      %6716 = vmatmul.mubr.bf16.gmra.mrb[0].mxu0 %v6385
      %v6717 = vpop.f32.mrb[0].mxu0
      %v6718 = vadd.f32 %v1569, %v6717
      %v6719 = vpop.f32.mrb[0].mxu0
      %v6720 = vadd.f32 %v1571, %v6719
      %v6721 = vpop.f32.mrb[0].mxu0
      %v6722 = vadd.f32 %v1573, %v6721
      %v6723 = vpop.f32.mrb[0].mxu0
      %v6724 = vadd.f32 %v1575, %v6723
      %6725 = vmatprep.mubr.bf16.mxu0 0
      %6726 = vmatmul.mubr.bf16.gmra.mrb[0].mxu0 %v6386
      %v6727 = vpop.f32.mrb[0].mxu0
      %v6728 = vadd.f32 %v1579, %v6727
      %v6729 = vpop.f32.mrb[0].mxu0
      %v6730 = vadd.f32 %v1581, %v6729
      %v6731 = vpop.f32.mrb[0].mxu0
      %v6732 = vadd.f32 %v1583, %v6731
      %v6733 = vpop.f32.mrb[0].mxu0
      %v6734 = vadd.f32 %v1585, %v6733
      %6735 = vmatprep.mubr.bf16.mxu0 0
      %6736 = vmatmul.mubr.bf16.gmra.mrb[0].mxu0 %v6387
      %v6737 = vpop.f32.mrb[0].mxu0
      %v6738 = vadd.f32 %v1589, %v6737
      %v6739 = vpop.f32.mrb[0].mxu0
      %v6740 = vadd.f32 %v1591, %v6739
      %v6741 = vpop.f32.mrb[0].mxu0
      %v6742 = vadd.f32 %v1593, %v6741
      %v6743 = vpop.f32.mrb[0].mxu0
      %v6744 = vadd.f32 %v1595, %v6743
      %6745 = vmatprep.mubr.bf16.mxu0 0
      %6746 = vmatmul.mubr.bf16.gmra.mrb[0].mxu0 %v6388
      %v6747 = vpop.f32.mrb[0].mxu0
      %v6748 = vadd.f32 %v1599, %v6747
      %v6749 = vpop.f32.mrb[0].mxu0
      %v6750 = vadd.f32 %v1601, %v6749
      %v6751 = vpop.f32.mrb[0].mxu0
      %v6752 = vadd.f32 %v1603, %v6751
      %v6753 = vpop.f32.mrb[0].mxu0
      %v6754 = vadd.f32 %v1605, %v6753
      %6755 = vmatprep.mubr.bf16.mxu0 0
      %6756 = vmatmul.mubr.bf16.gmra.mrb[0].mxu0 %v6389
      %v6757 = vpop.f32.mrb[0].mxu0
      %v6758 = vadd.f32 %v1609, %v6757
      %v6759 = vpop.f32.mrb[0].mxu0
      %v6760 = vadd.f32 %v1611, %v6759
      %v6761 = vpop.f32.mrb[0].mxu0
      %v6762 = vadd.f32 %v1613, %v6761
      %v6763 = vpop.f32.mrb[0].mxu0
      %v6764 = vadd.f32 %v1615, %v6763
      %6765 = vmatprep.mubr.bf16.mxu0 0
      %6766 = vmatmul.mubr.bf16.gmra.mrb[0].mxu0 %v6390
      %v6767 = vpop.f32.mrb[0].mxu0
      %v6768 = vadd.f32 %v1619, %v6767
      %v6769 = vpop.f32.mrb[0].mxu0
      %v6770 = vadd.f32 %v1621, %v6769
      %v6771 = vpop.f32.mrb[0].mxu0
      %v6772 = vadd.f32 %v1623, %v6771
      %v6773 = vpop.f32.mrb[0].mxu0
      %v6774 = vadd.f32 %v1625, %v6773
      %6775 = vdwg.mxu0
      %6776 = vmatprep.subr.bf16.mxu0 %v6522
      %6777 = vmatpush1.bf16.msra.mxu0 %v6521
      %6778 = vmatprep.subr.bf16.mxu0 %v6526
      %6779 = vmatpush1.bf16.msra.mxu0 %v6525
      %6780 = vmatprep.subr.bf16.mxu0 %v6530
      %6781 = vmatpush1.bf16.msra.mxu0 %v6529
      %6782 = vmatprep.subr.bf16.mxu0 %v6534
      %6783 = vmatpush1.bf16.msra.mxu0 %v6533
      %6784 = vmatprep.subr.bf16.mxu0 %v6538
      %6785 = vmatpush1.bf16.msra.mxu0 %v6537
      %6786 = vmatprep.subr.bf16.mxu0 %v6542
      %6787 = vmatpush1.bf16.msra.mxu0 %v6541
      %6788 = vmatprep.subr.bf16.mxu0 %v6546
      %6789 = vmatpush1.bf16.msra.mxu0 %v6545
      %6790 = vmatprep.subr.bf16.mxu0 %v6550
      %6791 = vmatpush1.bf16.msra.mxu0 %v6549
      %6792 = vmatprep.subr.bf16.mxu0 0
      %6793 = vmatpush1.bf16.msra.mxu0 0
      %6794 = vmatprep.subr.bf16.mxu0 0
      %6795 = vmatpush1.bf16.msra.mxu0 0
      %6796 = vmatprep.subr.bf16.mxu0 0
      %6797 = vmatpush1.bf16.msra.mxu0 0
      %6798 = vmatprep.subr.bf16.mxu0 0
      %6799 = vmatpush1.bf16.msra.mxu0 0
      %6800 = vmatprep.subr.bf16.mxu0 0
      %6801 = vmatpush1.bf16.msra.mxu0 0
      %6802 = vmatprep.subr.bf16.mxu0 0
      %6803 = vmatpush1.bf16.msra.mxu0 0
      %6804 = vmatprep.subr.bf16.mxu0 0
      %6805 = vmatpush1.bf16.msra.mxu0 0
      %6806 = vmatprep.subr.bf16.mxu0 0
      %6807 = vmatpush1.bf16.msra.mxu0 0
      %6808 = vmatprep.mubr.bf16.mxu0 0
      %6809 = vmatmul.mubr.bf16.gmra.mrb[0].mxu0 %v6375
      %v6810 = vpop.f32.mrb[0].mxu0
      %v6811 = vadd.f32 %v1662, %v6810
      %v6812 = vpop.f32.mrb[0].mxu0
      %v6813 = vadd.f32 %v1664, %v6812
      %v6814 = vpop.f32.mrb[0].mxu0
      %v6815 = vadd.f32 %v1666, %v6814
      %v6816 = vpop.f32.mrb[0].mxu0
      %v6817 = vadd.f32 %v1668, %v6816
      %6818 = vmatprep.mubr.bf16.mxu0 0
      %6819 = vmatmul.mubr.bf16.gmra.mrb[0].mxu0 %v6376
      %v6820 = vpop.f32.mrb[0].mxu0
      %v6821 = vadd.f32 %v1672, %v6820
      %v6822 = vpop.f32.mrb[0].mxu0
      %v6823 = vadd.f32 %v1674, %v6822
      %v6824 = vpop.f32.mrb[0].mxu0
      %v6825 = vadd.f32 %v1676, %v6824
      %v6826 = vpop.f32.mrb[0].mxu0
      %v6827 = vadd.f32 %v1678, %v6826
      %6828 = vmatprep.mubr.bf16.mxu0 0
      %6829 = vmatmul.mubr.bf16.gmra.mrb[0].mxu0 %v6377
      %v6830 = vpop.f32.mrb[0].mxu0
      %v6831 = vadd.f32 %v1682, %v6830
      %v6832 = vpop.f32.mrb[0].mxu0
      %v6833 = vadd.f32 %v1684, %v6832
      %v6834 = vpop.f32.mrb[0].mxu0
      %v6835 = vadd.f32 %v1686, %v6834
      %v6836 = vpop.f32.mrb[0].mxu0
      %v6837 = vadd.f32 %v1688, %v6836
      %6838 = vmatprep.mubr.bf16.mxu0 0
      %6839 = vmatmul.mubr.bf16.gmra.mrb[0].mxu0 %v6378
      %v6840 = vpop.f32.mrb[0].mxu0
      %v6841 = vadd.f32 %v1692, %v6840
      %v6842 = vpop.f32.mrb[0].mxu0
      %v6843 = vadd.f32 %v1694, %v6842
      %v6844 = vpop.f32.mrb[0].mxu0
      %v6845 = vadd.f32 %v1696, %v6844
      %v6846 = vpop.f32.mrb[0].mxu0
      %v6847 = vadd.f32 %v1698, %v6846
      %6848 = vmatprep.mubr.bf16.mxu0 0
      %6849 = vmatmul.mubr.bf16.gmra.mrb[0].mxu0 %v6379
      %v6850 = vpop.f32.mrb[0].mxu0
      %v6851 = vadd.f32 %v1702, %v6850
      %v6852 = vpop.f32.mrb[0].mxu0
      %v6853 = vadd.f32 %v1704, %v6852
      %v6854 = vpop.f32.mrb[0].mxu0
      %v6855 = vadd.f32 %v1706, %v6854
      %v6856 = vpop.f32.mrb[0].mxu0
      %v6857 = vadd.f32 %v1708, %v6856
      %6858 = vmatprep.mubr.bf16.mxu0 0
      %6859 = vmatmul.mubr.bf16.gmra.mrb[0].mxu0 %v6380
      %v6860 = vpop.f32.mrb[0].mxu0
      %v6861 = vadd.f32 %v1712, %v6860
      %v6862 = vpop.f32.mrb[0].mxu0
      %v6863 = vadd.f32 %v1714, %v6862
      %v6864 = vpop.f32.mrb[0].mxu0
      %v6865 = vadd.f32 %v1716, %v6864
      %v6866 = vpop.f32.mrb[0].mxu0
      %v6867 = vadd.f32 %v1718, %v6866
      %6868 = vmatprep.mubr.bf16.mxu0 0
      %6869 = vmatmul.mubr.bf16.gmra.mrb[0].mxu0 %v6381
      %v6870 = vpop.f32.mrb[0].mxu0
      %v6871 = vadd.f32 %v1722, %v6870
      %v6872 = vpop.f32.mrb[0].mxu0
      %v6873 = vadd.f32 %v1724, %v6872
      %v6874 = vpop.f32.mrb[0].mxu0
      %v6875 = vadd.f32 %v1726, %v6874
      %v6876 = vpop.f32.mrb[0].mxu0
      %v6877 = vadd.f32 %v1728, %v6876
      %6878 = vmatprep.mubr.bf16.mxu0 0
      %6879 = vmatmul.mubr.bf16.gmra.mrb[0].mxu0 %v6382
      %v6880 = vpop.f32.mrb[0].mxu0
      %v6881 = vadd.f32 %v1732, %v6880
      %v6882 = vpop.f32.mrb[0].mxu0
      %v6883 = vadd.f32 %v1734, %v6882
      %v6884 = vpop.f32.mrb[0].mxu0
      %v6885 = vadd.f32 %v1736, %v6884
      %v6886 = vpop.f32.mrb[0].mxu0
      %v6887 = vadd.f32 %v1738, %v6886
      %6888 = vmatprep.mubr.bf16.mxu0 0
      %6889 = vmatmul.mubr.bf16.gmra.mrb[0].mxu0 %v6383
      %v6890 = vpop.f32.mrb[0].mxu0
      %v6891 = vadd.f32 %v1742, %v6890
      %v6892 = vpop.f32.mrb[0].mxu0
      %v6893 = vadd.f32 %v1744, %v6892
      %v6894 = vpop.f32.mrb[0].mxu0
      %v6895 = vadd.f32 %v1746, %v6894
      %v6896 = vpop.f32.mrb[0].mxu0
      %v6897 = vadd.f32 %v1748, %v6896
      %6898 = vmatprep.mubr.bf16.mxu0 0
      %6899 = vmatmul.mubr.bf16.gmra.mrb[0].mxu0 %v6384
      %v6900 = vpop.f32.mrb[0].mxu0
      %v6901 = vadd.f32 %v1752, %v6900
      %v6902 = vpop.f32.mrb[0].mxu0
      %v6903 = vadd.f32 %v1754, %v6902
      %v6904 = vpop.f32.mrb[0].mxu0
      %v6905 = vadd.f32 %v1756, %v6904
      %v6906 = vpop.f32.mrb[0].mxu0
      %v6907 = vadd.f32 %v1758, %v6906
      %6908 = vmatprep.mubr.bf16.mxu0 0
      %6909 = vmatmul.mubr.bf16.gmra.mrb[0].mxu0 %v6385
      %v6910 = vpop.f32.mrb[0].mxu0
      %v6911 = vadd.f32 %v1762, %v6910
      %v6912 = vpop.f32.mrb[0].mxu0
      %v6913 = vadd.f32 %v1764, %v6912
      %v6914 = vpop.f32.mrb[0].mxu0
      %v6915 = vadd.f32 %v1766, %v6914
      %v6916 = vpop.f32.mrb[0].mxu0
      %v6917 = vadd.f32 %v1768, %v6916
      %6918 = vmatprep.mubr.bf16.mxu0 0
      %6919 = vmatmul.mubr.bf16.gmra.mrb[0].mxu0 %v6386
      %v6920 = vpop.f32.mrb[0].mxu0
      %v6921 = vadd.f32 %v1772, %v6920
      %v6922 = vpop.f32.mrb[0].mxu0
      %v6923 = vadd.f32 %v1774, %v6922
      %v6924 = vpop.f32.mrb[0].mxu0
      %v6925 = vadd.f32 %v1776, %v6924
      %v6926 = vpop.f32.mrb[0].mxu0
      %v6927 = vadd.f32 %v1778, %v6926
      %6928 = vmatprep.mubr.bf16.mxu0 0
      %6929 = vmatmul.mubr.bf16.gmra.mrb[0].mxu0 %v6387
      %v6930 = vpop.f32.mrb[0].mxu0
      %v6931 = vadd.f32 %v1782, %v6930
      %v6932 = vpop.f32.mrb[0].mxu0
      %v6933 = vadd.f32 %v1784, %v6932
      %v6934 = vpop.f32.mrb[0].mxu0
      %v6935 = vadd.f32 %v1786, %v6934
      %v6936 = vpop.f32.mrb[0].mxu0
      %v6937 = vadd.f32 %v1788, %v6936
      %6938 = vmatprep.mubr.bf16.mxu0 0
      %6939 = vmatmul.mubr.bf16.gmra.mrb[0].mxu0 %v6388
      %v6940 = vpop.f32.mrb[0].mxu0
      %v6941 = vadd.f32 %v1792, %v6940
      %v6942 = vpop.f32.mrb[0].mxu0
      %v6943 = vadd.f32 %v1794, %v6942
      %v6944 = vpop.f32.mrb[0].mxu0
      %v6945 = vadd.f32 %v1796, %v6944
      %v6946 = vpop.f32.mrb[0].mxu0
      %v6947 = vadd.f32 %v1798, %v6946
      %6948 = vmatprep.mubr.bf16.mxu0 0
      %6949 = vmatmul.mubr.bf16.gmra.mrb[0].mxu0 %v6389
      %v6950 = vpop.f32.mrb[0].mxu0
      %v6951 = vadd.f32 %v1802, %v6950
      %v6952 = vpop.f32.mrb[0].mxu0
      %v6953 = vadd.f32 %v1804, %v6952
      %v6954 = vpop.f32.mrb[0].mxu0
      %v6955 = vadd.f32 %v1806, %v6954
      %v6956 = vpop.f32.mrb[0].mxu0
      %v6957 = vadd.f32 %v1808, %v6956
      %6958 = vmatprep.mubr.bf16.mxu0 0
      %6959 = vmatmul.mubr.bf16.gmra.mrb[0].mxu0 %v6390
      %v6960 = vpop.f32.mrb[0].mxu0
      %v6961 = vadd.f32 %v1812, %v6960
      %v6962 = vpop.f32.mrb[0].mxu0
      %v6963 = vadd.f32 %v1814, %v6962
      %v6964 = vpop.f32.mrb[0].mxu0
      %v6965 = vadd.f32 %v1816, %v6964
      %v6966 = vpop.f32.mrb[0].mxu0
      %v6967 = vadd.f32 %v1818, %v6966
      %6968 = vdwg.mxu0
      %v6969 = vmax.f32 %v6618, 0.0
      %v6970 = vmax.f32 %v6620, 0.0
      %v6971 = vmax.f32 %v6811, 0.0
      %v6972 = vmax.f32 %v6813, 0.0
      %v6973 = vmax.f32 %v6622, 0.0
      %v6974 = vmax.f32 %v6624, 0.0
      %v6975 = vmax.f32 %v6815, 0.0
      %v6976 = vmax.f32 %v6817, 0.0
      %v6977 = vmax.f32 %v6628, 0.0
      %v6978 = vmax.f32 %v6630, 0.0
      %v6979 = vmax.f32 %v6821, 0.0
      %v6980 = vmax.f32 %v6823, 0.0
      %v6981 = vmax.f32 %v6632, 0.0
      %v6982 = vmax.f32 %v6634, 0.0
      %v6983 = vmax.f32 %v6825, 0.0
      %v6984 = vmax.f32 %v6827, 0.0
      %v6985 = vmax.f32 %v6638, 0.0
      %v6986 = vmax.f32 %v6640, 0.0
      %v6987 = vmax.f32 %v6831, 0.0
      %v6988 = vmax.f32 %v6833, 0.0
      %v6989 = vmax.f32 %v6642, 0.0
      %v6990 = vmax.f32 %v6644, 0.0
      %v6991 = vmax.f32 %v6835, 0.0
      %v6992 = vmax.f32 %v6837, 0.0
      %v6993 = vmax.f32 %v6648, 0.0
      %v6994 = vmax.f32 %v6650, 0.0
      %v6995 = vmax.f32 %v6841, 0.0
      %v6996 = vmax.f32 %v6843, 0.0
      %v6997 = vmax.f32 %v6652, 0.0
      %v6998 = vmax.f32 %v6654, 0.0
      %v6999 = vmax.f32 %v6845, 0.0
      %v7000 = vmax.f32 %v6847, 0.0
      %v7001 = vmax.f32 %v6658, 0.0
      %v7002 = vmax.f32 %v6660, 0.0
      %v7003 = vmax.f32 %v6851, 0.0
      %v7004 = vmax.f32 %v6853, 0.0
      %v7005 = vmax.f32 %v6662, 0.0
      %v7006 = vmax.f32 %v6664, 0.0
      %v7007 = vmax.f32 %v6855, 0.0
      %v7008 = vmax.f32 %v6857, 0.0
      %v7009 = vmax.f32 %v6668, 0.0
      %v7010 = vmax.f32 %v6670, 0.0
      %v7011 = vmax.f32 %v6861, 0.0
      %v7012 = vmax.f32 %v6863, 0.0
      %v7013 = vmax.f32 %v6672, 0.0
      %v7014 = vmax.f32 %v6674, 0.0
      %v7015 = vmax.f32 %v6865, 0.0
      %v7016 = vmax.f32 %v6867, 0.0
      %v7017 = vmax.f32 %v6678, 0.0
      %v7018 = vmax.f32 %v6680, 0.0
      %v7019 = vmax.f32 %v6871, 0.0
      %v7020 = vmax.f32 %v6873, 0.0
      %v7021 = vmax.f32 %v6682, 0.0
      %v7022 = vmax.f32 %v6684, 0.0
      %v7023 = vmax.f32 %v6875, 0.0
      %v7024 = vmax.f32 %v6877, 0.0
      %v7025 = vmax.f32 %v6688, 0.0
      %v7026 = vmax.f32 %v6690, 0.0
      %v7027 = vmax.f32 %v6881, 0.0
      %v7028 = vmax.f32 %v6883, 0.0
      %v7029 = vmax.f32 %v6692, 0.0
      %v7030 = vmax.f32 %v6694, 0.0
      %v7031 = vmax.f32 %v6885, 0.0
      %v7032 = vmax.f32 %v6887, 0.0
      %v7033 = vmax.f32 %v6698, 0.0
      %v7034 = vmax.f32 %v6700, 0.0
      %v7035 = vmax.f32 %v6891, 0.0
      %v7036 = vmax.f32 %v6893, 0.0
      %v7037 = vmax.f32 %v6702, 0.0
      %v7038 = vmax.f32 %v6704, 0.0
      %v7039 = vmax.f32 %v6895, 0.0
      %v7040 = vmax.f32 %v6897, 0.0
      %v7041 = vmax.f32 %v6708, 0.0
      %v7042 = vmax.f32 %v6710, 0.0
      %v7043 = vmax.f32 %v6901, 0.0
      %v7044 = vmax.f32 %v6903, 0.0
      %v7045 = vmax.f32 %v6712, 0.0
      %v7046 = vmax.f32 %v6714, 0.0
      %v7047 = vmax.f32 %v6905, 0.0
      %v7048 = vmax.f32 %v6907, 0.0
      %v7049 = vmax.f32 %v6718, 0.0
      %v7050 = vmax.f32 %v6720, 0.0
      %v7051 = vmax.f32 %v6911, 0.0
      %v7052 = vmax.f32 %v6913, 0.0
      %v7053 = vmax.f32 %v6722, 0.0
      %v7054 = vmax.f32 %v6724, 0.0
      %v7055 = vmax.f32 %v6915, 0.0
      %v7056 = vmax.f32 %v6917, 0.0
      %v7057 = vmax.f32 %v6728, 0.0
      %v7058 = vmax.f32 %v6730, 0.0
      %v7059 = vmax.f32 %v6921, 0.0
      %v7060 = vmax.f32 %v6923, 0.0
      %v7061 = vmax.f32 %v6732, 0.0
      %v7062 = vmax.f32 %v6734, 0.0
      %v7063 = vmax.f32 %v6925, 0.0
      %v7064 = vmax.f32 %v6927, 0.0
      %v7065 = vmax.f32 %v6738, 0.0
      %v7066 = vmax.f32 %v6740, 0.0
      %v7067 = vmax.f32 %v6931, 0.0
      %v7068 = vmax.f32 %v6933, 0.0
      %v7069 = vmax.f32 %v6742, 0.0
      %v7070 = vmax.f32 %v6744, 0.0
      %v7071 = vmax.f32 %v6935, 0.0
      %v7072 = vmax.f32 %v6937, 0.0
      %v7073 = vmax.f32 %v6748, 0.0
      %v7074 = vmax.f32 %v6750, 0.0
      %v7075 = vmax.f32 %v6941, 0.0
      %v7076 = vmax.f32 %v6943, 0.0
      %v7077 = vmax.f32 %v6752, 0.0
      %v7078 = vmax.f32 %v6754, 0.0
      %v7079 = vmax.f32 %v6945, 0.0
      %v7080 = vmax.f32 %v6947, 0.0
      %v7081 = vmax.f32 %v6758, 0.0
      %v7082 = vmax.f32 %v6760, 0.0
      %v7083 = vmax.f32 %v6951, 0.0
      %v7084 = vmax.f32 %v6953, 0.0
      %v7085 = vmax.f32 %v6762, 0.0
      %v7086 = vmax.f32 %v6764, 0.0
      %v7087 = vmax.f32 %v6955, 0.0
      %v7088 = vmax.f32 %v6957, 0.0
      %v7089 = vmax.f32 %v6768, 0.0
      %v7090 = vmax.f32 %v6770, 0.0
      %v7091 = vmax.f32 %v6961, 0.0
      %v7092 = vmax.f32 %v6963, 0.0
      %v7093 = vmax.f32 %v6772, 0.0
      %v7094 = vmax.f32 %v6774, 0.0
      %v7095 = vmax.f32 %v6965, 0.0
      %v7096 = vmax.f32 %v6967, 0.0
      %v7097 = vpack.c.bf16 %v6973, %v6969
      %v7098 = vpack.c.bf16 %v6974, %v6970
      %v7099 = vpack.c.bf16 %v6975, %v6971
      %v7100 = vpack.c.bf16 %v6976, %v6972
      %v7101 = vpack.c.bf16 %v6981, %v6977
      %v7102 = vpack.c.bf16 %v6982, %v6978
      %v7103 = vpack.c.bf16 %v6983, %v6979
      %v7104 = vpack.c.bf16 %v6984, %v6980
      %v7105 = vpack.c.bf16 %v6989, %v6985
      %v7106 = vpack.c.bf16 %v6990, %v6986
      %v7107 = vpack.c.bf16 %v6991, %v6987
      %v7108 = vpack.c.bf16 %v6992, %v6988
      %v7109 = vpack.c.bf16 %v6997, %v6993
      %v7110 = vpack.c.bf16 %v6998, %v6994
      %v7111 = vpack.c.bf16 %v6999, %v6995
      %v7112 = vpack.c.bf16 %v7000, %v6996
      %v7113 = vpack.c.bf16 %v7005, %v7001
      %v7114 = vpack.c.bf16 %v7006, %v7002
      %v7115 = vpack.c.bf16 %v7007, %v7003
      %v7116 = vpack.c.bf16 %v7008, %v7004
      %v7117 = vpack.c.bf16 %v7013, %v7009
      %v7118 = vpack.c.bf16 %v7014, %v7010
      %v7119 = vpack.c.bf16 %v7015, %v7011
      %v7120 = vpack.c.bf16 %v7016, %v7012
      %v7121 = vpack.c.bf16 %v7021, %v7017
      %v7122 = vpack.c.bf16 %v7022, %v7018
      %v7123 = vpack.c.bf16 %v7023, %v7019
      %v7124 = vpack.c.bf16 %v7024, %v7020
      %v7125 = vpack.c.bf16 %v7029, %v7025
      %v7126 = vpack.c.bf16 %v7030, %v7026
      %v7127 = vpack.c.bf16 %v7031, %v7027
      %v7128 = vpack.c.bf16 %v7032, %v7028
      %v7129 = vpack.c.bf16 %v7037, %v7033
      %v7130 = vpack.c.bf16 %v7038, %v7034
      %v7131 = vpack.c.bf16 %v7039, %v7035
      %v7132 = vpack.c.bf16 %v7040, %v7036
      %v7133 = vpack.c.bf16 %v7045, %v7041
      %v7134 = vpack.c.bf16 %v7046, %v7042
      %v7135 = vpack.c.bf16 %v7047, %v7043
      %v7136 = vpack.c.bf16 %v7048, %v7044
      %v7137 = vpack.c.bf16 %v7053, %v7049
      %v7138 = vpack.c.bf16 %v7054, %v7050
      %v7139 = vpack.c.bf16 %v7055, %v7051
      %v7140 = vpack.c.bf16 %v7056, %v7052
      %v7141 = vpack.c.bf16 %v7061, %v7057
      %v7142 = vpack.c.bf16 %v7062, %v7058
      %v7143 = vpack.c.bf16 %v7063, %v7059
      %v7144 = vpack.c.bf16 %v7064, %v7060
      %v7145 = vpack.c.bf16 %v7069, %v7065
      %v7146 = vpack.c.bf16 %v7070, %v7066
      %v7147 = vpack.c.bf16 %v7071, %v7067
      %v7148 = vpack.c.bf16 %v7072, %v7068
      %v7149 = vpack.c.bf16 %v7077, %v7073
      %v7150 = vpack.c.bf16 %v7078, %v7074
      %v7151 = vpack.c.bf16 %v7079, %v7075
      %v7152 = vpack.c.bf16 %v7080, %v7076
      %v7153 = vpack.c.bf16 %v7085, %v7081
      %v7154 = vpack.c.bf16 %v7086, %v7082
      %v7155 = vpack.c.bf16 %v7087, %v7083
      %v7156 = vpack.c.bf16 %v7088, %v7084
      %v7157 = vpack.c.bf16 %v7093, %v7089
      %v7158 = vpack.c.bf16 %v7094, %v7090
      %v7159 = vpack.c.bf16 %v7095, %v7091
      %v7160 = vpack.c.bf16 %v7096, %v7092
      %v7161 = vld [vmem:[%s8] sm:$0xff]
      %v7162 = vld [vmem:[%s8 + $0x8] sm:$0xff]
      %v7163 = vld [vmem:[%s8 + $0x10] sm:$0xff]
      %v7164 = vld [vmem:[%s8 + $0x18] sm:$0xf]
      %v7165 = vld [vmem:[%s8 + $0x1c] sm:$0xff]
      %v7166 = vld [vmem:[%s8 + $0x24] sm:$0xff]
      %v7167 = vld [vmem:[%s8 + $0x2c] sm:$0xff]
      %v7168 = vld [vmem:[%s8 + $0x34] sm:$0xf]
      %v7169 = vld [vmem:[%s8 + $0x38] sm:$0xff]
      %v7170 = vld [vmem:[%s8 + $0x40] sm:$0xff]
      %v7171 = vld [vmem:[%s8 + $0x48] sm:$0xff]
      %v7172 = vld [vmem:[%s8 + $0x50] sm:$0xf]
      %v7173 = vld [vmem:[%s8 + $0x54] sm:$0xff]
      %v7174 = vld [vmem:[%s8 + $0x5c] sm:$0xff]
      %v7175 = vld [vmem:[%s8 + $0x64] sm:$0xff]
      %v7176 = vld [vmem:[%s8 + $0x6c] sm:$0xf]
      %v7177 = vld [vmem:[%s8 + $0x70] sm:$0xff]
      %v7178 = vld [vmem:[%s8 + $0x78] sm:$0xff]
      %v7179 = vld [vmem:[%s8 + $0x80] sm:$0xff]
      %v7180 = vld [vmem:[%s8 + $0x88] sm:$0xf]
      %v7181 = vld [vmem:[%s8 + $0x8c] sm:$0xff]
      %v7182 = vld [vmem:[%s8 + $0x94] sm:$0xff]
      %v7183 = vld [vmem:[%s8 + $0x9c] sm:$0xff]
      %v7184 = vld [vmem:[%s8 + $0xa4] sm:$0xf]
      %v7185 = vld [vmem:[%s8 + $0xa8] sm:$0xff]
      %v7186 = vld [vmem:[%s8 + $0xb0] sm:$0xff]
      %v7187 = vld [vmem:[%s8 + $0xb8] sm:$0xff]
      %v7188 = vld [vmem:[%s8 + $0xc0] sm:$0xf]
      %v7189 = vld [vmem:[%s8 + $0xc4] sm:$0xff]
      %v7190 = vld [vmem:[%s8 + $0xcc] sm:$0xff]
      %v7191 = vld [vmem:[%s8 + $0xd4] sm:$0xff]
      %v7192 = vld [vmem:[%s8 + $0xdc] sm:$0xf]
      %v7193 = vld [vmem:[%s8 + $0xe0] sm:$0xff]
      %v7194 = vld [vmem:[%s8 + $0xe8] sm:$0xff]
      %v7195 = vld [vmem:[%s8 + $0xf0] sm:$0xff]
      %v7196 = vld [vmem:[%s8 + $0xf8] sm:$0xf]
      %v7197 = vld [vmem:[%s8 + $0xfc] sm:$0xff]
      %v7198 = vld [vmem:[%s8 + $0x104] sm:$0xff]
      %v7199 = vld [vmem:[%s8 + $0x10c] sm:$0xff]
      %v7200 = vld [vmem:[%s8 + $0x114] sm:$0xf]
      %v7201 = vld [vmem:[%s8 + $0x118] sm:$0xff]
      %v7202 = vld [vmem:[%s8 + $0x120] sm:$0xff]
      %v7203 = vld [vmem:[%s8 + $0x128] sm:$0xff]
      %v7204 = vld [vmem:[%s8 + $0x130] sm:$0xf]
      %v7205 = vld [vmem:[%s8 + $0x134] sm:$0xff]
      %v7206 = vld [vmem:[%s8 + $0x13c] sm:$0xff]
      %v7207 = vld [vmem:[%s8 + $0x144] sm:$0xff]
      %v7208 = vld [vmem:[%s8 + $0x14c] sm:$0xf]
      %v7209 = vld [vmem:[%s8 + $0x150] sm:$0xff]
      %v7210 = vld [vmem:[%s8 + $0x158] sm:$0xff]
      %v7211 = vld [vmem:[%s8 + $0x160] sm:$0xff]
      %v7212 = vld [vmem:[%s8 + $0x168] sm:$0xf]
      %v7213 = vld [vmem:[%s8 + $0x16c] sm:$0xff]
      %v7214 = vld [vmem:[%s8 + $0x174] sm:$0xff]
      %v7215 = vld [vmem:[%s8 + $0x17c] sm:$0xff]
      %v7216 = vld [vmem:[%s8 + $0x184] sm:$0xf]
      %v7217 = vld [vmem:[%s8 + $0x188] sm:$0xff]
      %v7218 = vld [vmem:[%s8 + $0x190] sm:$0xff]
      %v7219 = vld [vmem:[%s8 + $0x198] sm:$0xff]
      %v7220 = vld [vmem:[%s8 + $0x1a0] sm:$0xf]
      %v7221 = vld [vmem:[%s8 + $0x1a4] sm:$0xff]
      %v7222 = vld [vmem:[%s8 + $0x1ac] sm:$0xff]
      %v7223 = vld [vmem:[%s8 + $0x1b4] sm:$0xff]
      %v7224 = vld [vmem:[%s8 + $0x1bc] sm:$0xf]
      %v7225 = vld [vmem:[%s8 + $0x1c0] sm:$0xff]
      %v7226 = vld [vmem:[%s8 + $0x1c8] sm:$0xff]
      %v7227 = vld [vmem:[%s8 + $0x1d0] sm:$0xff]
      %v7228 = vld [vmem:[%s8 + $0x1d8] sm:$0xf]
      %v7229 = vld [vmem:[%s8 + $0x1dc] sm:$0xff]
      %v7230 = vld [vmem:[%s8 + $0x1e4] sm:$0xff]
      %v7231 = vld [vmem:[%s8 + $0x1ec] sm:$0xff]
      %v7232 = vld [vmem:[%s8 + $0x1f4] sm:$0xf]
      %v7233 = vld [vmem:[%s8 + $0x1f8] sm:$0xff]
      %v7234 = vld [vmem:[%s8 + $0x200] sm:$0xff]
      %v7235 = vld [vmem:[%s8 + $0x208] sm:$0xff]
      %v7236 = vld [vmem:[%s8 + $0x210] sm:$0xf]
      %v7237 = vld [vmem:[%s8 + $0x214] sm:$0xff]
      %v7238 = vld [vmem:[%s8 + $0x21c] sm:$0xff]
      %v7239 = vld [vmem:[%s8 + $0x224] sm:$0xff]
      %v7240 = vld [vmem:[%s8 + $0x22c] sm:$0xf]
      %v7241 = vld [vmem:[%s8 + $0x230] sm:$0xff]
      %v7242 = vld [vmem:[%s8 + $0x238] sm:$0xff]
      %v7243 = vld [vmem:[%s8 + $0x240] sm:$0xff]
      %v7244 = vld [vmem:[%s8 + $0x248] sm:$0xf]
      %v7245 = vld [vmem:[%s8 + $0x24c] sm:$0xff]
      %v7246 = vld [vmem:[%s8 + $0x254] sm:$0xff]
      %v7247 = vld [vmem:[%s8 + $0x25c] sm:$0xff]
      %v7248 = vld [vmem:[%s8 + $0x264] sm:$0xf]
      %v7249 = vld [vmem:[%s8 + $0x268] sm:$0xff]
      %v7250 = vld [vmem:[%s8 + $0x270] sm:$0xff]
      %v7251 = vld [vmem:[%s8 + $0x278] sm:$0xff]
      %v7252 = vld [vmem:[%s8 + $0x280] sm:$0xf]
      %v7253 = vld [vmem:[%s8 + $0x284] sm:$0xff]
      %v7254 = vld [vmem:[%s8 + $0x28c] sm:$0xff]
      %v7255 = vld [vmem:[%s8 + $0x294] sm:$0xff]
      %v7256 = vld [vmem:[%s8 + $0x29c] sm:$0xf]
      %v7257 = vld [vmem:[%s8 + $0x2a0] sm:$0xff]
      %v7258 = vld [vmem:[%s8 + $0x2a8] sm:$0xff]
      %v7259 = vld [vmem:[%s8 + $0x2b0] sm:$0xff]
      %v7260 = vld [vmem:[%s8 + $0x2b8] sm:$0xf]
      %v7261 = vld [vmem:[%s8 + $0x2bc] sm:$0xff]
      %v7262 = vld [vmem:[%s8 + $0x2c4] sm:$0xff]
      %v7263 = vld [vmem:[%s8 + $0x2cc] sm:$0xff]
      %v7264 = vld [vmem:[%s8 + $0x2d4] sm:$0xf]
      %v7265 = vld [vmem:[%s8 + $0x2d8] sm:$0xff]
      %v7266 = vld [vmem:[%s8 + $0x2e0] sm:$0xff]
      %v7267 = vld [vmem:[%s8 + $0x2e8] sm:$0xff]
      %v7268 = vld [vmem:[%s8 + $0x2f0] sm:$0xf]
      %v7269 = vld [vmem:[%s8 + $0x2f4] sm:$0xff]
      %v7270 = vld [vmem:[%s8 + $0x2fc] sm:$0xff]
      %v7271 = vld [vmem:[%s8 + $0x304] sm:$0xff]
      %v7272 = vld [vmem:[%s8 + $0x30c] sm:$0xf]
      %v7273 = vld [vmem:[%s8 + $0x310] sm:$0xff]
      %v7274 = vld [vmem:[%s8 + $0x318] sm:$0xff]
      %v7275 = vld [vmem:[%s8 + $0x320] sm:$0xff]
      %v7276 = vld [vmem:[%s8 + $0x328] sm:$0xf]
      %v7277 = vld [vmem:[%s8 + $0x32c] sm:$0xff]
      %v7278 = vld [vmem:[%s8 + $0x334] sm:$0xff]
      %v7279 = vld [vmem:[%s8 + $0x33c] sm:$0xff]
      %v7280 = vld [vmem:[%s8 + $0x344] sm:$0xf]
      %v7281 = vld [vmem:[%s8 + $0x348] sm:$0xff]
      %v7282 = vld [vmem:[%s8 + $0x350] sm:$0xff]
      %v7283 = vld [vmem:[%s8 + $0x358] sm:$0xff]
      %v7284 = vld [vmem:[%s8 + $0x360] sm:$0xf]
      %v7285 = vld [vmem:[%s8 + $0x364] sm:$0xff]
      %v7286 = vld [vmem:[%s8 + $0x36c] sm:$0xff]
      %v7287 = vld [vmem:[%s8 + $0x374] sm:$0xff]
      %v7288 = vld [vmem:[%s8 + $0x37c] sm:$0xf]
      %v7289 = vld [vmem:[%s8 + $0x380] sm:$0xff]
      %v7290 = vld [vmem:[%s8 + $0x388] sm:$0xff]
      %v7291 = vld [vmem:[%s8 + $0x390] sm:$0xff]
      %v7292 = vld [vmem:[%s8 + $0x398] sm:$0xf]
      %v7293 = vld [vmem:[%s8 + $0x39c] sm:$0xff]
      %v7294 = vld [vmem:[%s8 + $0x3a4] sm:$0xff]
      %v7295 = vld [vmem:[%s8 + $0x3ac] sm:$0xff]
      %v7296 = vld [vmem:[%s8 + $0x3b4] sm:$0xf]
      %v7297 = vld [vmem:[%s8 + $0x3b8] sm:$0xff]
      %v7298 = vld [vmem:[%s8 + $0x3c0] sm:$0xff]
      %v7299 = vld [vmem:[%s8 + $0x3c8] sm:$0xff]
      %v7300 = vld [vmem:[%s8 + $0x3d0] sm:$0xf]
      %v7301 = vld [vmem:[%s8 + $0x3d4] sm:$0xff]
      %v7302 = vld [vmem:[%s8 + $0x3dc] sm:$0xff]
      %v7303 = vld [vmem:[%s8 + $0x3e4] sm:$0xff]
      %v7304 = vld [vmem:[%s8 + $0x3ec] sm:$0xf]
      %v7305 = vld [vmem:[%s8 + $0x3f0] sm:$0xff]
      %v7306 = vld [vmem:[%s8 + $0x3f8] sm:$0xff]
      %v7307 = vld [vmem:[%s8 + $0x400] sm:$0xff]
      %v7308 = vld [vmem:[%s8 + $0x408] sm:$0xf]
      %v7309 = vld [vmem:[%s8 + $0x40c] sm:$0xff]
      %v7310 = vld [vmem:[%s8 + $0x414] sm:$0xff]
      %v7311 = vld [vmem:[%s8 + $0x41c] sm:$0xff]
      %v7312 = vld [vmem:[%s8 + $0x424] sm:$0xf]
      %v7313 = vld [vmem:[%s8 + $0x428] sm:$0xff]
      %v7314 = vld [vmem:[%s8 + $0x430] sm:$0xff]
      %v7315 = vld [vmem:[%s8 + $0x438] sm:$0xff]
      %v7316 = vld [vmem:[%s8 + $0x440] sm:$0xf]
      %v7317 = vld [vmem:[%s8 + $0x444] sm:$0xff]
      %v7318 = vld [vmem:[%s8 + $0x44c] sm:$0xff]
      %v7319 = vld [vmem:[%s8 + $0x454] sm:$0xff]
      %v7320 = vld [vmem:[%s8 + $0x45c] sm:$0xf]
      %v7321 = vld [vmem:[%s8 + $0x460] sm:$0xff]
      %v7322 = vld [vmem:[%s8 + $0x468] sm:$0xff]
      %v7323 = vld [vmem:[%s8 + $0x470] sm:$0xff]
      %v7324 = vld [vmem:[%s8 + $0x478] sm:$0xf]
      %v7325 = vld [vmem:[%s8 + $0x47c] sm:$0xff]
      %v7326 = vld [vmem:[%s8 + $0x484] sm:$0xff]
      %v7327 = vld [vmem:[%s8 + $0x48c] sm:$0xff]
      %v7328 = vld [vmem:[%s8 + $0x494] sm:$0xf]
      %v7329 = vld [vmem:[%s8 + $0x498] sm:$0xff]
      %v7330 = vld [vmem:[%s8 + $0x4a0] sm:$0xff]
      %v7331 = vld [vmem:[%s8 + $0x4a8] sm:$0xff]
      %v7332 = vld [vmem:[%s8 + $0x4b0] sm:$0xf]
      %v7333 = vld [vmem:[%s8 + $0x4b4] sm:$0xff]
      %v7334 = vld [vmem:[%s8 + $0x4bc] sm:$0xff]
      %v7335 = vld [vmem:[%s8 + $0x4c4] sm:$0xff]
      %v7336 = vld [vmem:[%s8 + $0x4cc] sm:$0xf]
      %v7337 = vld [vmem:[%s8 + $0x4d0] sm:$0xff]
      %v7338 = vld [vmem:[%s8 + $0x4d8] sm:$0xff]
      %v7339 = vld [vmem:[%s8 + $0x4e0] sm:$0xff]
      %v7340 = vld [vmem:[%s8 + $0x4e8] sm:$0xf]
      %v7341 = vld [vmem:[%s8 + $0x4ec] sm:$0xff]
      %v7342 = vld [vmem:[%s8 + $0x4f4] sm:$0xff]
      %v7343 = vld [vmem:[%s8 + $0x4fc] sm:$0xff]
      %v7344 = vld [vmem:[%s8 + $0x504] sm:$0xf]
      %v7345 = vld [vmem:[%s8 + $0x508] sm:$0xff]
      %v7346 = vld [vmem:[%s8 + $0x510] sm:$0xff]
      %v7347 = vld [vmem:[%s8 + $0x518] sm:$0xff]
      %v7348 = vld [vmem:[%s8 + $0x520] sm:$0xf]
      %v7349 = vld [vmem:[%s8 + $0x524] sm:$0xff]
      %v7350 = vld [vmem:[%s8 + $0x52c] sm:$0xff]
      %v7351 = vld [vmem:[%s8 + $0x534] sm:$0xff]
      %v7352 = vld [vmem:[%s8 + $0x53c] sm:$0xf]
      %v7353 = vld [vmem:[%s8 + $0x540] sm:$0xff]
      %v7354 = vld [vmem:[%s8 + $0x548] sm:$0xff]
      %v7355 = vld [vmem:[%s8 + $0x550] sm:$0xff]
      %v7356 = vld [vmem:[%s8 + $0x558] sm:$0xf]
      %v7357 = vld [vmem:[%s8 + $0x55c] sm:$0xff]
      %v7358 = vld [vmem:[%s8 + $0x564] sm:$0xff]
      %v7359 = vld [vmem:[%s8 + $0x56c] sm:$0xff]
      %v7360 = vld [vmem:[%s8 + $0x574] sm:$0xf]
      %v7361 = vld [vmem:[%s8 + $0x578] sm:$0xff]
      %v7362 = vld [vmem:[%s8 + $0x580] sm:$0xff]
      %v7363 = vld [vmem:[%s8 + $0x588] sm:$0xff]
      %v7364 = vld [vmem:[%s8 + $0x590] sm:$0xf]
      %v7365 = vld [vmem:[%s8 + $0x594] sm:$0xff]
      %v7366 = vld [vmem:[%s8 + $0x59c] sm:$0xff]
      %v7367 = vld [vmem:[%s8 + $0x5a4] sm:$0xff]
      %v7368 = vld [vmem:[%s8 + $0x5ac] sm:$0xf]
      %v7369 = vld [vmem:[%s8 + $0x5b0] sm:$0xff]
      %v7370 = vld [vmem:[%s8 + $0x5b8] sm:$0xff]
      %v7371 = vld [vmem:[%s8 + $0x5c0] sm:$0xff]
      %v7372 = vld [vmem:[%s8 + $0x5c8] sm:$0xf]
      %v7373 = vld [vmem:[%s8 + $0x5cc] sm:$0xff]
      %v7374 = vld [vmem:[%s8 + $0x5d4] sm:$0xff]
      %v7375 = vld [vmem:[%s8 + $0x5dc] sm:$0xff]
      %v7376 = vld [vmem:[%s8 + $0x5e4] sm:$0xf]
      %v7377 = vld [vmem:[%s8 + $0x5e8] sm:$0xff]
      %v7378 = vld [vmem:[%s8 + $0x5f0] sm:$0xff]
      %v7379 = vld [vmem:[%s8 + $0x5f8] sm:$0xff]
      %v7380 = vld [vmem:[%s8 + $0x600] sm:$0xf]
      %v7381 = vld [vmem:[%s8 + $0x604] sm:$0xff]
      %v7382 = vld [vmem:[%s8 + $0x60c] sm:$0xff]
      %v7383 = vld [vmem:[%s8 + $0x614] sm:$0xff]
      %v7384 = vld [vmem:[%s8 + $0x61c] sm:$0xf]
      %v7385 = vld [vmem:[%s8 + $0x620] sm:$0xff]
      %v7386 = vld [vmem:[%s8 + $0x628] sm:$0xff]
      %v7387 = vld [vmem:[%s8 + $0x630] sm:$0xff]
      %v7388 = vld [vmem:[%s8 + $0x638] sm:$0xf]
      %v7389 = vld [vmem:[%s8 + $0x63c] sm:$0xff]
      %v7390 = vld [vmem:[%s8 + $0x644] sm:$0xff]
      %v7391 = vld [vmem:[%s8 + $0x64c] sm:$0xff]
      %v7392 = vld [vmem:[%s8 + $0x654] sm:$0xf]
      %v7393 = vld [vmem:[%s8 + $0x658] sm:$0xff]
      %v7394 = vld [vmem:[%s8 + $0x660] sm:$0xff]
      %v7395 = vld [vmem:[%s8 + $0x668] sm:$0xff]
      %v7396 = vld [vmem:[%s8 + $0x670] sm:$0xf]
      %v7397 = vld [vmem:[%s8 + $0x674] sm:$0xff]
      %v7398 = vld [vmem:[%s8 + $0x67c] sm:$0xff]
      %v7399 = vld [vmem:[%s8 + $0x684] sm:$0xff]
      %v7400 = vld [vmem:[%s8 + $0x68c] sm:$0xf]
      %v7401 = vld [vmem:[%s8 + $0x690] sm:$0xff]
      %v7402 = vld [vmem:[%s8 + $0x698] sm:$0xff]
      %v7403 = vld [vmem:[%s8 + $0x6a0] sm:$0xff]
      %v7404 = vld [vmem:[%s8 + $0x6a8] sm:$0xf]
      %v7405 = vld [vmem:[%s8 + $0x6ac] sm:$0xff]
      %v7406 = vld [vmem:[%s8 + $0x6b4] sm:$0xff]
      %v7407 = vld [vmem:[%s8 + $0x6bc] sm:$0xff]
      %v7408 = vld [vmem:[%s8 + $0x6c4] sm:$0xf]
      %v7409 = vld [vmem:[%s8 + $0x6c8] sm:$0xff]
      %v7410 = vld [vmem:[%s8 + $0x6d0] sm:$0xff]
      %v7411 = vld [vmem:[%s8 + $0x6d8] sm:$0xff]
      %v7412 = vld [vmem:[%s8 + $0x6e0] sm:$0xf]
      %v7413 = vld [vmem:[%s8 + $0x6e4] sm:$0xff]
      %v7414 = vld [vmem:[%s8 + $0x6ec] sm:$0xff]
      %v7415 = vld [vmem:[%s8 + $0x6f4] sm:$0xff]
      %v7416 = vld [vmem:[%s8 + $0x6fc] sm:$0xf]
      %v7417 = vld [vmem:[%s9] sm:$0x7f]
      %v7419 = vlaneseq
      %v7420 = vshrl.u32 %v7419, 7
      %v7421 = vsub.s32 0, %v7420
      %v7422 = vrot.slane %v7417, %v7421
      %v7423 = vlaneseq
      %v7424 = vshrl.u32 %v7423, 7
      %v7425 = vsub.s32 1, %v7424
      %v7426 = vrot.slane %v7417, %v7425
      %v7427 = vlaneseq
      %v7428 = vshrl.u32 %v7427, 7
      %v7429 = vsub.s32 2, %v7428
      %v7430 = vrot.slane %v7417, %v7429
      %v7431 = vlaneseq
      %v7432 = vshrl.u32 %v7431, 7
      %v7433 = vsub.s32 3, %v7432
      %v7434 = vrot.slane %v7417, %v7433
      %v7435 = vlaneseq
      %v7436 = vshrl.u32 %v7435, 7
      %v7437 = vsub.s32 4, %v7436
      %v7438 = vrot.slane %v7417, %v7437
      %v7439 = vlaneseq
      %v7440 = vshrl.u32 %v7439, 7
      %v7441 = vsub.s32 5, %v7440
      %v7442 = vrot.slane %v7417, %v7441
      %v7443 = vlaneseq
      %v7444 = vshrl.u32 %v7443, 7
      %v7445 = vsub.s32 6, %v7444
      %v7446 = vrot.slane %v7417, %v7445
      %v7710 = vunpack.c.l.b16 %v7161
      %v7711 = vunpack.c.h.b16 %v7161
      %v7712 = vunpack.c.l.b16 %v7162
      %v7713 = vunpack.c.h.b16 %v7162
      %v7714 = vunpack.c.l.b16 %v7163
      %v7715 = vunpack.c.h.b16 %v7163
      %v7716 = vunpack.c.l.b16 %v7164
      %v7717 = vunpack.c.l.b16 %v7165
      %v7718 = vunpack.c.h.b16 %v7165
      %v7719 = vunpack.c.l.b16 %v7166
      %v7720 = vunpack.c.h.b16 %v7166
      %v7721 = vunpack.c.l.b16 %v7167
      %v7722 = vunpack.c.h.b16 %v7167
      %v7723 = vunpack.c.l.b16 %v7168
      %v7724 = vunpack.c.l.b16 %v7169
      %v7725 = vunpack.c.h.b16 %v7169
      %v7726 = vunpack.c.l.b16 %v7170
      %v7727 = vunpack.c.h.b16 %v7170
      %v7728 = vunpack.c.l.b16 %v7171
      %v7729 = vunpack.c.h.b16 %v7171
      %v7730 = vunpack.c.l.b16 %v7172
      %v7731 = vunpack.c.l.b16 %v7173
      %v7732 = vunpack.c.h.b16 %v7173
      %v7733 = vunpack.c.l.b16 %v7174
      %v7734 = vunpack.c.h.b16 %v7174
      %v7735 = vunpack.c.l.b16 %v7175
      %v7736 = vunpack.c.h.b16 %v7175
      %v7737 = vunpack.c.l.b16 %v7176
      %v7738 = vunpack.c.l.b16 %v7177
      %v7739 = vunpack.c.h.b16 %v7177
      %v7740 = vunpack.c.l.b16 %v7178
      %v7741 = vunpack.c.h.b16 %v7178
      %v7742 = vunpack.c.l.b16 %v7179
      %v7743 = vunpack.c.h.b16 %v7179
      %v7744 = vunpack.c.l.b16 %v7180
      %v7745 = vunpack.c.l.b16 %v7181
      %v7746 = vunpack.c.h.b16 %v7181
      %v7747 = vunpack.c.l.b16 %v7182
      %v7748 = vunpack.c.h.b16 %v7182
      %v7749 = vunpack.c.l.b16 %v7183
      %v7750 = vunpack.c.h.b16 %v7183
      %v7751 = vunpack.c.l.b16 %v7184
      %v7752 = vunpack.c.l.b16 %v7185
      %v7753 = vunpack.c.h.b16 %v7185
      %v7754 = vunpack.c.l.b16 %v7186
      %v7755 = vunpack.c.h.b16 %v7186
      %v7756 = vunpack.c.l.b16 %v7187
      %v7757 = vunpack.c.h.b16 %v7187
      %v7758 = vunpack.c.l.b16 %v7188
      %v7759 = vunpack.c.l.b16 %v7189
      %v7760 = vunpack.c.h.b16 %v7189
      %v7761 = vunpack.c.l.b16 %v7190
      %v7762 = vunpack.c.h.b16 %v7190
      %v7763 = vunpack.c.l.b16 %v7191
      %v7764 = vunpack.c.h.b16 %v7191
      %v7765 = vunpack.c.l.b16 %v7192
      %v7766 = vunpack.c.l.b16 %v7193
      %v7767 = vunpack.c.h.b16 %v7193
      %v7768 = vunpack.c.l.b16 %v7194
      %v7769 = vunpack.c.h.b16 %v7194
      %v7770 = vunpack.c.l.b16 %v7195
      %v7771 = vunpack.c.h.b16 %v7195
      %v7772 = vunpack.c.l.b16 %v7196
      %v7773 = vunpack.c.l.b16 %v7197
      %v7774 = vunpack.c.h.b16 %v7197
      %v7775 = vunpack.c.l.b16 %v7198
      %v7776 = vunpack.c.h.b16 %v7198
      %v7777 = vunpack.c.l.b16 %v7199
      %v7778 = vunpack.c.h.b16 %v7199
      %v7779 = vunpack.c.l.b16 %v7200
      %v7780 = vunpack.c.l.b16 %v7201
      %v7781 = vunpack.c.h.b16 %v7201
      %v7782 = vunpack.c.l.b16 %v7202
      %v7783 = vunpack.c.h.b16 %v7202
      %v7784 = vunpack.c.l.b16 %v7203
      %v7785 = vunpack.c.h.b16 %v7203
      %v7786 = vunpack.c.l.b16 %v7204
      %v7787 = vunpack.c.l.b16 %v7205
      %v7788 = vunpack.c.h.b16 %v7205
      %v7789 = vunpack.c.l.b16 %v7206
      %v7790 = vunpack.c.h.b16 %v7206
      %v7791 = vunpack.c.l.b16 %v7207
      %v7792 = vunpack.c.h.b16 %v7207
      %v7793 = vunpack.c.l.b16 %v7208
      %v7794 = vunpack.c.l.b16 %v7209
      %v7795 = vunpack.c.h.b16 %v7209
      %v7796 = vunpack.c.l.b16 %v7210
      %v7797 = vunpack.c.h.b16 %v7210
      %v7798 = vunpack.c.l.b16 %v7211
      %v7799 = vunpack.c.h.b16 %v7211
      %v7800 = vunpack.c.l.b16 %v7212
      %v7801 = vunpack.c.l.b16 %v7213
      %v7802 = vunpack.c.h.b16 %v7213
      %v7803 = vunpack.c.l.b16 %v7214
      %v7804 = vunpack.c.h.b16 %v7214
      %v7805 = vunpack.c.l.b16 %v7215
      %v7806 = vunpack.c.h.b16 %v7215
      %v7807 = vunpack.c.l.b16 %v7216
      %v7808 = vunpack.c.l.b16 %v7217
      %v7809 = vunpack.c.h.b16 %v7217
      %v7810 = vunpack.c.l.b16 %v7218
      %v7811 = vunpack.c.h.b16 %v7218
      %v7812 = vunpack.c.l.b16 %v7219
      %v7813 = vunpack.c.h.b16 %v7219
      %v7814 = vunpack.c.l.b16 %v7220
      %v7815 = vunpack.c.l.b16 %v7221
      %v7816 = vunpack.c.h.b16 %v7221
      %v7817 = vunpack.c.l.b16 %v7222
      %v7818 = vunpack.c.h.b16 %v7222
      %v7819 = vunpack.c.l.b16 %v7223
      %v7820 = vunpack.c.h.b16 %v7223
      %v7821 = vunpack.c.l.b16 %v7224
      %v7822 = vunpack.c.l.b16 %v7225
      %v7823 = vunpack.c.h.b16 %v7225
      %v7824 = vunpack.c.l.b16 %v7226
      %v7825 = vunpack.c.h.b16 %v7226
      %v7826 = vunpack.c.l.b16 %v7227
      %v7827 = vunpack.c.h.b16 %v7227
      %v7828 = vunpack.c.l.b16 %v7228
      %v7829 = vunpack.c.l.b16 %v7229
      %v7830 = vunpack.c.h.b16 %v7229
      %v7831 = vunpack.c.l.b16 %v7230
      %v7832 = vunpack.c.h.b16 %v7230
      %v7833 = vunpack.c.l.b16 %v7231
      %v7834 = vunpack.c.h.b16 %v7231
      %v7835 = vunpack.c.l.b16 %v7232
      %v7836 = vunpack.c.l.b16 %v7233
      %v7837 = vunpack.c.h.b16 %v7233
      %v7838 = vunpack.c.l.b16 %v7234
      %v7839 = vunpack.c.h.b16 %v7234
      %v7840 = vunpack.c.l.b16 %v7235
      %v7841 = vunpack.c.h.b16 %v7235
      %v7842 = vunpack.c.l.b16 %v7236
      %v7843 = vunpack.c.l.b16 %v7237
      %v7844 = vunpack.c.h.b16 %v7237
      %v7845 = vunpack.c.l.b16 %v7238
      %v7846 = vunpack.c.h.b16 %v7238
      %v7847 = vunpack.c.l.b16 %v7239
      %v7848 = vunpack.c.h.b16 %v7239
      %v7849 = vunpack.c.l.b16 %v7240
      %v7850 = vunpack.c.l.b16 %v7241
      %v7851 = vunpack.c.h.b16 %v7241
      %v7852 = vunpack.c.l.b16 %v7242
      %v7853 = vunpack.c.h.b16 %v7242
      %v7854 = vunpack.c.l.b16 %v7243
      %v7855 = vunpack.c.h.b16 %v7243
      %v7856 = vunpack.c.l.b16 %v7244
      %v7857 = vunpack.c.l.b16 %v7245
      %v7858 = vunpack.c.h.b16 %v7245
      %v7859 = vunpack.c.l.b16 %v7246
      %v7860 = vunpack.c.h.b16 %v7246
      %v7861 = vunpack.c.l.b16 %v7247
      %v7862 = vunpack.c.h.b16 %v7247
      %v7863 = vunpack.c.l.b16 %v7248
      %v7864 = vunpack.c.l.b16 %v7249
      %v7865 = vunpack.c.h.b16 %v7249
      %v7866 = vunpack.c.l.b16 %v7250
      %v7867 = vunpack.c.h.b16 %v7250
      %v7868 = vunpack.c.l.b16 %v7251
      %v7869 = vunpack.c.h.b16 %v7251
      %v7870 = vunpack.c.l.b16 %v7252
      %v7871 = vunpack.c.l.b16 %v7253
      %v7872 = vunpack.c.h.b16 %v7253
      %v7873 = vunpack.c.l.b16 %v7254
      %v7874 = vunpack.c.h.b16 %v7254
      %v7875 = vunpack.c.l.b16 %v7255
      %v7876 = vunpack.c.h.b16 %v7255
      %v7877 = vunpack.c.l.b16 %v7256
      %v7878 = vunpack.c.l.b16 %v7257
      %v7879 = vunpack.c.h.b16 %v7257
      %v7880 = vunpack.c.l.b16 %v7258
      %v7881 = vunpack.c.h.b16 %v7258
      %v7882 = vunpack.c.l.b16 %v7259
      %v7883 = vunpack.c.h.b16 %v7259
      %v7884 = vunpack.c.l.b16 %v7260
      %v7885 = vunpack.c.l.b16 %v7261
      %v7886 = vunpack.c.h.b16 %v7261
      %v7887 = vunpack.c.l.b16 %v7262
      %v7888 = vunpack.c.h.b16 %v7262
      %v7889 = vunpack.c.l.b16 %v7263
      %v7890 = vunpack.c.h.b16 %v7263
      %v7891 = vunpack.c.l.b16 %v7264
      %v7892 = vunpack.c.l.b16 %v7265
      %v7893 = vunpack.c.h.b16 %v7265
      %v7894 = vunpack.c.l.b16 %v7266
      %v7895 = vunpack.c.h.b16 %v7266
      %v7896 = vunpack.c.l.b16 %v7267
      %v7897 = vunpack.c.h.b16 %v7267
      %v7898 = vunpack.c.l.b16 %v7268
      %v7899 = vunpack.c.l.b16 %v7269
      %v7900 = vunpack.c.h.b16 %v7269
      %v7901 = vunpack.c.l.b16 %v7270
      %v7902 = vunpack.c.h.b16 %v7270
      %v7903 = vunpack.c.l.b16 %v7271
      %v7904 = vunpack.c.h.b16 %v7271
      %v7905 = vunpack.c.l.b16 %v7272
      %v7906 = vunpack.c.l.b16 %v7273
      %v7907 = vunpack.c.h.b16 %v7273
      %v7908 = vunpack.c.l.b16 %v7274
      %v7909 = vunpack.c.h.b16 %v7274
      %v7910 = vunpack.c.l.b16 %v7275
      %v7911 = vunpack.c.h.b16 %v7275
      %v7912 = vunpack.c.l.b16 %v7276
      %v7913 = vunpack.c.l.b16 %v7277
      %v7914 = vunpack.c.h.b16 %v7277
      %v7915 = vunpack.c.l.b16 %v7278
      %v7916 = vunpack.c.h.b16 %v7278
      %v7917 = vunpack.c.l.b16 %v7279
      %v7918 = vunpack.c.h.b16 %v7279
      %v7919 = vunpack.c.l.b16 %v7280
      %v7920 = vunpack.c.l.b16 %v7281
      %v7921 = vunpack.c.h.b16 %v7281
      %v7922 = vunpack.c.l.b16 %v7282
      %v7923 = vunpack.c.h.b16 %v7282
      %v7924 = vunpack.c.l.b16 %v7283
      %v7925 = vunpack.c.h.b16 %v7283
      %v7926 = vunpack.c.l.b16 %v7284
      %v7927 = vunpack.c.l.b16 %v7285
      %v7928 = vunpack.c.h.b16 %v7285
      %v7929 = vunpack.c.l.b16 %v7286
      %v7930 = vunpack.c.h.b16 %v7286
      %v7931 = vunpack.c.l.b16 %v7287
      %v7932 = vunpack.c.h.b16 %v7287
      %v7933 = vunpack.c.l.b16 %v7288
      %v7934 = vunpack.c.l.b16 %v7289
      %v7935 = vunpack.c.h.b16 %v7289
      %v7936 = vunpack.c.l.b16 %v7290
      %v7937 = vunpack.c.h.b16 %v7290
      %v7938 = vunpack.c.l.b16 %v7291
      %v7939 = vunpack.c.h.b16 %v7291
      %v7940 = vunpack.c.l.b16 %v7292
      %v7941 = vunpack.c.l.b16 %v7293
      %v7942 = vunpack.c.h.b16 %v7293
      %v7943 = vunpack.c.l.b16 %v7294
      %v7944 = vunpack.c.h.b16 %v7294
      %v7945 = vunpack.c.l.b16 %v7295
      %v7946 = vunpack.c.h.b16 %v7295
      %v7947 = vunpack.c.l.b16 %v7296
      %v7948 = vunpack.c.l.b16 %v7297
      %v7949 = vunpack.c.h.b16 %v7297
      %v7950 = vunpack.c.l.b16 %v7298
      %v7951 = vunpack.c.h.b16 %v7298
      %v7952 = vunpack.c.l.b16 %v7299
      %v7953 = vunpack.c.h.b16 %v7299
      %v7954 = vunpack.c.l.b16 %v7300
      %v7955 = vunpack.c.l.b16 %v7301
      %v7956 = vunpack.c.h.b16 %v7301
      %v7957 = vunpack.c.l.b16 %v7302
      %v7958 = vunpack.c.h.b16 %v7302
      %v7959 = vunpack.c.l.b16 %v7303
      %v7960 = vunpack.c.h.b16 %v7303
      %v7961 = vunpack.c.l.b16 %v7304
      %v7962 = vunpack.c.l.b16 %v7305
      %v7963 = vunpack.c.h.b16 %v7305
      %v7964 = vunpack.c.l.b16 %v7306
      %v7965 = vunpack.c.h.b16 %v7306
      %v7966 = vunpack.c.l.b16 %v7307
      %v7967 = vunpack.c.h.b16 %v7307
      %v7968 = vunpack.c.l.b16 %v7308
      %v7969 = vunpack.c.l.b16 %v7309
      %v7970 = vunpack.c.h.b16 %v7309
      %v7971 = vunpack.c.l.b16 %v7310
      %v7972 = vunpack.c.h.b16 %v7310
      %v7973 = vunpack.c.l.b16 %v7311
      %v7974 = vunpack.c.h.b16 %v7311
      %v7975 = vunpack.c.l.b16 %v7312
      %v7976 = vunpack.c.l.b16 %v7313
      %v7977 = vunpack.c.h.b16 %v7313
      %v7978 = vunpack.c.l.b16 %v7314
      %v7979 = vunpack.c.h.b16 %v7314
      %v7980 = vunpack.c.l.b16 %v7315
      %v7981 = vunpack.c.h.b16 %v7315
      %v7982 = vunpack.c.l.b16 %v7316
      %v7983 = vunpack.c.l.b16 %v7317
      %v7984 = vunpack.c.h.b16 %v7317
      %v7985 = vunpack.c.l.b16 %v7318
      %v7986 = vunpack.c.h.b16 %v7318
      %v7987 = vunpack.c.l.b16 %v7319
      %v7988 = vunpack.c.h.b16 %v7319
      %v7989 = vunpack.c.l.b16 %v7320
      %v7990 = vunpack.c.l.b16 %v7321
      %v7991 = vunpack.c.h.b16 %v7321
      %v7992 = vunpack.c.l.b16 %v7322
      %v7993 = vunpack.c.h.b16 %v7322
      %v7994 = vunpack.c.l.b16 %v7323
      %v7995 = vunpack.c.h.b16 %v7323
      %v7996 = vunpack.c.l.b16 %v7324
      %v7997 = vunpack.c.l.b16 %v7325
      %v7998 = vunpack.c.h.b16 %v7325
      %v7999 = vunpack.c.l.b16 %v7326
      %v8000 = vunpack.c.h.b16 %v7326
      %v8001 = vunpack.c.l.b16 %v7327
      %v8002 = vunpack.c.h.b16 %v7327
      %v8003 = vunpack.c.l.b16 %v7328
      %v8004 = vunpack.c.l.b16 %v7329
      %v8005 = vunpack.c.h.b16 %v7329
      %v8006 = vunpack.c.l.b16 %v7330
      %v8007 = vunpack.c.h.b16 %v7330
      %v8008 = vunpack.c.l.b16 %v7331
      %v8009 = vunpack.c.h.b16 %v7331
      %v8010 = vunpack.c.l.b16 %v7332
      %v8011 = vunpack.c.l.b16 %v7333
      %v8012 = vunpack.c.h.b16 %v7333
      %v8013 = vunpack.c.l.b16 %v7334
      %v8014 = vunpack.c.h.b16 %v7334
      %v8015 = vunpack.c.l.b16 %v7335
      %v8016 = vunpack.c.h.b16 %v7335
      %v8017 = vunpack.c.l.b16 %v7336
      %v8018 = vunpack.c.l.b16 %v7337
      %v8019 = vunpack.c.h.b16 %v7337
      %v8020 = vunpack.c.l.b16 %v7338
      %v8021 = vunpack.c.h.b16 %v7338
      %v8022 = vunpack.c.l.b16 %v7339
      %v8023 = vunpack.c.h.b16 %v7339
      %v8024 = vunpack.c.l.b16 %v7340
      %v8025 = vunpack.c.l.b16 %v7341
      %v8026 = vunpack.c.h.b16 %v7341
      %v8027 = vunpack.c.l.b16 %v7342
      %v8028 = vunpack.c.h.b16 %v7342
      %v8029 = vunpack.c.l.b16 %v7343
      %v8030 = vunpack.c.h.b16 %v7343
      %v8031 = vunpack.c.l.b16 %v7344
      %v8032 = vunpack.c.l.b16 %v7345
      %v8033 = vunpack.c.h.b16 %v7345
      %v8034 = vunpack.c.l.b16 %v7346
      %v8035 = vunpack.c.h.b16 %v7346
      %v8036 = vunpack.c.l.b16 %v7347
      %v8037 = vunpack.c.h.b16 %v7347
      %v8038 = vunpack.c.l.b16 %v7348
      %v8039 = vunpack.c.l.b16 %v7349
      %v8040 = vunpack.c.h.b16 %v7349
      %v8041 = vunpack.c.l.b16 %v7350
      %v8042 = vunpack.c.h.b16 %v7350
      %v8043 = vunpack.c.l.b16 %v7351
      %v8044 = vunpack.c.h.b16 %v7351
      %v8045 = vunpack.c.l.b16 %v7352
      %v8046 = vunpack.c.l.b16 %v7353
      %v8047 = vunpack.c.h.b16 %v7353
      %v8048 = vunpack.c.l.b16 %v7354
      %v8049 = vunpack.c.h.b16 %v7354
      %v8050 = vunpack.c.l.b16 %v7355
      %v8051 = vunpack.c.h.b16 %v7355
      %v8052 = vunpack.c.l.b16 %v7356
      %v8053 = vunpack.c.l.b16 %v7357
      %v8054 = vunpack.c.h.b16 %v7357
      %v8055 = vunpack.c.l.b16 %v7358
      %v8056 = vunpack.c.h.b16 %v7358
      %v8057 = vunpack.c.l.b16 %v7359
      %v8058 = vunpack.c.h.b16 %v7359
      %v8059 = vunpack.c.l.b16 %v7360
      %v8060 = vunpack.c.l.b16 %v7361
      %v8061 = vunpack.c.h.b16 %v7361
      %v8062 = vunpack.c.l.b16 %v7362
      %v8063 = vunpack.c.h.b16 %v7362
      %v8064 = vunpack.c.l.b16 %v7363
      %v8065 = vunpack.c.h.b16 %v7363
      %v8066 = vunpack.c.l.b16 %v7364
      %v8067 = vunpack.c.l.b16 %v7365
      %v8068 = vunpack.c.h.b16 %v7365
      %v8069 = vunpack.c.l.b16 %v7366
      %v8070 = vunpack.c.h.b16 %v7366
      %v8071 = vunpack.c.l.b16 %v7367
      %v8072 = vunpack.c.h.b16 %v7367
      %v8073 = vunpack.c.l.b16 %v7368
      %v8074 = vunpack.c.l.b16 %v7369
      %v8075 = vunpack.c.h.b16 %v7369
      %v8076 = vunpack.c.l.b16 %v7370
      %v8077 = vunpack.c.h.b16 %v7370
      %v8078 = vunpack.c.l.b16 %v7371
      %v8079 = vunpack.c.h.b16 %v7371
      %v8080 = vunpack.c.l.b16 %v7372
      %v8081 = vunpack.c.l.b16 %v7373
      %v8082 = vunpack.c.h.b16 %v7373
      %v8083 = vunpack.c.l.b16 %v7374
      %v8084 = vunpack.c.h.b16 %v7374
      %v8085 = vunpack.c.l.b16 %v7375
      %v8086 = vunpack.c.h.b16 %v7375
      %v8087 = vunpack.c.l.b16 %v7376
      %v8088 = vunpack.c.l.b16 %v7377
      %v8089 = vunpack.c.h.b16 %v7377
      %v8090 = vunpack.c.l.b16 %v7378
      %v8091 = vunpack.c.h.b16 %v7378
      %v8092 = vunpack.c.l.b16 %v7379
      %v8093 = vunpack.c.h.b16 %v7379
      %v8094 = vunpack.c.l.b16 %v7380
      %v8095 = vunpack.c.l.b16 %v7381
      %v8096 = vunpack.c.h.b16 %v7381
      %v8097 = vunpack.c.l.b16 %v7382
      %v8098 = vunpack.c.h.b16 %v7382
      %v8099 = vunpack.c.l.b16 %v7383
      %v8100 = vunpack.c.h.b16 %v7383
      %v8101 = vunpack.c.l.b16 %v7384
      %v8102 = vunpack.c.l.b16 %v7385
      %v8103 = vunpack.c.h.b16 %v7385
      %v8104 = vunpack.c.l.b16 %v7386
      %v8105 = vunpack.c.h.b16 %v7386
      %v8106 = vunpack.c.l.b16 %v7387
      %v8107 = vunpack.c.h.b16 %v7387
      %v8108 = vunpack.c.l.b16 %v7388
      %v8109 = vunpack.c.l.b16 %v7389
      %v8110 = vunpack.c.h.b16 %v7389
      %v8111 = vunpack.c.l.b16 %v7390
      %v8112 = vunpack.c.h.b16 %v7390
      %v8113 = vunpack.c.l.b16 %v7391
      %v8114 = vunpack.c.h.b16 %v7391
      %v8115 = vunpack.c.l.b16 %v7392
      %v8116 = vunpack.c.l.b16 %v7393
      %v8117 = vunpack.c.h.b16 %v7393
      %v8118 = vunpack.c.l.b16 %v7394
      %v8119 = vunpack.c.h.b16 %v7394
      %v8120 = vunpack.c.l.b16 %v7395
      %v8121 = vunpack.c.h.b16 %v7395
      %v8122 = vunpack.c.l.b16 %v7396
      %v8123 = vunpack.c.l.b16 %v7397
      %v8124 = vunpack.c.h.b16 %v7397
      %v8125 = vunpack.c.l.b16 %v7398
      %v8126 = vunpack.c.h.b16 %v7398
      %v8127 = vunpack.c.l.b16 %v7399
      %v8128 = vunpack.c.h.b16 %v7399
      %v8129 = vunpack.c.l.b16 %v7400
      %v8130 = vunpack.c.l.b16 %v7401
      %v8131 = vunpack.c.h.b16 %v7401
      %v8132 = vunpack.c.l.b16 %v7402
      %v8133 = vunpack.c.h.b16 %v7402
      %v8134 = vunpack.c.l.b16 %v7403
      %v8135 = vunpack.c.h.b16 %v7403
      %v8136 = vunpack.c.l.b16 %v7404
      %v8137 = vunpack.c.l.b16 %v7405
      %v8138 = vunpack.c.h.b16 %v7405
      %v8139 = vunpack.c.l.b16 %v7406
      %v8140 = vunpack.c.h.b16 %v7406
      %v8141 = vunpack.c.l.b16 %v7407
      %v8142 = vunpack.c.h.b16 %v7407
      %v8143 = vunpack.c.l.b16 %v7408
      %v8144 = vunpack.c.l.b16 %v7409
      %v8145 = vunpack.c.h.b16 %v7409
      %v8146 = vunpack.c.l.b16 %v7410
      %v8147 = vunpack.c.h.b16 %v7410
      %v8148 = vunpack.c.l.b16 %v7411
      %v8149 = vunpack.c.h.b16 %v7411
      %v8150 = vunpack.c.l.b16 %v7412
      %v8151 = vunpack.c.l.b16 %v7413
      %v8152 = vunpack.c.h.b16 %v7413
      %v8153 = vunpack.c.l.b16 %v7414
      %v8154 = vunpack.c.h.b16 %v7414
      %v8155 = vunpack.c.l.b16 %v7415
      %v8156 = vunpack.c.h.b16 %v7415
      %v8157 = vunpack.c.l.b16 %v7416
      %v8158 = vpack.c.b16 %v7717, %v7710
      %v8159 = vpack.c.b16 %v7718, %v7711
      %v8160 = vpack.c.b16 %v7719, %v7712
      %v8161 = vpack.c.b16 %v7720, %v7713
      %v8162 = vpack.c.b16 %v7721, %v7714
      %v8163 = vpack.c.b16 %v7722, %v7715
      %v8164 = vpack.c.b16 %v7723, %v7716
      %v8165 = vpack.c.b16 %v7731, %v7724
      %v8166 = vpack.c.b16 %v7732, %v7725
      %v8167 = vpack.c.b16 %v7733, %v7726
      %v8168 = vpack.c.b16 %v7734, %v7727
      %v8169 = vpack.c.b16 %v7735, %v7728
      %v8170 = vpack.c.b16 %v7736, %v7729
      %v8171 = vpack.c.b16 %v7737, %v7730
      %v8172 = vpack.c.b16 %v7745, %v7738
      %v8173 = vpack.c.b16 %v7746, %v7739
      %v8174 = vpack.c.b16 %v7747, %v7740
      %v8175 = vpack.c.b16 %v7748, %v7741
      %v8176 = vpack.c.b16 %v7749, %v7742
      %v8177 = vpack.c.b16 %v7750, %v7743
      %v8178 = vpack.c.b16 %v7751, %v7744
      %v8179 = vpack.c.b16 %v7759, %v7752
      %v8180 = vpack.c.b16 %v7760, %v7753
      %v8181 = vpack.c.b16 %v7761, %v7754
      %v8182 = vpack.c.b16 %v7762, %v7755
      %v8183 = vpack.c.b16 %v7763, %v7756
      %v8184 = vpack.c.b16 %v7764, %v7757
      %v8185 = vpack.c.b16 %v7765, %v7758
      %v8186 = vpack.c.b16 %v7773, %v7766
      %v8187 = vpack.c.b16 %v7774, %v7767
      %v8188 = vpack.c.b16 %v7775, %v7768
      %v8189 = vpack.c.b16 %v7776, %v7769
      %v8190 = vpack.c.b16 %v7777, %v7770
      %v8191 = vpack.c.b16 %v7778, %v7771
      %v8192 = vpack.c.b16 %v7779, %v7772
      %v8193 = vpack.c.b16 %v7787, %v7780
      %v8194 = vpack.c.b16 %v7788, %v7781
      %v8195 = vpack.c.b16 %v7789, %v7782
      %v8196 = vpack.c.b16 %v7790, %v7783
      %v8197 = vpack.c.b16 %v7791, %v7784
      %v8198 = vpack.c.b16 %v7792, %v7785
      %v8199 = vpack.c.b16 %v7793, %v7786
      %v8200 = vpack.c.b16 %v7801, %v7794
      %v8201 = vpack.c.b16 %v7802, %v7795
      %v8202 = vpack.c.b16 %v7803, %v7796
      %v8203 = vpack.c.b16 %v7804, %v7797
      %v8204 = vpack.c.b16 %v7805, %v7798
      %v8205 = vpack.c.b16 %v7806, %v7799
      %v8206 = vpack.c.b16 %v7807, %v7800
      %v8207 = vpack.c.b16 %v7815, %v7808
      %v8208 = vpack.c.b16 %v7816, %v7809
      %v8209 = vpack.c.b16 %v7817, %v7810
      %v8210 = vpack.c.b16 %v7818, %v7811
      %v8211 = vpack.c.b16 %v7819, %v7812
      %v8212 = vpack.c.b16 %v7820, %v7813
      %v8213 = vpack.c.b16 %v7821, %v7814
      %v8214 = vpack.c.b16 %v7829, %v7822
      %v8215 = vpack.c.b16 %v7830, %v7823
      %v8216 = vpack.c.b16 %v7831, %v7824
      %v8217 = vpack.c.b16 %v7832, %v7825
      %v8218 = vpack.c.b16 %v7833, %v7826
      %v8219 = vpack.c.b16 %v7834, %v7827
      %v8220 = vpack.c.b16 %v7835, %v7828
      %v8221 = vpack.c.b16 %v7843, %v7836
      %v8222 = vpack.c.b16 %v7844, %v7837
      %v8223 = vpack.c.b16 %v7845, %v7838
      %v8224 = vpack.c.b16 %v7846, %v7839
      %v8225 = vpack.c.b16 %v7847, %v7840
      %v8226 = vpack.c.b16 %v7848, %v7841
      %v8227 = vpack.c.b16 %v7849, %v7842
      %v8228 = vpack.c.b16 %v7857, %v7850
      %v8229 = vpack.c.b16 %v7858, %v7851
      %v8230 = vpack.c.b16 %v7859, %v7852
      %v8231 = vpack.c.b16 %v7860, %v7853
      %v8232 = vpack.c.b16 %v7861, %v7854
      %v8233 = vpack.c.b16 %v7862, %v7855
      %v8234 = vpack.c.b16 %v7863, %v7856
      %v8235 = vpack.c.b16 %v7871, %v7864
      %v8236 = vpack.c.b16 %v7872, %v7865
      %v8237 = vpack.c.b16 %v7873, %v7866
      %v8238 = vpack.c.b16 %v7874, %v7867
      %v8239 = vpack.c.b16 %v7875, %v7868
      %v8240 = vpack.c.b16 %v7876, %v7869
      %v8241 = vpack.c.b16 %v7877, %v7870
      %v8242 = vpack.c.b16 %v7885, %v7878
      %v8243 = vpack.c.b16 %v7886, %v7879
      %v8244 = vpack.c.b16 %v7887, %v7880
      %v8245 = vpack.c.b16 %v7888, %v7881
      %v8246 = vpack.c.b16 %v7889, %v7882
      %v8247 = vpack.c.b16 %v7890, %v7883
      %v8248 = vpack.c.b16 %v7891, %v7884
      %v8249 = vpack.c.b16 %v7899, %v7892
      %v8250 = vpack.c.b16 %v7900, %v7893
      %v8251 = vpack.c.b16 %v7901, %v7894
      %v8252 = vpack.c.b16 %v7902, %v7895
      %v8253 = vpack.c.b16 %v7903, %v7896
      %v8254 = vpack.c.b16 %v7904, %v7897
      %v8255 = vpack.c.b16 %v7905, %v7898
      %v8256 = vpack.c.b16 %v7913, %v7906
      %v8257 = vpack.c.b16 %v7914, %v7907
      %v8258 = vpack.c.b16 %v7915, %v7908
      %v8259 = vpack.c.b16 %v7916, %v7909
      %v8260 = vpack.c.b16 %v7917, %v7910
      %v8261 = vpack.c.b16 %v7918, %v7911
      %v8262 = vpack.c.b16 %v7919, %v7912
      %v8263 = vpack.c.b16 %v7927, %v7920
      %v8264 = vpack.c.b16 %v7928, %v7921
      %v8265 = vpack.c.b16 %v7929, %v7922
      %v8266 = vpack.c.b16 %v7930, %v7923
      %v8267 = vpack.c.b16 %v7931, %v7924
      %v8268 = vpack.c.b16 %v7932, %v7925
      %v8269 = vpack.c.b16 %v7933, %v7926
      %v8270 = vpack.c.b16 %v7941, %v7934
      %v8271 = vpack.c.b16 %v7942, %v7935
      %v8272 = vpack.c.b16 %v7943, %v7936
      %v8273 = vpack.c.b16 %v7944, %v7937
      %v8274 = vpack.c.b16 %v7945, %v7938
      %v8275 = vpack.c.b16 %v7946, %v7939
      %v8276 = vpack.c.b16 %v7947, %v7940
      %v8277 = vpack.c.b16 %v7955, %v7948
      %v8278 = vpack.c.b16 %v7956, %v7949
      %v8279 = vpack.c.b16 %v7957, %v7950
      %v8280 = vpack.c.b16 %v7958, %v7951
      %v8281 = vpack.c.b16 %v7959, %v7952
      %v8282 = vpack.c.b16 %v7960, %v7953
      %v8283 = vpack.c.b16 %v7961, %v7954
      %v8284 = vpack.c.b16 %v7969, %v7962
      %v8285 = vpack.c.b16 %v7970, %v7963
      %v8286 = vpack.c.b16 %v7971, %v7964
      %v8287 = vpack.c.b16 %v7972, %v7965
      %v8288 = vpack.c.b16 %v7973, %v7966
      %v8289 = vpack.c.b16 %v7974, %v7967
      %v8290 = vpack.c.b16 %v7975, %v7968
      %v8291 = vpack.c.b16 %v7983, %v7976
      %v8292 = vpack.c.b16 %v7984, %v7977
      %v8293 = vpack.c.b16 %v7985, %v7978
      %v8294 = vpack.c.b16 %v7986, %v7979
      %v8295 = vpack.c.b16 %v7987, %v7980
      %v8296 = vpack.c.b16 %v7988, %v7981
      %v8297 = vpack.c.b16 %v7989, %v7982
      %v8298 = vpack.c.b16 %v7997, %v7990
      %v8299 = vpack.c.b16 %v7998, %v7991
      %v8300 = vpack.c.b16 %v7999, %v7992
      %v8301 = vpack.c.b16 %v8000, %v7993
      %v8302 = vpack.c.b16 %v8001, %v7994
      %v8303 = vpack.c.b16 %v8002, %v7995
      %v8304 = vpack.c.b16 %v8003, %v7996
      %v8305 = vpack.c.b16 %v8011, %v8004
      %v8306 = vpack.c.b16 %v8012, %v8005
      %v8307 = vpack.c.b16 %v8013, %v8006
      %v8308 = vpack.c.b16 %v8014, %v8007
      %v8309 = vpack.c.b16 %v8015, %v8008
      %v8310 = vpack.c.b16 %v8016, %v8009
      %v8311 = vpack.c.b16 %v8017, %v8010
      %v8312 = vpack.c.b16 %v8025, %v8018
      %v8313 = vpack.c.b16 %v8026, %v8019
      %v8314 = vpack.c.b16 %v8027, %v8020
      %v8315 = vpack.c.b16 %v8028, %v8021
      %v8316 = vpack.c.b16 %v8029, %v8022
      %v8317 = vpack.c.b16 %v8030, %v8023
      %v8318 = vpack.c.b16 %v8031, %v8024
      %v8319 = vpack.c.b16 %v8039, %v8032
      %v8320 = vpack.c.b16 %v8040, %v8033
      %v8321 = vpack.c.b16 %v8041, %v8034
      %v8322 = vpack.c.b16 %v8042, %v8035
      %v8323 = vpack.c.b16 %v8043, %v8036
      %v8324 = vpack.c.b16 %v8044, %v8037
      %v8325 = vpack.c.b16 %v8045, %v8038
      %v8326 = vpack.c.b16 %v8053, %v8046
      %v8327 = vpack.c.b16 %v8054, %v8047
      %v8328 = vpack.c.b16 %v8055, %v8048
      %v8329 = vpack.c.b16 %v8056, %v8049
      %v8330 = vpack.c.b16 %v8057, %v8050
      %v8331 = vpack.c.b16 %v8058, %v8051
      %v8332 = vpack.c.b16 %v8059, %v8052
      %v8333 = vpack.c.b16 %v8067, %v8060
      %v8334 = vpack.c.b16 %v8068, %v8061
      %v8335 = vpack.c.b16 %v8069, %v8062
      %v8336 = vpack.c.b16 %v8070, %v8063
      %v8337 = vpack.c.b16 %v8071, %v8064
      %v8338 = vpack.c.b16 %v8072, %v8065
      %v8339 = vpack.c.b16 %v8073, %v8066
      %v8340 = vpack.c.b16 %v8081, %v8074
      %v8341 = vpack.c.b16 %v8082, %v8075
      %v8342 = vpack.c.b16 %v8083, %v8076
      %v8343 = vpack.c.b16 %v8084, %v8077
      %v8344 = vpack.c.b16 %v8085, %v8078
      %v8345 = vpack.c.b16 %v8086, %v8079
      %v8346 = vpack.c.b16 %v8087, %v8080
      %v8347 = vpack.c.b16 %v8095, %v8088
      %v8348 = vpack.c.b16 %v8096, %v8089
      %v8349 = vpack.c.b16 %v8097, %v8090
      %v8350 = vpack.c.b16 %v8098, %v8091
      %v8351 = vpack.c.b16 %v8099, %v8092
      %v8352 = vpack.c.b16 %v8100, %v8093
      %v8353 = vpack.c.b16 %v8101, %v8094
      %v8354 = vpack.c.b16 %v8109, %v8102
      %v8355 = vpack.c.b16 %v8110, %v8103
      %v8356 = vpack.c.b16 %v8111, %v8104
      %v8357 = vpack.c.b16 %v8112, %v8105
      %v8358 = vpack.c.b16 %v8113, %v8106
      %v8359 = vpack.c.b16 %v8114, %v8107
      %v8360 = vpack.c.b16 %v8115, %v8108
      %v8361 = vpack.c.b16 %v8123, %v8116
      %v8362 = vpack.c.b16 %v8124, %v8117
      %v8363 = vpack.c.b16 %v8125, %v8118
      %v8364 = vpack.c.b16 %v8126, %v8119
      %v8365 = vpack.c.b16 %v8127, %v8120
      %v8366 = vpack.c.b16 %v8128, %v8121
      %v8367 = vpack.c.b16 %v8129, %v8122
      %v8368 = vpack.c.b16 %v8137, %v8130
      %v8369 = vpack.c.b16 %v8138, %v8131
      %v8370 = vpack.c.b16 %v8139, %v8132
      %v8371 = vpack.c.b16 %v8140, %v8133
      %v8372 = vpack.c.b16 %v8141, %v8134
      %v8373 = vpack.c.b16 %v8142, %v8135
      %v8374 = vpack.c.b16 %v8143, %v8136
      %v8375 = vpack.c.b16 %v8151, %v8144
      %v8376 = vpack.c.b16 %v8152, %v8145
      %v8377 = vpack.c.b16 %v8153, %v8146
      %v8378 = vpack.c.b16 %v8154, %v8147
      %v8379 = vpack.c.b16 %v8155, %v8148
      %v8380 = vpack.c.b16 %v8156, %v8149
      %v8381 = vpack.c.b16 %v8157, %v8150
      %8606 = vmatprep.subr.bf16.mxu0 %v8159
      %8607 = vmatpush1.bf16.msra.mxu0 %v8158
      %8608 = vmatprep.subr.bf16.mxu0 %v8166
      %8609 = vmatpush1.bf16.msra.mxu0 %v8165
      %8610 = vmatprep.subr.bf16.mxu0 %v8173
      %8611 = vmatpush1.bf16.msra.mxu0 %v8172
      %8612 = vmatprep.subr.bf16.mxu0 %v8180
      %8613 = vmatpush1.bf16.msra.mxu0 %v8179
      %8614 = vmatprep.subr.bf16.mxu0 %v8187
      %8615 = vmatpush1.bf16.msra.mxu0 %v8186
      %8616 = vmatprep.subr.bf16.mxu0 %v8194
      %8617 = vmatpush1.bf16.msra.mxu0 %v8193
      %8618 = vmatprep.subr.bf16.mxu0 %v8201
      %8619 = vmatpush1.bf16.msra.mxu0 %v8200
      %8620 = vmatprep.subr.bf16.mxu0 %v8208
      %8621 = vmatpush1.bf16.msra.mxu0 %v8207
      %8622 = vmatprep.subr.bf16.mxu0 %v8215
      %8623 = vmatpush1.bf16.msra.mxu0 %v8214
      %8624 = vmatprep.subr.bf16.mxu0 %v8222
      %8625 = vmatpush1.bf16.msra.mxu0 %v8221
      %8626 = vmatprep.subr.bf16.mxu0 %v8229
      %8627 = vmatpush1.bf16.msra.mxu0 %v8228
      %8628 = vmatprep.subr.bf16.mxu0 %v8236
      %8629 = vmatpush1.bf16.msra.mxu0 %v8235
      %8630 = vmatprep.subr.bf16.mxu0 %v8243
      %8631 = vmatpush1.bf16.msra.mxu0 %v8242
      %8632 = vmatprep.subr.bf16.mxu0 %v8250
      %8633 = vmatpush1.bf16.msra.mxu0 %v8249
      %8634 = vmatprep.subr.bf16.mxu0 %v8257
      %8635 = vmatpush1.bf16.msra.mxu0 %v8256
      %8636 = vmatprep.subr.bf16.mxu0 %v8264
      %8637 = vmatpush1.bf16.msra.mxu0 %v8263
      %8638 = vmatprep.mubr.bf16.mxu0 %v7098
      %8639 = vmatmul.mubr.bf16.gmra.mrb[0].mxu0 %v7097
      %v8640 = vpop.f32.mrb[0].mxu0
      %v8641 = vadd.f32 %v7422, %v8640
      %v8642 = vpop.f32.mrb[0].mxu0
      %v8643 = vadd.f32 %v7426, %v8642
      %v8644 = vpop.f32.mrb[0].mxu0
      %v8645 = vadd.f32 %v7422, %v8644
      %v8646 = vpop.f32.mrb[0].mxu0
      %v8647 = vadd.f32 %v7426, %v8646
      %8648 = vmatprep.mubr.bf16.mxu0 %v7102
      %8649 = vmatmul.mubr.bf16.gmra.mrb[0].mxu0 %v7101
      %v8650 = vpop.f32.mrb[0].mxu0
      %v8651 = vadd.f32 %v7422, %v8650
      %v8652 = vpop.f32.mrb[0].mxu0
      %v8653 = vadd.f32 %v7426, %v8652
      %v8654 = vpop.f32.mrb[0].mxu0
      %v8655 = vadd.f32 %v7422, %v8654
      %v8656 = vpop.f32.mrb[0].mxu0
      %v8657 = vadd.f32 %v7426, %v8656
      %8658 = vmatprep.mubr.bf16.mxu0 %v7106
      %8659 = vmatmul.mubr.bf16.gmra.mrb[0].mxu0 %v7105
      %v8660 = vpop.f32.mrb[0].mxu0
      %v8661 = vadd.f32 %v7422, %v8660
      %v8662 = vpop.f32.mrb[0].mxu0
      %v8663 = vadd.f32 %v7426, %v8662
      %v8664 = vpop.f32.mrb[0].mxu0
      %v8665 = vadd.f32 %v7422, %v8664
      %v8666 = vpop.f32.mrb[0].mxu0
      %v8667 = vadd.f32 %v7426, %v8666
      %8668 = vmatprep.mubr.bf16.mxu0 %v7110
      %8669 = vmatmul.mubr.bf16.gmra.mrb[0].mxu0 %v7109
      %v8670 = vpop.f32.mrb[0].mxu0
      %v8671 = vadd.f32 %v7422, %v8670
      %v8672 = vpop.f32.mrb[0].mxu0
      %v8673 = vadd.f32 %v7426, %v8672
      %v8674 = vpop.f32.mrb[0].mxu0
      %v8675 = vadd.f32 %v7422, %v8674
      %v8676 = vpop.f32.mrb[0].mxu0
      %v8677 = vadd.f32 %v7426, %v8676
      %8678 = vmatprep.mubr.bf16.mxu0 %v7114
      %8679 = vmatmul.mubr.bf16.gmra.mrb[0].mxu0 %v7113
      %v8680 = vpop.f32.mrb[0].mxu0
      %v8681 = vadd.f32 %v7422, %v8680
      %v8682 = vpop.f32.mrb[0].mxu0
      %v8683 = vadd.f32 %v7426, %v8682
      %v8684 = vpop.f32.mrb[0].mxu0
      %v8685 = vadd.f32 %v7422, %v8684
      %v8686 = vpop.f32.mrb[0].mxu0
      %v8687 = vadd.f32 %v7426, %v8686
      %8688 = vmatprep.mubr.bf16.mxu0 %v7118
      %8689 = vmatmul.mubr.bf16.gmra.mrb[0].mxu0 %v7117
      %v8690 = vpop.f32.mrb[0].mxu0
      %v8691 = vadd.f32 %v7422, %v8690
      %v8692 = vpop.f32.mrb[0].mxu0
      %v8693 = vadd.f32 %v7426, %v8692
      %v8694 = vpop.f32.mrb[0].mxu0
      %v8695 = vadd.f32 %v7422, %v8694
      %v8696 = vpop.f32.mrb[0].mxu0
      %v8697 = vadd.f32 %v7426, %v8696
      %8698 = vmatprep.mubr.bf16.mxu0 %v7122
      %8699 = vmatmul.mubr.bf16.gmra.mrb[0].mxu0 %v7121
      %v8700 = vpop.f32.mrb[0].mxu0
      %v8701 = vadd.f32 %v7422, %v8700
      %v8702 = vpop.f32.mrb[0].mxu0
      %v8703 = vadd.f32 %v7426, %v8702
      %v8704 = vpop.f32.mrb[0].mxu0
      %v8705 = vadd.f32 %v7422, %v8704
      %v8706 = vpop.f32.mrb[0].mxu0
      %v8707 = vadd.f32 %v7426, %v8706
      %8708 = vmatprep.mubr.bf16.mxu0 %v7126
      %8709 = vmatmul.mubr.bf16.gmra.mrb[0].mxu0 %v7125
      %v8710 = vpop.f32.mrb[0].mxu0
      %v8711 = vadd.f32 %v7422, %v8710
      %v8712 = vpop.f32.mrb[0].mxu0
      %v8713 = vadd.f32 %v7426, %v8712
      %v8714 = vpop.f32.mrb[0].mxu0
      %v8715 = vadd.f32 %v7422, %v8714
      %v8716 = vpop.f32.mrb[0].mxu0
      %v8717 = vadd.f32 %v7426, %v8716
      %8718 = vmatprep.mubr.bf16.mxu0 %v7130
      %8719 = vmatmul.mubr.bf16.gmra.mrb[0].mxu0 %v7129
      %v8720 = vpop.f32.mrb[0].mxu0
      %v8721 = vadd.f32 %v7422, %v8720
      %v8722 = vpop.f32.mrb[0].mxu0
      %v8723 = vadd.f32 %v7426, %v8722
      %v8724 = vpop.f32.mrb[0].mxu0
      %v8725 = vadd.f32 %v7422, %v8724
      %v8726 = vpop.f32.mrb[0].mxu0
      %v8727 = vadd.f32 %v7426, %v8726
      %8728 = vmatprep.mubr.bf16.mxu0 %v7134
      %8729 = vmatmul.mubr.bf16.gmra.mrb[0].mxu0 %v7133
      %v8730 = vpop.f32.mrb[0].mxu0
      %v8731 = vadd.f32 %v7422, %v8730
      %v8732 = vpop.f32.mrb[0].mxu0
      %v8733 = vadd.f32 %v7426, %v8732
      %v8734 = vpop.f32.mrb[0].mxu0
      %v8735 = vadd.f32 %v7422, %v8734
      %v8736 = vpop.f32.mrb[0].mxu0
      %v8737 = vadd.f32 %v7426, %v8736
      %8738 = vmatprep.mubr.bf16.mxu0 %v7138
      %8739 = vmatmul.mubr.bf16.gmra.mrb[0].mxu0 %v7137
      %v8740 = vpop.f32.mrb[0].mxu0
      %v8741 = vadd.f32 %v7422, %v8740
      %v8742 = vpop.f32.mrb[0].mxu0
      %v8743 = vadd.f32 %v7426, %v8742
      %v8744 = vpop.f32.mrb[0].mxu0
      %v8745 = vadd.f32 %v7422, %v8744
      %v8746 = vpop.f32.mrb[0].mxu0
      %v8747 = vadd.f32 %v7426, %v8746
      %8748 = vmatprep.mubr.bf16.mxu0 %v7142
      %8749 = vmatmul.mubr.bf16.gmra.mrb[0].mxu0 %v7141
      %v8750 = vpop.f32.mrb[0].mxu0
      %v8751 = vadd.f32 %v7422, %v8750
      %v8752 = vpop.f32.mrb[0].mxu0
      %v8753 = vadd.f32 %v7426, %v8752
      %v8754 = vpop.f32.mrb[0].mxu0
      %v8755 = vadd.f32 %v7422, %v8754
      %v8756 = vpop.f32.mrb[0].mxu0
      %v8757 = vadd.f32 %v7426, %v8756
      %8758 = vmatprep.mubr.bf16.mxu0 %v7146
      %8759 = vmatmul.mubr.bf16.gmra.mrb[0].mxu0 %v7145
      %v8760 = vpop.f32.mrb[0].mxu0
      %v8761 = vadd.f32 %v7422, %v8760
      %v8762 = vpop.f32.mrb[0].mxu0
      %v8763 = vadd.f32 %v7426, %v8762
      %v8764 = vpop.f32.mrb[0].mxu0
      %v8765 = vadd.f32 %v7422, %v8764
      %v8766 = vpop.f32.mrb[0].mxu0
      %v8767 = vadd.f32 %v7426, %v8766
      %8768 = vmatprep.mubr.bf16.mxu0 %v7150
      %8769 = vmatmul.mubr.bf16.gmra.mrb[0].mxu0 %v7149
      %v8770 = vpop.f32.mrb[0].mxu0
      %v8771 = vadd.f32 %v7422, %v8770
      %v8772 = vpop.f32.mrb[0].mxu0
      %v8773 = vadd.f32 %v7426, %v8772
      %v8774 = vpop.f32.mrb[0].mxu0
      %v8775 = vadd.f32 %v7422, %v8774
      %v8776 = vpop.f32.mrb[0].mxu0
      %v8777 = vadd.f32 %v7426, %v8776
      %8778 = vmatprep.mubr.bf16.mxu0 %v7154
      %8779 = vmatmul.mubr.bf16.gmra.mrb[0].mxu0 %v7153
      %v8780 = vpop.f32.mrb[0].mxu0
      %v8781 = vadd.f32 %v7422, %v8780
      %v8782 = vpop.f32.mrb[0].mxu0
      %v8783 = vadd.f32 %v7426, %v8782
      %v8784 = vpop.f32.mrb[0].mxu0
      %v8785 = vadd.f32 %v7422, %v8784
      %v8786 = vpop.f32.mrb[0].mxu0
      %v8787 = vadd.f32 %v7426, %v8786
      %8788 = vmatprep.mubr.bf16.mxu0 %v7158
      %8789 = vmatmul.mubr.bf16.gmra.mrb[0].mxu0 %v7157
      %v8790 = vpop.f32.mrb[0].mxu0
      %v8791 = vadd.f32 %v7422, %v8790
      %v8792 = vpop.f32.mrb[0].mxu0
      %v8793 = vadd.f32 %v7426, %v8792
      %v8794 = vpop.f32.mrb[0].mxu0
      %v8795 = vadd.f32 %v7422, %v8794
      %v8796 = vpop.f32.mrb[0].mxu0
      %v8797 = vadd.f32 %v7426, %v8796
      %8798 = vdwg.mxu0
      %8799 = vmatprep.subr.bf16.mxu0 %v8271
      %8800 = vmatpush1.bf16.msra.mxu0 %v8270
      %8801 = vmatprep.subr.bf16.mxu0 %v8278
      %8802 = vmatpush1.bf16.msra.mxu0 %v8277
      %8803 = vmatprep.subr.bf16.mxu0 %v8285
      %8804 = vmatpush1.bf16.msra.mxu0 %v8284
      %8805 = vmatprep.subr.bf16.mxu0 %v8292
      %8806 = vmatpush1.bf16.msra.mxu0 %v8291
      %8807 = vmatprep.subr.bf16.mxu0 %v8299
      %8808 = vmatpush1.bf16.msra.mxu0 %v8298
      %8809 = vmatprep.subr.bf16.mxu0 %v8306
      %8810 = vmatpush1.bf16.msra.mxu0 %v8305
      %8811 = vmatprep.subr.bf16.mxu0 %v8313
      %8812 = vmatpush1.bf16.msra.mxu0 %v8312
      %8813 = vmatprep.subr.bf16.mxu0 %v8320
      %8814 = vmatpush1.bf16.msra.mxu0 %v8319
      %8815 = vmatprep.subr.bf16.mxu0 %v8327
      %8816 = vmatpush1.bf16.msra.mxu0 %v8326
      %8817 = vmatprep.subr.bf16.mxu0 %v8334
      %8818 = vmatpush1.bf16.msra.mxu0 %v8333
      %8819 = vmatprep.subr.bf16.mxu0 %v8341
      %8820 = vmatpush1.bf16.msra.mxu0 %v8340
      %8821 = vmatprep.subr.bf16.mxu0 %v8348
      %8822 = vmatpush1.bf16.msra.mxu0 %v8347
      %8823 = vmatprep.subr.bf16.mxu0 %v8355
      %8824 = vmatpush1.bf16.msra.mxu0 %v8354
      %8825 = vmatprep.subr.bf16.mxu0 %v8362
      %8826 = vmatpush1.bf16.msra.mxu0 %v8361
      %8827 = vmatprep.subr.bf16.mxu0 %v8369
      %8828 = vmatpush1.bf16.msra.mxu0 %v8368
      %8829 = vmatprep.subr.bf16.mxu0 %v8376
      %8830 = vmatpush1.bf16.msra.mxu0 %v8375
      %8831 = vmatprep.mubr.bf16.mxu0 %v7100
      %8832 = vmatmul.mubr.bf16.gmra.mrb[0].mxu0 %v7099
      %v8833 = vpop.f32.mrb[0].mxu0
      %v8834 = vadd.f32 %v8641, %v8833
      %v8835 = vpop.f32.mrb[0].mxu0
      %v8836 = vadd.f32 %v8643, %v8835
      %v8837 = vpop.f32.mrb[0].mxu0
      %v8838 = vadd.f32 %v8645, %v8837
      %v8839 = vpop.f32.mrb[0].mxu0
      %v8840 = vadd.f32 %v8647, %v8839
      %8841 = vmatprep.mubr.bf16.mxu0 %v7104
      %8842 = vmatmul.mubr.bf16.gmra.mrb[0].mxu0 %v7103
      %v8843 = vpop.f32.mrb[0].mxu0
      %v8844 = vadd.f32 %v8651, %v8843
      %v8845 = vpop.f32.mrb[0].mxu0
      %v8846 = vadd.f32 %v8653, %v8845
      %v8847 = vpop.f32.mrb[0].mxu0
      %v8848 = vadd.f32 %v8655, %v8847
      %v8849 = vpop.f32.mrb[0].mxu0
      %v8850 = vadd.f32 %v8657, %v8849
      %8851 = vmatprep.mubr.bf16.mxu0 %v7108
      %8852 = vmatmul.mubr.bf16.gmra.mrb[0].mxu0 %v7107
      %v8853 = vpop.f32.mrb[0].mxu0
      %v8854 = vadd.f32 %v8661, %v8853
      %v8855 = vpop.f32.mrb[0].mxu0
      %v8856 = vadd.f32 %v8663, %v8855
      %v8857 = vpop.f32.mrb[0].mxu0
      %v8858 = vadd.f32 %v8665, %v8857
      %v8859 = vpop.f32.mrb[0].mxu0
      %v8860 = vadd.f32 %v8667, %v8859
      %8861 = vmatprep.mubr.bf16.mxu0 %v7112
      %8862 = vmatmul.mubr.bf16.gmra.mrb[0].mxu0 %v7111
      %v8863 = vpop.f32.mrb[0].mxu0
      %v8864 = vadd.f32 %v8671, %v8863
      %v8865 = vpop.f32.mrb[0].mxu0
      %v8866 = vadd.f32 %v8673, %v8865
      %v8867 = vpop.f32.mrb[0].mxu0
      %v8868 = vadd.f32 %v8675, %v8867
      %v8869 = vpop.f32.mrb[0].mxu0
      %v8870 = vadd.f32 %v8677, %v8869
      %8871 = vmatprep.mubr.bf16.mxu0 %v7116
      %8872 = vmatmul.mubr.bf16.gmra.mrb[0].mxu0 %v7115
      %v8873 = vpop.f32.mrb[0].mxu0
      %v8874 = vadd.f32 %v8681, %v8873
      %v8875 = vpop.f32.mrb[0].mxu0
      %v8876 = vadd.f32 %v8683, %v8875
      %v8877 = vpop.f32.mrb[0].mxu0
      %v8878 = vadd.f32 %v8685, %v8877
      %v8879 = vpop.f32.mrb[0].mxu0
      %v8880 = vadd.f32 %v8687, %v8879
      %8881 = vmatprep.mubr.bf16.mxu0 %v7120
      %8882 = vmatmul.mubr.bf16.gmra.mrb[0].mxu0 %v7119
      %v8883 = vpop.f32.mrb[0].mxu0
      %v8884 = vadd.f32 %v8691, %v8883
      %v8885 = vpop.f32.mrb[0].mxu0
      %v8886 = vadd.f32 %v8693, %v8885
      %v8887 = vpop.f32.mrb[0].mxu0
      %v8888 = vadd.f32 %v8695, %v8887
      %v8889 = vpop.f32.mrb[0].mxu0
      %v8890 = vadd.f32 %v8697, %v8889
      %8891 = vmatprep.mubr.bf16.mxu0 %v7124
      %8892 = vmatmul.mubr.bf16.gmra.mrb[0].mxu0 %v7123
      %v8893 = vpop.f32.mrb[0].mxu0
      %v8894 = vadd.f32 %v8701, %v8893
      %v8895 = vpop.f32.mrb[0].mxu0
      %v8896 = vadd.f32 %v8703, %v8895
      %v8897 = vpop.f32.mrb[0].mxu0
      %v8898 = vadd.f32 %v8705, %v8897
      %v8899 = vpop.f32.mrb[0].mxu0
      %v8900 = vadd.f32 %v8707, %v8899
      %8901 = vmatprep.mubr.bf16.mxu0 %v7128
      %8902 = vmatmul.mubr.bf16.gmra.mrb[0].mxu0 %v7127
      %v8903 = vpop.f32.mrb[0].mxu0
      %v8904 = vadd.f32 %v8711, %v8903
      %v8905 = vpop.f32.mrb[0].mxu0
      %v8906 = vadd.f32 %v8713, %v8905
      %v8907 = vpop.f32.mrb[0].mxu0
      %v8908 = vadd.f32 %v8715, %v8907
      %v8909 = vpop.f32.mrb[0].mxu0
      %v8910 = vadd.f32 %v8717, %v8909
      %8911 = vmatprep.mubr.bf16.mxu0 %v7132
      %8912 = vmatmul.mubr.bf16.gmra.mrb[0].mxu0 %v7131
      %v8913 = vpop.f32.mrb[0].mxu0
      %v8914 = vadd.f32 %v8721, %v8913
      %v8915 = vpop.f32.mrb[0].mxu0
      %v8916 = vadd.f32 %v8723, %v8915
      %v8917 = vpop.f32.mrb[0].mxu0
      %v8918 = vadd.f32 %v8725, %v8917
      %v8919 = vpop.f32.mrb[0].mxu0
      %v8920 = vadd.f32 %v8727, %v8919
      %8921 = vmatprep.mubr.bf16.mxu0 %v7136
      %8922 = vmatmul.mubr.bf16.gmra.mrb[0].mxu0 %v7135
      %v8923 = vpop.f32.mrb[0].mxu0
      %v8924 = vadd.f32 %v8731, %v8923
      %v8925 = vpop.f32.mrb[0].mxu0
      %v8926 = vadd.f32 %v8733, %v8925
      %v8927 = vpop.f32.mrb[0].mxu0
      %v8928 = vadd.f32 %v8735, %v8927
      %v8929 = vpop.f32.mrb[0].mxu0
      %v8930 = vadd.f32 %v8737, %v8929
      %8931 = vmatprep.mubr.bf16.mxu0 %v7140
      %8932 = vmatmul.mubr.bf16.gmra.mrb[0].mxu0 %v7139
      %v8933 = vpop.f32.mrb[0].mxu0
      %v8934 = vadd.f32 %v8741, %v8933
      %v8935 = vpop.f32.mrb[0].mxu0
      %v8936 = vadd.f32 %v8743, %v8935
      %v8937 = vpop.f32.mrb[0].mxu0
      %v8938 = vadd.f32 %v8745, %v8937
      %v8939 = vpop.f32.mrb[0].mxu0
      %v8940 = vadd.f32 %v8747, %v8939
      %8941 = vmatprep.mubr.bf16.mxu0 %v7144
      %8942 = vmatmul.mubr.bf16.gmra.mrb[0].mxu0 %v7143
      %v8943 = vpop.f32.mrb[0].mxu0
      %v8944 = vadd.f32 %v8751, %v8943
      %v8945 = vpop.f32.mrb[0].mxu0
      %v8946 = vadd.f32 %v8753, %v8945
      %v8947 = vpop.f32.mrb[0].mxu0
      %v8948 = vadd.f32 %v8755, %v8947
      %v8949 = vpop.f32.mrb[0].mxu0
      %v8950 = vadd.f32 %v8757, %v8949
      %8951 = vmatprep.mubr.bf16.mxu0 %v7148
      %8952 = vmatmul.mubr.bf16.gmra.mrb[0].mxu0 %v7147
      %v8953 = vpop.f32.mrb[0].mxu0
      %v8954 = vadd.f32 %v8761, %v8953
      %v8955 = vpop.f32.mrb[0].mxu0
      %v8956 = vadd.f32 %v8763, %v8955
      %v8957 = vpop.f32.mrb[0].mxu0
      %v8958 = vadd.f32 %v8765, %v8957
      %v8959 = vpop.f32.mrb[0].mxu0
      %v8960 = vadd.f32 %v8767, %v8959
      %8961 = vmatprep.mubr.bf16.mxu0 %v7152
      %8962 = vmatmul.mubr.bf16.gmra.mrb[0].mxu0 %v7151
      %v8963 = vpop.f32.mrb[0].mxu0
      %v8964 = vadd.f32 %v8771, %v8963
      %v8965 = vpop.f32.mrb[0].mxu0
      %v8966 = vadd.f32 %v8773, %v8965
      %v8967 = vpop.f32.mrb[0].mxu0
      %v8968 = vadd.f32 %v8775, %v8967
      %v8969 = vpop.f32.mrb[0].mxu0
      %v8970 = vadd.f32 %v8777, %v8969
      %8971 = vmatprep.mubr.bf16.mxu0 %v7156
      %8972 = vmatmul.mubr.bf16.gmra.mrb[0].mxu0 %v7155
      %v8973 = vpop.f32.mrb[0].mxu0
      %v8974 = vadd.f32 %v8781, %v8973
      %v8975 = vpop.f32.mrb[0].mxu0
      %v8976 = vadd.f32 %v8783, %v8975
      %v8977 = vpop.f32.mrb[0].mxu0
      %v8978 = vadd.f32 %v8785, %v8977
      %v8979 = vpop.f32.mrb[0].mxu0
      %v8980 = vadd.f32 %v8787, %v8979
      %8981 = vmatprep.mubr.bf16.mxu0 %v7160
      %8982 = vmatmul.mubr.bf16.gmra.mrb[0].mxu0 %v7159
      %v8983 = vpop.f32.mrb[0].mxu0
      %v8984 = vadd.f32 %v8791, %v8983
      %v8985 = vpop.f32.mrb[0].mxu0
      %v8986 = vadd.f32 %v8793, %v8985
      %v8987 = vpop.f32.mrb[0].mxu0
      %v8988 = vadd.f32 %v8795, %v8987
      %v8989 = vpop.f32.mrb[0].mxu0
      %v8990 = vadd.f32 %v8797, %v8989
      %8991 = vdwg.mxu0
      %8992 = vmatprep.subr.bf16.mxu0 %v8161
      %8993 = vmatpush1.bf16.msra.mxu0 %v8160
      %8994 = vmatprep.subr.bf16.mxu0 %v8168
      %8995 = vmatpush1.bf16.msra.mxu0 %v8167
      %8996 = vmatprep.subr.bf16.mxu0 %v8175
      %8997 = vmatpush1.bf16.msra.mxu0 %v8174
      %8998 = vmatprep.subr.bf16.mxu0 %v8182
      %8999 = vmatpush1.bf16.msra.mxu0 %v8181
      %9000 = vmatprep.subr.bf16.mxu0 %v8189
      %9001 = vmatpush1.bf16.msra.mxu0 %v8188
      %9002 = vmatprep.subr.bf16.mxu0 %v8196
      %9003 = vmatpush1.bf16.msra.mxu0 %v8195
      %9004 = vmatprep.subr.bf16.mxu0 %v8203
      %9005 = vmatpush1.bf16.msra.mxu0 %v8202
      %9006 = vmatprep.subr.bf16.mxu0 %v8210
      %9007 = vmatpush1.bf16.msra.mxu0 %v8209
      %9008 = vmatprep.subr.bf16.mxu0 %v8217
      %9009 = vmatpush1.bf16.msra.mxu0 %v8216
      %9010 = vmatprep.subr.bf16.mxu0 %v8224
      %9011 = vmatpush1.bf16.msra.mxu0 %v8223
      %9012 = vmatprep.subr.bf16.mxu0 %v8231
      %9013 = vmatpush1.bf16.msra.mxu0 %v8230
      %9014 = vmatprep.subr.bf16.mxu0 %v8238
      %9015 = vmatpush1.bf16.msra.mxu0 %v8237
      %9016 = vmatprep.subr.bf16.mxu0 %v8245
      %9017 = vmatpush1.bf16.msra.mxu0 %v8244
      %9018 = vmatprep.subr.bf16.mxu0 %v8252
      %9019 = vmatpush1.bf16.msra.mxu0 %v8251
      %9020 = vmatprep.subr.bf16.mxu0 %v8259
      %9021 = vmatpush1.bf16.msra.mxu0 %v8258
      %9022 = vmatprep.subr.bf16.mxu0 %v8266
      %9023 = vmatpush1.bf16.msra.mxu0 %v8265
      %9024 = vmatprep.mubr.bf16.mxu0 %v7098
      %9025 = vmatmul.mubr.bf16.gmra.mrb[0].mxu0 %v7097
      %v9026 = vpop.f32.mrb[0].mxu0
      %v9027 = vadd.f32 %v7430, %v9026
      %v9028 = vpop.f32.mrb[0].mxu0
      %v9029 = vadd.f32 %v7434, %v9028
      %v9030 = vpop.f32.mrb[0].mxu0
      %v9031 = vadd.f32 %v7430, %v9030
      %v9032 = vpop.f32.mrb[0].mxu0
      %v9033 = vadd.f32 %v7434, %v9032
      %9034 = vmatprep.mubr.bf16.mxu0 %v7102
      %9035 = vmatmul.mubr.bf16.gmra.mrb[0].mxu0 %v7101
      %v9036 = vpop.f32.mrb[0].mxu0
      %v9037 = vadd.f32 %v7430, %v9036
      %v9038 = vpop.f32.mrb[0].mxu0
      %v9039 = vadd.f32 %v7434, %v9038
      %v9040 = vpop.f32.mrb[0].mxu0
      %v9041 = vadd.f32 %v7430, %v9040
      %v9042 = vpop.f32.mrb[0].mxu0
      %v9043 = vadd.f32 %v7434, %v9042
      %9044 = vmatprep.mubr.bf16.mxu0 %v7106
      %9045 = vmatmul.mubr.bf16.gmra.mrb[0].mxu0 %v7105
      %v9046 = vpop.f32.mrb[0].mxu0
      %v9047 = vadd.f32 %v7430, %v9046
      %v9048 = vpop.f32.mrb[0].mxu0
      %v9049 = vadd.f32 %v7434, %v9048
      %v9050 = vpop.f32.mrb[0].mxu0
      %v9051 = vadd.f32 %v7430, %v9050
      %v9052 = vpop.f32.mrb[0].mxu0
      %v9053 = vadd.f32 %v7434, %v9052
      %9054 = vmatprep.mubr.bf16.mxu0 %v7110
      %9055 = vmatmul.mubr.bf16.gmra.mrb[0].mxu0 %v7109
      %v9056 = vpop.f32.mrb[0].mxu0
      %v9057 = vadd.f32 %v7430, %v9056
      %v9058 = vpop.f32.mrb[0].mxu0
      %v9059 = vadd.f32 %v7434, %v9058
      %v9060 = vpop.f32.mrb[0].mxu0
      %v9061 = vadd.f32 %v7430, %v9060
      %v9062 = vpop.f32.mrb[0].mxu0
      %v9063 = vadd.f32 %v7434, %v9062
      %9064 = vmatprep.mubr.bf16.mxu0 %v7114
      %9065 = vmatmul.mubr.bf16.gmra.mrb[0].mxu0 %v7113
      %v9066 = vpop.f32.mrb[0].mxu0
      %v9067 = vadd.f32 %v7430, %v9066
      %v9068 = vpop.f32.mrb[0].mxu0
      %v9069 = vadd.f32 %v7434, %v9068
      %v9070 = vpop.f32.mrb[0].mxu0
      %v9071 = vadd.f32 %v7430, %v9070
      %v9072 = vpop.f32.mrb[0].mxu0
      %v9073 = vadd.f32 %v7434, %v9072
      %9074 = vmatprep.mubr.bf16.mxu0 %v7118
      %9075 = vmatmul.mubr.bf16.gmra.mrb[0].mxu0 %v7117
      %v9076 = vpop.f32.mrb[0].mxu0
      %v9077 = vadd.f32 %v7430, %v9076
      %v9078 = vpop.f32.mrb[0].mxu0
      %v9079 = vadd.f32 %v7434, %v9078
      %v9080 = vpop.f32.mrb[0].mxu0
      %v9081 = vadd.f32 %v7430, %v9080
      %v9082 = vpop.f32.mrb[0].mxu0
      %v9083 = vadd.f32 %v7434, %v9082
      %9084 = vmatprep.mubr.bf16.mxu0 %v7122
      %9085 = vmatmul.mubr.bf16.gmra.mrb[0].mxu0 %v7121
      %v9086 = vpop.f32.mrb[0].mxu0
      %v9087 = vadd.f32 %v7430, %v9086
      %v9088 = vpop.f32.mrb[0].mxu0
      %v9089 = vadd.f32 %v7434, %v9088
      %v9090 = vpop.f32.mrb[0].mxu0
      %v9091 = vadd.f32 %v7430, %v9090
      %v9092 = vpop.f32.mrb[0].mxu0
      %v9093 = vadd.f32 %v7434, %v9092
      %9094 = vmatprep.mubr.bf16.mxu0 %v7126
      %9095 = vmatmul.mubr.bf16.gmra.mrb[0].mxu0 %v7125
      %v9096 = vpop.f32.mrb[0].mxu0
      %v9097 = vadd.f32 %v7430, %v9096
      %v9098 = vpop.f32.mrb[0].mxu0
      %v9099 = vadd.f32 %v7434, %v9098
      %v9100 = vpop.f32.mrb[0].mxu0
      %v9101 = vadd.f32 %v7430, %v9100
      %v9102 = vpop.f32.mrb[0].mxu0
      %v9103 = vadd.f32 %v7434, %v9102
      %9104 = vmatprep.mubr.bf16.mxu0 %v7130
      %9105 = vmatmul.mubr.bf16.gmra.mrb[0].mxu0 %v7129
      %v9106 = vpop.f32.mrb[0].mxu0
      %v9107 = vadd.f32 %v7430, %v9106
      %v9108 = vpop.f32.mrb[0].mxu0
      %v9109 = vadd.f32 %v7434, %v9108
      %v9110 = vpop.f32.mrb[0].mxu0
      %v9111 = vadd.f32 %v7430, %v9110
      %v9112 = vpop.f32.mrb[0].mxu0
      %v9113 = vadd.f32 %v7434, %v9112
      %9114 = vmatprep.mubr.bf16.mxu0 %v7134
      %9115 = vmatmul.mubr.bf16.gmra.mrb[0].mxu0 %v7133
      %v9116 = vpop.f32.mrb[0].mxu0
      %v9117 = vadd.f32 %v7430, %v9116
      %v9118 = vpop.f32.mrb[0].mxu0
      %v9119 = vadd.f32 %v7434, %v9118
      %v9120 = vpop.f32.mrb[0].mxu0
      %v9121 = vadd.f32 %v7430, %v9120
      %v9122 = vpop.f32.mrb[0].mxu0
      %v9123 = vadd.f32 %v7434, %v9122
      %9124 = vmatprep.mubr.bf16.mxu0 %v7138
      %9125 = vmatmul.mubr.bf16.gmra.mrb[0].mxu0 %v7137
      %v9126 = vpop.f32.mrb[0].mxu0
      %v9127 = vadd.f32 %v7430, %v9126
      %v9128 = vpop.f32.mrb[0].mxu0
      %v9129 = vadd.f32 %v7434, %v9128
      %v9130 = vpop.f32.mrb[0].mxu0
      %v9131 = vadd.f32 %v7430, %v9130
      %v9132 = vpop.f32.mrb[0].mxu0
      %v9133 = vadd.f32 %v7434, %v9132
      %9134 = vmatprep.mubr.bf16.mxu0 %v7142
      %9135 = vmatmul.mubr.bf16.gmra.mrb[0].mxu0 %v7141
      %v9136 = vpop.f32.mrb[0].mxu0
      %v9137 = vadd.f32 %v7430, %v9136
      %v9138 = vpop.f32.mrb[0].mxu0
      %v9139 = vadd.f32 %v7434, %v9138
      %v9140 = vpop.f32.mrb[0].mxu0
      %v9141 = vadd.f32 %v7430, %v9140
      %v9142 = vpop.f32.mrb[0].mxu0
      %v9143 = vadd.f32 %v7434, %v9142
      %9144 = vmatprep.mubr.bf16.mxu0 %v7146
      %9145 = vmatmul.mubr.bf16.gmra.mrb[0].mxu0 %v7145
      %v9146 = vpop.f32.mrb[0].mxu0
      %v9147 = vadd.f32 %v7430, %v9146
      %v9148 = vpop.f32.mrb[0].mxu0
      %v9149 = vadd.f32 %v7434, %v9148
      %v9150 = vpop.f32.mrb[0].mxu0
      %v9151 = vadd.f32 %v7430, %v9150
      %v9152 = vpop.f32.mrb[0].mxu0
      %v9153 = vadd.f32 %v7434, %v9152
      %9154 = vmatprep.mubr.bf16.mxu0 %v7150
      %9155 = vmatmul.mubr.bf16.gmra.mrb[0].mxu0 %v7149
      %v9156 = vpop.f32.mrb[0].mxu0
      %v9157 = vadd.f32 %v7430, %v9156
      %v9158 = vpop.f32.mrb[0].mxu0
      %v9159 = vadd.f32 %v7434, %v9158
      %v9160 = vpop.f32.mrb[0].mxu0
      %v9161 = vadd.f32 %v7430, %v9160
      %v9162 = vpop.f32.mrb[0].mxu0
      %v9163 = vadd.f32 %v7434, %v9162
      %9164 = vmatprep.mubr.bf16.mxu0 %v7154
      %9165 = vmatmul.mubr.bf16.gmra.mrb[0].mxu0 %v7153
      %v9166 = vpop.f32.mrb[0].mxu0
      %v9167 = vadd.f32 %v7430, %v9166
      %v9168 = vpop.f32.mrb[0].mxu0
      %v9169 = vadd.f32 %v7434, %v9168
      %v9170 = vpop.f32.mrb[0].mxu0
      %v9171 = vadd.f32 %v7430, %v9170
      %v9172 = vpop.f32.mrb[0].mxu0
      %v9173 = vadd.f32 %v7434, %v9172
      %9174 = vmatprep.mubr.bf16.mxu0 %v7158
      %9175 = vmatmul.mubr.bf16.gmra.mrb[0].mxu0 %v7157
      %v9176 = vpop.f32.mrb[0].mxu0
      %v9177 = vadd.f32 %v7430, %v9176
      %v9178 = vpop.f32.mrb[0].mxu0
      %v9179 = vadd.f32 %v7434, %v9178
      %v9180 = vpop.f32.mrb[0].mxu0
      %v9181 = vadd.f32 %v7430, %v9180
      %v9182 = vpop.f32.mrb[0].mxu0
      %v9183 = vadd.f32 %v7434, %v9182
      %9184 = vdwg.mxu0
      %9185 = vmatprep.subr.bf16.mxu0 %v8273
      %9186 = vmatpush1.bf16.msra.mxu0 %v8272
      %9187 = vmatprep.subr.bf16.mxu0 %v8280
      %9188 = vmatpush1.bf16.msra.mxu0 %v8279
      %9189 = vmatprep.subr.bf16.mxu0 %v8287
      %9190 = vmatpush1.bf16.msra.mxu0 %v8286
      %9191 = vmatprep.subr.bf16.mxu0 %v8294
      %9192 = vmatpush1.bf16.msra.mxu0 %v8293
      %9193 = vmatprep.subr.bf16.mxu0 %v8301
      %9194 = vmatpush1.bf16.msra.mxu0 %v8300
      %9195 = vmatprep.subr.bf16.mxu0 %v8308
      %9196 = vmatpush1.bf16.msra.mxu0 %v8307
      %9197 = vmatprep.subr.bf16.mxu0 %v8315
      %9198 = vmatpush1.bf16.msra.mxu0 %v8314
      %9199 = vmatprep.subr.bf16.mxu0 %v8322
      %9200 = vmatpush1.bf16.msra.mxu0 %v8321
      %9201 = vmatprep.subr.bf16.mxu0 %v8329
      %9202 = vmatpush1.bf16.msra.mxu0 %v8328
      %9203 = vmatprep.subr.bf16.mxu0 %v8336
      %9204 = vmatpush1.bf16.msra.mxu0 %v8335
      %9205 = vmatprep.subr.bf16.mxu0 %v8343
      %9206 = vmatpush1.bf16.msra.mxu0 %v8342
      %9207 = vmatprep.subr.bf16.mxu0 %v8350
      %9208 = vmatpush1.bf16.msra.mxu0 %v8349
      %9209 = vmatprep.subr.bf16.mxu0 %v8357
      %9210 = vmatpush1.bf16.msra.mxu0 %v8356
      %9211 = vmatprep.subr.bf16.mxu0 %v8364
      %9212 = vmatpush1.bf16.msra.mxu0 %v8363
      %9213 = vmatprep.subr.bf16.mxu0 %v8371
      %9214 = vmatpush1.bf16.msra.mxu0 %v8370
      %9215 = vmatprep.subr.bf16.mxu0 %v8378
      %9216 = vmatpush1.bf16.msra.mxu0 %v8377
      %9217 = vmatprep.mubr.bf16.mxu0 %v7100
      %9218 = vmatmul.mubr.bf16.gmra.mrb[0].mxu0 %v7099
      %v9219 = vpop.f32.mrb[0].mxu0
      %v9220 = vadd.f32 %v9027, %v9219
      %v9221 = vpop.f32.mrb[0].mxu0
      %v9222 = vadd.f32 %v9029, %v9221
      %v9223 = vpop.f32.mrb[0].mxu0
      %v9224 = vadd.f32 %v9031, %v9223
      %v9225 = vpop.f32.mrb[0].mxu0
      %v9226 = vadd.f32 %v9033, %v9225
      %9227 = vmatprep.mubr.bf16.mxu0 %v7104
      %9228 = vmatmul.mubr.bf16.gmra.mrb[0].mxu0 %v7103
      %v9229 = vpop.f32.mrb[0].mxu0
      %v9230 = vadd.f32 %v9037, %v9229
      %v9231 = vpop.f32.mrb[0].mxu0
      %v9232 = vadd.f32 %v9039, %v9231
      %v9233 = vpop.f32.mrb[0].mxu0
      %v9234 = vadd.f32 %v9041, %v9233
      %v9235 = vpop.f32.mrb[0].mxu0
      %v9236 = vadd.f32 %v9043, %v9235
      %9237 = vmatprep.mubr.bf16.mxu0 %v7108
      %9238 = vmatmul.mubr.bf16.gmra.mrb[0].mxu0 %v7107
      %v9239 = vpop.f32.mrb[0].mxu0
      %v9240 = vadd.f32 %v9047, %v9239
      %v9241 = vpop.f32.mrb[0].mxu0
      %v9242 = vadd.f32 %v9049, %v9241
      %v9243 = vpop.f32.mrb[0].mxu0
      %v9244 = vadd.f32 %v9051, %v9243
      %v9245 = vpop.f32.mrb[0].mxu0
      %v9246 = vadd.f32 %v9053, %v9245
      %9247 = vmatprep.mubr.bf16.mxu0 %v7112
      %9248 = vmatmul.mubr.bf16.gmra.mrb[0].mxu0 %v7111
      %v9249 = vpop.f32.mrb[0].mxu0
      %v9250 = vadd.f32 %v9057, %v9249
      %v9251 = vpop.f32.mrb[0].mxu0
      %v9252 = vadd.f32 %v9059, %v9251
      %v9253 = vpop.f32.mrb[0].mxu0
      %v9254 = vadd.f32 %v9061, %v9253
      %v9255 = vpop.f32.mrb[0].mxu0
      %v9256 = vadd.f32 %v9063, %v9255
      %9257 = vmatprep.mubr.bf16.mxu0 %v7116
      %9258 = vmatmul.mubr.bf16.gmra.mrb[0].mxu0 %v7115
      %v9259 = vpop.f32.mrb[0].mxu0
      %v9260 = vadd.f32 %v9067, %v9259
      %v9261 = vpop.f32.mrb[0].mxu0
      %v9262 = vadd.f32 %v9069, %v9261
      %v9263 = vpop.f32.mrb[0].mxu0
      %v9264 = vadd.f32 %v9071, %v9263
      %v9265 = vpop.f32.mrb[0].mxu0
      %v9266 = vadd.f32 %v9073, %v9265
      %9267 = vmatprep.mubr.bf16.mxu0 %v7120
      %9268 = vmatmul.mubr.bf16.gmra.mrb[0].mxu0 %v7119
      %v9269 = vpop.f32.mrb[0].mxu0
      %v9270 = vadd.f32 %v9077, %v9269
      %v9271 = vpop.f32.mrb[0].mxu0
      %v9272 = vadd.f32 %v9079, %v9271
      %v9273 = vpop.f32.mrb[0].mxu0
      %v9274 = vadd.f32 %v9081, %v9273
      %v9275 = vpop.f32.mrb[0].mxu0
      %v9276 = vadd.f32 %v9083, %v9275
      %9277 = vmatprep.mubr.bf16.mxu0 %v7124
      %9278 = vmatmul.mubr.bf16.gmra.mrb[0].mxu0 %v7123
      %v9279 = vpop.f32.mrb[0].mxu0
      %v9280 = vadd.f32 %v9087, %v9279
      %v9281 = vpop.f32.mrb[0].mxu0
      %v9282 = vadd.f32 %v9089, %v9281
      %v9283 = vpop.f32.mrb[0].mxu0
      %v9284 = vadd.f32 %v9091, %v9283
      %v9285 = vpop.f32.mrb[0].mxu0
      %v9286 = vadd.f32 %v9093, %v9285
      %9287 = vmatprep.mubr.bf16.mxu0 %v7128
      %9288 = vmatmul.mubr.bf16.gmra.mrb[0].mxu0 %v7127
      %v9289 = vpop.f32.mrb[0].mxu0
      %v9290 = vadd.f32 %v9097, %v9289
      %v9291 = vpop.f32.mrb[0].mxu0
      %v9292 = vadd.f32 %v9099, %v9291
      %v9293 = vpop.f32.mrb[0].mxu0
      %v9294 = vadd.f32 %v9101, %v9293
      %v9295 = vpop.f32.mrb[0].mxu0
      %v9296 = vadd.f32 %v9103, %v9295
      %9297 = vmatprep.mubr.bf16.mxu0 %v7132
      %9298 = vmatmul.mubr.bf16.gmra.mrb[0].mxu0 %v7131
      %v9299 = vpop.f32.mrb[0].mxu0
      %v9300 = vadd.f32 %v9107, %v9299
      %v9301 = vpop.f32.mrb[0].mxu0
      %v9302 = vadd.f32 %v9109, %v9301
      %v9303 = vpop.f32.mrb[0].mxu0
      %v9304 = vadd.f32 %v9111, %v9303
      %v9305 = vpop.f32.mrb[0].mxu0
      %v9306 = vadd.f32 %v9113, %v9305
      %9307 = vmatprep.mubr.bf16.mxu0 %v7136
      %9308 = vmatmul.mubr.bf16.gmra.mrb[0].mxu0 %v7135
      %v9309 = vpop.f32.mrb[0].mxu0
      %v9310 = vadd.f32 %v9117, %v9309
      %v9311 = vpop.f32.mrb[0].mxu0
      %v9312 = vadd.f32 %v9119, %v9311
      %v9313 = vpop.f32.mrb[0].mxu0
      %v9314 = vadd.f32 %v9121, %v9313
      %v9315 = vpop.f32.mrb[0].mxu0
      %v9316 = vadd.f32 %v9123, %v9315
      %9317 = vmatprep.mubr.bf16.mxu0 %v7140
      %9318 = vmatmul.mubr.bf16.gmra.mrb[0].mxu0 %v7139
      %v9319 = vpop.f32.mrb[0].mxu0
      %v9320 = vadd.f32 %v9127, %v9319
      %v9321 = vpop.f32.mrb[0].mxu0
      %v9322 = vadd.f32 %v9129, %v9321
      %v9323 = vpop.f32.mrb[0].mxu0
      %v9324 = vadd.f32 %v9131, %v9323
      %v9325 = vpop.f32.mrb[0].mxu0
      %v9326 = vadd.f32 %v9133, %v9325
      %9327 = vmatprep.mubr.bf16.mxu0 %v7144
      %9328 = vmatmul.mubr.bf16.gmra.mrb[0].mxu0 %v7143
      %v9329 = vpop.f32.mrb[0].mxu0
      %v9330 = vadd.f32 %v9137, %v9329
      %v9331 = vpop.f32.mrb[0].mxu0
      %v9332 = vadd.f32 %v9139, %v9331
      %v9333 = vpop.f32.mrb[0].mxu0
      %v9334 = vadd.f32 %v9141, %v9333
      %v9335 = vpop.f32.mrb[0].mxu0
      %v9336 = vadd.f32 %v9143, %v9335
      %9337 = vmatprep.mubr.bf16.mxu0 %v7148
      %9338 = vmatmul.mubr.bf16.gmra.mrb[0].mxu0 %v7147
      %v9339 = vpop.f32.mrb[0].mxu0
      %v9340 = vadd.f32 %v9147, %v9339
      %v9341 = vpop.f32.mrb[0].mxu0
      %v9342 = vadd.f32 %v9149, %v9341
      %v9343 = vpop.f32.mrb[0].mxu0
      %v9344 = vadd.f32 %v9151, %v9343
      %v9345 = vpop.f32.mrb[0].mxu0
      %v9346 = vadd.f32 %v9153, %v9345
      %9347 = vmatprep.mubr.bf16.mxu0 %v7152
      %9348 = vmatmul.mubr.bf16.gmra.mrb[0].mxu0 %v7151
      %v9349 = vpop.f32.mrb[0].mxu0
      %v9350 = vadd.f32 %v9157, %v9349
      %v9351 = vpop.f32.mrb[0].mxu0
      %v9352 = vadd.f32 %v9159, %v9351
      %v9353 = vpop.f32.mrb[0].mxu0
      %v9354 = vadd.f32 %v9161, %v9353
      %v9355 = vpop.f32.mrb[0].mxu0
      %v9356 = vadd.f32 %v9163, %v9355
      %9357 = vmatprep.mubr.bf16.mxu0 %v7156
      %9358 = vmatmul.mubr.bf16.gmra.mrb[0].mxu0 %v7155
      %v9359 = vpop.f32.mrb[0].mxu0
      %v9360 = vadd.f32 %v9167, %v9359
      %v9361 = vpop.f32.mrb[0].mxu0
      %v9362 = vadd.f32 %v9169, %v9361
      %v9363 = vpop.f32.mrb[0].mxu0
      %v9364 = vadd.f32 %v9171, %v9363
      %v9365 = vpop.f32.mrb[0].mxu0
      %v9366 = vadd.f32 %v9173, %v9365
      %9367 = vmatprep.mubr.bf16.mxu0 %v7160
      %9368 = vmatmul.mubr.bf16.gmra.mrb[0].mxu0 %v7159
      %v9369 = vpop.f32.mrb[0].mxu0
      %v9370 = vadd.f32 %v9177, %v9369
      %v9371 = vpop.f32.mrb[0].mxu0
      %v9372 = vadd.f32 %v9179, %v9371
      %v9373 = vpop.f32.mrb[0].mxu0
      %v9374 = vadd.f32 %v9181, %v9373
      %v9375 = vpop.f32.mrb[0].mxu0
      %v9376 = vadd.f32 %v9183, %v9375
      %9377 = vdwg.mxu0
      %9378 = vmatprep.subr.bf16.mxu0 %v8163
      %9379 = vmatpush1.bf16.msra.mxu0 %v8162
      %9380 = vmatprep.subr.bf16.mxu0 %v8170
      %9381 = vmatpush1.bf16.msra.mxu0 %v8169
      %9382 = vmatprep.subr.bf16.mxu0 %v8177
      %9383 = vmatpush1.bf16.msra.mxu0 %v8176
      %9384 = vmatprep.subr.bf16.mxu0 %v8184
      %9385 = vmatpush1.bf16.msra.mxu0 %v8183
      %9386 = vmatprep.subr.bf16.mxu0 %v8191
      %9387 = vmatpush1.bf16.msra.mxu0 %v8190
      %9388 = vmatprep.subr.bf16.mxu0 %v8198
      %9389 = vmatpush1.bf16.msra.mxu0 %v8197
      %9390 = vmatprep.subr.bf16.mxu0 %v8205
      %9391 = vmatpush1.bf16.msra.mxu0 %v8204
      %9392 = vmatprep.subr.bf16.mxu0 %v8212
      %9393 = vmatpush1.bf16.msra.mxu0 %v8211
      %9394 = vmatprep.subr.bf16.mxu0 %v8219
      %9395 = vmatpush1.bf16.msra.mxu0 %v8218
      %9396 = vmatprep.subr.bf16.mxu0 %v8226
      %9397 = vmatpush1.bf16.msra.mxu0 %v8225
      %9398 = vmatprep.subr.bf16.mxu0 %v8233
      %9399 = vmatpush1.bf16.msra.mxu0 %v8232
      %9400 = vmatprep.subr.bf16.mxu0 %v8240
      %9401 = vmatpush1.bf16.msra.mxu0 %v8239
      %9402 = vmatprep.subr.bf16.mxu0 %v8247
      %9403 = vmatpush1.bf16.msra.mxu0 %v8246
      %9404 = vmatprep.subr.bf16.mxu0 %v8254
      %9405 = vmatpush1.bf16.msra.mxu0 %v8253
      %9406 = vmatprep.subr.bf16.mxu0 %v8261
      %9407 = vmatpush1.bf16.msra.mxu0 %v8260
      %9408 = vmatprep.subr.bf16.mxu0 %v8268
      %9409 = vmatpush1.bf16.msra.mxu0 %v8267
      %9410 = vmatprep.mubr.bf16.mxu0 %v7098
      %9411 = vmatmul.mubr.bf16.gmra.mrb[0].mxu0 %v7097
      %v9412 = vpop.f32.mrb[0].mxu0
      %v9413 = vadd.f32 %v7438, %v9412
      %v9414 = vpop.f32.mrb[0].mxu0
      %v9415 = vadd.f32 %v7442, %v9414
      %v9416 = vpop.f32.mrb[0].mxu0
      %v9417 = vadd.f32 %v7438, %v9416
      %v9418 = vpop.f32.mrb[0].mxu0
      %v9419 = vadd.f32 %v7442, %v9418
      %9420 = vmatprep.mubr.bf16.mxu0 %v7102
      %9421 = vmatmul.mubr.bf16.gmra.mrb[0].mxu0 %v7101
      %v9422 = vpop.f32.mrb[0].mxu0
      %v9423 = vadd.f32 %v7438, %v9422
      %v9424 = vpop.f32.mrb[0].mxu0
      %v9425 = vadd.f32 %v7442, %v9424
      %v9426 = vpop.f32.mrb[0].mxu0
      %v9427 = vadd.f32 %v7438, %v9426
      %v9428 = vpop.f32.mrb[0].mxu0
      %v9429 = vadd.f32 %v7442, %v9428
      %9430 = vmatprep.mubr.bf16.mxu0 %v7106
      %9431 = vmatmul.mubr.bf16.gmra.mrb[0].mxu0 %v7105
      %v9432 = vpop.f32.mrb[0].mxu0
      %v9433 = vadd.f32 %v7438, %v9432
      %v9434 = vpop.f32.mrb[0].mxu0
      %v9435 = vadd.f32 %v7442, %v9434
      %v9436 = vpop.f32.mrb[0].mxu0
      %v9437 = vadd.f32 %v7438, %v9436
      %v9438 = vpop.f32.mrb[0].mxu0
      %v9439 = vadd.f32 %v7442, %v9438
      %9440 = vmatprep.mubr.bf16.mxu0 %v7110
      %9441 = vmatmul.mubr.bf16.gmra.mrb[0].mxu0 %v7109
      %v9442 = vpop.f32.mrb[0].mxu0
      %v9443 = vadd.f32 %v7438, %v9442
      %v9444 = vpop.f32.mrb[0].mxu0
      %v9445 = vadd.f32 %v7442, %v9444
      %v9446 = vpop.f32.mrb[0].mxu0
      %v9447 = vadd.f32 %v7438, %v9446
      %v9448 = vpop.f32.mrb[0].mxu0
      %v9449 = vadd.f32 %v7442, %v9448
      %9450 = vmatprep.mubr.bf16.mxu0 %v7114
      %9451 = vmatmul.mubr.bf16.gmra.mrb[0].mxu0 %v7113
      %v9452 = vpop.f32.mrb[0].mxu0
      %v9453 = vadd.f32 %v7438, %v9452
      %v9454 = vpop.f32.mrb[0].mxu0
      %v9455 = vadd.f32 %v7442, %v9454
      %v9456 = vpop.f32.mrb[0].mxu0
      %v9457 = vadd.f32 %v7438, %v9456
      %v9458 = vpop.f32.mrb[0].mxu0
      %v9459 = vadd.f32 %v7442, %v9458
      %9460 = vmatprep.mubr.bf16.mxu0 %v7118
      %9461 = vmatmul.mubr.bf16.gmra.mrb[0].mxu0 %v7117
      %v9462 = vpop.f32.mrb[0].mxu0
      %v9463 = vadd.f32 %v7438, %v9462
      %v9464 = vpop.f32.mrb[0].mxu0
      %v9465 = vadd.f32 %v7442, %v9464
      %v9466 = vpop.f32.mrb[0].mxu0
      %v9467 = vadd.f32 %v7438, %v9466
      %v9468 = vpop.f32.mrb[0].mxu0
      %v9469 = vadd.f32 %v7442, %v9468
      %9470 = vmatprep.mubr.bf16.mxu0 %v7122
      %9471 = vmatmul.mubr.bf16.gmra.mrb[0].mxu0 %v7121
      %v9472 = vpop.f32.mrb[0].mxu0
      %v9473 = vadd.f32 %v7438, %v9472
      %v9474 = vpop.f32.mrb[0].mxu0
      %v9475 = vadd.f32 %v7442, %v9474
      %v9476 = vpop.f32.mrb[0].mxu0
      %v9477 = vadd.f32 %v7438, %v9476
      %v9478 = vpop.f32.mrb[0].mxu0
      %v9479 = vadd.f32 %v7442, %v9478
      %9480 = vmatprep.mubr.bf16.mxu0 %v7126
      %9481 = vmatmul.mubr.bf16.gmra.mrb[0].mxu0 %v7125
      %v9482 = vpop.f32.mrb[0].mxu0
      %v9483 = vadd.f32 %v7438, %v9482
      %v9484 = vpop.f32.mrb[0].mxu0
      %v9485 = vadd.f32 %v7442, %v9484
      %v9486 = vpop.f32.mrb[0].mxu0
      %v9487 = vadd.f32 %v7438, %v9486
      %v9488 = vpop.f32.mrb[0].mxu0
      %v9489 = vadd.f32 %v7442, %v9488
      %9490 = vmatprep.mubr.bf16.mxu0 %v7130
      %9491 = vmatmul.mubr.bf16.gmra.mrb[0].mxu0 %v7129
      %v9492 = vpop.f32.mrb[0].mxu0
      %v9493 = vadd.f32 %v7438, %v9492
      %v9494 = vpop.f32.mrb[0].mxu0
      %v9495 = vadd.f32 %v7442, %v9494
      %v9496 = vpop.f32.mrb[0].mxu0
      %v9497 = vadd.f32 %v7438, %v9496
      %v9498 = vpop.f32.mrb[0].mxu0
      %v9499 = vadd.f32 %v7442, %v9498
      %9500 = vmatprep.mubr.bf16.mxu0 %v7134
      %9501 = vmatmul.mubr.bf16.gmra.mrb[0].mxu0 %v7133
      %v9502 = vpop.f32.mrb[0].mxu0
      %v9503 = vadd.f32 %v7438, %v9502
      %v9504 = vpop.f32.mrb[0].mxu0
      %v9505 = vadd.f32 %v7442, %v9504
      %v9506 = vpop.f32.mrb[0].mxu0
      %v9507 = vadd.f32 %v7438, %v9506
      %v9508 = vpop.f32.mrb[0].mxu0
      %v9509 = vadd.f32 %v7442, %v9508
      %9510 = vmatprep.mubr.bf16.mxu0 %v7138
      %9511 = vmatmul.mubr.bf16.gmra.mrb[0].mxu0 %v7137
      %v9512 = vpop.f32.mrb[0].mxu0
      %v9513 = vadd.f32 %v7438, %v9512
      %v9514 = vpop.f32.mrb[0].mxu0
      %v9515 = vadd.f32 %v7442, %v9514
      %v9516 = vpop.f32.mrb[0].mxu0
      %v9517 = vadd.f32 %v7438, %v9516
      %v9518 = vpop.f32.mrb[0].mxu0
      %v9519 = vadd.f32 %v7442, %v9518
      %9520 = vmatprep.mubr.bf16.mxu0 %v7142
      %9521 = vmatmul.mubr.bf16.gmra.mrb[0].mxu0 %v7141
      %v9522 = vpop.f32.mrb[0].mxu0
      %v9523 = vadd.f32 %v7438, %v9522
      %v9524 = vpop.f32.mrb[0].mxu0
      %v9525 = vadd.f32 %v7442, %v9524
      %v9526 = vpop.f32.mrb[0].mxu0
      %v9527 = vadd.f32 %v7438, %v9526
      %v9528 = vpop.f32.mrb[0].mxu0
      %v9529 = vadd.f32 %v7442, %v9528
      %9530 = vmatprep.mubr.bf16.mxu0 %v7146
      %9531 = vmatmul.mubr.bf16.gmra.mrb[0].mxu0 %v7145
      %v9532 = vpop.f32.mrb[0].mxu0
      %v9533 = vadd.f32 %v7438, %v9532
      %v9534 = vpop.f32.mrb[0].mxu0
      %v9535 = vadd.f32 %v7442, %v9534
      %v9536 = vpop.f32.mrb[0].mxu0
      %v9537 = vadd.f32 %v7438, %v9536
      %v9538 = vpop.f32.mrb[0].mxu0
      %v9539 = vadd.f32 %v7442, %v9538
      %9540 = vmatprep.mubr.bf16.mxu0 %v7150
      %9541 = vmatmul.mubr.bf16.gmra.mrb[0].mxu0 %v7149
      %v9542 = vpop.f32.mrb[0].mxu0
      %v9543 = vadd.f32 %v7438, %v9542
      %v9544 = vpop.f32.mrb[0].mxu0
      %v9545 = vadd.f32 %v7442, %v9544
      %v9546 = vpop.f32.mrb[0].mxu0
      %v9547 = vadd.f32 %v7438, %v9546
      %v9548 = vpop.f32.mrb[0].mxu0
      %v9549 = vadd.f32 %v7442, %v9548
      %9550 = vmatprep.mubr.bf16.mxu0 %v7154
      %9551 = vmatmul.mubr.bf16.gmra.mrb[0].mxu0 %v7153
      %v9552 = vpop.f32.mrb[0].mxu0
      %v9553 = vadd.f32 %v7438, %v9552
      %v9554 = vpop.f32.mrb[0].mxu0
      %v9555 = vadd.f32 %v7442, %v9554
      %v9556 = vpop.f32.mrb[0].mxu0
      %v9557 = vadd.f32 %v7438, %v9556
      %v9558 = vpop.f32.mrb[0].mxu0
      %v9559 = vadd.f32 %v7442, %v9558
      %9560 = vmatprep.mubr.bf16.mxu0 %v7158
      %9561 = vmatmul.mubr.bf16.gmra.mrb[0].mxu0 %v7157
      %v9562 = vpop.f32.mrb[0].mxu0
      %v9563 = vadd.f32 %v7438, %v9562
      %v9564 = vpop.f32.mrb[0].mxu0
      %v9565 = vadd.f32 %v7442, %v9564
      %v9566 = vpop.f32.mrb[0].mxu0
      %v9567 = vadd.f32 %v7438, %v9566
      %v9568 = vpop.f32.mrb[0].mxu0
      %v9569 = vadd.f32 %v7442, %v9568
      %9570 = vdwg.mxu0
      %9571 = vmatprep.subr.bf16.mxu0 %v8275
      %9572 = vmatpush1.bf16.msra.mxu0 %v8274
      %9573 = vmatprep.subr.bf16.mxu0 %v8282
      %9574 = vmatpush1.bf16.msra.mxu0 %v8281
      %9575 = vmatprep.subr.bf16.mxu0 %v8289
      %9576 = vmatpush1.bf16.msra.mxu0 %v8288
      %9577 = vmatprep.subr.bf16.mxu0 %v8296
      %9578 = vmatpush1.bf16.msra.mxu0 %v8295
      %9579 = vmatprep.subr.bf16.mxu0 %v8303
      %9580 = vmatpush1.bf16.msra.mxu0 %v8302
      %9581 = vmatprep.subr.bf16.mxu0 %v8310
      %9582 = vmatpush1.bf16.msra.mxu0 %v8309
      %9583 = vmatprep.subr.bf16.mxu0 %v8317
      %9584 = vmatpush1.bf16.msra.mxu0 %v8316
      %9585 = vmatprep.subr.bf16.mxu0 %v8324
      %9586 = vmatpush1.bf16.msra.mxu0 %v8323
      %9587 = vmatprep.subr.bf16.mxu0 %v8331
      %9588 = vmatpush1.bf16.msra.mxu0 %v8330
      %9589 = vmatprep.subr.bf16.mxu0 %v8338
      %9590 = vmatpush1.bf16.msra.mxu0 %v8337
      %9591 = vmatprep.subr.bf16.mxu0 %v8345
      %9592 = vmatpush1.bf16.msra.mxu0 %v8344
      %9593 = vmatprep.subr.bf16.mxu0 %v8352
      %9594 = vmatpush1.bf16.msra.mxu0 %v8351
      %9595 = vmatprep.subr.bf16.mxu0 %v8359
      %9596 = vmatpush1.bf16.msra.mxu0 %v8358
      %9597 = vmatprep.subr.bf16.mxu0 %v8366
      %9598 = vmatpush1.bf16.msra.mxu0 %v8365
      %9599 = vmatprep.subr.bf16.mxu0 %v8373
      %9600 = vmatpush1.bf16.msra.mxu0 %v8372
      %9601 = vmatprep.subr.bf16.mxu0 %v8380
      %9602 = vmatpush1.bf16.msra.mxu0 %v8379
      %9603 = vmatprep.mubr.bf16.mxu0 %v7100
      %9604 = vmatmul.mubr.bf16.gmra.mrb[0].mxu0 %v7099
      %v9605 = vpop.f32.mrb[0].mxu0
      %v9606 = vadd.f32 %v9413, %v9605
      %v9607 = vpop.f32.mrb[0].mxu0
      %v9608 = vadd.f32 %v9415, %v9607
      %v9609 = vpop.f32.mrb[0].mxu0
      %v9610 = vadd.f32 %v9417, %v9609
      %v9611 = vpop.f32.mrb[0].mxu0
      %v9612 = vadd.f32 %v9419, %v9611
      %9613 = vmatprep.mubr.bf16.mxu0 %v7104
      %9614 = vmatmul.mubr.bf16.gmra.mrb[0].mxu0 %v7103
      %v9615 = vpop.f32.mrb[0].mxu0
      %v9616 = vadd.f32 %v9423, %v9615
      %v9617 = vpop.f32.mrb[0].mxu0
      %v9618 = vadd.f32 %v9425, %v9617
      %v9619 = vpop.f32.mrb[0].mxu0
      %v9620 = vadd.f32 %v9427, %v9619
      %v9621 = vpop.f32.mrb[0].mxu0
      %v9622 = vadd.f32 %v9429, %v9621
      %9623 = vmatprep.mubr.bf16.mxu0 %v7108
      %9624 = vmatmul.mubr.bf16.gmra.mrb[0].mxu0 %v7107
      %v9625 = vpop.f32.mrb[0].mxu0
      %v9626 = vadd.f32 %v9433, %v9625
      %v9627 = vpop.f32.mrb[0].mxu0
      %v9628 = vadd.f32 %v9435, %v9627
      %v9629 = vpop.f32.mrb[0].mxu0
      %v9630 = vadd.f32 %v9437, %v9629
      %v9631 = vpop.f32.mrb[0].mxu0
      %v9632 = vadd.f32 %v9439, %v9631
      %9633 = vmatprep.mubr.bf16.mxu0 %v7112
      %9634 = vmatmul.mubr.bf16.gmra.mrb[0].mxu0 %v7111
      %v9635 = vpop.f32.mrb[0].mxu0
      %v9636 = vadd.f32 %v9443, %v9635
      %v9637 = vpop.f32.mrb[0].mxu0
      %v9638 = vadd.f32 %v9445, %v9637
      %v9639 = vpop.f32.mrb[0].mxu0
      %v9640 = vadd.f32 %v9447, %v9639
      %v9641 = vpop.f32.mrb[0].mxu0
      %v9642 = vadd.f32 %v9449, %v9641
      %9643 = vmatprep.mubr.bf16.mxu0 %v7116
      %9644 = vmatmul.mubr.bf16.gmra.mrb[0].mxu0 %v7115
      %v9645 = vpop.f32.mrb[0].mxu0
      %v9646 = vadd.f32 %v9453, %v9645
      %v9647 = vpop.f32.mrb[0].mxu0
      %v9648 = vadd.f32 %v9455, %v9647
      %v9649 = vpop.f32.mrb[0].mxu0
      %v9650 = vadd.f32 %v9457, %v9649
      %v9651 = vpop.f32.mrb[0].mxu0
      %v9652 = vadd.f32 %v9459, %v9651
      %9653 = vmatprep.mubr.bf16.mxu0 %v7120
      %9654 = vmatmul.mubr.bf16.gmra.mrb[0].mxu0 %v7119
      %v9655 = vpop.f32.mrb[0].mxu0
      %v9656 = vadd.f32 %v9463, %v9655
      %v9657 = vpop.f32.mrb[0].mxu0
      %v9658 = vadd.f32 %v9465, %v9657
      %v9659 = vpop.f32.mrb[0].mxu0
      %v9660 = vadd.f32 %v9467, %v9659
      %v9661 = vpop.f32.mrb[0].mxu0
      %v9662 = vadd.f32 %v9469, %v9661
      %9663 = vmatprep.mubr.bf16.mxu0 %v7124
      %9664 = vmatmul.mubr.bf16.gmra.mrb[0].mxu0 %v7123
      %v9665 = vpop.f32.mrb[0].mxu0
      %v9666 = vadd.f32 %v9473, %v9665
      %v9667 = vpop.f32.mrb[0].mxu0
      %v9668 = vadd.f32 %v9475, %v9667
      %v9669 = vpop.f32.mrb[0].mxu0
      %v9670 = vadd.f32 %v9477, %v9669
      %v9671 = vpop.f32.mrb[0].mxu0
      %v9672 = vadd.f32 %v9479, %v9671
      %9673 = vmatprep.mubr.bf16.mxu0 %v7128
      %9674 = vmatmul.mubr.bf16.gmra.mrb[0].mxu0 %v7127
      %v9675 = vpop.f32.mrb[0].mxu0
      %v9676 = vadd.f32 %v9483, %v9675
      %v9677 = vpop.f32.mrb[0].mxu0
      %v9678 = vadd.f32 %v9485, %v9677
      %v9679 = vpop.f32.mrb[0].mxu0
      %v9680 = vadd.f32 %v9487, %v9679
      %v9681 = vpop.f32.mrb[0].mxu0
      %v9682 = vadd.f32 %v9489, %v9681
      %9683 = vmatprep.mubr.bf16.mxu0 %v7132
      %9684 = vmatmul.mubr.bf16.gmra.mrb[0].mxu0 %v7131
      %v9685 = vpop.f32.mrb[0].mxu0
      %v9686 = vadd.f32 %v9493, %v9685
      %v9687 = vpop.f32.mrb[0].mxu0
      %v9688 = vadd.f32 %v9495, %v9687
      %v9689 = vpop.f32.mrb[0].mxu0
      %v9690 = vadd.f32 %v9497, %v9689
      %v9691 = vpop.f32.mrb[0].mxu0
      %v9692 = vadd.f32 %v9499, %v9691
      %9693 = vmatprep.mubr.bf16.mxu0 %v7136
      %9694 = vmatmul.mubr.bf16.gmra.mrb[0].mxu0 %v7135
      %v9695 = vpop.f32.mrb[0].mxu0
      %v9696 = vadd.f32 %v9503, %v9695
      %v9697 = vpop.f32.mrb[0].mxu0
      %v9698 = vadd.f32 %v9505, %v9697
      %v9699 = vpop.f32.mrb[0].mxu0
      %v9700 = vadd.f32 %v9507, %v9699
      %v9701 = vpop.f32.mrb[0].mxu0
      %v9702 = vadd.f32 %v9509, %v9701
      %9703 = vmatprep.mubr.bf16.mxu0 %v7140
      %9704 = vmatmul.mubr.bf16.gmra.mrb[0].mxu0 %v7139
      %v9705 = vpop.f32.mrb[0].mxu0
      %v9706 = vadd.f32 %v9513, %v9705
      %v9707 = vpop.f32.mrb[0].mxu0
      %v9708 = vadd.f32 %v9515, %v9707
      %v9709 = vpop.f32.mrb[0].mxu0
      %v9710 = vadd.f32 %v9517, %v9709
      %v9711 = vpop.f32.mrb[0].mxu0
      %v9712 = vadd.f32 %v9519, %v9711
      %9713 = vmatprep.mubr.bf16.mxu0 %v7144
      %9714 = vmatmul.mubr.bf16.gmra.mrb[0].mxu0 %v7143
      %v9715 = vpop.f32.mrb[0].mxu0
      %v9716 = vadd.f32 %v9523, %v9715
      %v9717 = vpop.f32.mrb[0].mxu0
      %v9718 = vadd.f32 %v9525, %v9717
      %v9719 = vpop.f32.mrb[0].mxu0
      %v9720 = vadd.f32 %v9527, %v9719
      %v9721 = vpop.f32.mrb[0].mxu0
      %v9722 = vadd.f32 %v9529, %v9721
      %9723 = vmatprep.mubr.bf16.mxu0 %v7148
      %9724 = vmatmul.mubr.bf16.gmra.mrb[0].mxu0 %v7147
      %v9725 = vpop.f32.mrb[0].mxu0
      %v9726 = vadd.f32 %v9533, %v9725
      %v9727 = vpop.f32.mrb[0].mxu0
      %v9728 = vadd.f32 %v9535, %v9727
      %v9729 = vpop.f32.mrb[0].mxu0
      %v9730 = vadd.f32 %v9537, %v9729
      %v9731 = vpop.f32.mrb[0].mxu0
      %v9732 = vadd.f32 %v9539, %v9731
      %9733 = vmatprep.mubr.bf16.mxu0 %v7152
      %9734 = vmatmul.mubr.bf16.gmra.mrb[0].mxu0 %v7151
      %v9735 = vpop.f32.mrb[0].mxu0
      %v9736 = vadd.f32 %v9543, %v9735
      %v9737 = vpop.f32.mrb[0].mxu0
      %v9738 = vadd.f32 %v9545, %v9737
      %v9739 = vpop.f32.mrb[0].mxu0
      %v9740 = vadd.f32 %v9547, %v9739
      %v9741 = vpop.f32.mrb[0].mxu0
      %v9742 = vadd.f32 %v9549, %v9741
      %9743 = vmatprep.mubr.bf16.mxu0 %v7156
      %9744 = vmatmul.mubr.bf16.gmra.mrb[0].mxu0 %v7155
      %v9745 = vpop.f32.mrb[0].mxu0
      %v9746 = vadd.f32 %v9553, %v9745
      %v9747 = vpop.f32.mrb[0].mxu0
      %v9748 = vadd.f32 %v9555, %v9747
      %v9749 = vpop.f32.mrb[0].mxu0
      %v9750 = vadd.f32 %v9557, %v9749
      %v9751 = vpop.f32.mrb[0].mxu0
      %v9752 = vadd.f32 %v9559, %v9751
      %9753 = vmatprep.mubr.bf16.mxu0 %v7160
      %9754 = vmatmul.mubr.bf16.gmra.mrb[0].mxu0 %v7159
      %v9755 = vpop.f32.mrb[0].mxu0
      %v9756 = vadd.f32 %v9563, %v9755
      %v9757 = vpop.f32.mrb[0].mxu0
      %v9758 = vadd.f32 %v9565, %v9757
      %v9759 = vpop.f32.mrb[0].mxu0
      %v9760 = vadd.f32 %v9567, %v9759
      %v9761 = vpop.f32.mrb[0].mxu0
      %v9762 = vadd.f32 %v9569, %v9761
      %9763 = vdwg.mxu0
      %9764 = vmatprep.subr.bf16.mxu0 0
      %9765 = vmatpush1.bf16.msra.mxu0 %v8164
      %9766 = vmatprep.subr.bf16.mxu0 0
      %9767 = vmatpush1.bf16.msra.mxu0 %v8171
      %9768 = vmatprep.subr.bf16.mxu0 0
      %9769 = vmatpush1.bf16.msra.mxu0 %v8178
      %9770 = vmatprep.subr.bf16.mxu0 0
      %9771 = vmatpush1.bf16.msra.mxu0 %v8185
      %9772 = vmatprep.subr.bf16.mxu0 0
      %9773 = vmatpush1.bf16.msra.mxu0 %v8192
      %9774 = vmatprep.subr.bf16.mxu0 0
      %9775 = vmatpush1.bf16.msra.mxu0 %v8199
      %9776 = vmatprep.subr.bf16.mxu0 0
      %9777 = vmatpush1.bf16.msra.mxu0 %v8206
      %9778 = vmatprep.subr.bf16.mxu0 0
      %9779 = vmatpush1.bf16.msra.mxu0 %v8213
      %9780 = vmatprep.subr.bf16.mxu0 0
      %9781 = vmatpush1.bf16.msra.mxu0 %v8220
      %9782 = vmatprep.subr.bf16.mxu0 0
      %9783 = vmatpush1.bf16.msra.mxu0 %v8227
      %9784 = vmatprep.subr.bf16.mxu0 0
      %9785 = vmatpush1.bf16.msra.mxu0 %v8234
      %9786 = vmatprep.subr.bf16.mxu0 0
      %9787 = vmatpush1.bf16.msra.mxu0 %v8241
      %9788 = vmatprep.subr.bf16.mxu0 0
      %9789 = vmatpush1.bf16.msra.mxu0 %v8248
      %9790 = vmatprep.subr.bf16.mxu0 0
      %9791 = vmatpush1.bf16.msra.mxu0 %v8255
      %9792 = vmatprep.subr.bf16.mxu0 0
      %9793 = vmatpush1.bf16.msra.mxu0 %v8262
      %9794 = vmatprep.subr.bf16.mxu0 0
      %9795 = vmatpush1.bf16.msra.mxu0 %v8269
      %9796 = vmatprep.mubr.bf16.mxu0 %v7098
      %9797 = vmatmul.mubr.bf16.gmra.mrb[0].mxu0 %v7097
      %v9798 = vpop.f32.mrb[0].mxu0
      %v9799 = vadd.f32 %v7446, %v9798
      %v9800 = vpop.f32.mrb[0].mxu0
      %v9801 = vpop.f32.mrb[0].mxu0
      %v9802 = vadd.f32 %v7446, %v9801
      %v9803 = vpop.f32.mrb[0].mxu0
      %9804 = vmatprep.mubr.bf16.mxu0 %v7102
      %9805 = vmatmul.mubr.bf16.gmra.mrb[0].mxu0 %v7101
      %v9806 = vpop.f32.mrb[0].mxu0
      %v9807 = vadd.f32 %v7446, %v9806
      %v9808 = vpop.f32.mrb[0].mxu0
      %v9809 = vpop.f32.mrb[0].mxu0
      %v9810 = vadd.f32 %v7446, %v9809
      %v9811 = vpop.f32.mrb[0].mxu0
      %9812 = vmatprep.mubr.bf16.mxu0 %v7106
      %9813 = vmatmul.mubr.bf16.gmra.mrb[0].mxu0 %v7105
      %v9814 = vpop.f32.mrb[0].mxu0
      %v9815 = vadd.f32 %v7446, %v9814
      %v9816 = vpop.f32.mrb[0].mxu0
      %v9817 = vpop.f32.mrb[0].mxu0
      %v9818 = vadd.f32 %v7446, %v9817
      %v9819 = vpop.f32.mrb[0].mxu0
      %9820 = vmatprep.mubr.bf16.mxu0 %v7110
      %9821 = vmatmul.mubr.bf16.gmra.mrb[0].mxu0 %v7109
      %v9822 = vpop.f32.mrb[0].mxu0
      %v9823 = vadd.f32 %v7446, %v9822
      %v9824 = vpop.f32.mrb[0].mxu0
      %v9825 = vpop.f32.mrb[0].mxu0
      %v9826 = vadd.f32 %v7446, %v9825
      %v9827 = vpop.f32.mrb[0].mxu0
      %9828 = vmatprep.mubr.bf16.mxu0 %v7114
      %9829 = vmatmul.mubr.bf16.gmra.mrb[0].mxu0 %v7113
      %v9830 = vpop.f32.mrb[0].mxu0
      %v9831 = vadd.f32 %v7446, %v9830
      %v9832 = vpop.f32.mrb[0].mxu0
      %v9833 = vpop.f32.mrb[0].mxu0
      %v9834 = vadd.f32 %v7446, %v9833
      %v9835 = vpop.f32.mrb[0].mxu0
      %9836 = vmatprep.mubr.bf16.mxu0 %v7118
      %9837 = vmatmul.mubr.bf16.gmra.mrb[0].mxu0 %v7117
      %v9838 = vpop.f32.mrb[0].mxu0
      %v9839 = vadd.f32 %v7446, %v9838
      %v9840 = vpop.f32.mrb[0].mxu0
      %v9841 = vpop.f32.mrb[0].mxu0
      %v9842 = vadd.f32 %v7446, %v9841
      %v9843 = vpop.f32.mrb[0].mxu0
      %9844 = vmatprep.mubr.bf16.mxu0 %v7122
      %9845 = vmatmul.mubr.bf16.gmra.mrb[0].mxu0 %v7121
      %v9846 = vpop.f32.mrb[0].mxu0
      %v9847 = vadd.f32 %v7446, %v9846
      %v9848 = vpop.f32.mrb[0].mxu0
      %v9849 = vpop.f32.mrb[0].mxu0
      %v9850 = vadd.f32 %v7446, %v9849
      %v9851 = vpop.f32.mrb[0].mxu0
      %9852 = vmatprep.mubr.bf16.mxu0 %v7126
      %9853 = vmatmul.mubr.bf16.gmra.mrb[0].mxu0 %v7125
      %v9854 = vpop.f32.mrb[0].mxu0
      %v9855 = vadd.f32 %v7446, %v9854
      %v9856 = vpop.f32.mrb[0].mxu0
      %v9857 = vpop.f32.mrb[0].mxu0
      %v9858 = vadd.f32 %v7446, %v9857
      %v9859 = vpop.f32.mrb[0].mxu0
      %9860 = vmatprep.mubr.bf16.mxu0 %v7130
      %9861 = vmatmul.mubr.bf16.gmra.mrb[0].mxu0 %v7129
      %v9862 = vpop.f32.mrb[0].mxu0
      %v9863 = vadd.f32 %v7446, %v9862
      %v9864 = vpop.f32.mrb[0].mxu0
      %v9865 = vpop.f32.mrb[0].mxu0
      %v9866 = vadd.f32 %v7446, %v9865
      %v9867 = vpop.f32.mrb[0].mxu0
      %9868 = vmatprep.mubr.bf16.mxu0 %v7134
      %9869 = vmatmul.mubr.bf16.gmra.mrb[0].mxu0 %v7133
      %v9870 = vpop.f32.mrb[0].mxu0
      %v9871 = vadd.f32 %v7446, %v9870
      %v9872 = vpop.f32.mrb[0].mxu0
      %v9873 = vpop.f32.mrb[0].mxu0
      %v9874 = vadd.f32 %v7446, %v9873
      %v9875 = vpop.f32.mrb[0].mxu0
      %9876 = vmatprep.mubr.bf16.mxu0 %v7138
      %9877 = vmatmul.mubr.bf16.gmra.mrb[0].mxu0 %v7137
      %v9878 = vpop.f32.mrb[0].mxu0
      %v9879 = vadd.f32 %v7446, %v9878
      %v9880 = vpop.f32.mrb[0].mxu0
      %v9881 = vpop.f32.mrb[0].mxu0
      %v9882 = vadd.f32 %v7446, %v9881
      %v9883 = vpop.f32.mrb[0].mxu0
      %9884 = vmatprep.mubr.bf16.mxu0 %v7142
      %9885 = vmatmul.mubr.bf16.gmra.mrb[0].mxu0 %v7141
      %v9886 = vpop.f32.mrb[0].mxu0
      %v9887 = vadd.f32 %v7446, %v9886
      %v9888 = vpop.f32.mrb[0].mxu0
      %v9889 = vpop.f32.mrb[0].mxu0
      %v9890 = vadd.f32 %v7446, %v9889
      %v9891 = vpop.f32.mrb[0].mxu0
      %9892 = vmatprep.mubr.bf16.mxu0 %v7146
      %9893 = vmatmul.mubr.bf16.gmra.mrb[0].mxu0 %v7145
      %v9894 = vpop.f32.mrb[0].mxu0
      %v9895 = vadd.f32 %v7446, %v9894
      %v9896 = vpop.f32.mrb[0].mxu0
      %v9897 = vpop.f32.mrb[0].mxu0
      %v9898 = vadd.f32 %v7446, %v9897
      %v9899 = vpop.f32.mrb[0].mxu0
      %9900 = vmatprep.mubr.bf16.mxu0 %v7150
      %9901 = vmatmul.mubr.bf16.gmra.mrb[0].mxu0 %v7149
      %v9902 = vpop.f32.mrb[0].mxu0
      %v9903 = vadd.f32 %v7446, %v9902
      %v9904 = vpop.f32.mrb[0].mxu0
      %v9905 = vpop.f32.mrb[0].mxu0
      %v9906 = vadd.f32 %v7446, %v9905
      %v9907 = vpop.f32.mrb[0].mxu0
      %9908 = vmatprep.mubr.bf16.mxu0 %v7154
      %9909 = vmatmul.mubr.bf16.gmra.mrb[0].mxu0 %v7153
      %v9910 = vpop.f32.mrb[0].mxu0
      %v9911 = vadd.f32 %v7446, %v9910
      %v9912 = vpop.f32.mrb[0].mxu0
      %v9913 = vpop.f32.mrb[0].mxu0
      %v9914 = vadd.f32 %v7446, %v9913
      %v9915 = vpop.f32.mrb[0].mxu0
      %9916 = vmatprep.mubr.bf16.mxu0 %v7158
      %9917 = vmatmul.mubr.bf16.gmra.mrb[0].mxu0 %v7157
      %v9918 = vpop.f32.mrb[0].mxu0
      %v9919 = vadd.f32 %v7446, %v9918
      %v9920 = vpop.f32.mrb[0].mxu0
      %v9921 = vpop.f32.mrb[0].mxu0
      %v9922 = vadd.f32 %v7446, %v9921
      %v9923 = vpop.f32.mrb[0].mxu0
      %9924 = vdwg.mxu0
      %9925 = vmatprep.subr.bf16.mxu0 0
      %9926 = vmatpush1.bf16.msra.mxu0 %v8276
      %9927 = vmatprep.subr.bf16.mxu0 0
      %9928 = vmatpush1.bf16.msra.mxu0 %v8283
      %9929 = vmatprep.subr.bf16.mxu0 0
      %9930 = vmatpush1.bf16.msra.mxu0 %v8290
      %9931 = vmatprep.subr.bf16.mxu0 0
      %9932 = vmatpush1.bf16.msra.mxu0 %v8297
      %9933 = vmatprep.subr.bf16.mxu0 0
      %9934 = vmatpush1.bf16.msra.mxu0 %v8304
      %9935 = vmatprep.subr.bf16.mxu0 0
      %9936 = vmatpush1.bf16.msra.mxu0 %v8311
      %9937 = vmatprep.subr.bf16.mxu0 0
      %9938 = vmatpush1.bf16.msra.mxu0 %v8318
      %9939 = vmatprep.subr.bf16.mxu0 0
      %9940 = vmatpush1.bf16.msra.mxu0 %v8325
      %9941 = vmatprep.subr.bf16.mxu0 0
      %9942 = vmatpush1.bf16.msra.mxu0 %v8332
      %9943 = vmatprep.subr.bf16.mxu0 0
      %9944 = vmatpush1.bf16.msra.mxu0 %v8339
      %9945 = vmatprep.subr.bf16.mxu0 0
      %9946 = vmatpush1.bf16.msra.mxu0 %v8346
      %9947 = vmatprep.subr.bf16.mxu0 0
      %9948 = vmatpush1.bf16.msra.mxu0 %v8353
      %9949 = vmatprep.subr.bf16.mxu0 0
      %9950 = vmatpush1.bf16.msra.mxu0 %v8360
      %9951 = vmatprep.subr.bf16.mxu0 0
      %9952 = vmatpush1.bf16.msra.mxu0 %v8367
      %9953 = vmatprep.subr.bf16.mxu0 0
      %9954 = vmatpush1.bf16.msra.mxu0 %v8374
      %9955 = vmatprep.subr.bf16.mxu0 0
      %9956 = vmatpush1.bf16.msra.mxu0 %v8381
      %9957 = vmatprep.mubr.bf16.mxu0 %v7100
      %9958 = vmatmul.mubr.bf16.gmra.mrb[0].mxu0 %v7099
      %v9959 = vpop.f32.mrb[0].mxu0
      %v9960 = vadd.f32 %v9799, %v9959
      %v9961 = vpop.f32.mrb[0].mxu0
      %v9962 = vpop.f32.mrb[0].mxu0
      %v9963 = vadd.f32 %v9802, %v9962
      %v9964 = vpop.f32.mrb[0].mxu0
      %9965 = vmatprep.mubr.bf16.mxu0 %v7104
      %9966 = vmatmul.mubr.bf16.gmra.mrb[0].mxu0 %v7103
      %v9967 = vpop.f32.mrb[0].mxu0
      %v9968 = vadd.f32 %v9807, %v9967
      %v9969 = vpop.f32.mrb[0].mxu0
      %v9970 = vpop.f32.mrb[0].mxu0
      %v9971 = vadd.f32 %v9810, %v9970
      %v9972 = vpop.f32.mrb[0].mxu0
      %9973 = vmatprep.mubr.bf16.mxu0 %v7108
      %9974 = vmatmul.mubr.bf16.gmra.mrb[0].mxu0 %v7107
      %v9975 = vpop.f32.mrb[0].mxu0
      %v9976 = vadd.f32 %v9815, %v9975
      %v9977 = vpop.f32.mrb[0].mxu0
      %v9978 = vpop.f32.mrb[0].mxu0
      %v9979 = vadd.f32 %v9818, %v9978
      %v9980 = vpop.f32.mrb[0].mxu0
      %9981 = vmatprep.mubr.bf16.mxu0 %v7112
      %9982 = vmatmul.mubr.bf16.gmra.mrb[0].mxu0 %v7111
      %v9983 = vpop.f32.mrb[0].mxu0
      %v9984 = vadd.f32 %v9823, %v9983
      %v9985 = vpop.f32.mrb[0].mxu0
      %v9986 = vpop.f32.mrb[0].mxu0
      %v9987 = vadd.f32 %v9826, %v9986
      %v9988 = vpop.f32.mrb[0].mxu0
      %9989 = vmatprep.mubr.bf16.mxu0 %v7116
      %9990 = vmatmul.mubr.bf16.gmra.mrb[0].mxu0 %v7115
      %v9991 = vpop.f32.mrb[0].mxu0
      %v9992 = vadd.f32 %v9831, %v9991
      %v9993 = vpop.f32.mrb[0].mxu0
      %v9994 = vpop.f32.mrb[0].mxu0
      %v9995 = vadd.f32 %v9834, %v9994
      %v9996 = vpop.f32.mrb[0].mxu0
      %9997 = vmatprep.mubr.bf16.mxu0 %v7120
      %9998 = vmatmul.mubr.bf16.gmra.mrb[0].mxu0 %v7119
      %v9999 = vpop.f32.mrb[0].mxu0
      %v10000 = vadd.f32 %v9839, %v9999
      %v10001 = vpop.f32.mrb[0].mxu0
      %v10002 = vpop.f32.mrb[0].mxu0
      %v10003 = vadd.f32 %v9842, %v10002
      %v10004 = vpop.f32.mrb[0].mxu0
      %10005 = vmatprep.mubr.bf16.mxu0 %v7124
      %10006 = vmatmul.mubr.bf16.gmra.mrb[0].mxu0 %v7123
      %v10007 = vpop.f32.mrb[0].mxu0
      %v10008 = vadd.f32 %v9847, %v10007
      %v10009 = vpop.f32.mrb[0].mxu0
      %v10010 = vpop.f32.mrb[0].mxu0
      %v10011 = vadd.f32 %v9850, %v10010
      %v10012 = vpop.f32.mrb[0].mxu0
      %10013 = vmatprep.mubr.bf16.mxu0 %v7128
      %10014 = vmatmul.mubr.bf16.gmra.mrb[0].mxu0 %v7127
      %v10015 = vpop.f32.mrb[0].mxu0
      %v10016 = vadd.f32 %v9855, %v10015
      %v10017 = vpop.f32.mrb[0].mxu0
      %v10018 = vpop.f32.mrb[0].mxu0
      %v10019 = vadd.f32 %v9858, %v10018
      %v10020 = vpop.f32.mrb[0].mxu0
      %10021 = vmatprep.mubr.bf16.mxu0 %v7132
      %10022 = vmatmul.mubr.bf16.gmra.mrb[0].mxu0 %v7131
      %v10023 = vpop.f32.mrb[0].mxu0
      %v10024 = vadd.f32 %v9863, %v10023
      %v10025 = vpop.f32.mrb[0].mxu0
      %v10026 = vpop.f32.mrb[0].mxu0
      %v10027 = vadd.f32 %v9866, %v10026
      %v10028 = vpop.f32.mrb[0].mxu0
      %10029 = vmatprep.mubr.bf16.mxu0 %v7136
      %10030 = vmatmul.mubr.bf16.gmra.mrb[0].mxu0 %v7135
      %v10031 = vpop.f32.mrb[0].mxu0
      %v10032 = vadd.f32 %v9871, %v10031
      %v10033 = vpop.f32.mrb[0].mxu0
      %v10034 = vpop.f32.mrb[0].mxu0
      %v10035 = vadd.f32 %v9874, %v10034
      %v10036 = vpop.f32.mrb[0].mxu0
      %10037 = vmatprep.mubr.bf16.mxu0 %v7140
      %10038 = vmatmul.mubr.bf16.gmra.mrb[0].mxu0 %v7139
      %v10039 = vpop.f32.mrb[0].mxu0
      %v10040 = vadd.f32 %v9879, %v10039
      %v10041 = vpop.f32.mrb[0].mxu0
      %v10042 = vpop.f32.mrb[0].mxu0
      %v10043 = vadd.f32 %v9882, %v10042
      %v10044 = vpop.f32.mrb[0].mxu0
      %10045 = vmatprep.mubr.bf16.mxu0 %v7144
      %10046 = vmatmul.mubr.bf16.gmra.mrb[0].mxu0 %v7143
      %v10047 = vpop.f32.mrb[0].mxu0
      %v10048 = vadd.f32 %v9887, %v10047
      %v10049 = vpop.f32.mrb[0].mxu0
      %v10050 = vpop.f32.mrb[0].mxu0
      %v10051 = vadd.f32 %v9890, %v10050
      %v10052 = vpop.f32.mrb[0].mxu0
      %10053 = vmatprep.mubr.bf16.mxu0 %v7148
      %10054 = vmatmul.mubr.bf16.gmra.mrb[0].mxu0 %v7147
      %v10055 = vpop.f32.mrb[0].mxu0
      %v10056 = vadd.f32 %v9895, %v10055
      %v10057 = vpop.f32.mrb[0].mxu0
      %v10058 = vpop.f32.mrb[0].mxu0
      %v10059 = vadd.f32 %v9898, %v10058
      %v10060 = vpop.f32.mrb[0].mxu0
      %10061 = vmatprep.mubr.bf16.mxu0 %v7152
      %10062 = vmatmul.mubr.bf16.gmra.mrb[0].mxu0 %v7151
      %v10063 = vpop.f32.mrb[0].mxu0
      %v10064 = vadd.f32 %v9903, %v10063
      %v10065 = vpop.f32.mrb[0].mxu0
      %v10066 = vpop.f32.mrb[0].mxu0
      %v10067 = vadd.f32 %v9906, %v10066
      %v10068 = vpop.f32.mrb[0].mxu0
      %10069 = vmatprep.mubr.bf16.mxu0 %v7156
      %10070 = vmatmul.mubr.bf16.gmra.mrb[0].mxu0 %v7155
      %v10071 = vpop.f32.mrb[0].mxu0
      %v10072 = vadd.f32 %v9911, %v10071
      %v10073 = vpop.f32.mrb[0].mxu0
      %v10074 = vpop.f32.mrb[0].mxu0
      %v10075 = vadd.f32 %v9914, %v10074
      %v10076 = vpop.f32.mrb[0].mxu0
      %10077 = vmatprep.mubr.bf16.mxu0 %v7160
      %10078 = vmatmul.mubr.bf16.gmra.mrb[0].mxu0 %v7159
      %v10079 = vpop.f32.mrb[0].mxu0
      %v10080 = vadd.f32 %v9919, %v10079
      %v10081 = vpop.f32.mrb[0].mxu0
      %v10082 = vpop.f32.mrb[0].mxu0
      %v10083 = vadd.f32 %v9922, %v10082
      %v10084 = vpop.f32.mrb[0].mxu0
      %10085 = vdwg.mxu0
      %v10086 = vxor.u32 %v8834, 2147483648
      %v10087 = vxor.u32 %v8836, 2147483648
      %v10088 = vxor.u32 %v9220, 2147483648
      %v10089 = vxor.u32 %v9222, 2147483648
      %v10090 = vxor.u32 %v9606, 2147483648
      %v10091 = vxor.u32 %v9608, 2147483648
      %v10092 = vxor.u32 %v9960, 2147483648
      %v10093 = vxor.u32 %v8838, 2147483648
      %v10094 = vxor.u32 %v8840, 2147483648
      %v10095 = vxor.u32 %v9224, 2147483648
      %v10096 = vxor.u32 %v9226, 2147483648
      %v10097 = vxor.u32 %v9610, 2147483648
      %v10098 = vxor.u32 %v9612, 2147483648
      %v10099 = vxor.u32 %v9963, 2147483648
      %v10100 = vxor.u32 %v8844, 2147483648
      %v10101 = vxor.u32 %v8846, 2147483648
      %v10102 = vxor.u32 %v9230, 2147483648
      %v10103 = vxor.u32 %v9232, 2147483648
      %v10104 = vxor.u32 %v9616, 2147483648
      %v10105 = vxor.u32 %v9618, 2147483648
      %v10106 = vxor.u32 %v9968, 2147483648
      %v10107 = vxor.u32 %v8848, 2147483648
      %v10108 = vxor.u32 %v8850, 2147483648
      %v10109 = vxor.u32 %v9234, 2147483648
      %v10110 = vxor.u32 %v9236, 2147483648
      %v10111 = vxor.u32 %v9620, 2147483648
      %v10112 = vxor.u32 %v9622, 2147483648
      %v10113 = vxor.u32 %v9971, 2147483648
      %v10114 = vxor.u32 %v8854, 2147483648
      %v10115 = vxor.u32 %v8856, 2147483648
      %v10116 = vxor.u32 %v9240, 2147483648
      %v10117 = vxor.u32 %v9242, 2147483648
      %v10118 = vxor.u32 %v9626, 2147483648
      %v10119 = vxor.u32 %v9628, 2147483648
      %v10120 = vxor.u32 %v9976, 2147483648
      %v10121 = vxor.u32 %v8858, 2147483648
      %v10122 = vxor.u32 %v8860, 2147483648
      %v10123 = vxor.u32 %v9244, 2147483648
      %v10124 = vxor.u32 %v9246, 2147483648
      %v10125 = vxor.u32 %v9630, 2147483648
      %v10126 = vxor.u32 %v9632, 2147483648
      %v10127 = vxor.u32 %v9979, 2147483648
      %v10128 = vxor.u32 %v8864, 2147483648
      %v10129 = vxor.u32 %v8866, 2147483648
      %v10130 = vxor.u32 %v9250, 2147483648
      %v10131 = vxor.u32 %v9252, 2147483648
      %v10132 = vxor.u32 %v9636, 2147483648
      %v10133 = vxor.u32 %v9638, 2147483648
      %v10134 = vxor.u32 %v9984, 2147483648
      %v10135 = vxor.u32 %v8868, 2147483648
      %v10136 = vxor.u32 %v8870, 2147483648
      %v10137 = vxor.u32 %v9254, 2147483648
      %v10138 = vxor.u32 %v9256, 2147483648
      %v10139 = vxor.u32 %v9640, 2147483648
      %v10140 = vxor.u32 %v9642, 2147483648
      %v10141 = vxor.u32 %v9987, 2147483648
      %v10142 = vxor.u32 %v8874, 2147483648
      %v10143 = vxor.u32 %v8876, 2147483648
      %v10144 = vxor.u32 %v9260, 2147483648
      %v10145 = vxor.u32 %v9262, 2147483648
      %v10146 = vxor.u32 %v9646, 2147483648
      %v10147 = vxor.u32 %v9648, 2147483648
      %v10148 = vxor.u32 %v9992, 2147483648
      %v10149 = vxor.u32 %v8878, 2147483648
      %v10150 = vxor.u32 %v8880, 2147483648
      %v10151 = vxor.u32 %v9264, 2147483648
      %v10152 = vxor.u32 %v9266, 2147483648
      %v10153 = vxor.u32 %v9650, 2147483648
      %v10154 = vxor.u32 %v9652, 2147483648
      %v10155 = vxor.u32 %v9995, 2147483648
      %v10156 = vxor.u32 %v8884, 2147483648
      %v10157 = vxor.u32 %v8886, 2147483648
      %v10158 = vxor.u32 %v9270, 2147483648
      %v10159 = vxor.u32 %v9272, 2147483648
      %v10160 = vxor.u32 %v9656, 2147483648
      %v10161 = vxor.u32 %v9658, 2147483648
      %v10162 = vxor.u32 %v10000, 2147483648
      %v10163 = vxor.u32 %v8888, 2147483648
      %v10164 = vxor.u32 %v8890, 2147483648
      %v10165 = vxor.u32 %v9274, 2147483648
      %v10166 = vxor.u32 %v9276, 2147483648
      %v10167 = vxor.u32 %v9660, 2147483648
      %v10168 = vxor.u32 %v9662, 2147483648
      %v10169 = vxor.u32 %v10003, 2147483648
      %v10170 = vxor.u32 %v8894, 2147483648
      %v10171 = vxor.u32 %v8896, 2147483648
      %v10172 = vxor.u32 %v9280, 2147483648
      %v10173 = vxor.u32 %v9282, 2147483648
      %v10174 = vxor.u32 %v9666, 2147483648
      %v10175 = vxor.u32 %v9668, 2147483648
      %v10176 = vxor.u32 %v10008, 2147483648
      %v10177 = vxor.u32 %v8898, 2147483648
      %v10178 = vxor.u32 %v8900, 2147483648
      %v10179 = vxor.u32 %v9284, 2147483648
      %v10180 = vxor.u32 %v9286, 2147483648
      %v10181 = vxor.u32 %v9670, 2147483648
      %v10182 = vxor.u32 %v9672, 2147483648
      %v10183 = vxor.u32 %v10011, 2147483648
      %v10184 = vxor.u32 %v8904, 2147483648
      %v10185 = vxor.u32 %v8906, 2147483648
      %v10186 = vxor.u32 %v9290, 2147483648
      %v10187 = vxor.u32 %v9292, 2147483648
      %v10188 = vxor.u32 %v9676, 2147483648
      %v10189 = vxor.u32 %v9678, 2147483648
      %v10190 = vxor.u32 %v10016, 2147483648
      %v10191 = vxor.u32 %v8908, 2147483648
      %v10192 = vxor.u32 %v8910, 2147483648
      %v10193 = vxor.u32 %v9294, 2147483648
      %v10194 = vxor.u32 %v9296, 2147483648
      %v10195 = vxor.u32 %v9680, 2147483648
      %v10196 = vxor.u32 %v9682, 2147483648
      %v10197 = vxor.u32 %v10019, 2147483648
      %v10198 = vxor.u32 %v8914, 2147483648
      %v10199 = vxor.u32 %v8916, 2147483648
      %v10200 = vxor.u32 %v9300, 2147483648
      %v10201 = vxor.u32 %v9302, 2147483648
      %v10202 = vxor.u32 %v9686, 2147483648
      %v10203 = vxor.u32 %v9688, 2147483648
      %v10204 = vxor.u32 %v10024, 2147483648
      %v10205 = vxor.u32 %v8918, 2147483648
      %v10206 = vxor.u32 %v8920, 2147483648
      %v10207 = vxor.u32 %v9304, 2147483648
      %v10208 = vxor.u32 %v9306, 2147483648
      %v10209 = vxor.u32 %v9690, 2147483648
      %v10210 = vxor.u32 %v9692, 2147483648
      %v10211 = vxor.u32 %v10027, 2147483648
      %v10212 = vxor.u32 %v8924, 2147483648
      %v10213 = vxor.u32 %v8926, 2147483648
      %v10214 = vxor.u32 %v9310, 2147483648
      %v10215 = vxor.u32 %v9312, 2147483648
      %v10216 = vxor.u32 %v9696, 2147483648
      %v10217 = vxor.u32 %v9698, 2147483648
      %v10218 = vxor.u32 %v10032, 2147483648
      %v10219 = vxor.u32 %v8928, 2147483648
      %v10220 = vxor.u32 %v8930, 2147483648
      %v10221 = vxor.u32 %v9314, 2147483648
      %v10222 = vxor.u32 %v9316, 2147483648
      %v10223 = vxor.u32 %v9700, 2147483648
      %v10224 = vxor.u32 %v9702, 2147483648
      %v10225 = vxor.u32 %v10035, 2147483648
      %v10226 = vxor.u32 %v8934, 2147483648
      %v10227 = vxor.u32 %v8936, 2147483648
      %v10228 = vxor.u32 %v9320, 2147483648
      %v10229 = vxor.u32 %v9322, 2147483648
      %v10230 = vxor.u32 %v9706, 2147483648
      %v10231 = vxor.u32 %v9708, 2147483648
      %v10232 = vxor.u32 %v10040, 2147483648
      %v10233 = vxor.u32 %v8938, 2147483648
      %v10234 = vxor.u32 %v8940, 2147483648
      %v10235 = vxor.u32 %v9324, 2147483648
      %v10236 = vxor.u32 %v9326, 2147483648
      %v10237 = vxor.u32 %v9710, 2147483648
      %v10238 = vxor.u32 %v9712, 2147483648
      %v10239 = vxor.u32 %v10043, 2147483648
      %v10240 = vxor.u32 %v8944, 2147483648
      %v10241 = vxor.u32 %v8946, 2147483648
      %v10242 = vxor.u32 %v9330, 2147483648
      %v10243 = vxor.u32 %v9332, 2147483648
      %v10244 = vxor.u32 %v9716, 2147483648
      %v10245 = vxor.u32 %v9718, 2147483648
      %v10246 = vxor.u32 %v10048, 2147483648
      %v10247 = vxor.u32 %v8948, 2147483648
      %v10248 = vxor.u32 %v8950, 2147483648
      %v10249 = vxor.u32 %v9334, 2147483648
      %v10250 = vxor.u32 %v9336, 2147483648
      %v10251 = vxor.u32 %v9720, 2147483648
      %v10252 = vxor.u32 %v9722, 2147483648
      %v10253 = vxor.u32 %v10051, 2147483648
      %v10254 = vxor.u32 %v8954, 2147483648
      %v10255 = vxor.u32 %v8956, 2147483648
      %v10256 = vxor.u32 %v9340, 2147483648
      %v10257 = vxor.u32 %v9342, 2147483648
      %v10258 = vxor.u32 %v9726, 2147483648
      %v10259 = vxor.u32 %v9728, 2147483648
      %v10260 = vxor.u32 %v10056, 2147483648
      %v10261 = vxor.u32 %v8958, 2147483648
      %v10262 = vxor.u32 %v8960, 2147483648
      %v10263 = vxor.u32 %v9344, 2147483648
      %v10264 = vxor.u32 %v9346, 2147483648
      %v10265 = vxor.u32 %v9730, 2147483648
      %v10266 = vxor.u32 %v9732, 2147483648
      %v10267 = vxor.u32 %v10059, 2147483648
      %v10268 = vxor.u32 %v8964, 2147483648
      %v10269 = vxor.u32 %v8966, 2147483648
      %v10270 = vxor.u32 %v9350, 2147483648
      %v10271 = vxor.u32 %v9352, 2147483648
      %v10272 = vxor.u32 %v9736, 2147483648
      %v10273 = vxor.u32 %v9738, 2147483648
      %v10274 = vxor.u32 %v10064, 2147483648
      %v10275 = vxor.u32 %v8968, 2147483648
      %v10276 = vxor.u32 %v8970, 2147483648
      %v10277 = vxor.u32 %v9354, 2147483648
      %v10278 = vxor.u32 %v9356, 2147483648
      %v10279 = vxor.u32 %v9740, 2147483648
      %v10280 = vxor.u32 %v9742, 2147483648
      %v10281 = vxor.u32 %v10067, 2147483648
      %v10282 = vxor.u32 %v8974, 2147483648
      %v10283 = vxor.u32 %v8976, 2147483648
      %v10284 = vxor.u32 %v9360, 2147483648
      %v10285 = vxor.u32 %v9362, 2147483648
      %v10286 = vxor.u32 %v9746, 2147483648
      %v10287 = vxor.u32 %v9748, 2147483648
      %v10288 = vxor.u32 %v10072, 2147483648
      %v10289 = vxor.u32 %v8978, 2147483648
      %v10290 = vxor.u32 %v8980, 2147483648
      %v10291 = vxor.u32 %v9364, 2147483648
      %v10292 = vxor.u32 %v9366, 2147483648
      %v10293 = vxor.u32 %v9750, 2147483648
      %v10294 = vxor.u32 %v9752, 2147483648
      %v10295 = vxor.u32 %v10075, 2147483648
      %v10296 = vxor.u32 %v8984, 2147483648
      %v10297 = vxor.u32 %v8986, 2147483648
      %v10298 = vxor.u32 %v9370, 2147483648
      %v10299 = vxor.u32 %v9372, 2147483648
      %v10300 = vxor.u32 %v9756, 2147483648
      %v10301 = vxor.u32 %v9758, 2147483648
      %v10302 = vxor.u32 %v10080, 2147483648
      %v10303 = vxor.u32 %v8988, 2147483648
      %v10304 = vxor.u32 %v8990, 2147483648
      %v10305 = vxor.u32 %v9374, 2147483648
      %v10306 = vxor.u32 %v9376, 2147483648
      %v10307 = vxor.u32 %v9760, 2147483648
      %v10308 = vxor.u32 %v9762, 2147483648
      %v10309 = vxor.u32 %v10083, 2147483648
      %v10310 = vmul.f32 %v10086, 1.442695
      %v10311 = vpow.pop %v10310
      %v10312 = vmul.f32 %v10087, 1.442695
      %v10313 = vpow.pop %v10312
      %v10314 = vmul.f32 %v10088, 1.442695
      %v10315 = vpow.pop %v10314
      %v10316 = vmul.f32 %v10089, 1.442695
      %v10317 = vpow.pop %v10316
      %v10318 = vmul.f32 %v10090, 1.442695
      %v10319 = vpow.pop %v10318
      %v10320 = vmul.f32 %v10091, 1.442695
      %v10321 = vpow.pop %v10320
      %v10322 = vmul.f32 %v10092, 1.442695
      %v10323 = vpow.pop %v10322
      %v10324 = vmul.f32 %v10093, 1.442695
      %v10325 = vpow.pop %v10324
      %v10326 = vmul.f32 %v10094, 1.442695
      %v10327 = vpow.pop %v10326
      %v10328 = vmul.f32 %v10095, 1.442695
      %v10329 = vpow.pop %v10328
      %v10330 = vmul.f32 %v10096, 1.442695
      %v10331 = vpow.pop %v10330
      %v10332 = vmul.f32 %v10097, 1.442695
      %v10333 = vpow.pop %v10332
      %v10334 = vmul.f32 %v10098, 1.442695
      %v10335 = vpow.pop %v10334
      %v10336 = vmul.f32 %v10099, 1.442695
      %v10337 = vpow.pop %v10336
      %v10338 = vmul.f32 %v10100, 1.442695
      %v10339 = vpow.pop %v10338
      %v10340 = vmul.f32 %v10101, 1.442695
      %v10341 = vpow.pop %v10340
      %v10342 = vmul.f32 %v10102, 1.442695
      %v10343 = vpow.pop %v10342
      %v10344 = vmul.f32 %v10103, 1.442695
      %v10345 = vpow.pop %v10344
      %v10346 = vmul.f32 %v10104, 1.442695
      %v10347 = vpow.pop %v10346
      %v10348 = vmul.f32 %v10105, 1.442695
      %v10349 = vpow.pop %v10348
      %v10350 = vmul.f32 %v10106, 1.442695
      %v10351 = vpow.pop %v10350
      %v10352 = vmul.f32 %v10107, 1.442695
      %v10353 = vpow.pop %v10352
      %v10354 = vmul.f32 %v10108, 1.442695
      %v10355 = vpow.pop %v10354
      %v10356 = vmul.f32 %v10109, 1.442695
      %v10357 = vpow.pop %v10356
      %v10358 = vmul.f32 %v10110, 1.442695
      %v10359 = vpow.pop %v10358
      %v10360 = vmul.f32 %v10111, 1.442695
      %v10361 = vpow.pop %v10360
      %v10362 = vmul.f32 %v10112, 1.442695
      %v10363 = vpow.pop %v10362
      %v10364 = vmul.f32 %v10113, 1.442695
      %v10365 = vpow.pop %v10364
      %v10366 = vmul.f32 %v10114, 1.442695
      %v10367 = vpow.pop %v10366
      %v10368 = vmul.f32 %v10115, 1.442695
      %v10369 = vpow.pop %v10368
      %v10370 = vmul.f32 %v10116, 1.442695
      %v10371 = vpow.pop %v10370
      %v10372 = vmul.f32 %v10117, 1.442695
      %v10373 = vpow.pop %v10372
      %v10374 = vmul.f32 %v10118, 1.442695
      %v10375 = vpow.pop %v10374
      %v10376 = vmul.f32 %v10119, 1.442695
      %v10377 = vpow.pop %v10376
      %v10378 = vmul.f32 %v10120, 1.442695
      %v10379 = vpow.pop %v10378
      %v10380 = vmul.f32 %v10121, 1.442695
      %v10381 = vpow.pop %v10380
      %v10382 = vmul.f32 %v10122, 1.442695
      %v10383 = vpow.pop %v10382
      %v10384 = vmul.f32 %v10123, 1.442695
      %v10385 = vpow.pop %v10384
      %v10386 = vmul.f32 %v10124, 1.442695
      %v10387 = vpow.pop %v10386
      %v10388 = vmul.f32 %v10125, 1.442695
      %v10389 = vpow.pop %v10388
      %v10390 = vmul.f32 %v10126, 1.442695
      %v10391 = vpow.pop %v10390
      %v10392 = vmul.f32 %v10127, 1.442695
      %v10393 = vpow.pop %v10392
      %v10394 = vmul.f32 %v10128, 1.442695
      %v10395 = vpow.pop %v10394
      %v10396 = vmul.f32 %v10129, 1.442695
      %v10397 = vpow.pop %v10396
      %v10398 = vmul.f32 %v10130, 1.442695
      %v10399 = vpow.pop %v10398
      %v10400 = vmul.f32 %v10131, 1.442695
      %v10401 = vpow.pop %v10400
      %v10402 = vmul.f32 %v10132, 1.442695
      %v10403 = vpow.pop %v10402
      %v10404 = vmul.f32 %v10133, 1.442695
      %v10405 = vpow.pop %v10404
      %v10406 = vmul.f32 %v10134, 1.442695
      %v10407 = vpow.pop %v10406
      %v10408 = vmul.f32 %v10135, 1.442695
      %v10409 = vpow.pop %v10408
      %v10410 = vmul.f32 %v10136, 1.442695
      %v10411 = vpow.pop %v10410
      %v10412 = vmul.f32 %v10137, 1.442695
      %v10413 = vpow.pop %v10412
      %v10414 = vmul.f32 %v10138, 1.442695
      %v10415 = vpow.pop %v10414
      %v10416 = vmul.f32 %v10139, 1.442695
      %v10417 = vpow.pop %v10416
      %v10418 = vmul.f32 %v10140, 1.442695
      %v10419 = vpow.pop %v10418
      %v10420 = vmul.f32 %v10141, 1.442695
      %v10421 = vpow.pop %v10420
      %v10422 = vmul.f32 %v10142, 1.442695
      %v10423 = vpow.pop %v10422
      %v10424 = vmul.f32 %v10143, 1.442695
      %v10425 = vpow.pop %v10424
      %v10426 = vmul.f32 %v10144, 1.442695
      %v10427 = vpow.pop %v10426
      %v10428 = vmul.f32 %v10145, 1.442695
      %v10429 = vpow.pop %v10428
      %v10430 = vmul.f32 %v10146, 1.442695
      %v10431 = vpow.pop %v10430
      %v10432 = vmul.f32 %v10147, 1.442695
      %v10433 = vpow.pop %v10432
      %v10434 = vmul.f32 %v10148, 1.442695
      %v10435 = vpow.pop %v10434
      %v10436 = vmul.f32 %v10149, 1.442695
      %v10437 = vpow.pop %v10436
      %v10438 = vmul.f32 %v10150, 1.442695
      %v10439 = vpow.pop %v10438
      %v10440 = vmul.f32 %v10151, 1.442695
      %v10441 = vpow.pop %v10440
      %v10442 = vmul.f32 %v10152, 1.442695
      %v10443 = vpow.pop %v10442
      %v10444 = vmul.f32 %v10153, 1.442695
      %v10445 = vpow.pop %v10444
      %v10446 = vmul.f32 %v10154, 1.442695
      %v10447 = vpow.pop %v10446
      %v10448 = vmul.f32 %v10155, 1.442695
      %v10449 = vpow.pop %v10448
      %v10450 = vmul.f32 %v10156, 1.442695
      %v10451 = vpow.pop %v10450
      %v10452 = vmul.f32 %v10157, 1.442695
      %v10453 = vpow.pop %v10452
      %v10454 = vmul.f32 %v10158, 1.442695
      %v10455 = vpow.pop %v10454
      %v10456 = vmul.f32 %v10159, 1.442695
      %v10457 = vpow.pop %v10456
      %v10458 = vmul.f32 %v10160, 1.442695
      %v10459 = vpow.pop %v10458
      %v10460 = vmul.f32 %v10161, 1.442695
      %v10461 = vpow.pop %v10460
      %v10462 = vmul.f32 %v10162, 1.442695
      %v10463 = vpow.pop %v10462
      %v10464 = vmul.f32 %v10163, 1.442695
      %v10465 = vpow.pop %v10464
      %v10466 = vmul.f32 %v10164, 1.442695
      %v10467 = vpow.pop %v10466
      %v10468 = vmul.f32 %v10165, 1.442695
      %v10469 = vpow.pop %v10468
      %v10470 = vmul.f32 %v10166, 1.442695
      %v10471 = vpow.pop %v10470
      %v10472 = vmul.f32 %v10167, 1.442695
      %v10473 = vpow.pop %v10472
      %v10474 = vmul.f32 %v10168, 1.442695
      %v10475 = vpow.pop %v10474
      %v10476 = vmul.f32 %v10169, 1.442695
      %v10477 = vpow.pop %v10476
      %v10478 = vmul.f32 %v10170, 1.442695
      %v10479 = vpow.pop %v10478
      %v10480 = vmul.f32 %v10171, 1.442695
      %v10481 = vpow.pop %v10480
      %v10482 = vmul.f32 %v10172, 1.442695
      %v10483 = vpow.pop %v10482
      %v10484 = vmul.f32 %v10173, 1.442695
      %v10485 = vpow.pop %v10484
      %v10486 = vmul.f32 %v10174, 1.442695
      %v10487 = vpow.pop %v10486
      %v10488 = vmul.f32 %v10175, 1.442695
      %v10489 = vpow.pop %v10488
      %v10490 = vmul.f32 %v10176, 1.442695
      %v10491 = vpow.pop %v10490
      %v10492 = vmul.f32 %v10177, 1.442695
      %v10493 = vpow.pop %v10492
      %v10494 = vmul.f32 %v10178, 1.442695
      %v10495 = vpow.pop %v10494
      %v10496 = vmul.f32 %v10179, 1.442695
      %v10497 = vpow.pop %v10496
      %v10498 = vmul.f32 %v10180, 1.442695
      %v10499 = vpow.pop %v10498
      %v10500 = vmul.f32 %v10181, 1.442695
      %v10501 = vpow.pop %v10500
      %v10502 = vmul.f32 %v10182, 1.442695
      %v10503 = vpow.pop %v10502
      %v10504 = vmul.f32 %v10183, 1.442695
      %v10505 = vpow.pop %v10504
      %v10506 = vmul.f32 %v10184, 1.442695
      %v10507 = vpow.pop %v10506
      %v10508 = vmul.f32 %v10185, 1.442695
      %v10509 = vpow.pop %v10508
      %v10510 = vmul.f32 %v10186, 1.442695
      %v10511 = vpow.pop %v10510
      %v10512 = vmul.f32 %v10187, 1.442695
      %v10513 = vpow.pop %v10512
      %v10514 = vmul.f32 %v10188, 1.442695
      %v10515 = vpow.pop %v10514
      %v10516 = vmul.f32 %v10189, 1.442695
      %v10517 = vpow.pop %v10516
      %v10518 = vmul.f32 %v10190, 1.442695
      %v10519 = vpow.pop %v10518
      %v10520 = vmul.f32 %v10191, 1.442695
      %v10521 = vpow.pop %v10520
      %v10522 = vmul.f32 %v10192, 1.442695
      %v10523 = vpow.pop %v10522
      %v10524 = vmul.f32 %v10193, 1.442695
      %v10525 = vpow.pop %v10524
      %v10526 = vmul.f32 %v10194, 1.442695
      %v10527 = vpow.pop %v10526
      %v10528 = vmul.f32 %v10195, 1.442695
      %v10529 = vpow.pop %v10528
      %v10530 = vmul.f32 %v10196, 1.442695
      %v10531 = vpow.pop %v10530
      %v10532 = vmul.f32 %v10197, 1.442695
      %v10533 = vpow.pop %v10532
      %v10534 = vmul.f32 %v10198, 1.442695
      %v10535 = vpow.pop %v10534
      %v10536 = vmul.f32 %v10199, 1.442695
      %v10537 = vpow.pop %v10536
      %v10538 = vmul.f32 %v10200, 1.442695
      %v10539 = vpow.pop %v10538
      %v10540 = vmul.f32 %v10201, 1.442695
      %v10541 = vpow.pop %v10540
      %v10542 = vmul.f32 %v10202, 1.442695
      %v10543 = vpow.pop %v10542
      %v10544 = vmul.f32 %v10203, 1.442695
      %v10545 = vpow.pop %v10544
      %v10546 = vmul.f32 %v10204, 1.442695
      %v10547 = vpow.pop %v10546
      %v10548 = vmul.f32 %v10205, 1.442695
      %v10549 = vpow.pop %v10548
      %v10550 = vmul.f32 %v10206, 1.442695
      %v10551 = vpow.pop %v10550
      %v10552 = vmul.f32 %v10207, 1.442695
      %v10553 = vpow.pop %v10552
      %v10554 = vmul.f32 %v10208, 1.442695
      %v10555 = vpow.pop %v10554
      %v10556 = vmul.f32 %v10209, 1.442695
      %v10557 = vpow.pop %v10556
      %v10558 = vmul.f32 %v10210, 1.442695
      %v10559 = vpow.pop %v10558
      %v10560 = vmul.f32 %v10211, 1.442695
      %v10561 = vpow.pop %v10560
      %v10562 = vmul.f32 %v10212, 1.442695
      %v10563 = vpow.pop %v10562
      %v10564 = vmul.f32 %v10213, 1.442695
      %v10565 = vpow.pop %v10564
      %v10566 = vmul.f32 %v10214, 1.442695
      %v10567 = vpow.pop %v10566
      %v10568 = vmul.f32 %v10215, 1.442695
      %v10569 = vpow.pop %v10568
      %v10570 = vmul.f32 %v10216, 1.442695
      %v10571 = vpow.pop %v10570
      %v10572 = vmul.f32 %v10217, 1.442695
      %v10573 = vpow.pop %v10572
      %v10574 = vmul.f32 %v10218, 1.442695
      %v10575 = vpow.pop %v10574
      %v10576 = vmul.f32 %v10219, 1.442695
      %v10577 = vpow.pop %v10576
      %v10578 = vmul.f32 %v10220, 1.442695
      %v10579 = vpow.pop %v10578
      %v10580 = vmul.f32 %v10221, 1.442695
      %v10581 = vpow.pop %v10580
      %v10582 = vmul.f32 %v10222, 1.442695
      %v10583 = vpow.pop %v10582
      %v10584 = vmul.f32 %v10223, 1.442695
      %v10585 = vpow.pop %v10584
      %v10586 = vmul.f32 %v10224, 1.442695
      %v10587 = vpow.pop %v10586
      %v10588 = vmul.f32 %v10225, 1.442695
      %v10589 = vpow.pop %v10588
      %v10590 = vmul.f32 %v10226, 1.442695
      %v10591 = vpow.pop %v10590
      %v10592 = vmul.f32 %v10227, 1.442695
      %v10593 = vpow.pop %v10592
      %v10594 = vmul.f32 %v10228, 1.442695
      %v10595 = vpow.pop %v10594
      %v10596 = vmul.f32 %v10229, 1.442695
      %v10597 = vpow.pop %v10596
      %v10598 = vmul.f32 %v10230, 1.442695
      %v10599 = vpow.pop %v10598
      %v10600 = vmul.f32 %v10231, 1.442695
      %v10601 = vpow.pop %v10600
      %v10602 = vmul.f32 %v10232, 1.442695
      %v10603 = vpow.pop %v10602
      %v10604 = vmul.f32 %v10233, 1.442695
      %v10605 = vpow.pop %v10604
      %v10606 = vmul.f32 %v10234, 1.442695
      %v10607 = vpow.pop %v10606
      %v10608 = vmul.f32 %v10235, 1.442695
      %v10609 = vpow.pop %v10608
      %v10610 = vmul.f32 %v10236, 1.442695
      %v10611 = vpow.pop %v10610
      %v10612 = vmul.f32 %v10237, 1.442695
      %v10613 = vpow.pop %v10612
      %v10614 = vmul.f32 %v10238, 1.442695
      %v10615 = vpow.pop %v10614
      %v10616 = vmul.f32 %v10239, 1.442695
      %v10617 = vpow.pop %v10616
      %v10618 = vmul.f32 %v10240, 1.442695
      %v10619 = vpow.pop %v10618
      %v10620 = vmul.f32 %v10241, 1.442695
      %v10621 = vpow.pop %v10620
      %v10622 = vmul.f32 %v10242, 1.442695
      %v10623 = vpow.pop %v10622
      %v10624 = vmul.f32 %v10243, 1.442695
      %v10625 = vpow.pop %v10624
      %v10626 = vmul.f32 %v10244, 1.442695
      %v10627 = vpow.pop %v10626
      %v10628 = vmul.f32 %v10245, 1.442695
      %v10629 = vpow.pop %v10628
      %v10630 = vmul.f32 %v10246, 1.442695
      %v10631 = vpow.pop %v10630
      %v10632 = vmul.f32 %v10247, 1.442695
      %v10633 = vpow.pop %v10632
      %v10634 = vmul.f32 %v10248, 1.442695
      %v10635 = vpow.pop %v10634
      %v10636 = vmul.f32 %v10249, 1.442695
      %v10637 = vpow.pop %v10636
      %v10638 = vmul.f32 %v10250, 1.442695
      %v10639 = vpow.pop %v10638
      %v10640 = vmul.f32 %v10251, 1.442695
      %v10641 = vpow.pop %v10640
      %v10642 = vmul.f32 %v10252, 1.442695
      %v10643 = vpow.pop %v10642
      %v10644 = vmul.f32 %v10253, 1.442695
      %v10645 = vpow.pop %v10644
      %v10646 = vmul.f32 %v10254, 1.442695
      %v10647 = vpow.pop %v10646
      %v10648 = vmul.f32 %v10255, 1.442695
      %v10649 = vpow.pop %v10648
      %v10650 = vmul.f32 %v10256, 1.442695
      %v10651 = vpow.pop %v10650
      %v10652 = vmul.f32 %v10257, 1.442695
      %v10653 = vpow.pop %v10652
      %v10654 = vmul.f32 %v10258, 1.442695
      %v10655 = vpow.pop %v10654
      %v10656 = vmul.f32 %v10259, 1.442695
      %v10657 = vpow.pop %v10656
      %v10658 = vmul.f32 %v10260, 1.442695
      %v10659 = vpow.pop %v10658
      %v10660 = vmul.f32 %v10261, 1.442695
      %v10661 = vpow.pop %v10660
      %v10662 = vmul.f32 %v10262, 1.442695
      %v10663 = vpow.pop %v10662
      %v10664 = vmul.f32 %v10263, 1.442695
      %v10665 = vpow.pop %v10664
      %v10666 = vmul.f32 %v10264, 1.442695
      %v10667 = vpow.pop %v10666
      %v10668 = vmul.f32 %v10265, 1.442695
      %v10669 = vpow.pop %v10668
      %v10670 = vmul.f32 %v10266, 1.442695
      %v10671 = vpow.pop %v10670
      %v10672 = vmul.f32 %v10267, 1.442695
      %v10673 = vpow.pop %v10672
      %v10674 = vmul.f32 %v10268, 1.442695
      %v10675 = vpow.pop %v10674
      %v10676 = vmul.f32 %v10269, 1.442695
      %v10677 = vpow.pop %v10676
      %v10678 = vmul.f32 %v10270, 1.442695
      %v10679 = vpow.pop %v10678
      %v10680 = vmul.f32 %v10271, 1.442695
      %v10681 = vpow.pop %v10680
      %v10682 = vmul.f32 %v10272, 1.442695
      %v10683 = vpow.pop %v10682
      %v10684 = vmul.f32 %v10273, 1.442695
      %v10685 = vpow.pop %v10684
      %v10686 = vmul.f32 %v10274, 1.442695
      %v10687 = vpow.pop %v10686
      %v10688 = vmul.f32 %v10275, 1.442695
      %v10689 = vpow.pop %v10688
      %v10690 = vmul.f32 %v10276, 1.442695
      %v10691 = vpow.pop %v10690
      %v10692 = vmul.f32 %v10277, 1.442695
      %v10693 = vpow.pop %v10692
      %v10694 = vmul.f32 %v10278, 1.442695
      %v10695 = vpow.pop %v10694
      %v10696 = vmul.f32 %v10279, 1.442695
      %v10697 = vpow.pop %v10696
      %v10698 = vmul.f32 %v10280, 1.442695
      %v10699 = vpow.pop %v10698
      %v10700 = vmul.f32 %v10281, 1.442695
      %v10701 = vpow.pop %v10700
      %v10702 = vmul.f32 %v10282, 1.442695
      %v10703 = vpow.pop %v10702
      %v10704 = vmul.f32 %v10283, 1.442695
      %v10705 = vpow.pop %v10704
      %v10706 = vmul.f32 %v10284, 1.442695
      %v10707 = vpow.pop %v10706
      %v10708 = vmul.f32 %v10285, 1.442695
      %v10709 = vpow.pop %v10708
      %v10710 = vmul.f32 %v10286, 1.442695
      %v10711 = vpow.pop %v10710
      %v10712 = vmul.f32 %v10287, 1.442695
      %v10713 = vpow.pop %v10712
      %v10714 = vmul.f32 %v10288, 1.442695
      %v10715 = vpow.pop %v10714
      %v10716 = vmul.f32 %v10289, 1.442695
      %v10717 = vpow.pop %v10716
      %v10718 = vmul.f32 %v10290, 1.442695
      %v10719 = vpow.pop %v10718
      %v10720 = vmul.f32 %v10291, 1.442695
      %v10721 = vpow.pop %v10720
      %v10722 = vmul.f32 %v10292, 1.442695
      %v10723 = vpow.pop %v10722
      %v10724 = vmul.f32 %v10293, 1.442695
      %v10725 = vpow.pop %v10724
      %v10726 = vmul.f32 %v10294, 1.442695
      %v10727 = vpow.pop %v10726
      %v10728 = vmul.f32 %v10295, 1.442695
      %v10729 = vpow.pop %v10728
      %v10730 = vmul.f32 %v10296, 1.442695
      %v10731 = vpow.pop %v10730
      %v10732 = vmul.f32 %v10297, 1.442695
      %v10733 = vpow.pop %v10732
      %v10734 = vmul.f32 %v10298, 1.442695
      %v10735 = vpow.pop %v10734
      %v10736 = vmul.f32 %v10299, 1.442695
      %v10737 = vpow.pop %v10736
      %v10738 = vmul.f32 %v10300, 1.442695
      %v10739 = vpow.pop %v10738
      %v10740 = vmul.f32 %v10301, 1.442695
      %v10741 = vpow.pop %v10740
      %v10742 = vmul.f32 %v10302, 1.442695
      %v10743 = vpow.pop %v10742
      %v10744 = vmul.f32 %v10303, 1.442695
      %v10745 = vpow.pop %v10744
      %v10746 = vmul.f32 %v10304, 1.442695
      %v10747 = vpow.pop %v10746
      %v10748 = vmul.f32 %v10305, 1.442695
      %v10749 = vpow.pop %v10748
      %v10750 = vmul.f32 %v10306, 1.442695
      %v10751 = vpow.pop %v10750
      %v10752 = vmul.f32 %v10307, 1.442695
      %v10753 = vpow.pop %v10752
      %v10754 = vmul.f32 %v10308, 1.442695
      %v10755 = vpow.pop %v10754
      %v10756 = vmul.f32 %v10309, 1.442695
      %v10757 = vpow.pop %v10756
      %v10758 = vadd.f32 %v10311, 1.0
      %v10759 = vadd.f32 %v10313, 1.0
      %v10760 = vadd.f32 %v10315, 1.0
      %v10761 = vadd.f32 %v10317, 1.0
      %v10762 = vadd.f32 %v10319, 1.0
      %v10763 = vadd.f32 %v10321, 1.0
      %v10764 = vadd.f32 %v10323, 1.0
      %v10765 = vadd.f32 %v10325, 1.0
      %v10766 = vadd.f32 %v10327, 1.0
      %v10767 = vadd.f32 %v10329, 1.0
      %v10768 = vadd.f32 %v10331, 1.0
      %v10769 = vadd.f32 %v10333, 1.0
      %v10770 = vadd.f32 %v10335, 1.0
      %v10771 = vadd.f32 %v10337, 1.0
      %v10772 = vadd.f32 %v10339, 1.0
      %v10773 = vadd.f32 %v10341, 1.0
      %v10774 = vadd.f32 %v10343, 1.0
      %v10775 = vadd.f32 %v10345, 1.0
      %v10776 = vadd.f32 %v10347, 1.0
      %v10777 = vadd.f32 %v10349, 1.0
      %v10778 = vadd.f32 %v10351, 1.0
      %v10779 = vadd.f32 %v10353, 1.0
      %v10780 = vadd.f32 %v10355, 1.0
      %v10781 = vadd.f32 %v10357, 1.0
      %v10782 = vadd.f32 %v10359, 1.0
      %v10783 = vadd.f32 %v10361, 1.0
      %v10784 = vadd.f32 %v10363, 1.0
      %v10785 = vadd.f32 %v10365, 1.0
      %v10786 = vadd.f32 %v10367, 1.0
      %v10787 = vadd.f32 %v10369, 1.0
      %v10788 = vadd.f32 %v10371, 1.0
      %v10789 = vadd.f32 %v10373, 1.0
      %v10790 = vadd.f32 %v10375, 1.0
      %v10791 = vadd.f32 %v10377, 1.0
      %v10792 = vadd.f32 %v10379, 1.0
      %v10793 = vadd.f32 %v10381, 1.0
      %v10794 = vadd.f32 %v10383, 1.0
      %v10795 = vadd.f32 %v10385, 1.0
      %v10796 = vadd.f32 %v10387, 1.0
      %v10797 = vadd.f32 %v10389, 1.0
      %v10798 = vadd.f32 %v10391, 1.0
      %v10799 = vadd.f32 %v10393, 1.0
      %v10800 = vadd.f32 %v10395, 1.0
      %v10801 = vadd.f32 %v10397, 1.0
      %v10802 = vadd.f32 %v10399, 1.0
      %v10803 = vadd.f32 %v10401, 1.0
      %v10804 = vadd.f32 %v10403, 1.0
      %v10805 = vadd.f32 %v10405, 1.0
      %v10806 = vadd.f32 %v10407, 1.0
      %v10807 = vadd.f32 %v10409, 1.0
      %v10808 = vadd.f32 %v10411, 1.0
      %v10809 = vadd.f32 %v10413, 1.0
      %v10810 = vadd.f32 %v10415, 1.0
      %v10811 = vadd.f32 %v10417, 1.0
      %v10812 = vadd.f32 %v10419, 1.0
      %v10813 = vadd.f32 %v10421, 1.0
      %v10814 = vadd.f32 %v10423, 1.0
      %v10815 = vadd.f32 %v10425, 1.0
      %v10816 = vadd.f32 %v10427, 1.0
      %v10817 = vadd.f32 %v10429, 1.0
      %v10818 = vadd.f32 %v10431, 1.0
      %v10819 = vadd.f32 %v10433, 1.0
      %v10820 = vadd.f32 %v10435, 1.0
      %v10821 = vadd.f32 %v10437, 1.0
      %v10822 = vadd.f32 %v10439, 1.0
      %v10823 = vadd.f32 %v10441, 1.0
      %v10824 = vadd.f32 %v10443, 1.0
      %v10825 = vadd.f32 %v10445, 1.0
      %v10826 = vadd.f32 %v10447, 1.0
      %v10827 = vadd.f32 %v10449, 1.0
      %v10828 = vadd.f32 %v10451, 1.0
      %v10829 = vadd.f32 %v10453, 1.0
      %v10830 = vadd.f32 %v10455, 1.0
      %v10831 = vadd.f32 %v10457, 1.0
      %v10832 = vadd.f32 %v10459, 1.0
      %v10833 = vadd.f32 %v10461, 1.0
      %v10834 = vadd.f32 %v10463, 1.0
      %v10835 = vadd.f32 %v10465, 1.0
      %v10836 = vadd.f32 %v10467, 1.0
      %v10837 = vadd.f32 %v10469, 1.0
      %v10838 = vadd.f32 %v10471, 1.0
      %v10839 = vadd.f32 %v10473, 1.0
      %v10840 = vadd.f32 %v10475, 1.0
      %v10841 = vadd.f32 %v10477, 1.0
      %v10842 = vadd.f32 %v10479, 1.0
      %v10843 = vadd.f32 %v10481, 1.0
      %v10844 = vadd.f32 %v10483, 1.0
      %v10845 = vadd.f32 %v10485, 1.0
      %v10846 = vadd.f32 %v10487, 1.0
      %v10847 = vadd.f32 %v10489, 1.0
      %v10848 = vadd.f32 %v10491, 1.0
      %v10849 = vadd.f32 %v10493, 1.0
      %v10850 = vadd.f32 %v10495, 1.0
      %v10851 = vadd.f32 %v10497, 1.0
      %v10852 = vadd.f32 %v10499, 1.0
      %v10853 = vadd.f32 %v10501, 1.0
      %v10854 = vadd.f32 %v10503, 1.0
      %v10855 = vadd.f32 %v10505, 1.0
      %v10856 = vadd.f32 %v10507, 1.0
      %v10857 = vadd.f32 %v10509, 1.0
      %v10858 = vadd.f32 %v10511, 1.0
      %v10859 = vadd.f32 %v10513, 1.0
      %v10860 = vadd.f32 %v10515, 1.0
      %v10861 = vadd.f32 %v10517, 1.0
      %v10862 = vadd.f32 %v10519, 1.0
      %v10863 = vadd.f32 %v10521, 1.0
      %v10864 = vadd.f32 %v10523, 1.0
      %v10865 = vadd.f32 %v10525, 1.0
      %v10866 = vadd.f32 %v10527, 1.0
      %v10867 = vadd.f32 %v10529, 1.0
      %v10868 = vadd.f32 %v10531, 1.0
      %v10869 = vadd.f32 %v10533, 1.0
      %v10870 = vadd.f32 %v10535, 1.0
      %v10871 = vadd.f32 %v10537, 1.0
      %v10872 = vadd.f32 %v10539, 1.0
      %v10873 = vadd.f32 %v10541, 1.0
      %v10874 = vadd.f32 %v10543, 1.0
      %v10875 = vadd.f32 %v10545, 1.0
      %v10876 = vadd.f32 %v10547, 1.0
      %v10877 = vadd.f32 %v10549, 1.0
      %v10878 = vadd.f32 %v10551, 1.0
      %v10879 = vadd.f32 %v10553, 1.0
      %v10880 = vadd.f32 %v10555, 1.0
      %v10881 = vadd.f32 %v10557, 1.0
      %v10882 = vadd.f32 %v10559, 1.0
      %v10883 = vadd.f32 %v10561, 1.0
      %v10884 = vadd.f32 %v10563, 1.0
      %v10885 = vadd.f32 %v10565, 1.0
      %v10886 = vadd.f32 %v10567, 1.0
      %v10887 = vadd.f32 %v10569, 1.0
      %v10888 = vadd.f32 %v10571, 1.0
      %v10889 = vadd.f32 %v10573, 1.0
      %v10890 = vadd.f32 %v10575, 1.0
      %v10891 = vadd.f32 %v10577, 1.0
      %v10892 = vadd.f32 %v10579, 1.0
      %v10893 = vadd.f32 %v10581, 1.0
      %v10894 = vadd.f32 %v10583, 1.0
      %v10895 = vadd.f32 %v10585, 1.0
      %v10896 = vadd.f32 %v10587, 1.0
      %v10897 = vadd.f32 %v10589, 1.0
      %v10898 = vadd.f32 %v10591, 1.0
      %v10899 = vadd.f32 %v10593, 1.0
      %v10900 = vadd.f32 %v10595, 1.0
      %v10901 = vadd.f32 %v10597, 1.0
      %v10902 = vadd.f32 %v10599, 1.0
      %v10903 = vadd.f32 %v10601, 1.0
      %v10904 = vadd.f32 %v10603, 1.0
      %v10905 = vadd.f32 %v10605, 1.0
      %v10906 = vadd.f32 %v10607, 1.0
      %v10907 = vadd.f32 %v10609, 1.0
      %v10908 = vadd.f32 %v10611, 1.0
      %v10909 = vadd.f32 %v10613, 1.0
      %v10910 = vadd.f32 %v10615, 1.0
      %v10911 = vadd.f32 %v10617, 1.0
      %v10912 = vadd.f32 %v10619, 1.0
      %v10913 = vadd.f32 %v10621, 1.0
      %v10914 = vadd.f32 %v10623, 1.0
      %v10915 = vadd.f32 %v10625, 1.0
      %v10916 = vadd.f32 %v10627, 1.0
      %v10917 = vadd.f32 %v10629, 1.0
      %v10918 = vadd.f32 %v10631, 1.0
      %v10919 = vadd.f32 %v10633, 1.0
      %v10920 = vadd.f32 %v10635, 1.0
      %v10921 = vadd.f32 %v10637, 1.0
      %v10922 = vadd.f32 %v10639, 1.0
      %v10923 = vadd.f32 %v10641, 1.0
      %v10924 = vadd.f32 %v10643, 1.0
      %v10925 = vadd.f32 %v10645, 1.0
      %v10926 = vadd.f32 %v10647, 1.0
      %v10927 = vadd.f32 %v10649, 1.0
      %v10928 = vadd.f32 %v10651, 1.0
      %v10929 = vadd.f32 %v10653, 1.0
      %v10930 = vadd.f32 %v10655, 1.0
      %v10931 = vadd.f32 %v10657, 1.0
      %v10932 = vadd.f32 %v10659, 1.0
      %v10933 = vadd.f32 %v10661, 1.0
      %v10934 = vadd.f32 %v10663, 1.0
      %v10935 = vadd.f32 %v10665, 1.0
      %v10936 = vadd.f32 %v10667, 1.0
      %v10937 = vadd.f32 %v10669, 1.0
      %v10938 = vadd.f32 %v10671, 1.0
      %v10939 = vadd.f32 %v10673, 1.0
      %v10940 = vadd.f32 %v10675, 1.0
      %v10941 = vadd.f32 %v10677, 1.0
      %v10942 = vadd.f32 %v10679, 1.0
      %v10943 = vadd.f32 %v10681, 1.0
      %v10944 = vadd.f32 %v10683, 1.0
      %v10945 = vadd.f32 %v10685, 1.0
      %v10946 = vadd.f32 %v10687, 1.0
      %v10947 = vadd.f32 %v10689, 1.0
      %v10948 = vadd.f32 %v10691, 1.0
      %v10949 = vadd.f32 %v10693, 1.0
      %v10950 = vadd.f32 %v10695, 1.0
      %v10951 = vadd.f32 %v10697, 1.0
      %v10952 = vadd.f32 %v10699, 1.0
      %v10953 = vadd.f32 %v10701, 1.0
      %v10954 = vadd.f32 %v10703, 1.0
      %v10955 = vadd.f32 %v10705, 1.0
      %v10956 = vadd.f32 %v10707, 1.0
      %v10957 = vadd.f32 %v10709, 1.0
      %v10958 = vadd.f32 %v10711, 1.0
      %v10959 = vadd.f32 %v10713, 1.0
      %v10960 = vadd.f32 %v10715, 1.0
      %v10961 = vadd.f32 %v10717, 1.0
      %v10962 = vadd.f32 %v10719, 1.0
      %v10963 = vadd.f32 %v10721, 1.0
      %v10964 = vadd.f32 %v10723, 1.0
      %v10965 = vadd.f32 %v10725, 1.0
      %v10966 = vadd.f32 %v10727, 1.0
      %v10967 = vadd.f32 %v10729, 1.0
      %v10968 = vadd.f32 %v10731, 1.0
      %v10969 = vadd.f32 %v10733, 1.0
      %v10970 = vadd.f32 %v10735, 1.0
      %v10971 = vadd.f32 %v10737, 1.0
      %v10972 = vadd.f32 %v10739, 1.0
      %v10973 = vadd.f32 %v10741, 1.0
      %v10974 = vadd.f32 %v10743, 1.0
      %v10975 = vadd.f32 %v10745, 1.0
      %v10976 = vadd.f32 %v10747, 1.0
      %v10977 = vadd.f32 %v10749, 1.0
      %v10978 = vadd.f32 %v10751, 1.0
      %v10979 = vadd.f32 %v10753, 1.0
      %v10980 = vadd.f32 %v10755, 1.0
      %v10981 = vadd.f32 %v10757, 1.0
      %v10982 = vrcp.pop %v10758
      %v10983 = vmul.f32 1.0, %v10982
      %v10984 = vrcp.pop %v10759
      %v10985 = vmul.f32 1.0, %v10984
      %v10986 = vrcp.pop %v10760
      %v10987 = vmul.f32 1.0, %v10986
      %v10988 = vrcp.pop %v10761
      %v10989 = vmul.f32 1.0, %v10988
      %v10990 = vrcp.pop %v10762
      %v10991 = vmul.f32 1.0, %v10990
      %v10992 = vrcp.pop %v10763
      %v10993 = vmul.f32 1.0, %v10992
      %v10994 = vrcp.pop %v10764
      %v10995 = vmul.f32 1.0, %v10994
      %v10996 = vrcp.pop %v10765
      %v10997 = vmul.f32 1.0, %v10996
      %v10998 = vrcp.pop %v10766
      %v10999 = vmul.f32 1.0, %v10998
      %v11000 = vrcp.pop %v10767
      %v11001 = vmul.f32 1.0, %v11000
      %v11002 = vrcp.pop %v10768
      %v11003 = vmul.f32 1.0, %v11002
      %v11004 = vrcp.pop %v10769
      %v11005 = vmul.f32 1.0, %v11004
      %v11006 = vrcp.pop %v10770
      %v11007 = vmul.f32 1.0, %v11006
      %v11008 = vrcp.pop %v10771
      %v11009 = vmul.f32 1.0, %v11008
      %v11010 = vrcp.pop %v10772
      %v11011 = vmul.f32 1.0, %v11010
      %v11012 = vrcp.pop %v10773
      %v11013 = vmul.f32 1.0, %v11012
      %v11014 = vrcp.pop %v10774
      %v11015 = vmul.f32 1.0, %v11014
      %v11016 = vrcp.pop %v10775
      %v11017 = vmul.f32 1.0, %v11016
      %v11018 = vrcp.pop %v10776
      %v11019 = vmul.f32 1.0, %v11018
      %v11020 = vrcp.pop %v10777
      %v11021 = vmul.f32 1.0, %v11020
      %v11022 = vrcp.pop %v10778
      %v11023 = vmul.f32 1.0, %v11022
      %v11024 = vrcp.pop %v10779
      %v11025 = vmul.f32 1.0, %v11024
      %v11026 = vrcp.pop %v10780
      %v11027 = vmul.f32 1.0, %v11026
      %v11028 = vrcp.pop %v10781
      %v11029 = vmul.f32 1.0, %v11028
      %v11030 = vrcp.pop %v10782
      %v11031 = vmul.f32 1.0, %v11030
      %v11032 = vrcp.pop %v10783
      %v11033 = vmul.f32 1.0, %v11032
      %v11034 = vrcp.pop %v10784
      %v11035 = vmul.f32 1.0, %v11034
      %v11036 = vrcp.pop %v10785
      %v11037 = vmul.f32 1.0, %v11036
      %v11038 = vrcp.pop %v10786
      %v11039 = vmul.f32 1.0, %v11038
      %v11040 = vrcp.pop %v10787
      %v11041 = vmul.f32 1.0, %v11040
      %v11042 = vrcp.pop %v10788
      %v11043 = vmul.f32 1.0, %v11042
      %v11044 = vrcp.pop %v10789
      %v11045 = vmul.f32 1.0, %v11044
      %v11046 = vrcp.pop %v10790
      %v11047 = vmul.f32 1.0, %v11046
      %v11048 = vrcp.pop %v10791
      %v11049 = vmul.f32 1.0, %v11048
      %v11050 = vrcp.pop %v10792
      %v11051 = vmul.f32 1.0, %v11050
      %v11052 = vrcp.pop %v10793
      %v11053 = vmul.f32 1.0, %v11052
      %v11054 = vrcp.pop %v10794
      %v11055 = vmul.f32 1.0, %v11054
      %v11056 = vrcp.pop %v10795
      %v11057 = vmul.f32 1.0, %v11056
      %v11058 = vrcp.pop %v10796
      %v11059 = vmul.f32 1.0, %v11058
      %v11060 = vrcp.pop %v10797
      %v11061 = vmul.f32 1.0, %v11060
      %v11062 = vrcp.pop %v10798
      %v11063 = vmul.f32 1.0, %v11062
      %v11064 = vrcp.pop %v10799
      %v11065 = vmul.f32 1.0, %v11064
      %v11066 = vrcp.pop %v10800
      %v11067 = vmul.f32 1.0, %v11066
      %v11068 = vrcp.pop %v10801
      %v11069 = vmul.f32 1.0, %v11068
      %v11070 = vrcp.pop %v10802
      %v11071 = vmul.f32 1.0, %v11070
      %v11072 = vrcp.pop %v10803
      %v11073 = vmul.f32 1.0, %v11072
      %v11074 = vrcp.pop %v10804
      %v11075 = vmul.f32 1.0, %v11074
      %v11076 = vrcp.pop %v10805
      %v11077 = vmul.f32 1.0, %v11076
      %v11078 = vrcp.pop %v10806
      %v11079 = vmul.f32 1.0, %v11078
      %v11080 = vrcp.pop %v10807
      %v11081 = vmul.f32 1.0, %v11080
      %v11082 = vrcp.pop %v10808
      %v11083 = vmul.f32 1.0, %v11082
      %v11084 = vrcp.pop %v10809
      %v11085 = vmul.f32 1.0, %v11084
      %v11086 = vrcp.pop %v10810
      %v11087 = vmul.f32 1.0, %v11086
      %v11088 = vrcp.pop %v10811
      %v11089 = vmul.f32 1.0, %v11088
      %v11090 = vrcp.pop %v10812
      %v11091 = vmul.f32 1.0, %v11090
      %v11092 = vrcp.pop %v10813
      %v11093 = vmul.f32 1.0, %v11092
      %v11094 = vrcp.pop %v10814
      %v11095 = vmul.f32 1.0, %v11094
      %v11096 = vrcp.pop %v10815
      %v11097 = vmul.f32 1.0, %v11096
      %v11098 = vrcp.pop %v10816
      %v11099 = vmul.f32 1.0, %v11098
      %v11100 = vrcp.pop %v10817
      %v11101 = vmul.f32 1.0, %v11100
      %v11102 = vrcp.pop %v10818
      %v11103 = vmul.f32 1.0, %v11102
      %v11104 = vrcp.pop %v10819
      %v11105 = vmul.f32 1.0, %v11104
      %v11106 = vrcp.pop %v10820
      %v11107 = vmul.f32 1.0, %v11106
      %v11108 = vrcp.pop %v10821
      %v11109 = vmul.f32 1.0, %v11108
      %v11110 = vrcp.pop %v10822
      %v11111 = vmul.f32 1.0, %v11110
      %v11112 = vrcp.pop %v10823
      %v11113 = vmul.f32 1.0, %v11112
      %v11114 = vrcp.pop %v10824
      %v11115 = vmul.f32 1.0, %v11114
      %v11116 = vrcp.pop %v10825
      %v11117 = vmul.f32 1.0, %v11116
      %v11118 = vrcp.pop %v10826
      %v11119 = vmul.f32 1.0, %v11118
      %v11120 = vrcp.pop %v10827
      %v11121 = vmul.f32 1.0, %v11120
      %v11122 = vrcp.pop %v10828
      %v11123 = vmul.f32 1.0, %v11122
      %v11124 = vrcp.pop %v10829
      %v11125 = vmul.f32 1.0, %v11124
      %v11126 = vrcp.pop %v10830
      %v11127 = vmul.f32 1.0, %v11126
      %v11128 = vrcp.pop %v10831
      %v11129 = vmul.f32 1.0, %v11128
      %v11130 = vrcp.pop %v10832
      %v11131 = vmul.f32 1.0, %v11130
      %v11132 = vrcp.pop %v10833
      %v11133 = vmul.f32 1.0, %v11132
      %v11134 = vrcp.pop %v10834
      %v11135 = vmul.f32 1.0, %v11134
      %v11136 = vrcp.pop %v10835
      %v11137 = vmul.f32 1.0, %v11136
      %v11138 = vrcp.pop %v10836
      %v11139 = vmul.f32 1.0, %v11138
      %v11140 = vrcp.pop %v10837
      %v11141 = vmul.f32 1.0, %v11140
      %v11142 = vrcp.pop %v10838
      %v11143 = vmul.f32 1.0, %v11142
      %v11144 = vrcp.pop %v10839
      %v11145 = vmul.f32 1.0, %v11144
      %v11146 = vrcp.pop %v10840
      %v11147 = vmul.f32 1.0, %v11146
      %v11148 = vrcp.pop %v10841
      %v11149 = vmul.f32 1.0, %v11148
      %v11150 = vrcp.pop %v10842
      %v11151 = vmul.f32 1.0, %v11150
      %v11152 = vrcp.pop %v10843
      %v11153 = vmul.f32 1.0, %v11152
      %v11154 = vrcp.pop %v10844
      %v11155 = vmul.f32 1.0, %v11154
      %v11156 = vrcp.pop %v10845
      %v11157 = vmul.f32 1.0, %v11156
      %v11158 = vrcp.pop %v10846
      %v11159 = vmul.f32 1.0, %v11158
      %v11160 = vrcp.pop %v10847
      %v11161 = vmul.f32 1.0, %v11160
      %v11162 = vrcp.pop %v10848
      %v11163 = vmul.f32 1.0, %v11162
      %v11164 = vrcp.pop %v10849
      %v11165 = vmul.f32 1.0, %v11164
      %v11166 = vrcp.pop %v10850
      %v11167 = vmul.f32 1.0, %v11166
      %v11168 = vrcp.pop %v10851
      %v11169 = vmul.f32 1.0, %v11168
      %v11170 = vrcp.pop %v10852
      %v11171 = vmul.f32 1.0, %v11170
      %v11172 = vrcp.pop %v10853
      %v11173 = vmul.f32 1.0, %v11172
      %v11174 = vrcp.pop %v10854
      %v11175 = vmul.f32 1.0, %v11174
      %v11176 = vrcp.pop %v10855
      %v11177 = vmul.f32 1.0, %v11176
      %v11178 = vrcp.pop %v10856
      %v11179 = vmul.f32 1.0, %v11178
      %v11180 = vrcp.pop %v10857
      %v11181 = vmul.f32 1.0, %v11180
      %v11182 = vrcp.pop %v10858
      %v11183 = vmul.f32 1.0, %v11182
      %v11184 = vrcp.pop %v10859
      %v11185 = vmul.f32 1.0, %v11184
      %v11186 = vrcp.pop %v10860
      %v11187 = vmul.f32 1.0, %v11186
      %v11188 = vrcp.pop %v10861
      %v11189 = vmul.f32 1.0, %v11188
      %v11190 = vrcp.pop %v10862
      %v11191 = vmul.f32 1.0, %v11190
      %v11192 = vrcp.pop %v10863
      %v11193 = vmul.f32 1.0, %v11192
      %v11194 = vrcp.pop %v10864
      %v11195 = vmul.f32 1.0, %v11194
      %v11196 = vrcp.pop %v10865
      %v11197 = vmul.f32 1.0, %v11196
      %v11198 = vrcp.pop %v10866
      %v11199 = vmul.f32 1.0, %v11198
      %v11200 = vrcp.pop %v10867
      %v11201 = vmul.f32 1.0, %v11200
      %v11202 = vrcp.pop %v10868
      %v11203 = vmul.f32 1.0, %v11202
      %v11204 = vrcp.pop %v10869
      %v11205 = vmul.f32 1.0, %v11204
      %v11206 = vrcp.pop %v10870
      %v11207 = vmul.f32 1.0, %v11206
      %v11208 = vrcp.pop %v10871
      %v11209 = vmul.f32 1.0, %v11208
      %v11210 = vrcp.pop %v10872
      %v11211 = vmul.f32 1.0, %v11210
      %v11212 = vrcp.pop %v10873
      %v11213 = vmul.f32 1.0, %v11212
      %v11214 = vrcp.pop %v10874
      %v11215 = vmul.f32 1.0, %v11214
      %v11216 = vrcp.pop %v10875
      %v11217 = vmul.f32 1.0, %v11216
      %v11218 = vrcp.pop %v10876
      %v11219 = vmul.f32 1.0, %v11218
      %v11220 = vrcp.pop %v10877
      %v11221 = vmul.f32 1.0, %v11220
      %v11222 = vrcp.pop %v10878
      %v11223 = vmul.f32 1.0, %v11222
      %v11224 = vrcp.pop %v10879
      %v11225 = vmul.f32 1.0, %v11224
      %v11226 = vrcp.pop %v10880
      %v11227 = vmul.f32 1.0, %v11226
      %v11228 = vrcp.pop %v10881
      %v11229 = vmul.f32 1.0, %v11228
      %v11230 = vrcp.pop %v10882
      %v11231 = vmul.f32 1.0, %v11230
      %v11232 = vrcp.pop %v10883
      %v11233 = vmul.f32 1.0, %v11232
      %v11234 = vrcp.pop %v10884
      %v11235 = vmul.f32 1.0, %v11234
      %v11236 = vrcp.pop %v10885
      %v11237 = vmul.f32 1.0, %v11236
      %v11238 = vrcp.pop %v10886
      %v11239 = vmul.f32 1.0, %v11238
      %v11240 = vrcp.pop %v10887
      %v11241 = vmul.f32 1.0, %v11240
      %v11242 = vrcp.pop %v10888
      %v11243 = vmul.f32 1.0, %v11242
      %v11244 = vrcp.pop %v10889
      %v11245 = vmul.f32 1.0, %v11244
      %v11246 = vrcp.pop %v10890
      %v11247 = vmul.f32 1.0, %v11246
      %v11248 = vrcp.pop %v10891
      %v11249 = vmul.f32 1.0, %v11248
      %v11250 = vrcp.pop %v10892
      %v11251 = vmul.f32 1.0, %v11250
      %v11252 = vrcp.pop %v10893
      %v11253 = vmul.f32 1.0, %v11252
      %v11254 = vrcp.pop %v10894
      %v11255 = vmul.f32 1.0, %v11254
      %v11256 = vrcp.pop %v10895
      %v11257 = vmul.f32 1.0, %v11256
      %v11258 = vrcp.pop %v10896
      %v11259 = vmul.f32 1.0, %v11258
      %v11260 = vrcp.pop %v10897
      %v11261 = vmul.f32 1.0, %v11260
      %v11262 = vrcp.pop %v10898
      %v11263 = vmul.f32 1.0, %v11262
      %v11264 = vrcp.pop %v10899
      %v11265 = vmul.f32 1.0, %v11264
      %v11266 = vrcp.pop %v10900
      %v11267 = vmul.f32 1.0, %v11266
      %v11268 = vrcp.pop %v10901
      %v11269 = vmul.f32 1.0, %v11268
      %v11270 = vrcp.pop %v10902
      %v11271 = vmul.f32 1.0, %v11270
      %v11272 = vrcp.pop %v10903
      %v11273 = vmul.f32 1.0, %v11272
      %v11274 = vrcp.pop %v10904
      %v11275 = vmul.f32 1.0, %v11274
      %v11276 = vrcp.pop %v10905
      %v11277 = vmul.f32 1.0, %v11276
      %v11278 = vrcp.pop %v10906
      %v11279 = vmul.f32 1.0, %v11278
      %v11280 = vrcp.pop %v10907
      %v11281 = vmul.f32 1.0, %v11280
      %v11282 = vrcp.pop %v10908
      %v11283 = vmul.f32 1.0, %v11282
      %v11284 = vrcp.pop %v10909
      %v11285 = vmul.f32 1.0, %v11284
      %v11286 = vrcp.pop %v10910
      %v11287 = vmul.f32 1.0, %v11286
      %v11288 = vrcp.pop %v10911
      %v11289 = vmul.f32 1.0, %v11288
      %v11290 = vrcp.pop %v10912
      %v11291 = vmul.f32 1.0, %v11290
      %v11292 = vrcp.pop %v10913
      %v11293 = vmul.f32 1.0, %v11292
      %v11294 = vrcp.pop %v10914
      %v11295 = vmul.f32 1.0, %v11294
      %v11296 = vrcp.pop %v10915
      %v11297 = vmul.f32 1.0, %v11296
      %v11298 = vrcp.pop %v10916
      %v11299 = vmul.f32 1.0, %v11298
      %v11300 = vrcp.pop %v10917
      %v11301 = vmul.f32 1.0, %v11300
      %v11302 = vrcp.pop %v10918
      %v11303 = vmul.f32 1.0, %v11302
      %v11304 = vrcp.pop %v10919
      %v11305 = vmul.f32 1.0, %v11304
      %v11306 = vrcp.pop %v10920
      %v11307 = vmul.f32 1.0, %v11306
      %v11308 = vrcp.pop %v10921
      %v11309 = vmul.f32 1.0, %v11308
      %v11310 = vrcp.pop %v10922
      %v11311 = vmul.f32 1.0, %v11310
      %v11312 = vrcp.pop %v10923
      %v11313 = vmul.f32 1.0, %v11312
      %v11314 = vrcp.pop %v10924
      %v11315 = vmul.f32 1.0, %v11314
      %v11316 = vrcp.pop %v10925
      %v11317 = vmul.f32 1.0, %v11316
      %v11318 = vrcp.pop %v10926
      %v11319 = vmul.f32 1.0, %v11318
      %v11320 = vrcp.pop %v10927
      %v11321 = vmul.f32 1.0, %v11320
      %v11322 = vrcp.pop %v10928
      %v11323 = vmul.f32 1.0, %v11322
      %v11324 = vrcp.pop %v10929
      %v11325 = vmul.f32 1.0, %v11324
      %v11326 = vrcp.pop %v10930
      %v11327 = vmul.f32 1.0, %v11326
      %v11328 = vrcp.pop %v10931
      %v11329 = vmul.f32 1.0, %v11328
      %v11330 = vrcp.pop %v10932
      %v11331 = vmul.f32 1.0, %v11330
      %v11332 = vrcp.pop %v10933
      %v11333 = vmul.f32 1.0, %v11332
      %v11334 = vrcp.pop %v10934
      %v11335 = vmul.f32 1.0, %v11334
      %v11336 = vrcp.pop %v10935
      %v11337 = vmul.f32 1.0, %v11336
      %v11338 = vrcp.pop %v10936
      %v11339 = vmul.f32 1.0, %v11338
      %v11340 = vrcp.pop %v10937
      %v11341 = vmul.f32 1.0, %v11340
      %v11342 = vrcp.pop %v10938
      %v11343 = vmul.f32 1.0, %v11342
      %v11344 = vrcp.pop %v10939
      %v11345 = vmul.f32 1.0, %v11344
      %v11346 = vrcp.pop %v10940
      %v11347 = vmul.f32 1.0, %v11346
      %v11348 = vrcp.pop %v10941
      %v11349 = vmul.f32 1.0, %v11348
      %v11350 = vrcp.pop %v10942
      %v11351 = vmul.f32 1.0, %v11350
      %v11352 = vrcp.pop %v10943
      %v11353 = vmul.f32 1.0, %v11352
      %v11354 = vrcp.pop %v10944
      %v11355 = vmul.f32 1.0, %v11354
      %v11356 = vrcp.pop %v10945
      %v11357 = vmul.f32 1.0, %v11356
      %v11358 = vrcp.pop %v10946
      %v11359 = vmul.f32 1.0, %v11358
      %v11360 = vrcp.pop %v10947
      %v11361 = vmul.f32 1.0, %v11360
      %v11362 = vrcp.pop %v10948
      %v11363 = vmul.f32 1.0, %v11362
      %v11364 = vrcp.pop %v10949
      %v11365 = vmul.f32 1.0, %v11364
      %v11366 = vrcp.pop %v10950
      %v11367 = vmul.f32 1.0, %v11366
      %v11368 = vrcp.pop %v10951
      %v11369 = vmul.f32 1.0, %v11368
      %v11370 = vrcp.pop %v10952
      %v11371 = vmul.f32 1.0, %v11370
      %v11372 = vrcp.pop %v10953
      %v11373 = vmul.f32 1.0, %v11372
      %v11374 = vrcp.pop %v10954
      %v11375 = vmul.f32 1.0, %v11374
      %v11376 = vrcp.pop %v10955
      %v11377 = vmul.f32 1.0, %v11376
      %v11378 = vrcp.pop %v10956
      %v11379 = vmul.f32 1.0, %v11378
      %v11380 = vrcp.pop %v10957
      %v11381 = vmul.f32 1.0, %v11380
      %v11382 = vrcp.pop %v10958
      %v11383 = vmul.f32 1.0, %v11382
      %v11384 = vrcp.pop %v10959
      %v11385 = vmul.f32 1.0, %v11384
      %v11386 = vrcp.pop %v10960
      %v11387 = vmul.f32 1.0, %v11386
      %v11388 = vrcp.pop %v10961
      %v11389 = vmul.f32 1.0, %v11388
      %v11390 = vrcp.pop %v10962
      %v11391 = vmul.f32 1.0, %v11390
      %v11392 = vrcp.pop %v10963
      %v11393 = vmul.f32 1.0, %v11392
      %v11394 = vrcp.pop %v10964
      %v11395 = vmul.f32 1.0, %v11394
      %v11396 = vrcp.pop %v10965
      %v11397 = vmul.f32 1.0, %v11396
      %v11398 = vrcp.pop %v10966
      %v11399 = vmul.f32 1.0, %v11398
      %v11400 = vrcp.pop %v10967
      %v11401 = vmul.f32 1.0, %v11400
      %v11402 = vrcp.pop %v10968
      %v11403 = vmul.f32 1.0, %v11402
      %v11404 = vrcp.pop %v10969
      %v11405 = vmul.f32 1.0, %v11404
      %v11406 = vrcp.pop %v10970
      %v11407 = vmul.f32 1.0, %v11406
      %v11408 = vrcp.pop %v10971
      %v11409 = vmul.f32 1.0, %v11408
      %v11410 = vrcp.pop %v10972
      %v11411 = vmul.f32 1.0, %v11410
      %v11412 = vrcp.pop %v10973
      %v11413 = vmul.f32 1.0, %v11412
      %v11414 = vrcp.pop %v10974
      %v11415 = vmul.f32 1.0, %v11414
      %v11416 = vrcp.pop %v10975
      %v11417 = vmul.f32 1.0, %v11416
      %v11418 = vrcp.pop %v10976
      %v11419 = vmul.f32 1.0, %v11418
      %v11420 = vrcp.pop %v10977
      %v11421 = vmul.f32 1.0, %v11420
      %v11422 = vrcp.pop %v10978
      %v11423 = vmul.f32 1.0, %v11422
      %v11424 = vrcp.pop %v10979
      %v11425 = vmul.f32 1.0, %v11424
      %v11426 = vrcp.pop %v10980
      %v11427 = vmul.f32 1.0, %v11426
      %v11428 = vrcp.pop %v10981
      %v11429 = vmul.f32 1.0, %v11428
      %11430 = vst [vmem:[%s445] sm:$0xff] %v10983
      %11431 = vst [vmem:[%s445 + $0x8] sm:$0xff] %v10985
      %11432 = vst [vmem:[%s445 + $0x10] sm:$0xff] %v10987
      %11433 = vst [vmem:[%s445 + $0x18] sm:$0xff] %v10989
      %11434 = vst [vmem:[%s445 + $0x20] sm:$0xff] %v10991
      %11435 = vst [vmem:[%s445 + $0x28] sm:$0xff] %v10993
      %11436 = vst.msk [vmem:[%s445 + $0x30] sm:$0xff] %vm3684, %v10995
      %11437 = vst [vmem:[%s445 + $0x38] sm:$0xff] %v10997
      %11438 = vst [vmem:[%s445 + $0x40] sm:$0xff] %v10999
      %11439 = vst [vmem:[%s445 + $0x48] sm:$0xff] %v11001
      %11440 = vst [vmem:[%s445 + $0x50] sm:$0xff] %v11003
      %11441 = vst [vmem:[%s445 + $0x58] sm:$0xff] %v11005
      %11442 = vst [vmem:[%s445 + $0x60] sm:$0xff] %v11007
      %11443 = vst.msk [vmem:[%s445 + $0x68] sm:$0xff] %vm3684, %v11009
      %11444 = vst [vmem:[%s445 + $0x70] sm:$0xff] %v11011
      %11445 = vst [vmem:[%s445 + $0x78] sm:$0xff] %v11013
      %11446 = vst [vmem:[%s445 + $0x80] sm:$0xff] %v11015
      %11447 = vst [vmem:[%s445 + $0x88] sm:$0xff] %v11017
      %11448 = vst [vmem:[%s445 + $0x90] sm:$0xff] %v11019
      %11449 = vst [vmem:[%s445 + $0x98] sm:$0xff] %v11021
      %11450 = vst.msk [vmem:[%s445 + $0xa0] sm:$0xff] %vm3684, %v11023
      %11451 = vst [vmem:[%s445 + $0xa8] sm:$0xff] %v11025
      %11452 = vst [vmem:[%s445 + $0xb0] sm:$0xff] %v11027
      %11453 = vst [vmem:[%s445 + $0xb8] sm:$0xff] %v11029
      %11454 = vst [vmem:[%s445 + $0xc0] sm:$0xff] %v11031
      %11455 = vst [vmem:[%s445 + $0xc8] sm:$0xff] %v11033
      %11456 = vst [vmem:[%s445 + $0xd0] sm:$0xff] %v11035
      %11457 = vst.msk [vmem:[%s445 + $0xd8] sm:$0xff] %vm3684, %v11037
      %11458 = vst [vmem:[%s445 + $0xe0] sm:$0xff] %v11039
      %11459 = vst [vmem:[%s445 + $0xe8] sm:$0xff] %v11041
      %11460 = vst [vmem:[%s445 + $0xf0] sm:$0xff] %v11043
      %11461 = vst [vmem:[%s445 + $0xf8] sm:$0xff] %v11045
      %11462 = vst [vmem:[%s445 + $0x100] sm:$0xff] %v11047
      %11463 = vst [vmem:[%s445 + $0x108] sm:$0xff] %v11049
      %11464 = vst.msk [vmem:[%s445 + $0x110] sm:$0xff] %vm3684, %v11051
      %11465 = vst [vmem:[%s445 + $0x118] sm:$0xff] %v11053
      %11466 = vst [vmem:[%s445 + $0x120] sm:$0xff] %v11055
      %11467 = vst [vmem:[%s445 + $0x128] sm:$0xff] %v11057
      %11468 = vst [vmem:[%s445 + $0x130] sm:$0xff] %v11059
      %11469 = vst [vmem:[%s445 + $0x138] sm:$0xff] %v11061
      %11470 = vst [vmem:[%s445 + $0x140] sm:$0xff] %v11063
      %11471 = vst.msk [vmem:[%s445 + $0x148] sm:$0xff] %vm3684, %v11065
      %11472 = vst [vmem:[%s445 + $0x150] sm:$0xff] %v11067
      %11473 = vst [vmem:[%s445 + $0x158] sm:$0xff] %v11069
      %11474 = vst [vmem:[%s445 + $0x160] sm:$0xff] %v11071
      %11475 = vst [vmem:[%s445 + $0x168] sm:$0xff] %v11073
      %11476 = vst [vmem:[%s445 + $0x170] sm:$0xff] %v11075
      %11477 = vst [vmem:[%s445 + $0x178] sm:$0xff] %v11077
      %11478 = vst.msk [vmem:[%s445 + $0x180] sm:$0xff] %vm3684, %v11079
      %11479 = vst [vmem:[%s445 + $0x188] sm:$0xff] %v11081
      %11480 = vst [vmem:[%s445 + $0x190] sm:$0xff] %v11083
      %11481 = vst [vmem:[%s445 + $0x198] sm:$0xff] %v11085
      %11482 = vst [vmem:[%s445 + $0x1a0] sm:$0xff] %v11087
      %11483 = vst [vmem:[%s445 + $0x1a8] sm:$0xff] %v11089
      %11484 = vst [vmem:[%s445 + $0x1b0] sm:$0xff] %v11091
      %11485 = vst.msk [vmem:[%s445 + $0x1b8] sm:$0xff] %vm3684, %v11093
      %11486 = vst [vmem:[%s445 + $0x1c0] sm:$0xff] %v11095
      %11487 = vst [vmem:[%s445 + $0x1c8] sm:$0xff] %v11097
      %11488 = vst [vmem:[%s445 + $0x1d0] sm:$0xff] %v11099
      %11489 = vst [vmem:[%s445 + $0x1d8] sm:$0xff] %v11101
      %11490 = vst [vmem:[%s445 + $0x1e0] sm:$0xff] %v11103
      %11491 = vst [vmem:[%s445 + $0x1e8] sm:$0xff] %v11105
      %11492 = vst.msk [vmem:[%s445 + $0x1f0] sm:$0xff] %vm3684, %v11107
      %11493 = vst [vmem:[%s445 + $0x1f8] sm:$0xff] %v11109
      %11494 = vst [vmem:[%s445 + $0x200] sm:$0xff] %v11111
      %11495 = vst [vmem:[%s445 + $0x208] sm:$0xff] %v11113
      %11496 = vst [vmem:[%s445 + $0x210] sm:$0xff] %v11115
      %11497 = vst [vmem:[%s445 + $0x218] sm:$0xff] %v11117
      %11498 = vst [vmem:[%s445 + $0x220] sm:$0xff] %v11119
      %11499 = vst.msk [vmem:[%s445 + $0x228] sm:$0xff] %vm3684, %v11121
      %11500 = vst [vmem:[%s445 + $0x230] sm:$0xff] %v11123
      %11501 = vst [vmem:[%s445 + $0x238] sm:$0xff] %v11125
      %11502 = vst [vmem:[%s445 + $0x240] sm:$0xff] %v11127
      %11503 = vst [vmem:[%s445 + $0x248] sm:$0xff] %v11129
      %11504 = vst [vmem:[%s445 + $0x250] sm:$0xff] %v11131
      %11505 = vst [vmem:[%s445 + $0x258] sm:$0xff] %v11133
      %11506 = vst.msk [vmem:[%s445 + $0x260] sm:$0xff] %vm3684, %v11135
      %11507 = vst [vmem:[%s445 + $0x268] sm:$0xff] %v11137
      %11508 = vst [vmem:[%s445 + $0x270] sm:$0xff] %v11139
      %11509 = vst [vmem:[%s445 + $0x278] sm:$0xff] %v11141
      %11510 = vst [vmem:[%s445 + $0x280] sm:$0xff] %v11143
      %11511 = vst [vmem:[%s445 + $0x288] sm:$0xff] %v11145
      %11512 = vst [vmem:[%s445 + $0x290] sm:$0xff] %v11147
      %11513 = vst.msk [vmem:[%s445 + $0x298] sm:$0xff] %vm3684, %v11149
      %11514 = vst [vmem:[%s445 + $0x2a0] sm:$0xff] %v11151
      %11515 = vst [vmem:[%s445 + $0x2a8] sm:$0xff] %v11153
      %11516 = vst [vmem:[%s445 + $0x2b0] sm:$0xff] %v11155
      %11517 = vst [vmem:[%s445 + $0x2b8] sm:$0xff] %v11157
      %11518 = vst [vmem:[%s445 + $0x2c0] sm:$0xff] %v11159
      %11519 = vst [vmem:[%s445 + $0x2c8] sm:$0xff] %v11161
      %11520 = vst.msk [vmem:[%s445 + $0x2d0] sm:$0xff] %vm3684, %v11163
      %11521 = vst [vmem:[%s445 + $0x2d8] sm:$0xff] %v11165
      %11522 = vst [vmem:[%s445 + $0x2e0] sm:$0xff] %v11167
      %11523 = vst [vmem:[%s445 + $0x2e8] sm:$0xff] %v11169
      %11524 = vst [vmem:[%s445 + $0x2f0] sm:$0xff] %v11171
      %11525 = vst [vmem:[%s445 + $0x2f8] sm:$0xff] %v11173
      %11526 = vst [vmem:[%s445 + $0x300] sm:$0xff] %v11175
      %11527 = vst.msk [vmem:[%s445 + $0x308] sm:$0xff] %vm3684, %v11177
      %11528 = vst [vmem:[%s445 + $0x310] sm:$0xff] %v11179
      %11529 = vst [vmem:[%s445 + $0x318] sm:$0xff] %v11181
      %11530 = vst [vmem:[%s445 + $0x320] sm:$0xff] %v11183
      %11531 = vst [vmem:[%s445 + $0x328] sm:$0xff] %v11185
      %11532 = vst [vmem:[%s445 + $0x330] sm:$0xff] %v11187
      %11533 = vst [vmem:[%s445 + $0x338] sm:$0xff] %v11189
      %11534 = vst.msk [vmem:[%s445 + $0x340] sm:$0xff] %vm3684, %v11191
      %11535 = vst [vmem:[%s445 + $0x348] sm:$0xff] %v11193
      %11536 = vst [vmem:[%s445 + $0x350] sm:$0xff] %v11195
      %11537 = vst [vmem:[%s445 + $0x358] sm:$0xff] %v11197
      %11538 = vst [vmem:[%s445 + $0x360] sm:$0xff] %v11199
      %11539 = vst [vmem:[%s445 + $0x368] sm:$0xff] %v11201
      %11540 = vst [vmem:[%s445 + $0x370] sm:$0xff] %v11203
      %11541 = vst.msk [vmem:[%s445 + $0x378] sm:$0xff] %vm3684, %v11205
      %11542 = vst [vmem:[%s445 + $0x380] sm:$0xff] %v11207
      %11543 = vst [vmem:[%s445 + $0x388] sm:$0xff] %v11209
      %11544 = vst [vmem:[%s445 + $0x390] sm:$0xff] %v11211
      %11545 = vst [vmem:[%s445 + $0x398] sm:$0xff] %v11213
      %11546 = vst [vmem:[%s445 + $0x3a0] sm:$0xff] %v11215
      %11547 = vst [vmem:[%s445 + $0x3a8] sm:$0xff] %v11217
      %11548 = vst.msk [vmem:[%s445 + $0x3b0] sm:$0xff] %vm3684, %v11219
      %11549 = vst [vmem:[%s445 + $0x3b8] sm:$0xff] %v11221
      %11550 = vst [vmem:[%s445 + $0x3c0] sm:$0xff] %v11223
      %11551 = vst [vmem:[%s445 + $0x3c8] sm:$0xff] %v11225
      %11552 = vst [vmem:[%s445 + $0x3d0] sm:$0xff] %v11227
      %11553 = vst [vmem:[%s445 + $0x3d8] sm:$0xff] %v11229
      %11554 = vst [vmem:[%s445 + $0x3e0] sm:$0xff] %v11231
      %11555 = vst.msk [vmem:[%s445 + $0x3e8] sm:$0xff] %vm3684, %v11233
      %11556 = vst [vmem:[%s445 + $0x3f0] sm:$0xff] %v11235
      %11557 = vst [vmem:[%s445 + $0x3f8] sm:$0xff] %v11237
      %11558 = vst [vmem:[%s445 + $0x400] sm:$0xff] %v11239
      %11559 = vst [vmem:[%s445 + $0x408] sm:$0xff] %v11241
      %11560 = vst [vmem:[%s445 + $0x410] sm:$0xff] %v11243
      %11561 = vst [vmem:[%s445 + $0x418] sm:$0xff] %v11245
      %11562 = vst.msk [vmem:[%s445 + $0x420] sm:$0xff] %vm3684, %v11247
      %11563 = vst [vmem:[%s445 + $0x428] sm:$0xff] %v11249
      %11564 = vst [vmem:[%s445 + $0x430] sm:$0xff] %v11251
      %11565 = vst [vmem:[%s445 + $0x438] sm:$0xff] %v11253
      %11566 = vst [vmem:[%s445 + $0x440] sm:$0xff] %v11255
      %11567 = vst [vmem:[%s445 + $0x448] sm:$0xff] %v11257
      %11568 = vst [vmem:[%s445 + $0x450] sm:$0xff] %v11259
      %11569 = vst.msk [vmem:[%s445 + $0x458] sm:$0xff] %vm3684, %v11261
      %11570 = vst [vmem:[%s445 + $0x460] sm:$0xff] %v11263
      %11571 = vst [vmem:[%s445 + $0x468] sm:$0xff] %v11265
      %11572 = vst [vmem:[%s445 + $0x470] sm:$0xff] %v11267
      %11573 = vst [vmem:[%s445 + $0x478] sm:$0xff] %v11269
      %11574 = vst [vmem:[%s445 + $0x480] sm:$0xff] %v11271
      %11575 = vst [vmem:[%s445 + $0x488] sm:$0xff] %v11273
      %11576 = vst.msk [vmem:[%s445 + $0x490] sm:$0xff] %vm3684, %v11275
      %11577 = vst [vmem:[%s445 + $0x498] sm:$0xff] %v11277
      %11578 = vst [vmem:[%s445 + $0x4a0] sm:$0xff] %v11279
      %11579 = vst [vmem:[%s445 + $0x4a8] sm:$0xff] %v11281
      %11580 = vst [vmem:[%s445 + $0x4b0] sm:$0xff] %v11283
      %11581 = vst [vmem:[%s445 + $0x4b8] sm:$0xff] %v11285
      %11582 = vst [vmem:[%s445 + $0x4c0] sm:$0xff] %v11287
      %11583 = vst.msk [vmem:[%s445 + $0x4c8] sm:$0xff] %vm3684, %v11289
      %11584 = vst [vmem:[%s445 + $0x4d0] sm:$0xff] %v11291
      %11585 = vst [vmem:[%s445 + $0x4d8] sm:$0xff] %v11293
      %11586 = vst [vmem:[%s445 + $0x4e0] sm:$0xff] %v11295
      %11587 = vst [vmem:[%s445 + $0x4e8] sm:$0xff] %v11297
      %11588 = vst [vmem:[%s445 + $0x4f0] sm:$0xff] %v11299
      %11589 = vst [vmem:[%s445 + $0x4f8] sm:$0xff] %v11301
      %11590 = vst.msk [vmem:[%s445 + $0x500] sm:$0xff] %vm3684, %v11303
      %11591 = vst [vmem:[%s445 + $0x508] sm:$0xff] %v11305
      %11592 = vst [vmem:[%s445 + $0x510] sm:$0xff] %v11307
      %11593 = vst [vmem:[%s445 + $0x518] sm:$0xff] %v11309
      %11594 = vst [vmem:[%s445 + $0x520] sm:$0xff] %v11311
      %11595 = vst [vmem:[%s445 + $0x528] sm:$0xff] %v11313
      %11596 = vst [vmem:[%s445 + $0x530] sm:$0xff] %v11315
      %11597 = vst.msk [vmem:[%s445 + $0x538] sm:$0xff] %vm3684, %v11317
      %11598 = vst [vmem:[%s445 + $0x540] sm:$0xff] %v11319
      %11599 = vst [vmem:[%s445 + $0x548] sm:$0xff] %v11321
      %11600 = vst [vmem:[%s445 + $0x550] sm:$0xff] %v11323
      %11601 = vst [vmem:[%s445 + $0x558] sm:$0xff] %v11325
      %11602 = vst [vmem:[%s445 + $0x560] sm:$0xff] %v11327
      %11603 = vst [vmem:[%s445 + $0x568] sm:$0xff] %v11329
      %11604 = vst.msk [vmem:[%s445 + $0x570] sm:$0xff] %vm3684, %v11331
      %11605 = vst [vmem:[%s445 + $0x578] sm:$0xff] %v11333
      %11606 = vst [vmem:[%s445 + $0x580] sm:$0xff] %v11335
      %11607 = vst [vmem:[%s445 + $0x588] sm:$0xff] %v11337
      %11608 = vst [vmem:[%s445 + $0x590] sm:$0xff] %v11339
      %11609 = vst [vmem:[%s445 + $0x598] sm:$0xff] %v11341
      %11610 = vst [vmem:[%s445 + $0x5a0] sm:$0xff] %v11343
      %11611 = vst.msk [vmem:[%s445 + $0x5a8] sm:$0xff] %vm3684, %v11345
      %11612 = vst [vmem:[%s445 + $0x5b0] sm:$0xff] %v11347
      %11613 = vst [vmem:[%s445 + $0x5b8] sm:$0xff] %v11349
      %11614 = vst [vmem:[%s445 + $0x5c0] sm:$0xff] %v11351
      %11615 = vst [vmem:[%s445 + $0x5c8] sm:$0xff] %v11353
      %11616 = vst [vmem:[%s445 + $0x5d0] sm:$0xff] %v11355
      %11617 = vst [vmem:[%s445 + $0x5d8] sm:$0xff] %v11357
      %11618 = vst.msk [vmem:[%s445 + $0x5e0] sm:$0xff] %vm3684, %v11359
      %11619 = vst [vmem:[%s445 + $0x5e8] sm:$0xff] %v11361
      %11620 = vst [vmem:[%s445 + $0x5f0] sm:$0xff] %v11363
      %11621 = vst [vmem:[%s445 + $0x5f8] sm:$0xff] %v11365
      %11622 = vst [vmem:[%s445 + $0x600] sm:$0xff] %v11367
      %11623 = vst [vmem:[%s445 + $0x608] sm:$0xff] %v11369
      %11624 = vst [vmem:[%s445 + $0x610] sm:$0xff] %v11371
      %11625 = vst.msk [vmem:[%s445 + $0x618] sm:$0xff] %vm3684, %v11373
      %11626 = vst [vmem:[%s445 + $0x620] sm:$0xff] %v11375
      %11627 = vst [vmem:[%s445 + $0x628] sm:$0xff] %v11377
      %11628 = vst [vmem:[%s445 + $0x630] sm:$0xff] %v11379
      %11629 = vst [vmem:[%s445 + $0x638] sm:$0xff] %v11381
      %11630 = vst [vmem:[%s445 + $0x640] sm:$0xff] %v11383
      %11631 = vst [vmem:[%s445 + $0x648] sm:$0xff] %v11385
      %11632 = vst.msk [vmem:[%s445 + $0x650] sm:$0xff] %vm3684, %v11387
      %11633 = vst [vmem:[%s445 + $0x658] sm:$0xff] %v11389
      %11634 = vst [vmem:[%s445 + $0x660] sm:$0xff] %v11391
      %11635 = vst [vmem:[%s445 + $0x668] sm:$0xff] %v11393
      %11636 = vst [vmem:[%s445 + $0x670] sm:$0xff] %v11395
      %11637 = vst [vmem:[%s445 + $0x678] sm:$0xff] %v11397
      %11638 = vst [vmem:[%s445 + $0x680] sm:$0xff] %v11399
      %11639 = vst.msk [vmem:[%s445 + $0x688] sm:$0xff] %vm3684, %v11401
      %11640 = vst [vmem:[%s445 + $0x690] sm:$0xff] %v11403
      %11641 = vst [vmem:[%s445 + $0x698] sm:$0xff] %v11405
      %11642 = vst [vmem:[%s445 + $0x6a0] sm:$0xff] %v11407
      %11643 = vst [vmem:[%s445 + $0x6a8] sm:$0xff] %v11409
      %11644 = vst [vmem:[%s445 + $0x6b0] sm:$0xff] %v11411
      %11645 = vst [vmem:[%s445 + $0x6b8] sm:$0xff] %v11413
      %11646 = vst.msk [vmem:[%s445 + $0x6c0] sm:$0xff] %vm3684, %v11415
      %11647 = vst [vmem:[%s445 + $0x6c8] sm:$0xff] %v11417
      %11648 = vst [vmem:[%s445 + $0x6d0] sm:$0xff] %v11419
      %11649 = vst [vmem:[%s445 + $0x6d8] sm:$0xff] %v11421
      %11650 = vst [vmem:[%s445 + $0x6e0] sm:$0xff] %v11423
      %11651 = vst [vmem:[%s445 + $0x6e8] sm:$0xff] %v11425
      %11652 = vst [vmem:[%s445 + $0x6f0] sm:$0xff] %v11427
      %11653 = vst.msk [vmem:[%s445 + $0x6f8] sm:$0xff] %vm3684, %v11429
      %s11654 = smul.u32 32, %s23
      %p11655 = scmp.lt.s32.totalorder %s11654, 63
      %s11656 = scalar_select %p11655, %s11654, 63
      %s11657 = smul.addr %s11656, 7
      %s11658 = smul.addr %s11657, 8
      %s11659 = scalar_lea.vmem %s10, %s11658
      %s11660 = smul.u32 32, %s23
      %p11661 = scmp.lt.s32.totalorder %s11660, 63
      %s11662 = scalar_select %p11661, %s11660, 63
      %s11663 = smul.addr %s11662, 8
      %s11664 = scalar_lea.vmem %s11, %s11663
      // Predicated region
      $region61: #{cvae_forward.1} parent=59 // pred_check
        %p11665 = pneg %p266
      $region62: #{cvae_forward.1} parent=59 // pred_check_branch
        %11667 = sbr.rel (%p11665) target = $region64
      $region63: #{cvae_forward.1} parent=59 // pred_region
        %s11668 = smul.u32 32, %s23
      $region64: #{cvae_forward.1} parent=59 // pred_fallthru
        _
      // Predicated region
      $region65: #{cvae_forward.1} parent=59 // pred_check
        %p11669 = pneg %p292
      $region66: #{cvae_forward.1} parent=59 // pred_check_branch
        %11671 = sbr.rel (%p11669) target = $region68
      $region67: #{cvae_forward.1} parent=59 // pred_region
        %s11672 = smul.u32 32, %s23
      $region68: #{cvae_forward.1} parent=59 // pred_fallthru
        _
    $region60: #{cvae_forward.1} parent=5 // pred_fallthru
      _
    %p11673 = scmp.le.s32.totalorder 2, %s18
    // Predicated region
    $region69: #{cvae_forward.1} parent=5 // pred_check
      %p11674 = pneg %p11673
    $region70: #{cvae_forward.1} parent=5 // pred_check_branch
      %11676 = sbr.rel (%p11674) target = $region72
    $region71: #{cvae_forward.1} parent=5 // pred_region
      %s11677 = ssub.s32 %s18, 2
      // Predicated region
      $region73: #{cvae_forward.1} parent=71 // pred_check
        %p11678 = pneg %p272
      $region74: #{cvae_forward.1} parent=71 // pred_check_branch
        %11680 = sbr.rel (%p11678) target = $region76
      $region75: #{cvae_forward.1} parent=71 // pred_region
        %s11681 = smul.u32 32, %s24
        %p11682 = scmp.lt.s32.totalorder %s11681, 63
        %s11683 = scalar_select %p11682, %s11681, 63
        %s11684 = smul.addr %s11683, 7
        %s11685 = smul.addr %s11684, 8
        %s11686 = scalar_lea.vmem %s10, %s11685
      $region76: #{cvae_forward.1} parent=71 // pred_fallthru
        _
      // Predicated region
      $region77: #{cvae_forward.1} parent=71 // pred_check
        %p11687 = pneg %p298
      $region78: #{cvae_forward.1} parent=71 // pred_check_branch
        %11689 = sbr.rel (%p11687) target = $region80
      $region79: #{cvae_forward.1} parent=71 // pred_region
        %s11690 = smul.u32 32, %s24
        %p11691 = scmp.lt.s32.totalorder %s11690, 63
        %s11692 = scalar_select %p11691, %s11690, 63
        %s11693 = smul.addr %s11692, 8
        %s11694 = scalar_lea.vmem %s11, %s11693
      $region80: #{cvae_forward.1} parent=71 // pred_fallthru
        _
    $region72: #{cvae_forward.1} parent=5 // pred_fallthru
      _
  $region6: #{cvae_forward.1} parent=0 // loop_footer
    %s22 = sadd.s32 1, %s18
  $region7: #{cvae_forward.1} parent=0 // loop_footer_branch
    %17 = sbr.rel target = $region3
  $region8: #{cvae_forward.1} parent=0 // loop_exit
    _

</llo_original>
